<compile_context>
chip_gen: v5e
topology: v5e:2x2
jax: 0.10.0
libtpu: 0.0.40
codegen_flags: <defaults>
</compile_context>

<pallas_src>
import jax
import jax.numpy as jnp
import numpy as np
from jax.experimental import pallas as pl
from jax.experimental.pallas import tpu as pltpu

EPS = 1e-5
DIMS = [2560, 1280, 320, 80, 20, 8]
TK = 1280  # K-tile for the layer-1 reduction (2560 / 1280 = 2 grid steps)

# Packed small-parameter layout: row 0 = gammas, row 1 = betas, row 2 = fc5
# bias.  Segment offsets are multiples of 128 so in-kernel loads are
# lane-aligned; segment widths are padded to multiples of 128.
_PK_OFFS = (0, 1280, 1664, 1792)   # bn1..bn4 gamma/beta segment starts
_PK_PADS = (1280, 384, 128, 128)   # padded segment widths
_PK_B5_OFF = 1920                  # fc5 bias segment start
_PK_WIDTH = 2048


def _bn_relu(h, gamma, beta):
    """Training-mode BatchNorm1d + ReLU, all in float32.

    Reuses the centred activation so the wide (B, F) pass is one FMA + max.
    BN's per-feature normalization makes the result invariant to any positive
    per-feature scale (and any per-feature additive bias) on `h` -- this is
    what lets the kernel skip both the fc biases and the int8 dequant scales.
    """
    mean = jnp.mean(h, axis=0, keepdims=True)
    c = h - mean
    var = jnp.mean(c * c, axis=0, keepdims=True)          # biased variance
    scale = gamma * jax.lax.rsqrt(var + EPS)               # (1, F)
    return jnp.maximum(c * scale + beta, 0.0)


def mlp_kernel(x_ref, w1_ref, w2_ref, w3_ref, w4_ref, w5_ref, pk_ref,
               out_ref, acc_ref):
    k = pl.program_id(0)

    @pl.when(k == 0)
    def _():
        acc_ref[...] = jnp.zeros_like(acc_ref)

    # Layer-1 K-tile.  W1 arrives as int8 (per-output-channel scales are
    # absorbed by BN1, so no dequant multiply is needed); cast to bf16 in
    # VMEM and run bf16 x bf16 on the MXU with f32 accumulation.
    acc_ref[...] += jnp.dot(
        x_ref[...].astype(jnp.bfloat16),
        w1_ref[...].astype(jnp.bfloat16),
        preferred_element_type=jnp.float32)

    @pl.when(k == pl.num_programs(0) - 1)
    def _():
        # Unpack the small per-feature parameters (lane-aligned loads, then
        # value-level slices down to the true feature counts).
        def gb(i):
            off, pad = _PK_OFFS[i], _PK_PADS[i]
            f = DIMS[i + 1]
            seg = pk_ref[:, off:off + pad]
            return seg[0:1, :f], seg[1:2, :f]

        g1, be1 = gb(0)
        g2, be2 = gb(1)
        g3, be3 = gb(2)
        g4, be4 = gb(3)
        b5 = pk_ref[2:3, _PK_B5_OFF:_PK_B5_OFF + 128][:, :DIMS[5]]

        # Note: fc1..fc4 biases are omitted -- training-mode BN subtracts the
        # batch mean, which cancels any additive per-feature bias exactly.
        h = _bn_relu(acc_ref[...], g1, be1)
        h = jnp.dot(h.astype(jnp.bfloat16), w2_ref[...],
                    preferred_element_type=jnp.float32)
        h = _bn_relu(h, g2, be2)
        h = jnp.dot(h.astype(jnp.bfloat16), w3_ref[...],
                    preferred_element_type=jnp.float32)
        h = _bn_relu(h, g3, be3)
        h = jnp.dot(h.astype(jnp.bfloat16), w4_ref[...],
                    preferred_element_type=jnp.float32)
        h = _bn_relu(h, g4, be4)
        out_ref[...] = (
            jnp.dot(h.astype(jnp.bfloat16), w5_ref[...],
                    preferred_element_type=jnp.float32) + b5)


@jax.jit
def model_pvpmulti_forward(x, w1, w2, w3, w4, w5, packed):
    """x: (B, 2560) f32.  w1: (2560, 1280) int8 (per-column scales absorbed by
    BN1).  w2..w5: bf16 weights (in_features, out_features).
    packed: (3, 2048) f32 packed gammas/betas/b5."""
    B = x.shape[0]
    n_k = DIMS[0] // TK
    grid_spec = pltpu.PrefetchScalarGridSpec(
        num_scalar_prefetch=0,
        grid=(n_k,),
        in_specs=[
            pl.BlockSpec((B, TK), lambda k: (0, k)),             # x K-tiles
            pl.BlockSpec((TK, DIMS[1]), lambda k: (k, 0)),       # W1 K-tiles (int8)
            pl.BlockSpec((DIMS[1], DIMS[2]), lambda k: (0, 0)),  # W2 resident
            pl.BlockSpec((DIMS[2], DIMS[3]), lambda k: (0, 0)),  # W3 resident
            pl.BlockSpec((DIMS[3], DIMS[4]), lambda k: (0, 0)),  # W4 resident
            pl.BlockSpec((DIMS[4], DIMS[5]), lambda k: (0, 0)),  # W5 resident
            pl.BlockSpec((3, _PK_WIDTH), lambda k: (0, 0)),      # packed small params
        ],
        out_specs=pl.BlockSpec((B, DIMS[5]), lambda k: (0, 0)),
        scratch_shapes=[pltpu.VMEM((B, DIMS[1]), jnp.float32)],  # layer-1 acc
    )
    return pl.pallas_call(
        mlp_kernel,
        out_shape=jax.ShapeDtypeStruct((B, DIMS[5]), jnp.float32),
        grid_spec=grid_spec,
        compiler_params=pltpu.CompilerParams(
            dimension_semantics=("arbitrary",),   # K reduction: sequential
            vmem_limit_bytes=32 << 20,            # fits v7x's 64 MiB physical VMEM
        ),
    )(x, w1, w2, w3, w4, w5, packed)


def make_params(key):
    """Deterministic synthetic parameters with the module's __init__ shapes."""
    params = {}
    for i in range(4):
        key, kw, kb, kg, kbe = jax.random.split(key, 5)
        fi, fo = DIMS[i], DIMS[i + 1]
        params[f"w{i+1}"] = jax.random.normal(kw, (fi, fo), jnp.float32) / np.sqrt(fi)
        params[f"b{i+1}"] = 0.01 * jax.random.normal(kb, (1, fo), jnp.float32)
        params[f"g{i+1}"] = 1.0 + 0.1 * jax.random.normal(kg, (1, fo), jnp.float32)
        params[f"be{i+1}"] = 0.1 * jax.random.normal(kbe, (1, fo), jnp.float32)
    key, kw, kb = jax.random.split(key, 3)
    params["w5"] = jax.random.normal(kw, (DIMS[4], DIMS[5]), jnp.float32) / np.sqrt(DIMS[4])
    params["b5"] = 0.01 * jax.random.normal(kb, (1, DIMS[5]), jnp.float32)
    return params


def pack_kernel_inputs(params):
    """int8 W1 (per-output-channel max-abs quant), bf16 W2..W5, and one packed
    (3, 2048) f32 array of small params.

    The per-channel W1 scales are intentionally NOT shipped to the kernel:
    training-mode BatchNorm1d cancels any positive per-feature scaling of its
    input, so the raw int8 values can feed the MXU directly.
    """
    w1 = np.asarray(params["w1"], np.float32)
    maxabs = np.max(np.abs(w1), axis=0, keepdims=True)
    scale = np.maximum(maxabs, 1e-30) / 127.0
    w1_q = np.clip(np.rint(w1 / scale), -127, 127).astype(np.int8)

    ws = (jnp.asarray(w1_q),) + tuple(
        params[f"w{i}"].astype(jnp.bfloat16) for i in range(2, 6))

    pk = np.zeros((3, _PK_WIDTH), np.float32)
    for i, off in enumerate(_PK_OFFS):
        f = DIMS[i + 1]
        pk[0, off:off + f] = np.asarray(params[f"g{i+1}"]).reshape(-1)
        pk[1, off:off + f] = np.asarray(params[f"be{i+1}"]).reshape(-1)
    pk[2, _PK_B5_OFF:_PK_B5_OFF + DIMS[5]] = np.asarray(params["b5"]).reshape(-1)
    return ws + (jnp.asarray(pk),)


def kernel_math_reference(x, w1_q, w2, w3, w4, w5, params):
    """Pure-JAX replica of the kernel's exact arithmetic (int8 W1 without
    dequant, bf16 W2..W5, no fc1..fc4 biases, f32 training-mode BN)."""
    def bn_relu(h, g, b):
        mean = jnp.mean(h, axis=0, keepdims=True)
        c = h - mean
        var = jnp.mean(c * c, axis=0, keepdims=True)
        return jnp.maximum(c * (g * jax.lax.rsqrt(var + EPS)) + b, 0.0)

    h = jnp.dot(x.astype(jnp.bfloat16), w1_q.astype(jnp.bfloat16),
                preferred_element_type=jnp.float32)
    h = bn_relu(h, params["g1"], params["be1"])
    h = jnp.dot(h.astype(jnp.bfloat16), w2, preferred_element_type=jnp.float32)
    h = bn_relu(h, params["g2"], params["be2"])
    h = jnp.dot(h.astype(jnp.bfloat16), w3, preferred_element_type=jnp.float32)
    h = bn_relu(h, params["g3"], params["be3"])
    h = jnp.dot(h.astype(jnp.bfloat16), w4, preferred_element_type=jnp.float32)
    h = bn_relu(h, params["g4"], params["be4"])
    return (jnp.dot(h.astype(jnp.bfloat16), w5,
                    preferred_element_type=jnp.float32) + params["b5"])


def f32_model_reference(x, params):
    """The original float32 PyTorch-semantics forward (training-mode BN,
    biased batch variance, eps=1e-5, fc biases included)."""
    h = x
    for i in range(1, 5):
        h = h @ params[f"w{i}"] + params[f"b{i}"]
        mean = jnp.mean(h, axis=0, keepdims=True)
        var = jnp.mean((h - mean) ** 2, axis=0, keepdims=True)
        h = jnp.maximum(
            (h - mean) * jax.lax.rsqrt(var + EPS) * params[f"g{i}"]
            + params[f"be{i}"], 0.0)
    return h @ params["w5"] + params["b5"]


if __name__ == "__main__":
    key = jax.random.PRNGKey(0)
    key, kx, kp = jax.random.split(key, 3)

    B = 8  # small batch (BatchNorm1d needs B > 1 in training mode)
    x = jax.random.normal(kx, (B, DIMS[0]), jnp.float32)
    params = make_params(kp)
    kernel_inputs = pack_kernel_inputs(params)

    out = model_pvpmulti_forward(x, *kernel_inputs)
    out = np.asarray(jax.block_until_ready(out))

    # (1) Tight check: kernel vs. pure-JAX replica of the same arithmetic.
    ref_q = np.asarray(kernel_math_reference(
        x, kernel_inputs[0], kernel_inputs[1], kernel_inputs[2],
        kernel_inputs[3], kernel_inputs[4], params))
    np.testing.assert_allclose(out, ref_q, rtol=2e-3, atol=2e-3)

    # (2) Loose accuracy check vs. the original float32 model (quantization is
    # an intentional approximation; typical relative error here is ~1-3%).
    ref_f32 = np.asarray(f32_model_reference(x, params))
    rel_err = np.linalg.norm(out - ref_f32) / (np.linalg.norm(ref_f32) + 1e-12)
    assert rel_err < 0.1, f"quantized kernel deviates from f32 model: {rel_err}"

    assert out.shape == (B, DIMS[5])
    print("KERNEL_OK")
</pallas_src>

<mosaic_0001>
module attributes {stable_mosaic.version = 11 : i64} {
  func.func @mlp_kernel(%arg0: i32, %arg1: memref<8x1280xf32, #tpu.memory_space<vmem>>, %arg2: memref<1280x1280xi8, #tpu.memory_space<vmem>>, %arg3: memref<1280x320xbf16, #tpu.memory_space<vmem>>, %arg4: memref<320x80xbf16, #tpu.memory_space<vmem>>, %arg5: memref<80x20xbf16, #tpu.memory_space<vmem>>, %arg6: memref<20x8xbf16, #tpu.memory_space<vmem>>, %arg7: memref<3x2048xf32, #tpu.memory_space<vmem>>, %arg8: memref<8x8xf32, #tpu.memory_space<vmem>>, %arg9: memref<8x1280xf32, #tpu.memory_space<vmem>>) attributes {dimension_semantics = [#tpu.dimension_semantics<arbitrary>], iteration_bounds = array<i64: 2>, scalar_prefetch = 0 : i64, scratch_operands = 1 : i64, tpu.core_type = #tpu.core_type<tc>, window_params = [{transform_indices = @transform_0, window_bounds = array<i64: 8, 1280>}, {transform_indices = @transform_1, window_bounds = array<i64: 1280, 1280>}, {pipeline_mode = #tpu.pipeline_mode<synchronous>, transform_indices = @transform_2, window_bounds = array<i64: 1280, 320>}, {pipeline_mode = #tpu.pipeline_mode<synchronous>, transform_indices = @transform_3, window_bounds = array<i64: 320, 80>}, {pipeline_mode = #tpu.pipeline_mode<synchronous>, transform_indices = @transform_4, window_bounds = array<i64: 80, 20>}, {pipeline_mode = #tpu.pipeline_mode<synchronous>, transform_indices = @transform_5, window_bounds = array<i64: 20, 8>}, {pipeline_mode = #tpu.pipeline_mode<synchronous>, transform_indices = @transform_6, window_bounds = array<i64: 3, 2048>}, {pipeline_mode = #tpu.pipeline_mode<synchronous>, transform_indices = @transform_7, window_bounds = array<i64: 8, 8>}]} {
    %c0_i32 = arith.constant 0 : i32
    %0 = arith.cmpi eq, %arg0, %c0_i32 : i32
    %1 = arith.extui %0 : i1 to i32
    %c0_i32_0 = arith.constant 0 : i32
    %2 = arith.cmpi ne, %1, %c0_i32_0 : i32
    scf.if %2 {
      %cst_9 = arith.constant 0.000000e+00 : f32
      %14 = vector.broadcast %cst_9 : f32 to vector<8x1280xf32>
      %c0_10 = arith.constant 0 : index
      %c0_11 = arith.constant 0 : index
      %15 = vector.load %arg9[%c0_10, %c0_11] : memref<8x1280xf32, #tpu.memory_space<vmem>>, vector<8x1280xf32>
      tpu.vector_store %arg9[%c0_10, %c0_11], %14 {strides = array<i32>} : memref<8x1280xf32, #tpu.memory_space<vmem>>, vector<8x1280xf32>,
    } else {
    }
    %c0 = arith.constant 0 : index
    %c0_1 = arith.constant 0 : index
    %3 = vector.load %arg9[%c0, %c0_1] : memref<8x1280xf32, #tpu.memory_space<vmem>>, vector<8x1280xf32>
    %c0_2 = arith.constant 0 : index
    %c0_3 = arith.constant 0 : index
    %4 = vector.load %arg1[%c0_2, %c0_3] : memref<8x1280xf32, #tpu.memory_space<vmem>>, vector<8x1280xf32>
    %5 = arith.truncf %4 : vector<8x1280xf32> to vector<8x1280xbf16>
    %c0_4 = arith.constant 0 : index
    %c0_5 = arith.constant 0 : index
    %6 = vector.load %arg2[%c0_4, %c0_5] : memref<1280x1280xi8, #tpu.memory_space<vmem>>, vector<1280x1280xi8>
    %7 = arith.sitofp %6 : vector<1280x1280xi8> to vector<1280x1280xbf16>
    %cst = arith.constant dense<0.000000e+00> : vector<8x1280xf32>
    %8 = tpu.matmul %5, %7, %cst {dimension_numbers = #tpu.dot_dimension_numbers<[1], [0], [0], [1], [0, 0, 1, 1], [], []>} : vector<8x1280xbf16>, vector<1280x1280xbf16>, vector<8x1280xf32> -> vector<8x1280xf32>
    %9 = arith.addf %3, %8 : vector<8x1280xf32>
    %c0_6 = arith.constant 0 : index
    %c0_7 = arith.constant 0 : index
    %10 = vector.load %arg9[%c0_6, %c0_7] : memref<8x1280xf32, #tpu.memory_space<vmem>>, vector<8x1280xf32>
    tpu.vector_store %arg9[%c0_6, %c0_7], %9 {strides = array<i32>} : memref<8x1280xf32, #tpu.memory_space<vmem>>, vector<8x1280xf32>,
    %c1_i32 = arith.constant 1 : i32
    %11 = arith.cmpi eq, %arg0, %c1_i32 : i32
    %12 = arith.extui %11 : i1 to i32
    %c0_i32_8 = arith.constant 0 : i32
    %13 = arith.cmpi ne, %12, %c0_i32_8 : i32
    scf.if %13 {
      %c0_9 = arith.constant 0 : index
      %c0_10 = arith.constant 0 : index
      %14 = vector.load %arg7[%c0_9, %c0_10] : memref<3x2048xf32, #tpu.memory_space<vmem>>, vector<3x1280xf32>
      %15 = vector.extract_strided_slice %14 {offsets = [0, 0], sizes = [1, 1280], strides = [1, 1]} : vector<3x1280xf32> to vector<1x1280xf32>
      %16 = vector.extract_strided_slice %14 {offsets = [1, 0], sizes = [1, 1280], strides = [1, 1]} : vector<3x1280xf32> to vector<1x1280xf32>
      %c0_11 = arith.constant 0 : index
      %c1280 = arith.constant 1280 : index
      %17 = vector.load %arg7[%c0_11, %c1280] : memref<3x2048xf32, #tpu.memory_space<vmem>>, vector<3x384xf32>
      %18 = vector.extract_strided_slice %17 {offsets = [0, 0], sizes = [1, 320], strides = [1, 1]} : vector<3x384xf32> to vector<1x320xf32>
      %19 = vector.extract_strided_slice %17 {offsets = [1, 0], sizes = [1, 320], strides = [1, 1]} : vector<3x384xf32> to vector<1x320xf32>
      %c0_12 = arith.constant 0 : index
      %c1664 = arith.constant 1664 : index
      %20 = vector.load %arg7[%c0_12, %c1664] : memref<3x2048xf32, #tpu.memory_space<vmem>>, vector<3x128xf32>
      %21 = vector.extract_strided_slice %20 {offsets = [0, 0], sizes = [1, 80], strides = [1, 1]} : vector<3x128xf32> to vector<1x80xf32>
      %22 = vector.extract_strided_slice %20 {offsets = [1, 0], sizes = [1, 80], strides = [1, 1]} : vector<3x128xf32> to vector<1x80xf32>
      %c0_13 = arith.constant 0 : index
      %c1792 = arith.constant 1792 : index
      %23 = vector.load %arg7[%c0_13, %c1792] : memref<3x2048xf32, #tpu.memory_space<vmem>>, vector<3x128xf32>
      %24 = vector.extract_strided_slice %23 {offsets = [0, 0], sizes = [1, 20], strides = [1, 1]} : vector<3x128xf32> to vector<1x20xf32>
      %25 = vector.extract_strided_slice %23 {offsets = [1, 0], sizes = [1, 20], strides = [1, 1]} : vector<3x128xf32> to vector<1x20xf32>
      %c2 = arith.constant 2 : index
      %c1920 = arith.constant 1920 : index
      %26 = vector.load %arg7[%c2, %c1920] : memref<3x2048xf32, #tpu.memory_space<vmem>>, vector<1x128xf32>
      %27 = vector.extract_strided_slice %26 {offsets = [0, 0], sizes = [1, 8], strides = [1, 1]} : vector<1x128xf32> to vector<1x8xf32>
      %c0_14 = arith.constant 0 : index
      %c0_15 = arith.constant 0 : index
      %28 = vector.load %arg9[%c0_14, %c0_15] : memref<8x1280xf32, #tpu.memory_space<vmem>>, vector<8x1280xf32>
      %cst_16 = arith.constant dense<0.000000e+00> : vector<1280xf32>
      %29 = vector.multi_reduction <add>, %28, %cst_16 [0] : vector<8x1280xf32> to vector<1280xf32>
      %30 = vector.shape_cast %29 : vector<1280xf32> to vector<1x1280xf32>
      %cst_17 = arith.constant 8.000000e+00 : f32
      %31 = vector.broadcast %cst_17 : f32 to vector<1x1280xf32>
      %32 = arith.divf %30, %31 : vector<1x1280xf32>
      %33 = vector.broadcast %32 : vector<1x1280xf32> to vector<8x1280xf32>
      %34 = arith.subf %28, %33 : vector<8x1280xf32>
      %35 = arith.mulf %34, %34 : vector<8x1280xf32>
      %cst_18 = arith.constant dense<0.000000e+00> : vector<1280xf32>
      %36 = vector.multi_reduction <add>, %35, %cst_18 [0] : vector<8x1280xf32> to vector<1280xf32>
      %37 = vector.shape_cast %36 : vector<1280xf32> to vector<1x1280xf32>
      %cst_19 = arith.constant 8.000000e+00 : f32
      %38 = vector.broadcast %cst_19 : f32 to vector<1x1280xf32>
      %39 = arith.divf %37, %38 : vector<1x1280xf32>
      %cst_20 = arith.constant 9.99999974E-6 : f32
      %40 = vector.broadcast %cst_20 : f32 to vector<1x1280xf32>
      %41 = arith.addf %39, %40 : vector<1x1280xf32>
      %42 = math.rsqrt %41 : vector<1x1280xf32>
      %43 = arith.mulf %15, %42 : vector<1x1280xf32>
      %44 = vector.broadcast %43 : vector<1x1280xf32> to vector<8x1280xf32>
      %45 = arith.mulf %34, %44 : vector<8x1280xf32>
      %46 = vector.broadcast %16 : vector<1x1280xf32> to vector<8x1280xf32>
      %47 = arith.addf %45, %46 : vector<8x1280xf32>
      %cst_21 = arith.constant 0.000000e+00 : f32
      %48 = vector.broadcast %cst_21 : f32 to vector<8x1280xf32>
      %49 = arith.maximumf %47, %48 : vector<8x1280xf32>
      %50 = arith.truncf %49 : vector<8x1280xf32> to vector<8x1280xbf16>
      %c0_22 = arith.constant 0 : index
      %c0_23 = arith.constant 0 : index
      %51 = vector.load %arg3[%c0_22, %c0_23] : memref<1280x320xbf16, #tpu.memory_space<vmem>>, vector<1280x320xbf16>
      %cst_24 = arith.constant dense<0.000000e+00> : vector<8x320xf32>
      %52 = tpu.matmul %50, %51, %cst_24 {dimension_numbers = #tpu.dot_dimension_numbers<[1], [0], [0], [1], [0, 0, 1, 1], [], []>} : vector<8x1280xbf16>, vector<1280x320xbf16>, vector<8x320xf32> -> vector<8x320xf32>
      %cst_25 = arith.constant dense<0.000000e+00> : vector<320xf32>
      %53 = vector.multi_reduction <add>, %52, %cst_25 [0] : vector<8x320xf32> to vector<320xf32>
      %54 = vector.shape_cast %53 : vector<320xf32> to vector<1x320xf32>
      %cst_26 = arith.constant 8.000000e+00 : f32
      %55 = vector.broadcast %cst_26 : f32 to vector<1x320xf32>
      %56 = arith.divf %54, %55 : vector<1x320xf32>
      %57 = vector.broadcast %56 : vector<1x320xf32> to vector<8x320xf32>
      %58 = arith.subf %52, %57 : vector<8x320xf32>
      %59 = arith.mulf %58, %58 : vector<8x320xf32>
      %cst_27 = arith.constant dense<0.000000e+00> : vector<320xf32>
      %60 = vector.multi_reduction <add>, %59, %cst_27 [0] : vector<8x320xf32> to vector<320xf32>
      %61 = vector.shape_cast %60 : vector<320xf32> to vector<1x320xf32>
      %cst_28 = arith.constant 8.000000e+00 : f32
      %62 = vector.broadcast %cst_28 : f32 to vector<1x320xf32>
      %63 = arith.divf %61, %62 : vector<1x320xf32>
      %cst_29 = arith.constant 9.99999974E-6 : f32
      %64 = vector.broadcast %cst_29 : f32 to vector<1x320xf32>
      %65 = arith.addf %63, %64 : vector<1x320xf32>
      %66 = math.rsqrt %65 : vector<1x320xf32>
      %67 = arith.mulf %18, %66 : vector<1x320xf32>
      %68 = vector.broadcast %67 : vector<1x320xf32> to vector<8x320xf32>
      %69 = arith.mulf %58, %68 : vector<8x320xf32>
      %70 = vector.broadcast %19 : vector<1x320xf32> to vector<8x320xf32>
      %71 = arith.addf %69, %70 : vector<8x320xf32>
      %cst_30 = arith.constant 0.000000e+00 : f32
      %72 = vector.broadcast %cst_30 : f32 to vector<8x320xf32>
      %73 = arith.maximumf %71, %72 : vector<8x320xf32>
      %74 = arith.truncf %73 : vector<8x320xf32> to vector<8x320xbf16>
      %c0_31 = arith.constant 0 : index
      %c0_32 = arith.constant 0 : index
      %75 = vector.load %arg4[%c0_31, %c0_32] : memref<320x80xbf16, #tpu.memory_space<vmem>>, vector<320x80xbf16>
      %cst_33 = arith.constant dense<0.000000e+00> : vector<8x80xf32>
      %76 = tpu.matmul %74, %75, %cst_33 {dimension_numbers = #tpu.dot_dimension_numbers<[1], [0], [0], [1], [0, 0, 1, 1], [], []>} : vector<8x320xbf16>, vector<320x80xbf16>, vector<8x80xf32> -> vector<8x80xf32>
      %cst_34 = arith.constant dense<0.000000e+00> : vector<80xf32>
      %77 = vector.multi_reduction <add>, %76, %cst_34 [0] : vector<8x80xf32> to vector<80xf32>
      %78 = vector.shape_cast %77 : vector<80xf32> to vector<1x80xf32>
      %cst_35 = arith.constant 8.000000e+00 : f32
      %79 = vector.broadcast %cst_35 : f32 to vector<1x80xf32>
      %80 = arith.divf %78, %79 : vector<1x80xf32>
      %81 = vector.broadcast %80 : vector<1x80xf32> to vector<8x80xf32>
      %82 = arith.subf %76, %81 : vector<8x80xf32>
      %83 = arith.mulf %82, %82 : vector<8x80xf32>
      %cst_36 = arith.constant dense<0.000000e+00> : vector<80xf32>
      %84 = vector.multi_reduction <add>, %83, %cst_36 [0] : vector<8x80xf32> to vector<80xf32>
      %85 = vector.shape_cast %84 : vector<80xf32> to vector<1x80xf32>
      %cst_37 = arith.constant 8.000000e+00 : f32
      %86 = vector.broadcast %cst_37 : f32 to vector<1x80xf32>
      %87 = arith.divf %85, %86 : vector<1x80xf32>
      %cst_38 = arith.constant 9.99999974E-6 : f32
      %88 = vector.broadcast %cst_38 : f32 to vector<1x80xf32>
      %89 = arith.addf %87, %88 : vector<1x80xf32>
      %90 = math.rsqrt %89 : vector<1x80xf32>
      %91 = arith.mulf %21, %90 : vector<1x80xf32>
      %92 = vector.broadcast %91 : vector<1x80xf32> to vector<8x80xf32>
      %93 = arith.mulf %82, %92 : vector<8x80xf32>
      %94 = vector.broadcast %22 : vector<1x80xf32> to vector<8x80xf32>
      %95 = arith.addf %93, %94 : vector<8x80xf32>
      %cst_39 = arith.constant 0.000000e+00 : f32
      %96 = vector.broadcast %cst_39 : f32 to vector<8x80xf32>
      %97 = arith.maximumf %95, %96 : vector<8x80xf32>
      %98 = arith.truncf %97 : vector<8x80xf32> to vector<8x80xbf16>
      %c0_40 = arith.constant 0 : index
      %c0_41 = arith.constant 0 : index
      %99 = vector.load %arg5[%c0_40, %c0_41] : memref<80x20xbf16, #tpu.memory_space<vmem>>, vector<80x20xbf16>
      %cst_42 = arith.constant dense<0.000000e+00> : vector<8x20xf32>
      %100 = tpu.matmul %98, %99, %cst_42 {dimension_numbers = #tpu.dot_dimension_numbers<[1], [0], [0], [1], [0, 0, 1, 1], [], []>} : vector<8x80xbf16>, vector<80x20xbf16>, vector<8x20xf32> -> vector<8x20xf32>
      %cst_43 = arith.constant dense<0.000000e+00> : vector<20xf32>
      %101 = vector.multi_reduction <add>, %100, %cst_43 [0] : vector<8x20xf32> to vector<20xf32>
      %102 = vector.shape_cast %101 : vector<20xf32> to vector<1x20xf32>
      %cst_44 = arith.constant 8.000000e+00 : f32
      %103 = vector.broadcast %cst_44 : f32 to vector<1x20xf32>
      %104 = arith.divf %102, %103 : vector<1x20xf32>
      %105 = vector.broadcast %104 : vector<1x20xf32> to vector<8x20xf32>
      %106 = arith.subf %100, %105 : vector<8x20xf32>
      %107 = arith.mulf %106, %106 : vector<8x20xf32>
      %cst_45 = arith.constant dense<0.000000e+00> : vector<20xf32>
      %108 = vector.multi_reduction <add>, %107, %cst_45 [0] : vector<8x20xf32> to vector<20xf32>
      %109 = vector.shape_cast %108 : vector<20xf32> to vector<1x20xf32>
      %cst_46 = arith.constant 8.000000e+00 : f32
      %110 = vector.broadcast %cst_46 : f32 to vector<1x20xf32>
      %111 = arith.divf %109, %110 : vector<1x20xf32>
      %cst_47 = arith.constant 9.99999974E-6 : f32
      %112 = vector.broadcast %cst_47 : f32 to vector<1x20xf32>
      %113 = arith.addf %111, %112 : vector<1x20xf32>
      %114 = math.rsqrt %113 : vector<1x20xf32>
      %115 = arith.mulf %24, %114 : vector<1x20xf32>
      %116 = vector.broadcast %115 : vector<1x20xf32> to vector<8x20xf32>
      %117 = arith.mulf %106, %116 : vector<8x20xf32>
      %118 = vector.broadcast %25 : vector<1x20xf32> to vector<8x20xf32>
      %119 = arith.addf %117, %118 : vector<8x20xf32>
      %cst_48 = arith.constant 0.000000e+00 : f32
      %120 = vector.broadcast %cst_48 : f32 to vector<8x20xf32>
      %121 = arith.maximumf %119, %120 : vector<8x20xf32>
      %122 = arith.truncf %121 : vector<8x20xf32> to vector<8x20xbf16>
      %c0_49 = arith.constant 0 : index
      %c0_50 = arith.constant 0 : index
      %123 = vector.load %arg6[%c0_49, %c0_50] : memref<20x8xbf16, #tpu.memory_space<vmem>>, vector<20x8xbf16>
      %cst_51 = arith.constant dense<0.000000e+00> : vector<8x8xf32>
      %124 = tpu.matmul %122, %123, %cst_51 {dimension_numbers = #tpu.dot_dimension_numbers<[1], [0], [0], [1], [0, 0, 1, 1], [], []>} : vector<8x20xbf16>, vector<20x8xbf16>, vector<8x8xf32> -> vector<8x8xf32>
      %125 = vector.broadcast %27 : vector<1x8xf32> to vector<8x8xf32>
      %126 = arith.addf %124, %125 : vector<8x8xf32>
      %c0_52 = arith.constant 0 : index
      %c0_53 = arith.constant 0 : index
      %127 = vector.load %arg8[%c0_52, %c0_53] : memref<8x8xf32, #tpu.memory_space<vmem>>, vector<8x8xf32>
      tpu.vector_store %arg8[%c0_52, %c0_53], %126 {strides = array<i32>} : memref<8x8xf32, #tpu.memory_space<vmem>>, vector<8x8xf32>,
    } else {
    }
    return
  }
  func.func @transform_0(%arg0: i32) -> (i32, i32) {
    %c0_i32 = arith.constant 0 : i32
    %c0_i32_0 = arith.constant 0 : i32
    return %c0_i32, %arg0 : i32, i32
  }
  func.func @transform_1(%arg0: i32) -> (i32, i32) {
    %c0_i32 = arith.constant 0 : i32
    %c0_i32_0 = arith.constant 0 : i32
    return %arg0, %c0_i32 : i32, i32
  }
  func.func @transform_2(%arg0: i32) -> (i32, i32) {
    %c0_i32 = arith.constant 0 : i32
    %c0_i32_0 = arith.constant 0 : i32
    %c0_i32_1 = arith.constant 0 : i32
    return %c0_i32, %c0_i32_0 : i32, i32
  }
  func.func @transform_3(%arg0: i32) -> (i32, i32) {
    %c0_i32 = arith.constant 0 : i32
    %c0_i32_0 = arith.constant 0 : i32
    %c0_i32_1 = arith.constant 0 : i32
    return %c0_i32, %c0_i32_0 : i32, i32
  }
  func.func @transform_4(%arg0: i32) -> (i32, i32) {
    %c0_i32 = arith.constant 0 : i32
    %c0_i32_0 = arith.constant 0 : i32
    %c0_i32_1 = arith.constant 0 : i32
    return %c0_i32, %c0_i32_0 : i32, i32
  }
  func.func @transform_5(%arg0: i32) -> (i32, i32) {
    %c0_i32 = arith.constant 0 : i32
    %c0_i32_0 = arith.constant 0 : i32
    %c0_i32_1 = arith.constant 0 : i32
    return %c0_i32, %c0_i32_0 : i32, i32
  }
  func.func @transform_6(%arg0: i32) -> (i32, i32) {
    %c0_i32 = arith.constant 0 : i32
    %c0_i32_0 = arith.constant 0 : i32
    %c0_i32_1 = arith.constant 0 : i32
    return %c0_i32, %c0_i32_0 : i32, i32
  }
  func.func @transform_7(%arg0: i32) -> (i32, i32) {
    %c0_i32 = arith.constant 0 : i32
    %c0_i32_0 = arith.constant 0 : i32
    %c0_i32_1 = arith.constant 0 : i32
    return %c0_i32, %c0_i32_0 : i32, i32
  }
}

</mosaic_0001>

<llo_original>
// kernel: model_pvpmulti_forward.1
$region0: #{model_pvpmulti_forward.1}
  #allocation0 [shape = 'u32[]', space=smem, size = 0x4, offset = 0x4, fixed_abs, tag = 'smem constant byte address 0x4 - core index']
  #allocation1 [shape = 'u32[72,128]{1,0:T(1,128)}', space=vmem, size = 0x9000, scoped, tag = 'internal scratch']
  #allocation2 [shape = 'f32[8,1280]{1,0:T(8,128)}', space=vmem, size = 0xa000, scoped, tag = 'scratch operand']
  %s0 = inlined_call_operand.hbm [shape: f32[8,2560], index: 0, kind: input, shape index: {}]
  %s1 = inlined_call_operand.hbm [shape: s8[2560,1280], index: 1, kind: input, shape index: {}]
  %s2 = inlined_call_operand.vmem [shape: bf16[1280,320], index: 2, kind: input, shape index: {}]
  %s3 = inlined_call_operand.vmem [shape: bf16[320,80], index: 3, kind: input, shape index: {}]
  %s4 = inlined_call_operand.vmem [shape: bf16[80,20], index: 4, kind: input, shape index: {}]
  %s5 = inlined_call_operand.vmem [shape: bf16[20,8], index: 5, kind: input, shape index: {}]
  %s6 = inlined_call_operand.hbm [shape: f32[3,2048], index: 6, kind: input, shape index: {}]
  %s7 = inlined_call_operand.hbm [shape: f32[8,8], index: 7, kind: output, shape index: {}]
  %s8 = sld [smem:[#allocation0]]
  $region81: #{model_pvpmulti_forward.1} parent=0
    _
  %s10 = ssub.s32 1, %s8
  %s11 = scalar_select 0, %s10, %s8
  $region1: #{model_pvpmulti_forward.1} parent=0
    #allocation3 [shape = 'u8[81920]{0}', space=vmem, size = 0x14000, scoped, tag = 'input window, operand 0']
    #allocation4 [shape = 's32[2]{0}', space=sflag, size = 0x8, scoped, tag = 'scoped memory for model_pvpmulti_forward.1']
    #allocation5 [shape = 's32[2]{0}', space=sflag, size = 0x8, scoped, tag = 'scoped memory for model_pvpmulti_forward.1']
    #allocation6 [shape = 'u8[3276800]{0}', space=vmem, size = 0x320000, scoped, tag = 'input window, operand 1']
    #allocation7 [shape = 's32[2]{0}', space=sflag, size = 0x8, scoped, tag = 'scoped memory for model_pvpmulti_forward.1']
    #allocation8 [shape = 'u8[32768]{0}', space=vmem, size = 0x8000, scoped, tag = 'input window, operand 6, single buffered']
    #allocation9 [shape = 'u8[4096]{0}', space=vmem, size = 0x1000, scoped, tag = 'output window, operand 0, single buffered']
    %12 = vsyncpa [#allocation4], 0
    %s13 = scalar_lea.sflag [#allocation4], 1
    %14 = vsyncpa %s13, 0
    %15 = vsyncpa [#allocation7], 0
    %s16 = scalar_lea.sflag [#allocation7], 1
    %17 = vsyncpa %s16, 0
    %18 = vsyncpa [#allocation5], 0
    loop: start=0, step=1, limit=4
    $region2: #{model_pvpmulti_forward.1} parent=1 // loop_pre_header
      _
    $region3: #{model_pvpmulti_forward.1} parent=1 // loop_header
      %s20 = sphi 0, %s24
      %p21 = scmp.ge.s32.totalorder %s20, 4
      %s30 = sphi 0, %s32
      %s33 = sphi 0, %s30
      %s34 = sphi 0, %s33
      %s50 = sphi 0, %s34
      %s56 = sphi 0, %s58
      %s59 = sphi 0, %s56
      %s60 = sphi 0, %s59
      %s76 = sphi 0, %s60
      %s80 = sphi 0, %s80
      %s82 = sphi 0, %s80
      %s83 = sphi 0, %s82
      %s97 = sphi 0, %s83
      %s101 = sphi 0, %s101
      %s103 = sphi 0, %s101
      %s104 = sphi 0, %s103
      %s118 = sphi 0, %s104
      %s122 = sphi 0, %s122
      %s124 = sphi 0, %s122
      %s125 = sphi 0, %s124
      %s139 = sphi 0, %s125
      %s143 = sphi 0, %s143
      %s145 = sphi 0, %s143
      %s146 = sphi 0, %s145
      %s160 = sphi 0, %s146
      %s164 = sphi 0, %s164
      %s166 = sphi 0, %s164
      %s167 = sphi 0, %s166
      %s181 = sphi 0, %s167
      %s185 = sphi 0, %s185
      %s187 = sphi 0, %s185
      %s188 = sphi 0, %s187
      %s202 = sphi 0, %s188
    $region4: #{model_pvpmulti_forward.1} parent=1 // loop_header_branch
      %23 = sbr.rel (%p21) target = $region8
    $region5: #{model_pvpmulti_forward.1} parent=1 // loop_body
      %s25 = ssub.s32 %s20, 1
      %s26 = ssub.s32 %s20, 2
      %s27 = sadd.s32 %s20, 1
      %s28 = ssub.s32 %s20, %s27
      %p29 = scmp.eq.s32.totalorder %s28, 0
      %s31 = sadd.s32 %s30, 1
      %s32 = scalar_select %p29, %s30, %s31
      %p35 = pneg %p29
      %p36 = scmp.eq.s32.totalorder %s20, 1
      %p37 = por %p35, %p36
      %p38 = scmp.ne.s32.totalorder %s30, %s33
      %p39 = scmp.eq.s32.totalorder %s20, 0
      %p40 = por %p38, %p39
      %p41 = scmp.ne.s32.totalorder %s30, %s33
      %p42 = scmp.eq.s32.totalorder %s25, 1
      %p43 = por %p41, %p42
      %p44 = scmp.ne.s32.totalorder %s33, %s34
      %p45 = scmp.eq.s32.totalorder %s25, 0
      %p46 = por %p44, %p45
      %p47 = scmp.ne.s32.totalorder %s33, %s34
      %p48 = scmp.eq.s32.totalorder %s26, 1
      %p49 = por %p47, %p48
      %p51 = scmp.ne.s32.totalorder %s34, %s50
      %p52 = scmp.eq.s32.totalorder %s26, 0
      %p53 = por %p51, %p52
      %s54 = ssub.s32 %s20, %s27
      %p55 = scmp.eq.s32.totalorder %s54, 0
      %s57 = sadd.s32 %s56, 1
      %s58 = scalar_select %p55, %s56, %s57
      %p61 = pneg %p55
      %p62 = scmp.eq.s32.totalorder %s20, 1
      %p63 = por %p61, %p62
      %p64 = scmp.ne.s32.totalorder %s56, %s59
      %p65 = scmp.eq.s32.totalorder %s20, 0
      %p66 = por %p64, %p65
      %p67 = scmp.ne.s32.totalorder %s56, %s59
      %p68 = scmp.eq.s32.totalorder %s25, 1
      %p69 = por %p67, %p68
      %p70 = scmp.ne.s32.totalorder %s59, %s60
      %p71 = scmp.eq.s32.totalorder %s25, 0
      %p72 = por %p70, %p71
      %p73 = scmp.ne.s32.totalorder %s59, %s60
      %p74 = scmp.eq.s32.totalorder %s26, 1
      %p75 = por %p73, %p74
      %p77 = scmp.ne.s32.totalorder %s60, %s76
      %p78 = scmp.eq.s32.totalorder %s26, 0
      %p79 = por %p77, %p78
      %s81 = sadd.s32 %s80, 1
      %p84 = scmp.eq.s32.totalorder %s20, 1
      %p85 = scmp.ne.s32.totalorder %s80, %s82
      %p86 = scmp.eq.s32.totalorder %s20, 0
      %p87 = por %p85, %p86
      %p88 = scmp.ne.s32.totalorder %s80, %s82
      %p89 = scmp.eq.s32.totalorder %s25, 1
      %p90 = por %p88, %p89
      %p91 = scmp.ne.s32.totalorder %s82, %s83
      %p92 = scmp.eq.s32.totalorder %s25, 0
      %p93 = por %p91, %p92
      %p94 = scmp.ne.s32.totalorder %s82, %s83
      %p95 = scmp.eq.s32.totalorder %s26, 1
      %p96 = por %p94, %p95
      %p98 = scmp.ne.s32.totalorder %s83, %s97
      %p99 = scmp.eq.s32.totalorder %s26, 0
      %p100 = por %p98, %p99
      %s102 = sadd.s32 %s101, 1
      %p105 = scmp.eq.s32.totalorder %s20, 1
      %p106 = scmp.ne.s32.totalorder %s101, %s103
      %p107 = scmp.eq.s32.totalorder %s20, 0
      %p108 = por %p106, %p107
      %p109 = scmp.ne.s32.totalorder %s101, %s103
      %p110 = scmp.eq.s32.totalorder %s25, 1
      %p111 = por %p109, %p110
      %p112 = scmp.ne.s32.totalorder %s103, %s104
      %p113 = scmp.eq.s32.totalorder %s25, 0
      %p114 = por %p112, %p113
      %p115 = scmp.ne.s32.totalorder %s103, %s104
      %p116 = scmp.eq.s32.totalorder %s26, 1
      %p117 = por %p115, %p116
      %p119 = scmp.ne.s32.totalorder %s104, %s118
      %p120 = scmp.eq.s32.totalorder %s26, 0
      %p121 = por %p119, %p120
      %s123 = sadd.s32 %s122, 1
      %p126 = scmp.eq.s32.totalorder %s20, 1
      %p127 = scmp.ne.s32.totalorder %s122, %s124
      %p128 = scmp.eq.s32.totalorder %s20, 0
      %p129 = por %p127, %p128
      %p130 = scmp.ne.s32.totalorder %s122, %s124
      %p131 = scmp.eq.s32.totalorder %s25, 1
      %p132 = por %p130, %p131
      %p133 = scmp.ne.s32.totalorder %s124, %s125
      %p134 = scmp.eq.s32.totalorder %s25, 0
      %p135 = por %p133, %p134
      %p136 = scmp.ne.s32.totalorder %s124, %s125
      %p137 = scmp.eq.s32.totalorder %s26, 1
      %p138 = por %p136, %p137
      %p140 = scmp.ne.s32.totalorder %s125, %s139
      %p141 = scmp.eq.s32.totalorder %s26, 0
      %p142 = por %p140, %p141
      %s144 = sadd.s32 %s143, 1
      %p147 = scmp.eq.s32.totalorder %s20, 1
      %p148 = scmp.ne.s32.totalorder %s143, %s145
      %p149 = scmp.eq.s32.totalorder %s20, 0
      %p150 = por %p148, %p149
      %p151 = scmp.ne.s32.totalorder %s143, %s145
      %p152 = scmp.eq.s32.totalorder %s25, 1
      %p153 = por %p151, %p152
      %p154 = scmp.ne.s32.totalorder %s145, %s146
      %p155 = scmp.eq.s32.totalorder %s25, 0
      %p156 = por %p154, %p155
      %p157 = scmp.ne.s32.totalorder %s145, %s146
      %p158 = scmp.eq.s32.totalorder %s26, 1
      %p159 = por %p157, %p158
      %p161 = scmp.ne.s32.totalorder %s146, %s160
      %p162 = scmp.eq.s32.totalorder %s26, 0
      %p163 = por %p161, %p162
      %s165 = sadd.s32 %s164, 1
      %p168 = scmp.eq.s32.totalorder %s20, 1
      %p169 = scmp.ne.s32.totalorder %s164, %s166
      %p170 = scmp.eq.s32.totalorder %s20, 0
      %p171 = por %p169, %p170
      %p172 = scmp.ne.s32.totalorder %s164, %s166
      %p173 = scmp.eq.s32.totalorder %s25, 1
      %p174 = por %p172, %p173
      %p175 = scmp.ne.s32.totalorder %s166, %s167
      %p176 = scmp.eq.s32.totalorder %s25, 0
      %p177 = por %p175, %p176
      %p178 = scmp.ne.s32.totalorder %s166, %s167
      %p179 = scmp.eq.s32.totalorder %s26, 1
      %p180 = por %p178, %p179
      %p182 = scmp.ne.s32.totalorder %s167, %s181
      %p183 = scmp.eq.s32.totalorder %s26, 0
      %p184 = por %p182, %p183
      %s186 = sadd.s32 %s185, 1
      %p189 = scmp.eq.s32.totalorder %s20, 1
      %p190 = scmp.ne.s32.totalorder %s185, %s187
      %p191 = scmp.eq.s32.totalorder %s20, 0
      %p192 = por %p190, %p191
      %p193 = scmp.ne.s32.totalorder %s185, %s187
      %p194 = scmp.eq.s32.totalorder %s25, 1
      %p195 = por %p193, %p194
      %p196 = scmp.ne.s32.totalorder %s187, %s188
      %p197 = scmp.eq.s32.totalorder %s25, 0
      %p198 = por %p196, %p197
      %p199 = scmp.ne.s32.totalorder %s187, %s188
      %p200 = scmp.eq.s32.totalorder %s26, 1
      %p201 = por %p199, %p200
      %p203 = scmp.ne.s32.totalorder %s188, %s202
      %p204 = scmp.eq.s32.totalorder %s26, 0
      %p205 = por %p203, %p204
      %p206 = scmp.le.s32.totalorder 1, %s20
      %p207 = scmp.lt.s32.totalorder %s20, 3
      %p208 = pnand %p206, %p207
      %p209 = pneg %p208
      // Predicated region
      $region9: #{model_pvpmulti_forward.1} parent=5 // pred_check
        _
      $region10: #{model_pvpmulti_forward.1} parent=5 // pred_check_branch
        %211 = sbr.rel (%p208) target = $region12
      $region11: #{model_pvpmulti_forward.1} parent=5 // pred_region
        %s212 = ssub.s32 %s20, 1
        // Predicated region
        $region13: #{model_pvpmulti_forward.1} parent=11 // pred_check
          %p213 = pneg %p93
        $region14: #{model_pvpmulti_forward.1} parent=11 // pred_check_branch
          %215 = sbr.rel (%p213) target = $region16
        $region15: #{model_pvpmulti_forward.1} parent=11 // pred_region
          _
        $region16: #{model_pvpmulti_forward.1} parent=11 // pred_fallthru
          _
        // Predicated region
        $region17: #{model_pvpmulti_forward.1} parent=11 // pred_check
          %p216 = pneg %p114
        $region18: #{model_pvpmulti_forward.1} parent=11 // pred_check_branch
          %218 = sbr.rel (%p216) target = $region20
        $region19: #{model_pvpmulti_forward.1} parent=11 // pred_region
          _
        $region20: #{model_pvpmulti_forward.1} parent=11 // pred_fallthru
          _
        // Predicated region
        $region21: #{model_pvpmulti_forward.1} parent=11 // pred_check
          %p219 = pneg %p135
        $region22: #{model_pvpmulti_forward.1} parent=11 // pred_check_branch
          %221 = sbr.rel (%p219) target = $region24
        $region23: #{model_pvpmulti_forward.1} parent=11 // pred_region
          _
        $region24: #{model_pvpmulti_forward.1} parent=11 // pred_fallthru
          _
        // Predicated region
        $region25: #{model_pvpmulti_forward.1} parent=11 // pred_check
          %p222 = pneg %p156
        $region26: #{model_pvpmulti_forward.1} parent=11 // pred_check_branch
          %224 = sbr.rel (%p222) target = $region28
        $region27: #{model_pvpmulti_forward.1} parent=11 // pred_region
          _
        $region28: #{model_pvpmulti_forward.1} parent=11 // pred_fallthru
          _
        // Predicated region
        $region29: #{model_pvpmulti_forward.1} parent=11 // pred_check
          %p225 = pneg %p177
        $region30: #{model_pvpmulti_forward.1} parent=11 // pred_check_branch
          %227 = sbr.rel (%p225) target = $region32
        $region31: #{model_pvpmulti_forward.1} parent=11 // pred_region
          %229 = vsyncadd [#allocation7], 0
          %s231 = sshll.u32 %s6, 4
          %s232 = int_to_ptr.hbm [resolvable:$true] %s231
          %s233 = sshll.u32 [#allocation8], 4
          %s234 = int_to_ptr.vmem [resolvable:$true] %s233
          %236 = dma.hbm_to_vmem [thread:$0]  %s232, 1024, %s234, [#allocation7]
        $region32: #{model_pvpmulti_forward.1} parent=11 // pred_fallthru
          _
      $region12: #{model_pvpmulti_forward.1} parent=5 // pred_fallthru
        _
      %p237 = scmp.lt.s32.totalorder %s20, 2
      // Predicated region
      $region33: #{model_pvpmulti_forward.1} parent=5 // pred_check
        %p238 = pneg %p237
      $region34: #{model_pvpmulti_forward.1} parent=5 // pred_check_branch
        %240 = sbr.rel (%p238) target = $region36
      $region35: #{model_pvpmulti_forward.1} parent=5 // pred_region
        // Predicated region
        $region37: #{model_pvpmulti_forward.1} parent=35 // pred_check
          %p241 = pneg %p40
        $region38: #{model_pvpmulti_forward.1} parent=35 // pred_check_branch
          %243 = sbr.rel (%p241) target = $region40
        $region39: #{model_pvpmulti_forward.1} parent=35 // pred_region
          %s244 = sand.u32 %s30, 1
          %s245 = scalar_lea.sflag [#allocation4], %s244
          %s246 = sand.u32 %s30, 1
          %s247 = smul.addr %s246, 80
          %s248 = scalar_lea.vmem [#allocation3], %s247
          %s249 = smul.u32 10, %s20
          %251 = vsyncadd %s245, 0
          %s252 = smul.addr %s249, 8
          %s253 = scalar_lea.hbm %s0, %s252
          %s255 = sshll.u32 %s253, 4
          %s256 = int_to_ptr.hbm [resolvable:$true] %s255
          %s257 = sshll.u32 %s248, 4
          %s258 = int_to_ptr.vmem [resolvable:$true] %s257
          %260 = dma.hbm_to_vmem [thread:$0]  %s256, 1280, %s258, %s245
        $region40: #{model_pvpmulti_forward.1} parent=35 // pred_fallthru
          _
        // Predicated region
        $region41: #{model_pvpmulti_forward.1} parent=35 // pred_check
          %p261 = pneg %p66
        $region42: #{model_pvpmulti_forward.1} parent=35 // pred_check_branch
          %263 = sbr.rel (%p261) target = $region44
        $region43: #{model_pvpmulti_forward.1} parent=35 // pred_region
          %s264 = sand.u32 %s20, 1
          %s265 = scalar_lea.sflag [#allocation7], %s264
          %s266 = sand.u32 %s56, 1
          %s267 = smul.addr %s266, 3200
          %s268 = scalar_lea.vmem [#allocation6], %s267
          %s269 = smul.u32 40, %s20
          %271 = vsyncadd %s265, 0
          %s272 = smul.addr %s269, 10
          %s273 = smul.addr %s272, 8
          %s274 = scalar_lea.hbm %s1, %s273
          %s275 = sshll.u32 %s274, 4
          %s276 = int_to_ptr.hbm [resolvable:$true] %s275
          %s277 = sshll.u32 %s268, 4
          %s278 = int_to_ptr.vmem [resolvable:$true] %s277
          %283 = dma.hbm_to_vmem [thread:$0]  %s276, 51200, %s278, %s265, 1280, 1280, 80
        $region44: #{model_pvpmulti_forward.1} parent=35 // pred_fallthru
          _
      $region36: #{model_pvpmulti_forward.1} parent=5 // pred_fallthru
        _
      %p284 = scmp.le.s32.totalorder 1, %s20
      %p285 = scmp.lt.s32.totalorder %s20, 3
      %p286 = pnand %p284, %p285
      %p287 = pneg %p286
      // Predicated region
      $region45: #{model_pvpmulti_forward.1} parent=5 // pred_check
        _
      $region46: #{model_pvpmulti_forward.1} parent=5 // pred_check_branch
        %289 = sbr.rel (%p286) target = $region48
      $region47: #{model_pvpmulti_forward.1} parent=5 // pred_region
        %s290 = ssub.s32 %s20, 1
        %s291 = sand.u32 %s33, 1
        %s292 = scalar_lea.sflag [#allocation4], %s291
        %s293 = sand.u32 %s33, 1
        %s294 = smul.addr %s293, 80
        %s295 = scalar_lea.vmem [#allocation3], %s294
        // Predicated region
        $region49: #{model_pvpmulti_forward.1} parent=47 // pred_check
          %p296 = pneg %p46
        $region50: #{model_pvpmulti_forward.1} parent=47 // pred_check_branch
          %298 = sbr.rel (%p296) target = $region52
        $region51: #{model_pvpmulti_forward.1} parent=47 // pred_region
          %300 = dma.done %s292, 1280
        $region52: #{model_pvpmulti_forward.1} parent=47 // pred_fallthru
          _
        %s301 = sand.u32 %s25, 1
        %s302 = scalar_lea.sflag [#allocation7], %s301
        %s303 = sand.u32 %s59, 1
        %s304 = smul.addr %s303, 3200
        %s305 = scalar_lea.vmem [#allocation6], %s304
        // Predicated region
        $region53: #{model_pvpmulti_forward.1} parent=47 // pred_check
          %p306 = pneg %p72
        $region54: #{model_pvpmulti_forward.1} parent=47 // pred_check_branch
          %308 = sbr.rel (%p306) target = $region56
        $region55: #{model_pvpmulti_forward.1} parent=47 // pred_region
          %310 = dma.done %s302, 51200
        $region56: #{model_pvpmulti_forward.1} parent=47 // pred_fallthru
          _
        // Predicated region
        $region57: #{model_pvpmulti_forward.1} parent=47 // pred_check
          %p311 = pneg %p177
        $region58: #{model_pvpmulti_forward.1} parent=47 // pred_check_branch
          %313 = sbr.rel (%p311) target = $region60
        $region59: #{model_pvpmulti_forward.1} parent=47 // pred_region
          %315 = dma.done [#allocation7], 1024
        $region60: #{model_pvpmulti_forward.1} parent=47 // pred_fallthru
          _
        %s316 = sand.u32 %s33, 1
        %s317 = scalar_lea.sflag [#allocation4], %s316
        %s318 = sand.u32 %s33, 1
        %s319 = smul.addr %s318, 80
        %s320 = scalar_lea.vmem [#allocation3], %s319
        %p321 = pneg %p46
        %p322 = pneg %p43
        %s323 = sand.u32 %s25, 1
        %s324 = scalar_lea.sflag [#allocation7], %s323
        %s325 = sand.u32 %s59, 1
        %s326 = smul.addr %s325, 3200
        %s327 = scalar_lea.vmem [#allocation6], %s326
        %p328 = pneg %p72
        %p329 = pneg %p69
        %p330 = pneg %p93
        %p331 = pneg %p90
        %p332 = pneg %p114
        %p333 = pneg %p111
        %p334 = pneg %p135
        %p335 = pneg %p132
        %p336 = pneg %p156
        %p337 = pneg %p153
        %p338 = pneg %p177
        %p339 = pneg %p174
        %p340 = pneg %p198
        %p341 = pneg %p195
        %s342 = smul.u32 10, %s25
        %s343 = smul.u32 40, %s25
        %p345 = scmp.eq.s32.totalorder %s25, 0
        // Predicated region
        $region61: #{model_pvpmulti_forward.1} parent=47 // pred_check
          %p346 = pneg %p345
        $region62: #{model_pvpmulti_forward.1} parent=47 // pred_check_branch
          %348 = sbr.rel (%p346) target = $region64
        $region63: #{model_pvpmulti_forward.1} parent=47 // pred_region
          %349 = vst [vmem:[#allocation2] sm:$0xff] 0.0
          %350 = vst [vmem:[#allocation2 + $0x8] sm:$0xff] 0.0
          %351 = vst [vmem:[#allocation2 + $0x10] sm:$0xff] 0.0
          %352 = vst [vmem:[#allocation2 + $0x18] sm:$0xff] 0.0
          %353 = vst [vmem:[#allocation2 + $0x20] sm:$0xff] 0.0
          %354 = vst [vmem:[#allocation2 + $0x28] sm:$0xff] 0.0
          %355 = vst [vmem:[#allocation2 + $0x30] sm:$0xff] 0.0
          %356 = vst [vmem:[#allocation2 + $0x38] sm:$0xff] 0.0
          %357 = vst [vmem:[#allocation2 + $0x40] sm:$0xff] 0.0
          %358 = vst [vmem:[#allocation2 + $0x48] sm:$0xff] 0.0
        $region64: #{model_pvpmulti_forward.1} parent=47 // pred_fallthru
          _
        %v359 = vld [vmem:[#allocation2] sm:$0xff]
        %v360 = vld [vmem:[#allocation2 + $0x8] sm:$0xff]
        %v361 = vld [vmem:[#allocation2 + $0x10] sm:$0xff]
        %v362 = vld [vmem:[#allocation2 + $0x18] sm:$0xff]
        %v363 = vld [vmem:[#allocation2 + $0x20] sm:$0xff]
        %v364 = vld [vmem:[#allocation2 + $0x28] sm:$0xff]
        %v365 = vld [vmem:[#allocation2 + $0x30] sm:$0xff]
        %v366 = vld [vmem:[#allocation2 + $0x38] sm:$0xff]
        %v367 = vld [vmem:[#allocation2 + $0x40] sm:$0xff]
        %v368 = vld [vmem:[#allocation2 + $0x48] sm:$0xff]
        %v369 = vld [vmem:[%s295] sm:$0xff]
        %v370 = vld [vmem:[%s295 + $0x8] sm:$0xff]
        %v371 = vld [vmem:[%s295 + $0x10] sm:$0xff]
        %v372 = vld [vmem:[%s295 + $0x18] sm:$0xff]
        %v373 = vld [vmem:[%s295 + $0x20] sm:$0xff]
        %v374 = vld [vmem:[%s295 + $0x28] sm:$0xff]
        %v375 = vld [vmem:[%s295 + $0x30] sm:$0xff]
        %v376 = vld [vmem:[%s295 + $0x38] sm:$0xff]
        %v377 = vld [vmem:[%s295 + $0x40] sm:$0xff]
        %v378 = vld [vmem:[%s295 + $0x48] sm:$0xff]
        %v379 = vpack.c.bf16 %v369, %v369
        %v380 = vpack.c.bf16 %v370, %v370
        %v381 = vpack.c.bf16 %v371, %v371
        %v382 = vpack.c.bf16 %v372, %v372
        %v383 = vpack.c.bf16 %v373, %v373
        %v384 = vpack.c.bf16 %v374, %v374
        %v385 = vpack.c.bf16 %v375, %v375
        %v386 = vpack.c.bf16 %v376, %v376
        %v387 = vpack.c.bf16 %v377, %v377
        %v388 = vpack.c.bf16 %v378, %v378
        %v389 = vld [vmem:[%s305] sm:$0xff]
        %v390 = vld [vmem:[%s305 + $0x8] sm:$0xff]
        %v391 = vld [vmem:[%s305 + $0x10] sm:$0xff]
        %v392 = vld [vmem:[%s305 + $0x18] sm:$0xff]
        %v393 = vld [vmem:[%s305 + $0x20] sm:$0xff]
        %v394 = vld [vmem:[%s305 + $0x28] sm:$0xff]
        %v395 = vld [vmem:[%s305 + $0x30] sm:$0xff]
        %v396 = vld [vmem:[%s305 + $0x38] sm:$0xff]
        %v397 = vld [vmem:[%s305 + $0x40] sm:$0xff]
        %v398 = vld [vmem:[%s305 + $0x48] sm:$0xff]
        %v399 = vld [vmem:[%s305 + $0x50] sm:$0xff]
        %v400 = vld [vmem:[%s305 + $0x58] sm:$0xff]
        %v401 = vld [vmem:[%s305 + $0x60] sm:$0xff]
        %v402 = vld [vmem:[%s305 + $0x68] sm:$0xff]
        %v403 = vld [vmem:[%s305 + $0x70] sm:$0xff]
        %v404 = vld [vmem:[%s305 + $0x78] sm:$0xff]
        %v405 = vld [vmem:[%s305 + $0x80] sm:$0xff]
        %v406 = vld [vmem:[%s305 + $0x88] sm:$0xff]
        %v407 = vld [vmem:[%s305 + $0x90] sm:$0xff]
        %v408 = vld [vmem:[%s305 + $0x98] sm:$0xff]
        %v409 = vld [vmem:[%s305 + $0xa0] sm:$0xff]
        %v410 = vld [vmem:[%s305 + $0xa8] sm:$0xff]
        %v411 = vld [vmem:[%s305 + $0xb0] sm:$0xff]
        %v412 = vld [vmem:[%s305 + $0xb8] sm:$0xff]
        %v413 = vld [vmem:[%s305 + $0xc0] sm:$0xff]
        %v414 = vld [vmem:[%s305 + $0xc8] sm:$0xff]
        %v415 = vld [vmem:[%s305 + $0xd0] sm:$0xff]
        %v416 = vld [vmem:[%s305 + $0xd8] sm:$0xff]
        %v417 = vld [vmem:[%s305 + $0xe0] sm:$0xff]
        %v418 = vld [vmem:[%s305 + $0xe8] sm:$0xff]
        %v419 = vld [vmem:[%s305 + $0xf0] sm:$0xff]
        %v420 = vld [vmem:[%s305 + $0xf8] sm:$0xff]
        %v421 = vld [vmem:[%s305 + $0x100] sm:$0xff]
        %v422 = vld [vmem:[%s305 + $0x108] sm:$0xff]
        %v423 = vld [vmem:[%s305 + $0x110] sm:$0xff]
        %v424 = vld [vmem:[%s305 + $0x118] sm:$0xff]
        %v425 = vld [vmem:[%s305 + $0x120] sm:$0xff]
        %v426 = vld [vmem:[%s305 + $0x128] sm:$0xff]
        %v427 = vld [vmem:[%s305 + $0x130] sm:$0xff]
        %v428 = vld [vmem:[%s305 + $0x138] sm:$0xff]
        %v429 = vld [vmem:[%s305 + $0x140] sm:$0xff]
        %v430 = vld [vmem:[%s305 + $0x148] sm:$0xff]
        %v431 = vld [vmem:[%s305 + $0x150] sm:$0xff]
        %v432 = vld [vmem:[%s305 + $0x158] sm:$0xff]
        %v433 = vld [vmem:[%s305 + $0x160] sm:$0xff]
        %v434 = vld [vmem:[%s305 + $0x168] sm:$0xff]
        %v435 = vld [vmem:[%s305 + $0x170] sm:$0xff]
        %v436 = vld [vmem:[%s305 + $0x178] sm:$0xff]
        %v437 = vld [vmem:[%s305 + $0x180] sm:$0xff]
        %v438 = vld [vmem:[%s305 + $0x188] sm:$0xff]
        %v439 = vld [vmem:[%s305 + $0x190] sm:$0xff]
        %v440 = vld [vmem:[%s305 + $0x198] sm:$0xff]
        %v441 = vld [vmem:[%s305 + $0x1a0] sm:$0xff]
        %v442 = vld [vmem:[%s305 + $0x1a8] sm:$0xff]
        %v443 = vld [vmem:[%s305 + $0x1b0] sm:$0xff]
        %v444 = vld [vmem:[%s305 + $0x1b8] sm:$0xff]
        %v445 = vld [vmem:[%s305 + $0x1c0] sm:$0xff]
        %v446 = vld [vmem:[%s305 + $0x1c8] sm:$0xff]
        %v447 = vld [vmem:[%s305 + $0x1d0] sm:$0xff]
        %v448 = vld [vmem:[%s305 + $0x1d8] sm:$0xff]
        %v449 = vld [vmem:[%s305 + $0x1e0] sm:$0xff]
        %v450 = vld [vmem:[%s305 + $0x1e8] sm:$0xff]
        %v451 = vld [vmem:[%s305 + $0x1f0] sm:$0xff]
        %v452 = vld [vmem:[%s305 + $0x1f8] sm:$0xff]
        %v453 = vld [vmem:[%s305 + $0x200] sm:$0xff]
        %v454 = vld [vmem:[%s305 + $0x208] sm:$0xff]
        %v455 = vld [vmem:[%s305 + $0x210] sm:$0xff]
        %v456 = vld [vmem:[%s305 + $0x218] sm:$0xff]
        %v457 = vld [vmem:[%s305 + $0x220] sm:$0xff]
        %v458 = vld [vmem:[%s305 + $0x228] sm:$0xff]
        %v459 = vld [vmem:[%s305 + $0x230] sm:$0xff]
        %v460 = vld [vmem:[%s305 + $0x238] sm:$0xff]
        %v461 = vld [vmem:[%s305 + $0x240] sm:$0xff]
        %v462 = vld [vmem:[%s305 + $0x248] sm:$0xff]
        %v463 = vld [vmem:[%s305 + $0x250] sm:$0xff]
        %v464 = vld [vmem:[%s305 + $0x258] sm:$0xff]
        %v465 = vld [vmem:[%s305 + $0x260] sm:$0xff]
        %v466 = vld [vmem:[%s305 + $0x268] sm:$0xff]
        %v467 = vld [vmem:[%s305 + $0x270] sm:$0xff]
        %v468 = vld [vmem:[%s305 + $0x278] sm:$0xff]
        %v469 = vld [vmem:[%s305 + $0x280] sm:$0xff]
        %v470 = vld [vmem:[%s305 + $0x288] sm:$0xff]
        %v471 = vld [vmem:[%s305 + $0x290] sm:$0xff]
        %v472 = vld [vmem:[%s305 + $0x298] sm:$0xff]
        %v473 = vld [vmem:[%s305 + $0x2a0] sm:$0xff]
        %v474 = vld [vmem:[%s305 + $0x2a8] sm:$0xff]
        %v475 = vld [vmem:[%s305 + $0x2b0] sm:$0xff]
        %v476 = vld [vmem:[%s305 + $0x2b8] sm:$0xff]
        %v477 = vld [vmem:[%s305 + $0x2c0] sm:$0xff]
        %v478 = vld [vmem:[%s305 + $0x2c8] sm:$0xff]
        %v479 = vld [vmem:[%s305 + $0x2d0] sm:$0xff]
        %v480 = vld [vmem:[%s305 + $0x2d8] sm:$0xff]
        %v481 = vld [vmem:[%s305 + $0x2e0] sm:$0xff]
        %v482 = vld [vmem:[%s305 + $0x2e8] sm:$0xff]
        %v483 = vld [vmem:[%s305 + $0x2f0] sm:$0xff]
        %v484 = vld [vmem:[%s305 + $0x2f8] sm:$0xff]
        %v485 = vld [vmem:[%s305 + $0x300] sm:$0xff]
        %v486 = vld [vmem:[%s305 + $0x308] sm:$0xff]
        %v487 = vld [vmem:[%s305 + $0x310] sm:$0xff]
        %v488 = vld [vmem:[%s305 + $0x318] sm:$0xff]
        %v489 = vld [vmem:[%s305 + $0x320] sm:$0xff]
        %v490 = vld [vmem:[%s305 + $0x328] sm:$0xff]
        %v491 = vld [vmem:[%s305 + $0x330] sm:$0xff]
        %v492 = vld [vmem:[%s305 + $0x338] sm:$0xff]
        %v493 = vld [vmem:[%s305 + $0x340] sm:$0xff]
        %v494 = vld [vmem:[%s305 + $0x348] sm:$0xff]
        %v495 = vld [vmem:[%s305 + $0x350] sm:$0xff]
        %v496 = vld [vmem:[%s305 + $0x358] sm:$0xff]
        %v497 = vld [vmem:[%s305 + $0x360] sm:$0xff]
        %v498 = vld [vmem:[%s305 + $0x368] sm:$0xff]
        %v499 = vld [vmem:[%s305 + $0x370] sm:$0xff]
        %v500 = vld [vmem:[%s305 + $0x378] sm:$0xff]
        %v501 = vld [vmem:[%s305 + $0x380] sm:$0xff]
        %v502 = vld [vmem:[%s305 + $0x388] sm:$0xff]
        %v503 = vld [vmem:[%s305 + $0x390] sm:$0xff]
        %v504 = vld [vmem:[%s305 + $0x398] sm:$0xff]
        %v505 = vld [vmem:[%s305 + $0x3a0] sm:$0xff]
        %v506 = vld [vmem:[%s305 + $0x3a8] sm:$0xff]
        %v507 = vld [vmem:[%s305 + $0x3b0] sm:$0xff]
        %v508 = vld [vmem:[%s305 + $0x3b8] sm:$0xff]
        %v509 = vld [vmem:[%s305 + $0x3c0] sm:$0xff]
        %v510 = vld [vmem:[%s305 + $0x3c8] sm:$0xff]
        %v511 = vld [vmem:[%s305 + $0x3d0] sm:$0xff]
        %v512 = vld [vmem:[%s305 + $0x3d8] sm:$0xff]
        %v513 = vld [vmem:[%s305 + $0x3e0] sm:$0xff]
        %v514 = vld [vmem:[%s305 + $0x3e8] sm:$0xff]
        %v515 = vld [vmem:[%s305 + $0x3f0] sm:$0xff]
        %v516 = vld [vmem:[%s305 + $0x3f8] sm:$0xff]
        %v517 = vld [vmem:[%s305 + $0x400] sm:$0xff]
        %v518 = vld [vmem:[%s305 + $0x408] sm:$0xff]
        %v519 = vld [vmem:[%s305 + $0x410] sm:$0xff]
        %v520 = vld [vmem:[%s305 + $0x418] sm:$0xff]
        %v521 = vld [vmem:[%s305 + $0x420] sm:$0xff]
        %v522 = vld [vmem:[%s305 + $0x428] sm:$0xff]
        %v523 = vld [vmem:[%s305 + $0x430] sm:$0xff]
        %v524 = vld [vmem:[%s305 + $0x438] sm:$0xff]
        %v525 = vld [vmem:[%s305 + $0x440] sm:$0xff]
        %v526 = vld [vmem:[%s305 + $0x448] sm:$0xff]
        %v527 = vld [vmem:[%s305 + $0x450] sm:$0xff]
        %v528 = vld [vmem:[%s305 + $0x458] sm:$0xff]
        %v529 = vld [vmem:[%s305 + $0x460] sm:$0xff]
        %v530 = vld [vmem:[%s305 + $0x468] sm:$0xff]
        %v531 = vld [vmem:[%s305 + $0x470] sm:$0xff]
        %v532 = vld [vmem:[%s305 + $0x478] sm:$0xff]
        %v533 = vld [vmem:[%s305 + $0x480] sm:$0xff]
        %v534 = vld [vmem:[%s305 + $0x488] sm:$0xff]
        %v535 = vld [vmem:[%s305 + $0x490] sm:$0xff]
        %v536 = vld [vmem:[%s305 + $0x498] sm:$0xff]
        %v537 = vld [vmem:[%s305 + $0x4a0] sm:$0xff]
        %v538 = vld [vmem:[%s305 + $0x4a8] sm:$0xff]
        %v539 = vld [vmem:[%s305 + $0x4b0] sm:$0xff]
        %v540 = vld [vmem:[%s305 + $0x4b8] sm:$0xff]
        %v541 = vld [vmem:[%s305 + $0x4c0] sm:$0xff]
        %v542 = vld [vmem:[%s305 + $0x4c8] sm:$0xff]
        %v543 = vld [vmem:[%s305 + $0x4d0] sm:$0xff]
        %v544 = vld [vmem:[%s305 + $0x4d8] sm:$0xff]
        %v545 = vld [vmem:[%s305 + $0x4e0] sm:$0xff]
        %v546 = vld [vmem:[%s305 + $0x4e8] sm:$0xff]
        %v547 = vld [vmem:[%s305 + $0x4f0] sm:$0xff]
        %v548 = vld [vmem:[%s305 + $0x4f8] sm:$0xff]
        %v549 = vld [vmem:[%s305 + $0x500] sm:$0xff]
        %v550 = vld [vmem:[%s305 + $0x508] sm:$0xff]
        %v551 = vld [vmem:[%s305 + $0x510] sm:$0xff]
        %v552 = vld [vmem:[%s305 + $0x518] sm:$0xff]
        %v553 = vld [vmem:[%s305 + $0x520] sm:$0xff]
        %v554 = vld [vmem:[%s305 + $0x528] sm:$0xff]
        %v555 = vld [vmem:[%s305 + $0x530] sm:$0xff]
        %v556 = vld [vmem:[%s305 + $0x538] sm:$0xff]
        %v557 = vld [vmem:[%s305 + $0x540] sm:$0xff]
        %v558 = vld [vmem:[%s305 + $0x548] sm:$0xff]
        %v559 = vld [vmem:[%s305 + $0x550] sm:$0xff]
        %v560 = vld [vmem:[%s305 + $0x558] sm:$0xff]
        %v561 = vld [vmem:[%s305 + $0x560] sm:$0xff]
        %v562 = vld [vmem:[%s305 + $0x568] sm:$0xff]
        %v563 = vld [vmem:[%s305 + $0x570] sm:$0xff]
        %v564 = vld [vmem:[%s305 + $0x578] sm:$0xff]
        %v565 = vld [vmem:[%s305 + $0x580] sm:$0xff]
        %v566 = vld [vmem:[%s305 + $0x588] sm:$0xff]
        %v567 = vld [vmem:[%s305 + $0x590] sm:$0xff]
        %v568 = vld [vmem:[%s305 + $0x598] sm:$0xff]
        %v569 = vld [vmem:[%s305 + $0x5a0] sm:$0xff]
        %v570 = vld [vmem:[%s305 + $0x5a8] sm:$0xff]
        %v571 = vld [vmem:[%s305 + $0x5b0] sm:$0xff]
        %v572 = vld [vmem:[%s305 + $0x5b8] sm:$0xff]
        %v573 = vld [vmem:[%s305 + $0x5c0] sm:$0xff]
        %v574 = vld [vmem:[%s305 + $0x5c8] sm:$0xff]
        %v575 = vld [vmem:[%s305 + $0x5d0] sm:$0xff]
        %v576 = vld [vmem:[%s305 + $0x5d8] sm:$0xff]
        %v577 = vld [vmem:[%s305 + $0x5e0] sm:$0xff]
        %v578 = vld [vmem:[%s305 + $0x5e8] sm:$0xff]
        %v579 = vld [vmem:[%s305 + $0x5f0] sm:$0xff]
        %v580 = vld [vmem:[%s305 + $0x5f8] sm:$0xff]
        %v581 = vld [vmem:[%s305 + $0x600] sm:$0xff]
        %v582 = vld [vmem:[%s305 + $0x608] sm:$0xff]
        %v583 = vld [vmem:[%s305 + $0x610] sm:$0xff]
        %v584 = vld [vmem:[%s305 + $0x618] sm:$0xff]
        %v585 = vld [vmem:[%s305 + $0x620] sm:$0xff]
        %v586 = vld [vmem:[%s305 + $0x628] sm:$0xff]
        %v587 = vld [vmem:[%s305 + $0x630] sm:$0xff]
        %v588 = vld [vmem:[%s305 + $0x638] sm:$0xff]
        %v589 = vld [vmem:[%s305 + $0x640] sm:$0xff]
        %v590 = vld [vmem:[%s305 + $0x648] sm:$0xff]
        %v591 = vld [vmem:[%s305 + $0x650] sm:$0xff]
        %v592 = vld [vmem:[%s305 + $0x658] sm:$0xff]
        %v593 = vld [vmem:[%s305 + $0x660] sm:$0xff]
        %v594 = vld [vmem:[%s305 + $0x668] sm:$0xff]
        %v595 = vld [vmem:[%s305 + $0x670] sm:$0xff]
        %v596 = vld [vmem:[%s305 + $0x678] sm:$0xff]
        %v597 = vld [vmem:[%s305 + $0x680] sm:$0xff]
        %v598 = vld [vmem:[%s305 + $0x688] sm:$0xff]
        %v599 = vld [vmem:[%s305 + $0x690] sm:$0xff]
        %v600 = vld [vmem:[%s305 + $0x698] sm:$0xff]
        %v601 = vld [vmem:[%s305 + $0x6a0] sm:$0xff]
        %v602 = vld [vmem:[%s305 + $0x6a8] sm:$0xff]
        %v603 = vld [vmem:[%s305 + $0x6b0] sm:$0xff]
        %v604 = vld [vmem:[%s305 + $0x6b8] sm:$0xff]
        %v605 = vld [vmem:[%s305 + $0x6c0] sm:$0xff]
        %v606 = vld [vmem:[%s305 + $0x6c8] sm:$0xff]
        %v607 = vld [vmem:[%s305 + $0x6d0] sm:$0xff]
        %v608 = vld [vmem:[%s305 + $0x6d8] sm:$0xff]
        %v609 = vld [vmem:[%s305 + $0x6e0] sm:$0xff]
        %v610 = vld [vmem:[%s305 + $0x6e8] sm:$0xff]
        %v611 = vld [vmem:[%s305 + $0x6f0] sm:$0xff]
        %v612 = vld [vmem:[%s305 + $0x6f8] sm:$0xff]
        %v613 = vld [vmem:[%s305 + $0x700] sm:$0xff]
        %v614 = vld [vmem:[%s305 + $0x708] sm:$0xff]
        %v615 = vld [vmem:[%s305 + $0x710] sm:$0xff]
        %v616 = vld [vmem:[%s305 + $0x718] sm:$0xff]
        %v617 = vld [vmem:[%s305 + $0x720] sm:$0xff]
        %v618 = vld [vmem:[%s305 + $0x728] sm:$0xff]
        %v619 = vld [vmem:[%s305 + $0x730] sm:$0xff]
        %v620 = vld [vmem:[%s305 + $0x738] sm:$0xff]
        %v621 = vld [vmem:[%s305 + $0x740] sm:$0xff]
        %v622 = vld [vmem:[%s305 + $0x748] sm:$0xff]
        %v623 = vld [vmem:[%s305 + $0x750] sm:$0xff]
        %v624 = vld [vmem:[%s305 + $0x758] sm:$0xff]
        %v625 = vld [vmem:[%s305 + $0x760] sm:$0xff]
        %v626 = vld [vmem:[%s305 + $0x768] sm:$0xff]
        %v627 = vld [vmem:[%s305 + $0x770] sm:$0xff]
        %v628 = vld [vmem:[%s305 + $0x778] sm:$0xff]
        %v629 = vld [vmem:[%s305 + $0x780] sm:$0xff]
        %v630 = vld [vmem:[%s305 + $0x788] sm:$0xff]
        %v631 = vld [vmem:[%s305 + $0x790] sm:$0xff]
        %v632 = vld [vmem:[%s305 + $0x798] sm:$0xff]
        %v633 = vld [vmem:[%s305 + $0x7a0] sm:$0xff]
        %v634 = vld [vmem:[%s305 + $0x7a8] sm:$0xff]
        %v635 = vld [vmem:[%s305 + $0x7b0] sm:$0xff]
        %v636 = vld [vmem:[%s305 + $0x7b8] sm:$0xff]
        %v637 = vld [vmem:[%s305 + $0x7c0] sm:$0xff]
        %v638 = vld [vmem:[%s305 + $0x7c8] sm:$0xff]
        %v639 = vld [vmem:[%s305 + $0x7d0] sm:$0xff]
        %v640 = vld [vmem:[%s305 + $0x7d8] sm:$0xff]
        %v641 = vld [vmem:[%s305 + $0x7e0] sm:$0xff]
        %v642 = vld [vmem:[%s305 + $0x7e8] sm:$0xff]
        %v643 = vld [vmem:[%s305 + $0x7f0] sm:$0xff]
        %v644 = vld [vmem:[%s305 + $0x7f8] sm:$0xff]
        %v645 = vld [vmem:[%s305 + $0x800] sm:$0xff]
        %v646 = vld [vmem:[%s305 + $0x808] sm:$0xff]
        %v647 = vld [vmem:[%s305 + $0x810] sm:$0xff]
        %v648 = vld [vmem:[%s305 + $0x818] sm:$0xff]
        %v649 = vld [vmem:[%s305 + $0x820] sm:$0xff]
        %v650 = vld [vmem:[%s305 + $0x828] sm:$0xff]
        %v651 = vld [vmem:[%s305 + $0x830] sm:$0xff]
        %v652 = vld [vmem:[%s305 + $0x838] sm:$0xff]
        %v653 = vld [vmem:[%s305 + $0x840] sm:$0xff]
        %v654 = vld [vmem:[%s305 + $0x848] sm:$0xff]
        %v655 = vld [vmem:[%s305 + $0x850] sm:$0xff]
        %v656 = vld [vmem:[%s305 + $0x858] sm:$0xff]
        %v657 = vld [vmem:[%s305 + $0x860] sm:$0xff]
        %v658 = vld [vmem:[%s305 + $0x868] sm:$0xff]
        %v659 = vld [vmem:[%s305 + $0x870] sm:$0xff]
        %v660 = vld [vmem:[%s305 + $0x878] sm:$0xff]
        %v661 = vld [vmem:[%s305 + $0x880] sm:$0xff]
        %v662 = vld [vmem:[%s305 + $0x888] sm:$0xff]
        %v663 = vld [vmem:[%s305 + $0x890] sm:$0xff]
        %v664 = vld [vmem:[%s305 + $0x898] sm:$0xff]
        %v665 = vld [vmem:[%s305 + $0x8a0] sm:$0xff]
        %v666 = vld [vmem:[%s305 + $0x8a8] sm:$0xff]
        %v667 = vld [vmem:[%s305 + $0x8b0] sm:$0xff]
        %v668 = vld [vmem:[%s305 + $0x8b8] sm:$0xff]
        %v669 = vld [vmem:[%s305 + $0x8c0] sm:$0xff]
        %v670 = vld [vmem:[%s305 + $0x8c8] sm:$0xff]
        %v671 = vld [vmem:[%s305 + $0x8d0] sm:$0xff]
        %v672 = vld [vmem:[%s305 + $0x8d8] sm:$0xff]
        %v673 = vld [vmem:[%s305 + $0x8e0] sm:$0xff]
        %v674 = vld [vmem:[%s305 + $0x8e8] sm:$0xff]
        %v675 = vld [vmem:[%s305 + $0x8f0] sm:$0xff]
        %v676 = vld [vmem:[%s305 + $0x8f8] sm:$0xff]
        %v677 = vld [vmem:[%s305 + $0x900] sm:$0xff]
        %v678 = vld [vmem:[%s305 + $0x908] sm:$0xff]
        %v679 = vld [vmem:[%s305 + $0x910] sm:$0xff]
        %v680 = vld [vmem:[%s305 + $0x918] sm:$0xff]
        %v681 = vld [vmem:[%s305 + $0x920] sm:$0xff]
        %v682 = vld [vmem:[%s305 + $0x928] sm:$0xff]
        %v683 = vld [vmem:[%s305 + $0x930] sm:$0xff]
        %v684 = vld [vmem:[%s305 + $0x938] sm:$0xff]
        %v685 = vld [vmem:[%s305 + $0x940] sm:$0xff]
        %v686 = vld [vmem:[%s305 + $0x948] sm:$0xff]
        %v687 = vld [vmem:[%s305 + $0x950] sm:$0xff]
        %v688 = vld [vmem:[%s305 + $0x958] sm:$0xff]
        %v689 = vld [vmem:[%s305 + $0x960] sm:$0xff]
        %v690 = vld [vmem:[%s305 + $0x968] sm:$0xff]
        %v691 = vld [vmem:[%s305 + $0x970] sm:$0xff]
        %v692 = vld [vmem:[%s305 + $0x978] sm:$0xff]
        %v693 = vld [vmem:[%s305 + $0x980] sm:$0xff]
        %v694 = vld [vmem:[%s305 + $0x988] sm:$0xff]
        %v695 = vld [vmem:[%s305 + $0x990] sm:$0xff]
        %v696 = vld [vmem:[%s305 + $0x998] sm:$0xff]
        %v697 = vld [vmem:[%s305 + $0x9a0] sm:$0xff]
        %v698 = vld [vmem:[%s305 + $0x9a8] sm:$0xff]
        %v699 = vld [vmem:[%s305 + $0x9b0] sm:$0xff]
        %v700 = vld [vmem:[%s305 + $0x9b8] sm:$0xff]
        %v701 = vld [vmem:[%s305 + $0x9c0] sm:$0xff]
        %v702 = vld [vmem:[%s305 + $0x9c8] sm:$0xff]
        %v703 = vld [vmem:[%s305 + $0x9d0] sm:$0xff]
        %v704 = vld [vmem:[%s305 + $0x9d8] sm:$0xff]
        %v705 = vld [vmem:[%s305 + $0x9e0] sm:$0xff]
        %v706 = vld [vmem:[%s305 + $0x9e8] sm:$0xff]
        %v707 = vld [vmem:[%s305 + $0x9f0] sm:$0xff]
        %v708 = vld [vmem:[%s305 + $0x9f8] sm:$0xff]
        %v709 = vld [vmem:[%s305 + $0xa00] sm:$0xff]
        %v710 = vld [vmem:[%s305 + $0xa08] sm:$0xff]
        %v711 = vld [vmem:[%s305 + $0xa10] sm:$0xff]
        %v712 = vld [vmem:[%s305 + $0xa18] sm:$0xff]
        %v713 = vld [vmem:[%s305 + $0xa20] sm:$0xff]
        %v714 = vld [vmem:[%s305 + $0xa28] sm:$0xff]
        %v715 = vld [vmem:[%s305 + $0xa30] sm:$0xff]
        %v716 = vld [vmem:[%s305 + $0xa38] sm:$0xff]
        %v717 = vld [vmem:[%s305 + $0xa40] sm:$0xff]
        %v718 = vld [vmem:[%s305 + $0xa48] sm:$0xff]
        %v719 = vld [vmem:[%s305 + $0xa50] sm:$0xff]
        %v720 = vld [vmem:[%s305 + $0xa58] sm:$0xff]
        %v721 = vld [vmem:[%s305 + $0xa60] sm:$0xff]
        %v722 = vld [vmem:[%s305 + $0xa68] sm:$0xff]
        %v723 = vld [vmem:[%s305 + $0xa70] sm:$0xff]
        %v724 = vld [vmem:[%s305 + $0xa78] sm:$0xff]
        %v725 = vld [vmem:[%s305 + $0xa80] sm:$0xff]
        %v726 = vld [vmem:[%s305 + $0xa88] sm:$0xff]
        %v727 = vld [vmem:[%s305 + $0xa90] sm:$0xff]
        %v728 = vld [vmem:[%s305 + $0xa98] sm:$0xff]
        %v729 = vld [vmem:[%s305 + $0xaa0] sm:$0xff]
        %v730 = vld [vmem:[%s305 + $0xaa8] sm:$0xff]
        %v731 = vld [vmem:[%s305 + $0xab0] sm:$0xff]
        %v732 = vld [vmem:[%s305 + $0xab8] sm:$0xff]
        %v733 = vld [vmem:[%s305 + $0xac0] sm:$0xff]
        %v734 = vld [vmem:[%s305 + $0xac8] sm:$0xff]
        %v735 = vld [vmem:[%s305 + $0xad0] sm:$0xff]
        %v736 = vld [vmem:[%s305 + $0xad8] sm:$0xff]
        %v737 = vld [vmem:[%s305 + $0xae0] sm:$0xff]
        %v738 = vld [vmem:[%s305 + $0xae8] sm:$0xff]
        %v739 = vld [vmem:[%s305 + $0xaf0] sm:$0xff]
        %v740 = vld [vmem:[%s305 + $0xaf8] sm:$0xff]
        %v741 = vld [vmem:[%s305 + $0xb00] sm:$0xff]
        %v742 = vld [vmem:[%s305 + $0xb08] sm:$0xff]
        %v743 = vld [vmem:[%s305 + $0xb10] sm:$0xff]
        %v744 = vld [vmem:[%s305 + $0xb18] sm:$0xff]
        %v745 = vld [vmem:[%s305 + $0xb20] sm:$0xff]
        %v746 = vld [vmem:[%s305 + $0xb28] sm:$0xff]
        %v747 = vld [vmem:[%s305 + $0xb30] sm:$0xff]
        %v748 = vld [vmem:[%s305 + $0xb38] sm:$0xff]
        %v749 = vld [vmem:[%s305 + $0xb40] sm:$0xff]
        %v750 = vld [vmem:[%s305 + $0xb48] sm:$0xff]
        %v751 = vld [vmem:[%s305 + $0xb50] sm:$0xff]
        %v752 = vld [vmem:[%s305 + $0xb58] sm:$0xff]
        %v753 = vld [vmem:[%s305 + $0xb60] sm:$0xff]
        %v754 = vld [vmem:[%s305 + $0xb68] sm:$0xff]
        %v755 = vld [vmem:[%s305 + $0xb70] sm:$0xff]
        %v756 = vld [vmem:[%s305 + $0xb78] sm:$0xff]
        %v757 = vld [vmem:[%s305 + $0xb80] sm:$0xff]
        %v758 = vld [vmem:[%s305 + $0xb88] sm:$0xff]
        %v759 = vld [vmem:[%s305 + $0xb90] sm:$0xff]
        %v760 = vld [vmem:[%s305 + $0xb98] sm:$0xff]
        %v761 = vld [vmem:[%s305 + $0xba0] sm:$0xff]
        %v762 = vld [vmem:[%s305 + $0xba8] sm:$0xff]
        %v763 = vld [vmem:[%s305 + $0xbb0] sm:$0xff]
        %v764 = vld [vmem:[%s305 + $0xbb8] sm:$0xff]
        %v765 = vld [vmem:[%s305 + $0xbc0] sm:$0xff]
        %v766 = vld [vmem:[%s305 + $0xbc8] sm:$0xff]
        %v767 = vld [vmem:[%s305 + $0xbd0] sm:$0xff]
        %v768 = vld [vmem:[%s305 + $0xbd8] sm:$0xff]
        %v769 = vld [vmem:[%s305 + $0xbe0] sm:$0xff]
        %v770 = vld [vmem:[%s305 + $0xbe8] sm:$0xff]
        %v771 = vld [vmem:[%s305 + $0xbf0] sm:$0xff]
        %v772 = vld [vmem:[%s305 + $0xbf8] sm:$0xff]
        %v773 = vld [vmem:[%s305 + $0xc00] sm:$0xff]
        %v774 = vld [vmem:[%s305 + $0xc08] sm:$0xff]
        %v775 = vld [vmem:[%s305 + $0xc10] sm:$0xff]
        %v776 = vld [vmem:[%s305 + $0xc18] sm:$0xff]
        %v777 = vld [vmem:[%s305 + $0xc20] sm:$0xff]
        %v778 = vld [vmem:[%s305 + $0xc28] sm:$0xff]
        %v779 = vld [vmem:[%s305 + $0xc30] sm:$0xff]
        %v780 = vld [vmem:[%s305 + $0xc38] sm:$0xff]
        %v781 = vld [vmem:[%s305 + $0xc40] sm:$0xff]
        %v782 = vld [vmem:[%s305 + $0xc48] sm:$0xff]
        %v783 = vld [vmem:[%s305 + $0xc50] sm:$0xff]
        %v784 = vld [vmem:[%s305 + $0xc58] sm:$0xff]
        %v785 = vld [vmem:[%s305 + $0xc60] sm:$0xff]
        %v786 = vld [vmem:[%s305 + $0xc68] sm:$0xff]
        %v787 = vld [vmem:[%s305 + $0xc70] sm:$0xff]
        %v788 = vld [vmem:[%s305 + $0xc78] sm:$0xff]
        %v789 = vunpack.c.0.s8 %v389
        %v790 = vunpack.c.0.s8 %v390
        %v791 = vunpack.c.0.s8 %v391
        %v792 = vunpack.c.0.s8 %v392
        %v793 = vunpack.c.0.s8 %v393
        %v794 = vunpack.c.0.s8 %v394
        %v795 = vunpack.c.0.s8 %v395
        %v796 = vunpack.c.0.s8 %v396
        %v797 = vunpack.c.0.s8 %v397
        %v798 = vunpack.c.0.s8 %v398
        %v799 = vunpack.c.1.s8 %v389
        %v800 = vunpack.c.1.s8 %v390
        %v801 = vunpack.c.1.s8 %v391
        %v802 = vunpack.c.1.s8 %v392
        %v803 = vunpack.c.1.s8 %v393
        %v804 = vunpack.c.1.s8 %v394
        %v805 = vunpack.c.1.s8 %v395
        %v806 = vunpack.c.1.s8 %v396
        %v807 = vunpack.c.1.s8 %v397
        %v808 = vunpack.c.1.s8 %v398
        %v809 = vunpack.c.2.s8 %v389
        %v810 = vunpack.c.2.s8 %v390
        %v811 = vunpack.c.2.s8 %v391
        %v812 = vunpack.c.2.s8 %v392
        %v813 = vunpack.c.2.s8 %v393
        %v814 = vunpack.c.2.s8 %v394
        %v815 = vunpack.c.2.s8 %v395
        %v816 = vunpack.c.2.s8 %v396
        %v817 = vunpack.c.2.s8 %v397
        %v818 = vunpack.c.2.s8 %v398
        %v819 = vunpack.c.3.s8 %v389
        %v820 = vunpack.c.3.s8 %v390
        %v821 = vunpack.c.3.s8 %v391
        %v822 = vunpack.c.3.s8 %v392
        %v823 = vunpack.c.3.s8 %v393
        %v824 = vunpack.c.3.s8 %v394
        %v825 = vunpack.c.3.s8 %v395
        %v826 = vunpack.c.3.s8 %v396
        %v827 = vunpack.c.3.s8 %v397
        %v828 = vunpack.c.3.s8 %v398
        %v829 = vunpack.c.0.s8 %v399
        %v830 = vunpack.c.0.s8 %v400
        %v831 = vunpack.c.0.s8 %v401
        %v832 = vunpack.c.0.s8 %v402
        %v833 = vunpack.c.0.s8 %v403
        %v834 = vunpack.c.0.s8 %v404
        %v835 = vunpack.c.0.s8 %v405
        %v836 = vunpack.c.0.s8 %v406
        %v837 = vunpack.c.0.s8 %v407
        %v838 = vunpack.c.0.s8 %v408
        %v839 = vunpack.c.1.s8 %v399
        %v840 = vunpack.c.1.s8 %v400
        %v841 = vunpack.c.1.s8 %v401
        %v842 = vunpack.c.1.s8 %v402
        %v843 = vunpack.c.1.s8 %v403
        %v844 = vunpack.c.1.s8 %v404
        %v845 = vunpack.c.1.s8 %v405
        %v846 = vunpack.c.1.s8 %v406
        %v847 = vunpack.c.1.s8 %v407
        %v848 = vunpack.c.1.s8 %v408
        %v849 = vunpack.c.2.s8 %v399
        %v850 = vunpack.c.2.s8 %v400
        %v851 = vunpack.c.2.s8 %v401
        %v852 = vunpack.c.2.s8 %v402
        %v853 = vunpack.c.2.s8 %v403
        %v854 = vunpack.c.2.s8 %v404
        %v855 = vunpack.c.2.s8 %v405
        %v856 = vunpack.c.2.s8 %v406
        %v857 = vunpack.c.2.s8 %v407
        %v858 = vunpack.c.2.s8 %v408
        %v859 = vunpack.c.3.s8 %v399
        %v860 = vunpack.c.3.s8 %v400
        %v861 = vunpack.c.3.s8 %v401
        %v862 = vunpack.c.3.s8 %v402
        %v863 = vunpack.c.3.s8 %v403
        %v864 = vunpack.c.3.s8 %v404
        %v865 = vunpack.c.3.s8 %v405
        %v866 = vunpack.c.3.s8 %v406
        %v867 = vunpack.c.3.s8 %v407
        %v868 = vunpack.c.3.s8 %v408
        %v869 = vunpack.c.0.s8 %v409
        %v870 = vunpack.c.0.s8 %v410
        %v871 = vunpack.c.0.s8 %v411
        %v872 = vunpack.c.0.s8 %v412
        %v873 = vunpack.c.0.s8 %v413
        %v874 = vunpack.c.0.s8 %v414
        %v875 = vunpack.c.0.s8 %v415
        %v876 = vunpack.c.0.s8 %v416
        %v877 = vunpack.c.0.s8 %v417
        %v878 = vunpack.c.0.s8 %v418
        %v879 = vunpack.c.1.s8 %v409
        %v880 = vunpack.c.1.s8 %v410
        %v881 = vunpack.c.1.s8 %v411
        %v882 = vunpack.c.1.s8 %v412
        %v883 = vunpack.c.1.s8 %v413
        %v884 = vunpack.c.1.s8 %v414
        %v885 = vunpack.c.1.s8 %v415
        %v886 = vunpack.c.1.s8 %v416
        %v887 = vunpack.c.1.s8 %v417
        %v888 = vunpack.c.1.s8 %v418
        %v889 = vunpack.c.2.s8 %v409
        %v890 = vunpack.c.2.s8 %v410
        %v891 = vunpack.c.2.s8 %v411
        %v892 = vunpack.c.2.s8 %v412
        %v893 = vunpack.c.2.s8 %v413
        %v894 = vunpack.c.2.s8 %v414
        %v895 = vunpack.c.2.s8 %v415
        %v896 = vunpack.c.2.s8 %v416
        %v897 = vunpack.c.2.s8 %v417
        %v898 = vunpack.c.2.s8 %v418
        %v899 = vunpack.c.3.s8 %v409
        %v900 = vunpack.c.3.s8 %v410
        %v901 = vunpack.c.3.s8 %v411
        %v902 = vunpack.c.3.s8 %v412
        %v903 = vunpack.c.3.s8 %v413
        %v904 = vunpack.c.3.s8 %v414
        %v905 = vunpack.c.3.s8 %v415
        %v906 = vunpack.c.3.s8 %v416
        %v907 = vunpack.c.3.s8 %v417
        %v908 = vunpack.c.3.s8 %v418
        %v909 = vunpack.c.0.s8 %v419
        %v910 = vunpack.c.0.s8 %v420
        %v911 = vunpack.c.0.s8 %v421
        %v912 = vunpack.c.0.s8 %v422
        %v913 = vunpack.c.0.s8 %v423
        %v914 = vunpack.c.0.s8 %v424
        %v915 = vunpack.c.0.s8 %v425
        %v916 = vunpack.c.0.s8 %v426
        %v917 = vunpack.c.0.s8 %v427
        %v918 = vunpack.c.0.s8 %v428
        %v919 = vunpack.c.1.s8 %v419
        %v920 = vunpack.c.1.s8 %v420
        %v921 = vunpack.c.1.s8 %v421
        %v922 = vunpack.c.1.s8 %v422
        %v923 = vunpack.c.1.s8 %v423
        %v924 = vunpack.c.1.s8 %v424
        %v925 = vunpack.c.1.s8 %v425
        %v926 = vunpack.c.1.s8 %v426
        %v927 = vunpack.c.1.s8 %v427
        %v928 = vunpack.c.1.s8 %v428
        %v929 = vunpack.c.2.s8 %v419
        %v930 = vunpack.c.2.s8 %v420
        %v931 = vunpack.c.2.s8 %v421
        %v932 = vunpack.c.2.s8 %v422
        %v933 = vunpack.c.2.s8 %v423
        %v934 = vunpack.c.2.s8 %v424
        %v935 = vunpack.c.2.s8 %v425
        %v936 = vunpack.c.2.s8 %v426
        %v937 = vunpack.c.2.s8 %v427
        %v938 = vunpack.c.2.s8 %v428
        %v939 = vunpack.c.3.s8 %v419
        %v940 = vunpack.c.3.s8 %v420
        %v941 = vunpack.c.3.s8 %v421
        %v942 = vunpack.c.3.s8 %v422
        %v943 = vunpack.c.3.s8 %v423
        %v944 = vunpack.c.3.s8 %v424
        %v945 = vunpack.c.3.s8 %v425
        %v946 = vunpack.c.3.s8 %v426
        %v947 = vunpack.c.3.s8 %v427
        %v948 = vunpack.c.3.s8 %v428
        %v949 = vunpack.c.0.s8 %v429
        %v950 = vunpack.c.0.s8 %v430
        %v951 = vunpack.c.0.s8 %v431
        %v952 = vunpack.c.0.s8 %v432
        %v953 = vunpack.c.0.s8 %v433
        %v954 = vunpack.c.0.s8 %v434
        %v955 = vunpack.c.0.s8 %v435
        %v956 = vunpack.c.0.s8 %v436
        %v957 = vunpack.c.0.s8 %v437
        %v958 = vunpack.c.0.s8 %v438
        %v959 = vunpack.c.1.s8 %v429
        %v960 = vunpack.c.1.s8 %v430
        %v961 = vunpack.c.1.s8 %v431
        %v962 = vunpack.c.1.s8 %v432
        %v963 = vunpack.c.1.s8 %v433
        %v964 = vunpack.c.1.s8 %v434
        %v965 = vunpack.c.1.s8 %v435
        %v966 = vunpack.c.1.s8 %v436
        %v967 = vunpack.c.1.s8 %v437
        %v968 = vunpack.c.1.s8 %v438
        %v969 = vunpack.c.2.s8 %v429
        %v970 = vunpack.c.2.s8 %v430
        %v971 = vunpack.c.2.s8 %v431
        %v972 = vunpack.c.2.s8 %v432
        %v973 = vunpack.c.2.s8 %v433
        %v974 = vunpack.c.2.s8 %v434
        %v975 = vunpack.c.2.s8 %v435
        %v976 = vunpack.c.2.s8 %v436
        %v977 = vunpack.c.2.s8 %v437
        %v978 = vunpack.c.2.s8 %v438
        %v979 = vunpack.c.3.s8 %v429
        %v980 = vunpack.c.3.s8 %v430
        %v981 = vunpack.c.3.s8 %v431
        %v982 = vunpack.c.3.s8 %v432
        %v983 = vunpack.c.3.s8 %v433
        %v984 = vunpack.c.3.s8 %v434
        %v985 = vunpack.c.3.s8 %v435
        %v986 = vunpack.c.3.s8 %v436
        %v987 = vunpack.c.3.s8 %v437
        %v988 = vunpack.c.3.s8 %v438
        %v989 = vunpack.c.0.s8 %v439
        %v990 = vunpack.c.0.s8 %v440
        %v991 = vunpack.c.0.s8 %v441
        %v992 = vunpack.c.0.s8 %v442
        %v993 = vunpack.c.0.s8 %v443
        %v994 = vunpack.c.0.s8 %v444
        %v995 = vunpack.c.0.s8 %v445
        %v996 = vunpack.c.0.s8 %v446
        %v997 = vunpack.c.0.s8 %v447
        %v998 = vunpack.c.0.s8 %v448
        %v999 = vunpack.c.1.s8 %v439
        %v1000 = vunpack.c.1.s8 %v440
        %v1001 = vunpack.c.1.s8 %v441
        %v1002 = vunpack.c.1.s8 %v442
        %v1003 = vunpack.c.1.s8 %v443
        %v1004 = vunpack.c.1.s8 %v444
        %v1005 = vunpack.c.1.s8 %v445
        %v1006 = vunpack.c.1.s8 %v446
        %v1007 = vunpack.c.1.s8 %v447
        %v1008 = vunpack.c.1.s8 %v448
        %v1009 = vunpack.c.2.s8 %v439
        %v1010 = vunpack.c.2.s8 %v440
        %v1011 = vunpack.c.2.s8 %v441
        %v1012 = vunpack.c.2.s8 %v442
        %v1013 = vunpack.c.2.s8 %v443
        %v1014 = vunpack.c.2.s8 %v444
        %v1015 = vunpack.c.2.s8 %v445
        %v1016 = vunpack.c.2.s8 %v446
        %v1017 = vunpack.c.2.s8 %v447
        %v1018 = vunpack.c.2.s8 %v448
        %v1019 = vunpack.c.3.s8 %v439
        %v1020 = vunpack.c.3.s8 %v440
        %v1021 = vunpack.c.3.s8 %v441
        %v1022 = vunpack.c.3.s8 %v442
        %v1023 = vunpack.c.3.s8 %v443
        %v1024 = vunpack.c.3.s8 %v444
        %v1025 = vunpack.c.3.s8 %v445
        %v1026 = vunpack.c.3.s8 %v446
        %v1027 = vunpack.c.3.s8 %v447
        %v1028 = vunpack.c.3.s8 %v448
        %v1029 = vunpack.c.0.s8 %v449
        %v1030 = vunpack.c.0.s8 %v450
        %v1031 = vunpack.c.0.s8 %v451
        %v1032 = vunpack.c.0.s8 %v452
        %v1033 = vunpack.c.0.s8 %v453
        %v1034 = vunpack.c.0.s8 %v454
        %v1035 = vunpack.c.0.s8 %v455
        %v1036 = vunpack.c.0.s8 %v456
        %v1037 = vunpack.c.0.s8 %v457
        %v1038 = vunpack.c.0.s8 %v458
        %v1039 = vunpack.c.1.s8 %v449
        %v1040 = vunpack.c.1.s8 %v450
        %v1041 = vunpack.c.1.s8 %v451
        %v1042 = vunpack.c.1.s8 %v452
        %v1043 = vunpack.c.1.s8 %v453
        %v1044 = vunpack.c.1.s8 %v454
        %v1045 = vunpack.c.1.s8 %v455
        %v1046 = vunpack.c.1.s8 %v456
        %v1047 = vunpack.c.1.s8 %v457
        %v1048 = vunpack.c.1.s8 %v458
        %v1049 = vunpack.c.2.s8 %v449
        %v1050 = vunpack.c.2.s8 %v450
        %v1051 = vunpack.c.2.s8 %v451
        %v1052 = vunpack.c.2.s8 %v452
        %v1053 = vunpack.c.2.s8 %v453
        %v1054 = vunpack.c.2.s8 %v454
        %v1055 = vunpack.c.2.s8 %v455
        %v1056 = vunpack.c.2.s8 %v456
        %v1057 = vunpack.c.2.s8 %v457
        %v1058 = vunpack.c.2.s8 %v458
        %v1059 = vunpack.c.3.s8 %v449
        %v1060 = vunpack.c.3.s8 %v450
        %v1061 = vunpack.c.3.s8 %v451
        %v1062 = vunpack.c.3.s8 %v452
        %v1063 = vunpack.c.3.s8 %v453
        %v1064 = vunpack.c.3.s8 %v454
        %v1065 = vunpack.c.3.s8 %v455
        %v1066 = vunpack.c.3.s8 %v456
        %v1067 = vunpack.c.3.s8 %v457
        %v1068 = vunpack.c.3.s8 %v458
        %v1069 = vunpack.c.0.s8 %v459
        %v1070 = vunpack.c.0.s8 %v460
        %v1071 = vunpack.c.0.s8 %v461
        %v1072 = vunpack.c.0.s8 %v462
        %v1073 = vunpack.c.0.s8 %v463
        %v1074 = vunpack.c.0.s8 %v464
        %v1075 = vunpack.c.0.s8 %v465
        %v1076 = vunpack.c.0.s8 %v466
        %v1077 = vunpack.c.0.s8 %v467
        %v1078 = vunpack.c.0.s8 %v468
        %v1079 = vunpack.c.1.s8 %v459
        %v1080 = vunpack.c.1.s8 %v460
        %v1081 = vunpack.c.1.s8 %v461
        %v1082 = vunpack.c.1.s8 %v462
        %v1083 = vunpack.c.1.s8 %v463
        %v1084 = vunpack.c.1.s8 %v464
        %v1085 = vunpack.c.1.s8 %v465
        %v1086 = vunpack.c.1.s8 %v466
        %v1087 = vunpack.c.1.s8 %v467
        %v1088 = vunpack.c.1.s8 %v468
        %v1089 = vunpack.c.2.s8 %v459
        %v1090 = vunpack.c.2.s8 %v460
        %v1091 = vunpack.c.2.s8 %v461
        %v1092 = vunpack.c.2.s8 %v462
        %v1093 = vunpack.c.2.s8 %v463
        %v1094 = vunpack.c.2.s8 %v464
        %v1095 = vunpack.c.2.s8 %v465
        %v1096 = vunpack.c.2.s8 %v466
        %v1097 = vunpack.c.2.s8 %v467
        %v1098 = vunpack.c.2.s8 %v468
        %v1099 = vunpack.c.3.s8 %v459
        %v1100 = vunpack.c.3.s8 %v460
        %v1101 = vunpack.c.3.s8 %v461
        %v1102 = vunpack.c.3.s8 %v462
        %v1103 = vunpack.c.3.s8 %v463
        %v1104 = vunpack.c.3.s8 %v464
        %v1105 = vunpack.c.3.s8 %v465
        %v1106 = vunpack.c.3.s8 %v466
        %v1107 = vunpack.c.3.s8 %v467
        %v1108 = vunpack.c.3.s8 %v468
        %v1109 = vunpack.c.0.s8 %v469
        %v1110 = vunpack.c.0.s8 %v470
        %v1111 = vunpack.c.0.s8 %v471
        %v1112 = vunpack.c.0.s8 %v472
        %v1113 = vunpack.c.0.s8 %v473
        %v1114 = vunpack.c.0.s8 %v474
        %v1115 = vunpack.c.0.s8 %v475
        %v1116 = vunpack.c.0.s8 %v476
        %v1117 = vunpack.c.0.s8 %v477
        %v1118 = vunpack.c.0.s8 %v478
        %v1119 = vunpack.c.1.s8 %v469
        %v1120 = vunpack.c.1.s8 %v470
        %v1121 = vunpack.c.1.s8 %v471
        %v1122 = vunpack.c.1.s8 %v472
        %v1123 = vunpack.c.1.s8 %v473
        %v1124 = vunpack.c.1.s8 %v474
        %v1125 = vunpack.c.1.s8 %v475
        %v1126 = vunpack.c.1.s8 %v476
        %v1127 = vunpack.c.1.s8 %v477
        %v1128 = vunpack.c.1.s8 %v478
        %v1129 = vunpack.c.2.s8 %v469
        %v1130 = vunpack.c.2.s8 %v470
        %v1131 = vunpack.c.2.s8 %v471
        %v1132 = vunpack.c.2.s8 %v472
        %v1133 = vunpack.c.2.s8 %v473
        %v1134 = vunpack.c.2.s8 %v474
        %v1135 = vunpack.c.2.s8 %v475
        %v1136 = vunpack.c.2.s8 %v476
        %v1137 = vunpack.c.2.s8 %v477
        %v1138 = vunpack.c.2.s8 %v478
        %v1139 = vunpack.c.3.s8 %v469
        %v1140 = vunpack.c.3.s8 %v470
        %v1141 = vunpack.c.3.s8 %v471
        %v1142 = vunpack.c.3.s8 %v472
        %v1143 = vunpack.c.3.s8 %v473
        %v1144 = vunpack.c.3.s8 %v474
        %v1145 = vunpack.c.3.s8 %v475
        %v1146 = vunpack.c.3.s8 %v476
        %v1147 = vunpack.c.3.s8 %v477
        %v1148 = vunpack.c.3.s8 %v478
        %v1149 = vunpack.c.0.s8 %v479
        %v1150 = vunpack.c.0.s8 %v480
        %v1151 = vunpack.c.0.s8 %v481
        %v1152 = vunpack.c.0.s8 %v482
        %v1153 = vunpack.c.0.s8 %v483
        %v1154 = vunpack.c.0.s8 %v484
        %v1155 = vunpack.c.0.s8 %v485
        %v1156 = vunpack.c.0.s8 %v486
        %v1157 = vunpack.c.0.s8 %v487
        %v1158 = vunpack.c.0.s8 %v488
        %v1159 = vunpack.c.1.s8 %v479
        %v1160 = vunpack.c.1.s8 %v480
        %v1161 = vunpack.c.1.s8 %v481
        %v1162 = vunpack.c.1.s8 %v482
        %v1163 = vunpack.c.1.s8 %v483
        %v1164 = vunpack.c.1.s8 %v484
        %v1165 = vunpack.c.1.s8 %v485
        %v1166 = vunpack.c.1.s8 %v486
        %v1167 = vunpack.c.1.s8 %v487
        %v1168 = vunpack.c.1.s8 %v488
        %v1169 = vunpack.c.2.s8 %v479
        %v1170 = vunpack.c.2.s8 %v480
        %v1171 = vunpack.c.2.s8 %v481
        %v1172 = vunpack.c.2.s8 %v482
        %v1173 = vunpack.c.2.s8 %v483
        %v1174 = vunpack.c.2.s8 %v484
        %v1175 = vunpack.c.2.s8 %v485
        %v1176 = vunpack.c.2.s8 %v486
        %v1177 = vunpack.c.2.s8 %v487
        %v1178 = vunpack.c.2.s8 %v488
        %v1179 = vunpack.c.3.s8 %v479
        %v1180 = vunpack.c.3.s8 %v480
        %v1181 = vunpack.c.3.s8 %v481
        %v1182 = vunpack.c.3.s8 %v482
        %v1183 = vunpack.c.3.s8 %v483
        %v1184 = vunpack.c.3.s8 %v484
        %v1185 = vunpack.c.3.s8 %v485
        %v1186 = vunpack.c.3.s8 %v486
        %v1187 = vunpack.c.3.s8 %v487
        %v1188 = vunpack.c.3.s8 %v488
        %v1189 = vunpack.c.0.s8 %v489
        %v1190 = vunpack.c.0.s8 %v490
        %v1191 = vunpack.c.0.s8 %v491
        %v1192 = vunpack.c.0.s8 %v492
        %v1193 = vunpack.c.0.s8 %v493
        %v1194 = vunpack.c.0.s8 %v494
        %v1195 = vunpack.c.0.s8 %v495
        %v1196 = vunpack.c.0.s8 %v496
        %v1197 = vunpack.c.0.s8 %v497
        %v1198 = vunpack.c.0.s8 %v498
        %v1199 = vunpack.c.1.s8 %v489
        %v1200 = vunpack.c.1.s8 %v490
        %v1201 = vunpack.c.1.s8 %v491
        %v1202 = vunpack.c.1.s8 %v492
        %v1203 = vunpack.c.1.s8 %v493
        %v1204 = vunpack.c.1.s8 %v494
        %v1205 = vunpack.c.1.s8 %v495
        %v1206 = vunpack.c.1.s8 %v496
        %v1207 = vunpack.c.1.s8 %v497
        %v1208 = vunpack.c.1.s8 %v498
        %v1209 = vunpack.c.2.s8 %v489
        %v1210 = vunpack.c.2.s8 %v490
        %v1211 = vunpack.c.2.s8 %v491
        %v1212 = vunpack.c.2.s8 %v492
        %v1213 = vunpack.c.2.s8 %v493
        %v1214 = vunpack.c.2.s8 %v494
        %v1215 = vunpack.c.2.s8 %v495
        %v1216 = vunpack.c.2.s8 %v496
        %v1217 = vunpack.c.2.s8 %v497
        %v1218 = vunpack.c.2.s8 %v498
        %v1219 = vunpack.c.3.s8 %v489
        %v1220 = vunpack.c.3.s8 %v490
        %v1221 = vunpack.c.3.s8 %v491
        %v1222 = vunpack.c.3.s8 %v492
        %v1223 = vunpack.c.3.s8 %v493
        %v1224 = vunpack.c.3.s8 %v494
        %v1225 = vunpack.c.3.s8 %v495
        %v1226 = vunpack.c.3.s8 %v496
        %v1227 = vunpack.c.3.s8 %v497
        %v1228 = vunpack.c.3.s8 %v498
        %v1229 = vunpack.c.0.s8 %v499
        %v1230 = vunpack.c.0.s8 %v500
        %v1231 = vunpack.c.0.s8 %v501
        %v1232 = vunpack.c.0.s8 %v502
        %v1233 = vunpack.c.0.s8 %v503
        %v1234 = vunpack.c.0.s8 %v504
        %v1235 = vunpack.c.0.s8 %v505
        %v1236 = vunpack.c.0.s8 %v506
        %v1237 = vunpack.c.0.s8 %v507
        %v1238 = vunpack.c.0.s8 %v508
        %v1239 = vunpack.c.1.s8 %v499
        %v1240 = vunpack.c.1.s8 %v500
        %v1241 = vunpack.c.1.s8 %v501
        %v1242 = vunpack.c.1.s8 %v502
        %v1243 = vunpack.c.1.s8 %v503
        %v1244 = vunpack.c.1.s8 %v504
        %v1245 = vunpack.c.1.s8 %v505
        %v1246 = vunpack.c.1.s8 %v506
        %v1247 = vunpack.c.1.s8 %v507
        %v1248 = vunpack.c.1.s8 %v508
        %v1249 = vunpack.c.2.s8 %v499
        %v1250 = vunpack.c.2.s8 %v500
        %v1251 = vunpack.c.2.s8 %v501
        %v1252 = vunpack.c.2.s8 %v502
        %v1253 = vunpack.c.2.s8 %v503
        %v1254 = vunpack.c.2.s8 %v504
        %v1255 = vunpack.c.2.s8 %v505
        %v1256 = vunpack.c.2.s8 %v506
        %v1257 = vunpack.c.2.s8 %v507
        %v1258 = vunpack.c.2.s8 %v508
        %v1259 = vunpack.c.3.s8 %v499
        %v1260 = vunpack.c.3.s8 %v500
        %v1261 = vunpack.c.3.s8 %v501
        %v1262 = vunpack.c.3.s8 %v502
        %v1263 = vunpack.c.3.s8 %v503
        %v1264 = vunpack.c.3.s8 %v504
        %v1265 = vunpack.c.3.s8 %v505
        %v1266 = vunpack.c.3.s8 %v506
        %v1267 = vunpack.c.3.s8 %v507
        %v1268 = vunpack.c.3.s8 %v508
        %v1269 = vunpack.c.0.s8 %v509
        %v1270 = vunpack.c.0.s8 %v510
        %v1271 = vunpack.c.0.s8 %v511
        %v1272 = vunpack.c.0.s8 %v512
        %v1273 = vunpack.c.0.s8 %v513
        %v1274 = vunpack.c.0.s8 %v514
        %v1275 = vunpack.c.0.s8 %v515
        %v1276 = vunpack.c.0.s8 %v516
        %v1277 = vunpack.c.0.s8 %v517
        %v1278 = vunpack.c.0.s8 %v518
        %v1279 = vunpack.c.1.s8 %v509
        %v1280 = vunpack.c.1.s8 %v510
        %v1281 = vunpack.c.1.s8 %v511
        %v1282 = vunpack.c.1.s8 %v512
        %v1283 = vunpack.c.1.s8 %v513
        %v1284 = vunpack.c.1.s8 %v514
        %v1285 = vunpack.c.1.s8 %v515
        %v1286 = vunpack.c.1.s8 %v516
        %v1287 = vunpack.c.1.s8 %v517
        %v1288 = vunpack.c.1.s8 %v518
        %v1289 = vunpack.c.2.s8 %v509
        %v1290 = vunpack.c.2.s8 %v510
        %v1291 = vunpack.c.2.s8 %v511
        %v1292 = vunpack.c.2.s8 %v512
        %v1293 = vunpack.c.2.s8 %v513
        %v1294 = vunpack.c.2.s8 %v514
        %v1295 = vunpack.c.2.s8 %v515
        %v1296 = vunpack.c.2.s8 %v516
        %v1297 = vunpack.c.2.s8 %v517
        %v1298 = vunpack.c.2.s8 %v518
        %v1299 = vunpack.c.3.s8 %v509
        %v1300 = vunpack.c.3.s8 %v510
        %v1301 = vunpack.c.3.s8 %v511
        %v1302 = vunpack.c.3.s8 %v512
        %v1303 = vunpack.c.3.s8 %v513
        %v1304 = vunpack.c.3.s8 %v514
        %v1305 = vunpack.c.3.s8 %v515
        %v1306 = vunpack.c.3.s8 %v516
        %v1307 = vunpack.c.3.s8 %v517
        %v1308 = vunpack.c.3.s8 %v518
        %v1309 = vunpack.c.0.s8 %v519
        %v1310 = vunpack.c.0.s8 %v520
        %v1311 = vunpack.c.0.s8 %v521
        %v1312 = vunpack.c.0.s8 %v522
        %v1313 = vunpack.c.0.s8 %v523
        %v1314 = vunpack.c.0.s8 %v524
        %v1315 = vunpack.c.0.s8 %v525
        %v1316 = vunpack.c.0.s8 %v526
        %v1317 = vunpack.c.0.s8 %v527
        %v1318 = vunpack.c.0.s8 %v528
        %v1319 = vunpack.c.1.s8 %v519
        %v1320 = vunpack.c.1.s8 %v520
        %v1321 = vunpack.c.1.s8 %v521
        %v1322 = vunpack.c.1.s8 %v522
        %v1323 = vunpack.c.1.s8 %v523
        %v1324 = vunpack.c.1.s8 %v524
        %v1325 = vunpack.c.1.s8 %v525
        %v1326 = vunpack.c.1.s8 %v526
        %v1327 = vunpack.c.1.s8 %v527
        %v1328 = vunpack.c.1.s8 %v528
        %v1329 = vunpack.c.2.s8 %v519
        %v1330 = vunpack.c.2.s8 %v520
        %v1331 = vunpack.c.2.s8 %v521
        %v1332 = vunpack.c.2.s8 %v522
        %v1333 = vunpack.c.2.s8 %v523
        %v1334 = vunpack.c.2.s8 %v524
        %v1335 = vunpack.c.2.s8 %v525
        %v1336 = vunpack.c.2.s8 %v526
        %v1337 = vunpack.c.2.s8 %v527
        %v1338 = vunpack.c.2.s8 %v528
        %v1339 = vunpack.c.3.s8 %v519
        %v1340 = vunpack.c.3.s8 %v520
        %v1341 = vunpack.c.3.s8 %v521
        %v1342 = vunpack.c.3.s8 %v522
        %v1343 = vunpack.c.3.s8 %v523
        %v1344 = vunpack.c.3.s8 %v524
        %v1345 = vunpack.c.3.s8 %v525
        %v1346 = vunpack.c.3.s8 %v526
        %v1347 = vunpack.c.3.s8 %v527
        %v1348 = vunpack.c.3.s8 %v528
        %v1349 = vunpack.c.0.s8 %v529
        %v1350 = vunpack.c.0.s8 %v530
        %v1351 = vunpack.c.0.s8 %v531
        %v1352 = vunpack.c.0.s8 %v532
        %v1353 = vunpack.c.0.s8 %v533
        %v1354 = vunpack.c.0.s8 %v534
        %v1355 = vunpack.c.0.s8 %v535
        %v1356 = vunpack.c.0.s8 %v536
        %v1357 = vunpack.c.0.s8 %v537
        %v1358 = vunpack.c.0.s8 %v538
        %v1359 = vunpack.c.1.s8 %v529
        %v1360 = vunpack.c.1.s8 %v530
        %v1361 = vunpack.c.1.s8 %v531
        %v1362 = vunpack.c.1.s8 %v532
        %v1363 = vunpack.c.1.s8 %v533
        %v1364 = vunpack.c.1.s8 %v534
        %v1365 = vunpack.c.1.s8 %v535
        %v1366 = vunpack.c.1.s8 %v536
        %v1367 = vunpack.c.1.s8 %v537
        %v1368 = vunpack.c.1.s8 %v538
        %v1369 = vunpack.c.2.s8 %v529
        %v1370 = vunpack.c.2.s8 %v530
        %v1371 = vunpack.c.2.s8 %v531
        %v1372 = vunpack.c.2.s8 %v532
        %v1373 = vunpack.c.2.s8 %v533
        %v1374 = vunpack.c.2.s8 %v534
        %v1375 = vunpack.c.2.s8 %v535
        %v1376 = vunpack.c.2.s8 %v536
        %v1377 = vunpack.c.2.s8 %v537
        %v1378 = vunpack.c.2.s8 %v538
        %v1379 = vunpack.c.3.s8 %v529
        %v1380 = vunpack.c.3.s8 %v530
        %v1381 = vunpack.c.3.s8 %v531
        %v1382 = vunpack.c.3.s8 %v532
        %v1383 = vunpack.c.3.s8 %v533
        %v1384 = vunpack.c.3.s8 %v534
        %v1385 = vunpack.c.3.s8 %v535
        %v1386 = vunpack.c.3.s8 %v536
        %v1387 = vunpack.c.3.s8 %v537
        %v1388 = vunpack.c.3.s8 %v538
        %v1389 = vunpack.c.0.s8 %v539
        %v1390 = vunpack.c.0.s8 %v540
        %v1391 = vunpack.c.0.s8 %v541
        %v1392 = vunpack.c.0.s8 %v542
        %v1393 = vunpack.c.0.s8 %v543
        %v1394 = vunpack.c.0.s8 %v544
        %v1395 = vunpack.c.0.s8 %v545
        %v1396 = vunpack.c.0.s8 %v546
        %v1397 = vunpack.c.0.s8 %v547
        %v1398 = vunpack.c.0.s8 %v548
        %v1399 = vunpack.c.1.s8 %v539
        %v1400 = vunpack.c.1.s8 %v540
        %v1401 = vunpack.c.1.s8 %v541
        %v1402 = vunpack.c.1.s8 %v542
        %v1403 = vunpack.c.1.s8 %v543
        %v1404 = vunpack.c.1.s8 %v544
        %v1405 = vunpack.c.1.s8 %v545
        %v1406 = vunpack.c.1.s8 %v546
        %v1407 = vunpack.c.1.s8 %v547
        %v1408 = vunpack.c.1.s8 %v548
        %v1409 = vunpack.c.2.s8 %v539
        %v1410 = vunpack.c.2.s8 %v540
        %v1411 = vunpack.c.2.s8 %v541
        %v1412 = vunpack.c.2.s8 %v542
        %v1413 = vunpack.c.2.s8 %v543
        %v1414 = vunpack.c.2.s8 %v544
        %v1415 = vunpack.c.2.s8 %v545
        %v1416 = vunpack.c.2.s8 %v546
        %v1417 = vunpack.c.2.s8 %v547
        %v1418 = vunpack.c.2.s8 %v548
        %v1419 = vunpack.c.3.s8 %v539
        %v1420 = vunpack.c.3.s8 %v540
        %v1421 = vunpack.c.3.s8 %v541
        %v1422 = vunpack.c.3.s8 %v542
        %v1423 = vunpack.c.3.s8 %v543
        %v1424 = vunpack.c.3.s8 %v544
        %v1425 = vunpack.c.3.s8 %v545
        %v1426 = vunpack.c.3.s8 %v546
        %v1427 = vunpack.c.3.s8 %v547
        %v1428 = vunpack.c.3.s8 %v548
        %v1429 = vunpack.c.0.s8 %v549
        %v1430 = vunpack.c.0.s8 %v550
        %v1431 = vunpack.c.0.s8 %v551
        %v1432 = vunpack.c.0.s8 %v552
        %v1433 = vunpack.c.0.s8 %v553
        %v1434 = vunpack.c.0.s8 %v554
        %v1435 = vunpack.c.0.s8 %v555
        %v1436 = vunpack.c.0.s8 %v556
        %v1437 = vunpack.c.0.s8 %v557
        %v1438 = vunpack.c.0.s8 %v558
        %v1439 = vunpack.c.1.s8 %v549
        %v1440 = vunpack.c.1.s8 %v550
        %v1441 = vunpack.c.1.s8 %v551
        %v1442 = vunpack.c.1.s8 %v552
        %v1443 = vunpack.c.1.s8 %v553
        %v1444 = vunpack.c.1.s8 %v554
        %v1445 = vunpack.c.1.s8 %v555
        %v1446 = vunpack.c.1.s8 %v556
        %v1447 = vunpack.c.1.s8 %v557
        %v1448 = vunpack.c.1.s8 %v558
        %v1449 = vunpack.c.2.s8 %v549
        %v1450 = vunpack.c.2.s8 %v550
        %v1451 = vunpack.c.2.s8 %v551
        %v1452 = vunpack.c.2.s8 %v552
        %v1453 = vunpack.c.2.s8 %v553
        %v1454 = vunpack.c.2.s8 %v554
        %v1455 = vunpack.c.2.s8 %v555
        %v1456 = vunpack.c.2.s8 %v556
        %v1457 = vunpack.c.2.s8 %v557
        %v1458 = vunpack.c.2.s8 %v558
        %v1459 = vunpack.c.3.s8 %v549
        %v1460 = vunpack.c.3.s8 %v550
        %v1461 = vunpack.c.3.s8 %v551
        %v1462 = vunpack.c.3.s8 %v552
        %v1463 = vunpack.c.3.s8 %v553
        %v1464 = vunpack.c.3.s8 %v554
        %v1465 = vunpack.c.3.s8 %v555
        %v1466 = vunpack.c.3.s8 %v556
        %v1467 = vunpack.c.3.s8 %v557
        %v1468 = vunpack.c.3.s8 %v558
        %v1469 = vunpack.c.0.s8 %v559
        %v1470 = vunpack.c.0.s8 %v560
        %v1471 = vunpack.c.0.s8 %v561
        %v1472 = vunpack.c.0.s8 %v562
        %v1473 = vunpack.c.0.s8 %v563
        %v1474 = vunpack.c.0.s8 %v564
        %v1475 = vunpack.c.0.s8 %v565
        %v1476 = vunpack.c.0.s8 %v566
        %v1477 = vunpack.c.0.s8 %v567
        %v1478 = vunpack.c.0.s8 %v568
        %v1479 = vunpack.c.1.s8 %v559
        %v1480 = vunpack.c.1.s8 %v560
        %v1481 = vunpack.c.1.s8 %v561
        %v1482 = vunpack.c.1.s8 %v562
        %v1483 = vunpack.c.1.s8 %v563
        %v1484 = vunpack.c.1.s8 %v564
        %v1485 = vunpack.c.1.s8 %v565
        %v1486 = vunpack.c.1.s8 %v566
        %v1487 = vunpack.c.1.s8 %v567
        %v1488 = vunpack.c.1.s8 %v568
        %v1489 = vunpack.c.2.s8 %v559
        %v1490 = vunpack.c.2.s8 %v560
        %v1491 = vunpack.c.2.s8 %v561
        %v1492 = vunpack.c.2.s8 %v562
        %v1493 = vunpack.c.2.s8 %v563
        %v1494 = vunpack.c.2.s8 %v564
        %v1495 = vunpack.c.2.s8 %v565
        %v1496 = vunpack.c.2.s8 %v566
        %v1497 = vunpack.c.2.s8 %v567
        %v1498 = vunpack.c.2.s8 %v568
        %v1499 = vunpack.c.3.s8 %v559
        %v1500 = vunpack.c.3.s8 %v560
        %v1501 = vunpack.c.3.s8 %v561
        %v1502 = vunpack.c.3.s8 %v562
        %v1503 = vunpack.c.3.s8 %v563
        %v1504 = vunpack.c.3.s8 %v564
        %v1505 = vunpack.c.3.s8 %v565
        %v1506 = vunpack.c.3.s8 %v566
        %v1507 = vunpack.c.3.s8 %v567
        %v1508 = vunpack.c.3.s8 %v568
        %v1509 = vunpack.c.0.s8 %v569
        %v1510 = vunpack.c.0.s8 %v570
        %v1511 = vunpack.c.0.s8 %v571
        %v1512 = vunpack.c.0.s8 %v572
        %v1513 = vunpack.c.0.s8 %v573
        %v1514 = vunpack.c.0.s8 %v574
        %v1515 = vunpack.c.0.s8 %v575
        %v1516 = vunpack.c.0.s8 %v576
        %v1517 = vunpack.c.0.s8 %v577
        %v1518 = vunpack.c.0.s8 %v578
        %v1519 = vunpack.c.1.s8 %v569
        %v1520 = vunpack.c.1.s8 %v570
        %v1521 = vunpack.c.1.s8 %v571
        %v1522 = vunpack.c.1.s8 %v572
        %v1523 = vunpack.c.1.s8 %v573
        %v1524 = vunpack.c.1.s8 %v574
        %v1525 = vunpack.c.1.s8 %v575
        %v1526 = vunpack.c.1.s8 %v576
        %v1527 = vunpack.c.1.s8 %v577
        %v1528 = vunpack.c.1.s8 %v578
        %v1529 = vunpack.c.2.s8 %v569
        %v1530 = vunpack.c.2.s8 %v570
        %v1531 = vunpack.c.2.s8 %v571
        %v1532 = vunpack.c.2.s8 %v572
        %v1533 = vunpack.c.2.s8 %v573
        %v1534 = vunpack.c.2.s8 %v574
        %v1535 = vunpack.c.2.s8 %v575
        %v1536 = vunpack.c.2.s8 %v576
        %v1537 = vunpack.c.2.s8 %v577
        %v1538 = vunpack.c.2.s8 %v578
        %v1539 = vunpack.c.3.s8 %v569
        %v1540 = vunpack.c.3.s8 %v570
        %v1541 = vunpack.c.3.s8 %v571
        %v1542 = vunpack.c.3.s8 %v572
        %v1543 = vunpack.c.3.s8 %v573
        %v1544 = vunpack.c.3.s8 %v574
        %v1545 = vunpack.c.3.s8 %v575
        %v1546 = vunpack.c.3.s8 %v576
        %v1547 = vunpack.c.3.s8 %v577
        %v1548 = vunpack.c.3.s8 %v578
        %v1549 = vunpack.c.0.s8 %v579
        %v1550 = vunpack.c.0.s8 %v580
        %v1551 = vunpack.c.0.s8 %v581
        %v1552 = vunpack.c.0.s8 %v582
        %v1553 = vunpack.c.0.s8 %v583
        %v1554 = vunpack.c.0.s8 %v584
        %v1555 = vunpack.c.0.s8 %v585
        %v1556 = vunpack.c.0.s8 %v586
        %v1557 = vunpack.c.0.s8 %v587
        %v1558 = vunpack.c.0.s8 %v588
        %v1559 = vunpack.c.1.s8 %v579
        %v1560 = vunpack.c.1.s8 %v580
        %v1561 = vunpack.c.1.s8 %v581
        %v1562 = vunpack.c.1.s8 %v582
        %v1563 = vunpack.c.1.s8 %v583
        %v1564 = vunpack.c.1.s8 %v584
        %v1565 = vunpack.c.1.s8 %v585
        %v1566 = vunpack.c.1.s8 %v586
        %v1567 = vunpack.c.1.s8 %v587
        %v1568 = vunpack.c.1.s8 %v588
        %v1569 = vunpack.c.2.s8 %v579
        %v1570 = vunpack.c.2.s8 %v580
        %v1571 = vunpack.c.2.s8 %v581
        %v1572 = vunpack.c.2.s8 %v582
        %v1573 = vunpack.c.2.s8 %v583
        %v1574 = vunpack.c.2.s8 %v584
        %v1575 = vunpack.c.2.s8 %v585
        %v1576 = vunpack.c.2.s8 %v586
        %v1577 = vunpack.c.2.s8 %v587
        %v1578 = vunpack.c.2.s8 %v588
        %v1579 = vunpack.c.3.s8 %v579
        %v1580 = vunpack.c.3.s8 %v580
        %v1581 = vunpack.c.3.s8 %v581
        %v1582 = vunpack.c.3.s8 %v582
        %v1583 = vunpack.c.3.s8 %v583
        %v1584 = vunpack.c.3.s8 %v584
        %v1585 = vunpack.c.3.s8 %v585
        %v1586 = vunpack.c.3.s8 %v586
        %v1587 = vunpack.c.3.s8 %v587
        %v1588 = vunpack.c.3.s8 %v588
        %v1589 = vunpack.c.0.s8 %v589
        %v1590 = vunpack.c.0.s8 %v590
        %v1591 = vunpack.c.0.s8 %v591
        %v1592 = vunpack.c.0.s8 %v592
        %v1593 = vunpack.c.0.s8 %v593
        %v1594 = vunpack.c.0.s8 %v594
        %v1595 = vunpack.c.0.s8 %v595
        %v1596 = vunpack.c.0.s8 %v596
        %v1597 = vunpack.c.0.s8 %v597
        %v1598 = vunpack.c.0.s8 %v598
        %v1599 = vunpack.c.1.s8 %v589
        %v1600 = vunpack.c.1.s8 %v590
        %v1601 = vunpack.c.1.s8 %v591
        %v1602 = vunpack.c.1.s8 %v592
        %v1603 = vunpack.c.1.s8 %v593
        %v1604 = vunpack.c.1.s8 %v594
        %v1605 = vunpack.c.1.s8 %v595
        %v1606 = vunpack.c.1.s8 %v596
        %v1607 = vunpack.c.1.s8 %v597
        %v1608 = vunpack.c.1.s8 %v598
        %v1609 = vunpack.c.2.s8 %v589
        %v1610 = vunpack.c.2.s8 %v590
        %v1611 = vunpack.c.2.s8 %v591
        %v1612 = vunpack.c.2.s8 %v592
        %v1613 = vunpack.c.2.s8 %v593
        %v1614 = vunpack.c.2.s8 %v594
        %v1615 = vunpack.c.2.s8 %v595
        %v1616 = vunpack.c.2.s8 %v596
        %v1617 = vunpack.c.2.s8 %v597
        %v1618 = vunpack.c.2.s8 %v598
        %v1619 = vunpack.c.3.s8 %v589
        %v1620 = vunpack.c.3.s8 %v590
        %v1621 = vunpack.c.3.s8 %v591
        %v1622 = vunpack.c.3.s8 %v592
        %v1623 = vunpack.c.3.s8 %v593
        %v1624 = vunpack.c.3.s8 %v594
        %v1625 = vunpack.c.3.s8 %v595
        %v1626 = vunpack.c.3.s8 %v596
        %v1627 = vunpack.c.3.s8 %v597
        %v1628 = vunpack.c.3.s8 %v598
        %v1629 = vunpack.c.0.s8 %v599
        %v1630 = vunpack.c.0.s8 %v600
        %v1631 = vunpack.c.0.s8 %v601
        %v1632 = vunpack.c.0.s8 %v602
        %v1633 = vunpack.c.0.s8 %v603
        %v1634 = vunpack.c.0.s8 %v604
        %v1635 = vunpack.c.0.s8 %v605
        %v1636 = vunpack.c.0.s8 %v606
        %v1637 = vunpack.c.0.s8 %v607
        %v1638 = vunpack.c.0.s8 %v608
        %v1639 = vunpack.c.1.s8 %v599
        %v1640 = vunpack.c.1.s8 %v600
        %v1641 = vunpack.c.1.s8 %v601
        %v1642 = vunpack.c.1.s8 %v602
        %v1643 = vunpack.c.1.s8 %v603
        %v1644 = vunpack.c.1.s8 %v604
        %v1645 = vunpack.c.1.s8 %v605
        %v1646 = vunpack.c.1.s8 %v606
        %v1647 = vunpack.c.1.s8 %v607
        %v1648 = vunpack.c.1.s8 %v608
        %v1649 = vunpack.c.2.s8 %v599
        %v1650 = vunpack.c.2.s8 %v600
        %v1651 = vunpack.c.2.s8 %v601
        %v1652 = vunpack.c.2.s8 %v602
        %v1653 = vunpack.c.2.s8 %v603
        %v1654 = vunpack.c.2.s8 %v604
        %v1655 = vunpack.c.2.s8 %v605
        %v1656 = vunpack.c.2.s8 %v606
        %v1657 = vunpack.c.2.s8 %v607
        %v1658 = vunpack.c.2.s8 %v608
        %v1659 = vunpack.c.3.s8 %v599
        %v1660 = vunpack.c.3.s8 %v600
        %v1661 = vunpack.c.3.s8 %v601
        %v1662 = vunpack.c.3.s8 %v602
        %v1663 = vunpack.c.3.s8 %v603
        %v1664 = vunpack.c.3.s8 %v604
        %v1665 = vunpack.c.3.s8 %v605
        %v1666 = vunpack.c.3.s8 %v606
        %v1667 = vunpack.c.3.s8 %v607
        %v1668 = vunpack.c.3.s8 %v608
        %v1669 = vunpack.c.0.s8 %v609
        %v1670 = vunpack.c.0.s8 %v610
        %v1671 = vunpack.c.0.s8 %v611
        %v1672 = vunpack.c.0.s8 %v612
        %v1673 = vunpack.c.0.s8 %v613
        %v1674 = vunpack.c.0.s8 %v614
        %v1675 = vunpack.c.0.s8 %v615
        %v1676 = vunpack.c.0.s8 %v616
        %v1677 = vunpack.c.0.s8 %v617
        %v1678 = vunpack.c.0.s8 %v618
        %v1679 = vunpack.c.1.s8 %v609
        %v1680 = vunpack.c.1.s8 %v610
        %v1681 = vunpack.c.1.s8 %v611
        %v1682 = vunpack.c.1.s8 %v612
        %v1683 = vunpack.c.1.s8 %v613
        %v1684 = vunpack.c.1.s8 %v614
        %v1685 = vunpack.c.1.s8 %v615
        %v1686 = vunpack.c.1.s8 %v616
        %v1687 = vunpack.c.1.s8 %v617
        %v1688 = vunpack.c.1.s8 %v618
        %v1689 = vunpack.c.2.s8 %v609
        %v1690 = vunpack.c.2.s8 %v610
        %v1691 = vunpack.c.2.s8 %v611
        %v1692 = vunpack.c.2.s8 %v612
        %v1693 = vunpack.c.2.s8 %v613
        %v1694 = vunpack.c.2.s8 %v614
        %v1695 = vunpack.c.2.s8 %v615
        %v1696 = vunpack.c.2.s8 %v616
        %v1697 = vunpack.c.2.s8 %v617
        %v1698 = vunpack.c.2.s8 %v618
        %v1699 = vunpack.c.3.s8 %v609
        %v1700 = vunpack.c.3.s8 %v610
        %v1701 = vunpack.c.3.s8 %v611
        %v1702 = vunpack.c.3.s8 %v612
        %v1703 = vunpack.c.3.s8 %v613
        %v1704 = vunpack.c.3.s8 %v614
        %v1705 = vunpack.c.3.s8 %v615
        %v1706 = vunpack.c.3.s8 %v616
        %v1707 = vunpack.c.3.s8 %v617
        %v1708 = vunpack.c.3.s8 %v618
        %v1709 = vunpack.c.0.s8 %v619
        %v1710 = vunpack.c.0.s8 %v620
        %v1711 = vunpack.c.0.s8 %v621
        %v1712 = vunpack.c.0.s8 %v622
        %v1713 = vunpack.c.0.s8 %v623
        %v1714 = vunpack.c.0.s8 %v624
        %v1715 = vunpack.c.0.s8 %v625
        %v1716 = vunpack.c.0.s8 %v626
        %v1717 = vunpack.c.0.s8 %v627
        %v1718 = vunpack.c.0.s8 %v628
        %v1719 = vunpack.c.1.s8 %v619
        %v1720 = vunpack.c.1.s8 %v620
        %v1721 = vunpack.c.1.s8 %v621
        %v1722 = vunpack.c.1.s8 %v622
        %v1723 = vunpack.c.1.s8 %v623
        %v1724 = vunpack.c.1.s8 %v624
        %v1725 = vunpack.c.1.s8 %v625
        %v1726 = vunpack.c.1.s8 %v626
        %v1727 = vunpack.c.1.s8 %v627
        %v1728 = vunpack.c.1.s8 %v628
        %v1729 = vunpack.c.2.s8 %v619
        %v1730 = vunpack.c.2.s8 %v620
        %v1731 = vunpack.c.2.s8 %v621
        %v1732 = vunpack.c.2.s8 %v622
        %v1733 = vunpack.c.2.s8 %v623
        %v1734 = vunpack.c.2.s8 %v624
        %v1735 = vunpack.c.2.s8 %v625
        %v1736 = vunpack.c.2.s8 %v626
        %v1737 = vunpack.c.2.s8 %v627
        %v1738 = vunpack.c.2.s8 %v628
        %v1739 = vunpack.c.3.s8 %v619
        %v1740 = vunpack.c.3.s8 %v620
        %v1741 = vunpack.c.3.s8 %v621
        %v1742 = vunpack.c.3.s8 %v622
        %v1743 = vunpack.c.3.s8 %v623
        %v1744 = vunpack.c.3.s8 %v624
        %v1745 = vunpack.c.3.s8 %v625
        %v1746 = vunpack.c.3.s8 %v626
        %v1747 = vunpack.c.3.s8 %v627
        %v1748 = vunpack.c.3.s8 %v628
        %v1749 = vunpack.c.0.s8 %v629
        %v1750 = vunpack.c.0.s8 %v630
        %v1751 = vunpack.c.0.s8 %v631
        %v1752 = vunpack.c.0.s8 %v632
        %v1753 = vunpack.c.0.s8 %v633
        %v1754 = vunpack.c.0.s8 %v634
        %v1755 = vunpack.c.0.s8 %v635
        %v1756 = vunpack.c.0.s8 %v636
        %v1757 = vunpack.c.0.s8 %v637
        %v1758 = vunpack.c.0.s8 %v638
        %v1759 = vunpack.c.1.s8 %v629
        %v1760 = vunpack.c.1.s8 %v630
        %v1761 = vunpack.c.1.s8 %v631
        %v1762 = vunpack.c.1.s8 %v632
        %v1763 = vunpack.c.1.s8 %v633
        %v1764 = vunpack.c.1.s8 %v634
        %v1765 = vunpack.c.1.s8 %v635
        %v1766 = vunpack.c.1.s8 %v636
        %v1767 = vunpack.c.1.s8 %v637
        %v1768 = vunpack.c.1.s8 %v638
        %v1769 = vunpack.c.2.s8 %v629
        %v1770 = vunpack.c.2.s8 %v630
        %v1771 = vunpack.c.2.s8 %v631
        %v1772 = vunpack.c.2.s8 %v632
        %v1773 = vunpack.c.2.s8 %v633
        %v1774 = vunpack.c.2.s8 %v634
        %v1775 = vunpack.c.2.s8 %v635
        %v1776 = vunpack.c.2.s8 %v636
        %v1777 = vunpack.c.2.s8 %v637
        %v1778 = vunpack.c.2.s8 %v638
        %v1779 = vunpack.c.3.s8 %v629
        %v1780 = vunpack.c.3.s8 %v630
        %v1781 = vunpack.c.3.s8 %v631
        %v1782 = vunpack.c.3.s8 %v632
        %v1783 = vunpack.c.3.s8 %v633
        %v1784 = vunpack.c.3.s8 %v634
        %v1785 = vunpack.c.3.s8 %v635
        %v1786 = vunpack.c.3.s8 %v636
        %v1787 = vunpack.c.3.s8 %v637
        %v1788 = vunpack.c.3.s8 %v638
        %v1789 = vunpack.c.0.s8 %v639
        %v1790 = vunpack.c.0.s8 %v640
        %v1791 = vunpack.c.0.s8 %v641
        %v1792 = vunpack.c.0.s8 %v642
        %v1793 = vunpack.c.0.s8 %v643
        %v1794 = vunpack.c.0.s8 %v644
        %v1795 = vunpack.c.0.s8 %v645
        %v1796 = vunpack.c.0.s8 %v646
        %v1797 = vunpack.c.0.s8 %v647
        %v1798 = vunpack.c.0.s8 %v648
        %v1799 = vunpack.c.1.s8 %v639
        %v1800 = vunpack.c.1.s8 %v640
        %v1801 = vunpack.c.1.s8 %v641
        %v1802 = vunpack.c.1.s8 %v642
        %v1803 = vunpack.c.1.s8 %v643
        %v1804 = vunpack.c.1.s8 %v644
        %v1805 = vunpack.c.1.s8 %v645
        %v1806 = vunpack.c.1.s8 %v646
        %v1807 = vunpack.c.1.s8 %v647
        %v1808 = vunpack.c.1.s8 %v648
        %v1809 = vunpack.c.2.s8 %v639
        %v1810 = vunpack.c.2.s8 %v640
        %v1811 = vunpack.c.2.s8 %v641
        %v1812 = vunpack.c.2.s8 %v642
        %v1813 = vunpack.c.2.s8 %v643
        %v1814 = vunpack.c.2.s8 %v644
        %v1815 = vunpack.c.2.s8 %v645
        %v1816 = vunpack.c.2.s8 %v646
        %v1817 = vunpack.c.2.s8 %v647
        %v1818 = vunpack.c.2.s8 %v648
        %v1819 = vunpack.c.3.s8 %v639
        %v1820 = vunpack.c.3.s8 %v640
        %v1821 = vunpack.c.3.s8 %v641
        %v1822 = vunpack.c.3.s8 %v642
        %v1823 = vunpack.c.3.s8 %v643
        %v1824 = vunpack.c.3.s8 %v644
        %v1825 = vunpack.c.3.s8 %v645
        %v1826 = vunpack.c.3.s8 %v646
        %v1827 = vunpack.c.3.s8 %v647
        %v1828 = vunpack.c.3.s8 %v648
        %v1829 = vunpack.c.0.s8 %v649
        %v1830 = vunpack.c.0.s8 %v650
        %v1831 = vunpack.c.0.s8 %v651
        %v1832 = vunpack.c.0.s8 %v652
        %v1833 = vunpack.c.0.s8 %v653
        %v1834 = vunpack.c.0.s8 %v654
        %v1835 = vunpack.c.0.s8 %v655
        %v1836 = vunpack.c.0.s8 %v656
        %v1837 = vunpack.c.0.s8 %v657
        %v1838 = vunpack.c.0.s8 %v658
        %v1839 = vunpack.c.1.s8 %v649
        %v1840 = vunpack.c.1.s8 %v650
        %v1841 = vunpack.c.1.s8 %v651
        %v1842 = vunpack.c.1.s8 %v652
        %v1843 = vunpack.c.1.s8 %v653
        %v1844 = vunpack.c.1.s8 %v654
        %v1845 = vunpack.c.1.s8 %v655
        %v1846 = vunpack.c.1.s8 %v656
        %v1847 = vunpack.c.1.s8 %v657
        %v1848 = vunpack.c.1.s8 %v658
        %v1849 = vunpack.c.2.s8 %v649
        %v1850 = vunpack.c.2.s8 %v650
        %v1851 = vunpack.c.2.s8 %v651
        %v1852 = vunpack.c.2.s8 %v652
        %v1853 = vunpack.c.2.s8 %v653
        %v1854 = vunpack.c.2.s8 %v654
        %v1855 = vunpack.c.2.s8 %v655
        %v1856 = vunpack.c.2.s8 %v656
        %v1857 = vunpack.c.2.s8 %v657
        %v1858 = vunpack.c.2.s8 %v658
        %v1859 = vunpack.c.3.s8 %v649
        %v1860 = vunpack.c.3.s8 %v650
        %v1861 = vunpack.c.3.s8 %v651
        %v1862 = vunpack.c.3.s8 %v652
        %v1863 = vunpack.c.3.s8 %v653
        %v1864 = vunpack.c.3.s8 %v654
        %v1865 = vunpack.c.3.s8 %v655
        %v1866 = vunpack.c.3.s8 %v656
        %v1867 = vunpack.c.3.s8 %v657
        %v1868 = vunpack.c.3.s8 %v658
        %v1869 = vunpack.c.0.s8 %v659
        %v1870 = vunpack.c.0.s8 %v660
        %v1871 = vunpack.c.0.s8 %v661
        %v1872 = vunpack.c.0.s8 %v662
        %v1873 = vunpack.c.0.s8 %v663
        %v1874 = vunpack.c.0.s8 %v664
        %v1875 = vunpack.c.0.s8 %v665
        %v1876 = vunpack.c.0.s8 %v666
        %v1877 = vunpack.c.0.s8 %v667
        %v1878 = vunpack.c.0.s8 %v668
        %v1879 = vunpack.c.1.s8 %v659
        %v1880 = vunpack.c.1.s8 %v660
        %v1881 = vunpack.c.1.s8 %v661
        %v1882 = vunpack.c.1.s8 %v662
        %v1883 = vunpack.c.1.s8 %v663
        %v1884 = vunpack.c.1.s8 %v664
        %v1885 = vunpack.c.1.s8 %v665
        %v1886 = vunpack.c.1.s8 %v666
        %v1887 = vunpack.c.1.s8 %v667
        %v1888 = vunpack.c.1.s8 %v668
        %v1889 = vunpack.c.2.s8 %v659
        %v1890 = vunpack.c.2.s8 %v660
        %v1891 = vunpack.c.2.s8 %v661
        %v1892 = vunpack.c.2.s8 %v662
        %v1893 = vunpack.c.2.s8 %v663
        %v1894 = vunpack.c.2.s8 %v664
        %v1895 = vunpack.c.2.s8 %v665
        %v1896 = vunpack.c.2.s8 %v666
        %v1897 = vunpack.c.2.s8 %v667
        %v1898 = vunpack.c.2.s8 %v668
        %v1899 = vunpack.c.3.s8 %v659
        %v1900 = vunpack.c.3.s8 %v660
        %v1901 = vunpack.c.3.s8 %v661
        %v1902 = vunpack.c.3.s8 %v662
        %v1903 = vunpack.c.3.s8 %v663
        %v1904 = vunpack.c.3.s8 %v664
        %v1905 = vunpack.c.3.s8 %v665
        %v1906 = vunpack.c.3.s8 %v666
        %v1907 = vunpack.c.3.s8 %v667
        %v1908 = vunpack.c.3.s8 %v668
        %v1909 = vunpack.c.0.s8 %v669
        %v1910 = vunpack.c.0.s8 %v670
        %v1911 = vunpack.c.0.s8 %v671
        %v1912 = vunpack.c.0.s8 %v672
        %v1913 = vunpack.c.0.s8 %v673
        %v1914 = vunpack.c.0.s8 %v674
        %v1915 = vunpack.c.0.s8 %v675
        %v1916 = vunpack.c.0.s8 %v676
        %v1917 = vunpack.c.0.s8 %v677
        %v1918 = vunpack.c.0.s8 %v678
        %v1919 = vunpack.c.1.s8 %v669
        %v1920 = vunpack.c.1.s8 %v670
        %v1921 = vunpack.c.1.s8 %v671
        %v1922 = vunpack.c.1.s8 %v672
        %v1923 = vunpack.c.1.s8 %v673
        %v1924 = vunpack.c.1.s8 %v674
        %v1925 = vunpack.c.1.s8 %v675
        %v1926 = vunpack.c.1.s8 %v676
        %v1927 = vunpack.c.1.s8 %v677
        %v1928 = vunpack.c.1.s8 %v678
        %v1929 = vunpack.c.2.s8 %v669
        %v1930 = vunpack.c.2.s8 %v670
        %v1931 = vunpack.c.2.s8 %v671
        %v1932 = vunpack.c.2.s8 %v672
        %v1933 = vunpack.c.2.s8 %v673
        %v1934 = vunpack.c.2.s8 %v674
        %v1935 = vunpack.c.2.s8 %v675
        %v1936 = vunpack.c.2.s8 %v676
        %v1937 = vunpack.c.2.s8 %v677
        %v1938 = vunpack.c.2.s8 %v678
        %v1939 = vunpack.c.3.s8 %v669
        %v1940 = vunpack.c.3.s8 %v670
        %v1941 = vunpack.c.3.s8 %v671
        %v1942 = vunpack.c.3.s8 %v672
        %v1943 = vunpack.c.3.s8 %v673
        %v1944 = vunpack.c.3.s8 %v674
        %v1945 = vunpack.c.3.s8 %v675
        %v1946 = vunpack.c.3.s8 %v676
        %v1947 = vunpack.c.3.s8 %v677
        %v1948 = vunpack.c.3.s8 %v678
        %v1949 = vunpack.c.0.s8 %v679
        %v1950 = vunpack.c.0.s8 %v680
        %v1951 = vunpack.c.0.s8 %v681
        %v1952 = vunpack.c.0.s8 %v682
        %v1953 = vunpack.c.0.s8 %v683
        %v1954 = vunpack.c.0.s8 %v684
        %v1955 = vunpack.c.0.s8 %v685
        %v1956 = vunpack.c.0.s8 %v686
        %v1957 = vunpack.c.0.s8 %v687
        %v1958 = vunpack.c.0.s8 %v688
        %v1959 = vunpack.c.1.s8 %v679
        %v1960 = vunpack.c.1.s8 %v680
        %v1961 = vunpack.c.1.s8 %v681
        %v1962 = vunpack.c.1.s8 %v682
        %v1963 = vunpack.c.1.s8 %v683
        %v1964 = vunpack.c.1.s8 %v684
        %v1965 = vunpack.c.1.s8 %v685
        %v1966 = vunpack.c.1.s8 %v686
        %v1967 = vunpack.c.1.s8 %v687
        %v1968 = vunpack.c.1.s8 %v688
        %v1969 = vunpack.c.2.s8 %v679
        %v1970 = vunpack.c.2.s8 %v680
        %v1971 = vunpack.c.2.s8 %v681
        %v1972 = vunpack.c.2.s8 %v682
        %v1973 = vunpack.c.2.s8 %v683
        %v1974 = vunpack.c.2.s8 %v684
        %v1975 = vunpack.c.2.s8 %v685
        %v1976 = vunpack.c.2.s8 %v686
        %v1977 = vunpack.c.2.s8 %v687
        %v1978 = vunpack.c.2.s8 %v688
        %v1979 = vunpack.c.3.s8 %v679
        %v1980 = vunpack.c.3.s8 %v680
        %v1981 = vunpack.c.3.s8 %v681
        %v1982 = vunpack.c.3.s8 %v682
        %v1983 = vunpack.c.3.s8 %v683
        %v1984 = vunpack.c.3.s8 %v684
        %v1985 = vunpack.c.3.s8 %v685
        %v1986 = vunpack.c.3.s8 %v686
        %v1987 = vunpack.c.3.s8 %v687
        %v1988 = vunpack.c.3.s8 %v688
        %v1989 = vunpack.c.0.s8 %v689
        %v1990 = vunpack.c.0.s8 %v690
        %v1991 = vunpack.c.0.s8 %v691
        %v1992 = vunpack.c.0.s8 %v692
        %v1993 = vunpack.c.0.s8 %v693
        %v1994 = vunpack.c.0.s8 %v694
        %v1995 = vunpack.c.0.s8 %v695
        %v1996 = vunpack.c.0.s8 %v696
        %v1997 = vunpack.c.0.s8 %v697
        %v1998 = vunpack.c.0.s8 %v698
        %v1999 = vunpack.c.1.s8 %v689
        %v2000 = vunpack.c.1.s8 %v690
        %v2001 = vunpack.c.1.s8 %v691
        %v2002 = vunpack.c.1.s8 %v692
        %v2003 = vunpack.c.1.s8 %v693
        %v2004 = vunpack.c.1.s8 %v694
        %v2005 = vunpack.c.1.s8 %v695
        %v2006 = vunpack.c.1.s8 %v696
        %v2007 = vunpack.c.1.s8 %v697
        %v2008 = vunpack.c.1.s8 %v698
        %v2009 = vunpack.c.2.s8 %v689
        %v2010 = vunpack.c.2.s8 %v690
        %v2011 = vunpack.c.2.s8 %v691
        %v2012 = vunpack.c.2.s8 %v692
        %v2013 = vunpack.c.2.s8 %v693
        %v2014 = vunpack.c.2.s8 %v694
        %v2015 = vunpack.c.2.s8 %v695
        %v2016 = vunpack.c.2.s8 %v696
        %v2017 = vunpack.c.2.s8 %v697
        %v2018 = vunpack.c.2.s8 %v698
        %v2019 = vunpack.c.3.s8 %v689
        %v2020 = vunpack.c.3.s8 %v690
        %v2021 = vunpack.c.3.s8 %v691
        %v2022 = vunpack.c.3.s8 %v692
        %v2023 = vunpack.c.3.s8 %v693
        %v2024 = vunpack.c.3.s8 %v694
        %v2025 = vunpack.c.3.s8 %v695
        %v2026 = vunpack.c.3.s8 %v696
        %v2027 = vunpack.c.3.s8 %v697
        %v2028 = vunpack.c.3.s8 %v698
        %v2029 = vunpack.c.0.s8 %v699
        %v2030 = vunpack.c.0.s8 %v700
        %v2031 = vunpack.c.0.s8 %v701
        %v2032 = vunpack.c.0.s8 %v702
        %v2033 = vunpack.c.0.s8 %v703
        %v2034 = vunpack.c.0.s8 %v704
        %v2035 = vunpack.c.0.s8 %v705
        %v2036 = vunpack.c.0.s8 %v706
        %v2037 = vunpack.c.0.s8 %v707
        %v2038 = vunpack.c.0.s8 %v708
        %v2039 = vunpack.c.1.s8 %v699
        %v2040 = vunpack.c.1.s8 %v700
        %v2041 = vunpack.c.1.s8 %v701
        %v2042 = vunpack.c.1.s8 %v702
        %v2043 = vunpack.c.1.s8 %v703
        %v2044 = vunpack.c.1.s8 %v704
        %v2045 = vunpack.c.1.s8 %v705
        %v2046 = vunpack.c.1.s8 %v706
        %v2047 = vunpack.c.1.s8 %v707
        %v2048 = vunpack.c.1.s8 %v708
        %v2049 = vunpack.c.2.s8 %v699
        %v2050 = vunpack.c.2.s8 %v700
        %v2051 = vunpack.c.2.s8 %v701
        %v2052 = vunpack.c.2.s8 %v702
        %v2053 = vunpack.c.2.s8 %v703
        %v2054 = vunpack.c.2.s8 %v704
        %v2055 = vunpack.c.2.s8 %v705
        %v2056 = vunpack.c.2.s8 %v706
        %v2057 = vunpack.c.2.s8 %v707
        %v2058 = vunpack.c.2.s8 %v708
        %v2059 = vunpack.c.3.s8 %v699
        %v2060 = vunpack.c.3.s8 %v700
        %v2061 = vunpack.c.3.s8 %v701
        %v2062 = vunpack.c.3.s8 %v702
        %v2063 = vunpack.c.3.s8 %v703
        %v2064 = vunpack.c.3.s8 %v704
        %v2065 = vunpack.c.3.s8 %v705
        %v2066 = vunpack.c.3.s8 %v706
        %v2067 = vunpack.c.3.s8 %v707
        %v2068 = vunpack.c.3.s8 %v708
        %v2069 = vunpack.c.0.s8 %v709
        %v2070 = vunpack.c.0.s8 %v710
        %v2071 = vunpack.c.0.s8 %v711
        %v2072 = vunpack.c.0.s8 %v712
        %v2073 = vunpack.c.0.s8 %v713
        %v2074 = vunpack.c.0.s8 %v714
        %v2075 = vunpack.c.0.s8 %v715
        %v2076 = vunpack.c.0.s8 %v716
        %v2077 = vunpack.c.0.s8 %v717
        %v2078 = vunpack.c.0.s8 %v718
        %v2079 = vunpack.c.1.s8 %v709
        %v2080 = vunpack.c.1.s8 %v710
        %v2081 = vunpack.c.1.s8 %v711
        %v2082 = vunpack.c.1.s8 %v712
        %v2083 = vunpack.c.1.s8 %v713
        %v2084 = vunpack.c.1.s8 %v714
        %v2085 = vunpack.c.1.s8 %v715
        %v2086 = vunpack.c.1.s8 %v716
        %v2087 = vunpack.c.1.s8 %v717
        %v2088 = vunpack.c.1.s8 %v718
        %v2089 = vunpack.c.2.s8 %v709
        %v2090 = vunpack.c.2.s8 %v710
        %v2091 = vunpack.c.2.s8 %v711
        %v2092 = vunpack.c.2.s8 %v712
        %v2093 = vunpack.c.2.s8 %v713
        %v2094 = vunpack.c.2.s8 %v714
        %v2095 = vunpack.c.2.s8 %v715
        %v2096 = vunpack.c.2.s8 %v716
        %v2097 = vunpack.c.2.s8 %v717
        %v2098 = vunpack.c.2.s8 %v718
        %v2099 = vunpack.c.3.s8 %v709
        %v2100 = vunpack.c.3.s8 %v710
        %v2101 = vunpack.c.3.s8 %v711
        %v2102 = vunpack.c.3.s8 %v712
        %v2103 = vunpack.c.3.s8 %v713
        %v2104 = vunpack.c.3.s8 %v714
        %v2105 = vunpack.c.3.s8 %v715
        %v2106 = vunpack.c.3.s8 %v716
        %v2107 = vunpack.c.3.s8 %v717
        %v2108 = vunpack.c.3.s8 %v718
        %v2109 = vunpack.c.0.s8 %v719
        %v2110 = vunpack.c.0.s8 %v720
        %v2111 = vunpack.c.0.s8 %v721
        %v2112 = vunpack.c.0.s8 %v722
        %v2113 = vunpack.c.0.s8 %v723
        %v2114 = vunpack.c.0.s8 %v724
        %v2115 = vunpack.c.0.s8 %v725
        %v2116 = vunpack.c.0.s8 %v726
        %v2117 = vunpack.c.0.s8 %v727
        %v2118 = vunpack.c.0.s8 %v728
        %v2119 = vunpack.c.1.s8 %v719
        %v2120 = vunpack.c.1.s8 %v720
        %v2121 = vunpack.c.1.s8 %v721
        %v2122 = vunpack.c.1.s8 %v722
        %v2123 = vunpack.c.1.s8 %v723
        %v2124 = vunpack.c.1.s8 %v724
        %v2125 = vunpack.c.1.s8 %v725
        %v2126 = vunpack.c.1.s8 %v726
        %v2127 = vunpack.c.1.s8 %v727
        %v2128 = vunpack.c.1.s8 %v728
        %v2129 = vunpack.c.2.s8 %v719
        %v2130 = vunpack.c.2.s8 %v720
        %v2131 = vunpack.c.2.s8 %v721
        %v2132 = vunpack.c.2.s8 %v722
        %v2133 = vunpack.c.2.s8 %v723
        %v2134 = vunpack.c.2.s8 %v724
        %v2135 = vunpack.c.2.s8 %v725
        %v2136 = vunpack.c.2.s8 %v726
        %v2137 = vunpack.c.2.s8 %v727
        %v2138 = vunpack.c.2.s8 %v728
        %v2139 = vunpack.c.3.s8 %v719
        %v2140 = vunpack.c.3.s8 %v720
        %v2141 = vunpack.c.3.s8 %v721
        %v2142 = vunpack.c.3.s8 %v722
        %v2143 = vunpack.c.3.s8 %v723
        %v2144 = vunpack.c.3.s8 %v724
        %v2145 = vunpack.c.3.s8 %v725
        %v2146 = vunpack.c.3.s8 %v726
        %v2147 = vunpack.c.3.s8 %v727
        %v2148 = vunpack.c.3.s8 %v728
        %v2149 = vunpack.c.0.s8 %v729
        %v2150 = vunpack.c.0.s8 %v730
        %v2151 = vunpack.c.0.s8 %v731
        %v2152 = vunpack.c.0.s8 %v732
        %v2153 = vunpack.c.0.s8 %v733
        %v2154 = vunpack.c.0.s8 %v734
        %v2155 = vunpack.c.0.s8 %v735
        %v2156 = vunpack.c.0.s8 %v736
        %v2157 = vunpack.c.0.s8 %v737
        %v2158 = vunpack.c.0.s8 %v738
        %v2159 = vunpack.c.1.s8 %v729
        %v2160 = vunpack.c.1.s8 %v730
        %v2161 = vunpack.c.1.s8 %v731
        %v2162 = vunpack.c.1.s8 %v732
        %v2163 = vunpack.c.1.s8 %v733
        %v2164 = vunpack.c.1.s8 %v734
        %v2165 = vunpack.c.1.s8 %v735
        %v2166 = vunpack.c.1.s8 %v736
        %v2167 = vunpack.c.1.s8 %v737
        %v2168 = vunpack.c.1.s8 %v738
        %v2169 = vunpack.c.2.s8 %v729
        %v2170 = vunpack.c.2.s8 %v730
        %v2171 = vunpack.c.2.s8 %v731
        %v2172 = vunpack.c.2.s8 %v732
        %v2173 = vunpack.c.2.s8 %v733
        %v2174 = vunpack.c.2.s8 %v734
        %v2175 = vunpack.c.2.s8 %v735
        %v2176 = vunpack.c.2.s8 %v736
        %v2177 = vunpack.c.2.s8 %v737
        %v2178 = vunpack.c.2.s8 %v738
        %v2179 = vunpack.c.3.s8 %v729
        %v2180 = vunpack.c.3.s8 %v730
        %v2181 = vunpack.c.3.s8 %v731
        %v2182 = vunpack.c.3.s8 %v732
        %v2183 = vunpack.c.3.s8 %v733
        %v2184 = vunpack.c.3.s8 %v734
        %v2185 = vunpack.c.3.s8 %v735
        %v2186 = vunpack.c.3.s8 %v736
        %v2187 = vunpack.c.3.s8 %v737
        %v2188 = vunpack.c.3.s8 %v738
        %v2189 = vunpack.c.0.s8 %v739
        %v2190 = vunpack.c.0.s8 %v740
        %v2191 = vunpack.c.0.s8 %v741
        %v2192 = vunpack.c.0.s8 %v742
        %v2193 = vunpack.c.0.s8 %v743
        %v2194 = vunpack.c.0.s8 %v744
        %v2195 = vunpack.c.0.s8 %v745
        %v2196 = vunpack.c.0.s8 %v746
        %v2197 = vunpack.c.0.s8 %v747
        %v2198 = vunpack.c.0.s8 %v748
        %v2199 = vunpack.c.1.s8 %v739
        %v2200 = vunpack.c.1.s8 %v740
        %v2201 = vunpack.c.1.s8 %v741
        %v2202 = vunpack.c.1.s8 %v742
        %v2203 = vunpack.c.1.s8 %v743
        %v2204 = vunpack.c.1.s8 %v744
        %v2205 = vunpack.c.1.s8 %v745
        %v2206 = vunpack.c.1.s8 %v746
        %v2207 = vunpack.c.1.s8 %v747
        %v2208 = vunpack.c.1.s8 %v748
        %v2209 = vunpack.c.2.s8 %v739
        %v2210 = vunpack.c.2.s8 %v740
        %v2211 = vunpack.c.2.s8 %v741
        %v2212 = vunpack.c.2.s8 %v742
        %v2213 = vunpack.c.2.s8 %v743
        %v2214 = vunpack.c.2.s8 %v744
        %v2215 = vunpack.c.2.s8 %v745
        %v2216 = vunpack.c.2.s8 %v746
        %v2217 = vunpack.c.2.s8 %v747
        %v2218 = vunpack.c.2.s8 %v748
        %v2219 = vunpack.c.3.s8 %v739
        %v2220 = vunpack.c.3.s8 %v740
        %v2221 = vunpack.c.3.s8 %v741
        %v2222 = vunpack.c.3.s8 %v742
        %v2223 = vunpack.c.3.s8 %v743
        %v2224 = vunpack.c.3.s8 %v744
        %v2225 = vunpack.c.3.s8 %v745
        %v2226 = vunpack.c.3.s8 %v746
        %v2227 = vunpack.c.3.s8 %v747
        %v2228 = vunpack.c.3.s8 %v748
        %v2229 = vunpack.c.0.s8 %v749
        %v2230 = vunpack.c.0.s8 %v750
        %v2231 = vunpack.c.0.s8 %v751
        %v2232 = vunpack.c.0.s8 %v752
        %v2233 = vunpack.c.0.s8 %v753
        %v2234 = vunpack.c.0.s8 %v754
        %v2235 = vunpack.c.0.s8 %v755
        %v2236 = vunpack.c.0.s8 %v756
        %v2237 = vunpack.c.0.s8 %v757
        %v2238 = vunpack.c.0.s8 %v758
        %v2239 = vunpack.c.1.s8 %v749
        %v2240 = vunpack.c.1.s8 %v750
        %v2241 = vunpack.c.1.s8 %v751
        %v2242 = vunpack.c.1.s8 %v752
        %v2243 = vunpack.c.1.s8 %v753
        %v2244 = vunpack.c.1.s8 %v754
        %v2245 = vunpack.c.1.s8 %v755
        %v2246 = vunpack.c.1.s8 %v756
        %v2247 = vunpack.c.1.s8 %v757
        %v2248 = vunpack.c.1.s8 %v758
        %v2249 = vunpack.c.2.s8 %v749
        %v2250 = vunpack.c.2.s8 %v750
        %v2251 = vunpack.c.2.s8 %v751
        %v2252 = vunpack.c.2.s8 %v752
        %v2253 = vunpack.c.2.s8 %v753
        %v2254 = vunpack.c.2.s8 %v754
        %v2255 = vunpack.c.2.s8 %v755
        %v2256 = vunpack.c.2.s8 %v756
        %v2257 = vunpack.c.2.s8 %v757
        %v2258 = vunpack.c.2.s8 %v758
        %v2259 = vunpack.c.3.s8 %v749
        %v2260 = vunpack.c.3.s8 %v750
        %v2261 = vunpack.c.3.s8 %v751
        %v2262 = vunpack.c.3.s8 %v752
        %v2263 = vunpack.c.3.s8 %v753
        %v2264 = vunpack.c.3.s8 %v754
        %v2265 = vunpack.c.3.s8 %v755
        %v2266 = vunpack.c.3.s8 %v756
        %v2267 = vunpack.c.3.s8 %v757
        %v2268 = vunpack.c.3.s8 %v758
        %v2269 = vunpack.c.0.s8 %v759
        %v2270 = vunpack.c.0.s8 %v760
        %v2271 = vunpack.c.0.s8 %v761
        %v2272 = vunpack.c.0.s8 %v762
        %v2273 = vunpack.c.0.s8 %v763
        %v2274 = vunpack.c.0.s8 %v764
        %v2275 = vunpack.c.0.s8 %v765
        %v2276 = vunpack.c.0.s8 %v766
        %v2277 = vunpack.c.0.s8 %v767
        %v2278 = vunpack.c.0.s8 %v768
        %v2279 = vunpack.c.1.s8 %v759
        %v2280 = vunpack.c.1.s8 %v760
        %v2281 = vunpack.c.1.s8 %v761
        %v2282 = vunpack.c.1.s8 %v762
        %v2283 = vunpack.c.1.s8 %v763
        %v2284 = vunpack.c.1.s8 %v764
        %v2285 = vunpack.c.1.s8 %v765
        %v2286 = vunpack.c.1.s8 %v766
        %v2287 = vunpack.c.1.s8 %v767
        %v2288 = vunpack.c.1.s8 %v768
        %v2289 = vunpack.c.2.s8 %v759
        %v2290 = vunpack.c.2.s8 %v760
        %v2291 = vunpack.c.2.s8 %v761
        %v2292 = vunpack.c.2.s8 %v762
        %v2293 = vunpack.c.2.s8 %v763
        %v2294 = vunpack.c.2.s8 %v764
        %v2295 = vunpack.c.2.s8 %v765
        %v2296 = vunpack.c.2.s8 %v766
        %v2297 = vunpack.c.2.s8 %v767
        %v2298 = vunpack.c.2.s8 %v768
        %v2299 = vunpack.c.3.s8 %v759
        %v2300 = vunpack.c.3.s8 %v760
        %v2301 = vunpack.c.3.s8 %v761
        %v2302 = vunpack.c.3.s8 %v762
        %v2303 = vunpack.c.3.s8 %v763
        %v2304 = vunpack.c.3.s8 %v764
        %v2305 = vunpack.c.3.s8 %v765
        %v2306 = vunpack.c.3.s8 %v766
        %v2307 = vunpack.c.3.s8 %v767
        %v2308 = vunpack.c.3.s8 %v768
        %v2309 = vunpack.c.0.s8 %v769
        %v2310 = vunpack.c.0.s8 %v770
        %v2311 = vunpack.c.0.s8 %v771
        %v2312 = vunpack.c.0.s8 %v772
        %v2313 = vunpack.c.0.s8 %v773
        %v2314 = vunpack.c.0.s8 %v774
        %v2315 = vunpack.c.0.s8 %v775
        %v2316 = vunpack.c.0.s8 %v776
        %v2317 = vunpack.c.0.s8 %v777
        %v2318 = vunpack.c.0.s8 %v778
        %v2319 = vunpack.c.1.s8 %v769
        %v2320 = vunpack.c.1.s8 %v770
        %v2321 = vunpack.c.1.s8 %v771
        %v2322 = vunpack.c.1.s8 %v772
        %v2323 = vunpack.c.1.s8 %v773
        %v2324 = vunpack.c.1.s8 %v774
        %v2325 = vunpack.c.1.s8 %v775
        %v2326 = vunpack.c.1.s8 %v776
        %v2327 = vunpack.c.1.s8 %v777
        %v2328 = vunpack.c.1.s8 %v778
        %v2329 = vunpack.c.2.s8 %v769
        %v2330 = vunpack.c.2.s8 %v770
        %v2331 = vunpack.c.2.s8 %v771
        %v2332 = vunpack.c.2.s8 %v772
        %v2333 = vunpack.c.2.s8 %v773
        %v2334 = vunpack.c.2.s8 %v774
        %v2335 = vunpack.c.2.s8 %v775
        %v2336 = vunpack.c.2.s8 %v776
        %v2337 = vunpack.c.2.s8 %v777
        %v2338 = vunpack.c.2.s8 %v778
        %v2339 = vunpack.c.3.s8 %v769
        %v2340 = vunpack.c.3.s8 %v770
        %v2341 = vunpack.c.3.s8 %v771
        %v2342 = vunpack.c.3.s8 %v772
        %v2343 = vunpack.c.3.s8 %v773
        %v2344 = vunpack.c.3.s8 %v774
        %v2345 = vunpack.c.3.s8 %v775
        %v2346 = vunpack.c.3.s8 %v776
        %v2347 = vunpack.c.3.s8 %v777
        %v2348 = vunpack.c.3.s8 %v778
        %v2349 = vunpack.c.0.s8 %v779
        %v2350 = vunpack.c.0.s8 %v780
        %v2351 = vunpack.c.0.s8 %v781
        %v2352 = vunpack.c.0.s8 %v782
        %v2353 = vunpack.c.0.s8 %v783
        %v2354 = vunpack.c.0.s8 %v784
        %v2355 = vunpack.c.0.s8 %v785
        %v2356 = vunpack.c.0.s8 %v786
        %v2357 = vunpack.c.0.s8 %v787
        %v2358 = vunpack.c.0.s8 %v788
        %v2359 = vunpack.c.1.s8 %v779
        %v2360 = vunpack.c.1.s8 %v780
        %v2361 = vunpack.c.1.s8 %v781
        %v2362 = vunpack.c.1.s8 %v782
        %v2363 = vunpack.c.1.s8 %v783
        %v2364 = vunpack.c.1.s8 %v784
        %v2365 = vunpack.c.1.s8 %v785
        %v2366 = vunpack.c.1.s8 %v786
        %v2367 = vunpack.c.1.s8 %v787
        %v2368 = vunpack.c.1.s8 %v788
        %v2369 = vunpack.c.2.s8 %v779
        %v2370 = vunpack.c.2.s8 %v780
        %v2371 = vunpack.c.2.s8 %v781
        %v2372 = vunpack.c.2.s8 %v782
        %v2373 = vunpack.c.2.s8 %v783
        %v2374 = vunpack.c.2.s8 %v784
        %v2375 = vunpack.c.2.s8 %v785
        %v2376 = vunpack.c.2.s8 %v786
        %v2377 = vunpack.c.2.s8 %v787
        %v2378 = vunpack.c.2.s8 %v788
        %v2379 = vunpack.c.3.s8 %v779
        %v2380 = vunpack.c.3.s8 %v780
        %v2381 = vunpack.c.3.s8 %v781
        %v2382 = vunpack.c.3.s8 %v782
        %v2383 = vunpack.c.3.s8 %v783
        %v2384 = vunpack.c.3.s8 %v784
        %v2385 = vunpack.c.3.s8 %v785
        %v2386 = vunpack.c.3.s8 %v786
        %v2387 = vunpack.c.3.s8 %v787
        %v2388 = vunpack.c.3.s8 %v788
        %v2389 = vcvt.s32.f32 %v789
        %v2390 = vcvt.s32.f32 %v790
        %v2391 = vcvt.s32.f32 %v791
        %v2392 = vcvt.s32.f32 %v792
        %v2393 = vcvt.s32.f32 %v793
        %v2394 = vcvt.s32.f32 %v794
        %v2395 = vcvt.s32.f32 %v795
        %v2396 = vcvt.s32.f32 %v796
        %v2397 = vcvt.s32.f32 %v797
        %v2398 = vcvt.s32.f32 %v798
        %v2399 = vcvt.s32.f32 %v799
        %v2400 = vcvt.s32.f32 %v800
        %v2401 = vcvt.s32.f32 %v801
        %v2402 = vcvt.s32.f32 %v802
        %v2403 = vcvt.s32.f32 %v803
        %v2404 = vcvt.s32.f32 %v804
        %v2405 = vcvt.s32.f32 %v805
        %v2406 = vcvt.s32.f32 %v806
        %v2407 = vcvt.s32.f32 %v807
        %v2408 = vcvt.s32.f32 %v808
        %v2409 = vcvt.s32.f32 %v809
        %v2410 = vcvt.s32.f32 %v810
        %v2411 = vcvt.s32.f32 %v811
        %v2412 = vcvt.s32.f32 %v812
        %v2413 = vcvt.s32.f32 %v813
        %v2414 = vcvt.s32.f32 %v814
        %v2415 = vcvt.s32.f32 %v815
        %v2416 = vcvt.s32.f32 %v816
        %v2417 = vcvt.s32.f32 %v817
        %v2418 = vcvt.s32.f32 %v818
        %v2419 = vcvt.s32.f32 %v819
        %v2420 = vcvt.s32.f32 %v820
        %v2421 = vcvt.s32.f32 %v821
        %v2422 = vcvt.s32.f32 %v822
        %v2423 = vcvt.s32.f32 %v823
        %v2424 = vcvt.s32.f32 %v824
        %v2425 = vcvt.s32.f32 %v825
        %v2426 = vcvt.s32.f32 %v826
        %v2427 = vcvt.s32.f32 %v827
        %v2428 = vcvt.s32.f32 %v828
        %v2429 = vcvt.s32.f32 %v829
        %v2430 = vcvt.s32.f32 %v830
        %v2431 = vcvt.s32.f32 %v831
        %v2432 = vcvt.s32.f32 %v832
        %v2433 = vcvt.s32.f32 %v833
        %v2434 = vcvt.s32.f32 %v834
        %v2435 = vcvt.s32.f32 %v835
        %v2436 = vcvt.s32.f32 %v836
        %v2437 = vcvt.s32.f32 %v837
        %v2438 = vcvt.s32.f32 %v838
        %v2439 = vcvt.s32.f32 %v839
        %v2440 = vcvt.s32.f32 %v840
        %v2441 = vcvt.s32.f32 %v841
        %v2442 = vcvt.s32.f32 %v842
        %v2443 = vcvt.s32.f32 %v843
        %v2444 = vcvt.s32.f32 %v844
        %v2445 = vcvt.s32.f32 %v845
        %v2446 = vcvt.s32.f32 %v846
        %v2447 = vcvt.s32.f32 %v847
        %v2448 = vcvt.s32.f32 %v848
        %v2449 = vcvt.s32.f32 %v849
        %v2450 = vcvt.s32.f32 %v850
        %v2451 = vcvt.s32.f32 %v851
        %v2452 = vcvt.s32.f32 %v852
        %v2453 = vcvt.s32.f32 %v853
        %v2454 = vcvt.s32.f32 %v854
        %v2455 = vcvt.s32.f32 %v855
        %v2456 = vcvt.s32.f32 %v856
        %v2457 = vcvt.s32.f32 %v857
        %v2458 = vcvt.s32.f32 %v858
        %v2459 = vcvt.s32.f32 %v859
        %v2460 = vcvt.s32.f32 %v860
        %v2461 = vcvt.s32.f32 %v861
        %v2462 = vcvt.s32.f32 %v862
        %v2463 = vcvt.s32.f32 %v863
        %v2464 = vcvt.s32.f32 %v864
        %v2465 = vcvt.s32.f32 %v865
        %v2466 = vcvt.s32.f32 %v866
        %v2467 = vcvt.s32.f32 %v867
        %v2468 = vcvt.s32.f32 %v868
        %v2469 = vcvt.s32.f32 %v869
        %v2470 = vcvt.s32.f32 %v870
        %v2471 = vcvt.s32.f32 %v871
        %v2472 = vcvt.s32.f32 %v872
        %v2473 = vcvt.s32.f32 %v873
        %v2474 = vcvt.s32.f32 %v874
        %v2475 = vcvt.s32.f32 %v875
        %v2476 = vcvt.s32.f32 %v876
        %v2477 = vcvt.s32.f32 %v877
        %v2478 = vcvt.s32.f32 %v878
        %v2479 = vcvt.s32.f32 %v879
        %v2480 = vcvt.s32.f32 %v880
        %v2481 = vcvt.s32.f32 %v881
        %v2482 = vcvt.s32.f32 %v882
        %v2483 = vcvt.s32.f32 %v883
        %v2484 = vcvt.s32.f32 %v884
        %v2485 = vcvt.s32.f32 %v885
        %v2486 = vcvt.s32.f32 %v886
        %v2487 = vcvt.s32.f32 %v887
        %v2488 = vcvt.s32.f32 %v888
        %v2489 = vcvt.s32.f32 %v889
        %v2490 = vcvt.s32.f32 %v890
        %v2491 = vcvt.s32.f32 %v891
        %v2492 = vcvt.s32.f32 %v892
        %v2493 = vcvt.s32.f32 %v893
        %v2494 = vcvt.s32.f32 %v894
        %v2495 = vcvt.s32.f32 %v895
        %v2496 = vcvt.s32.f32 %v896
        %v2497 = vcvt.s32.f32 %v897
        %v2498 = vcvt.s32.f32 %v898
        %v2499 = vcvt.s32.f32 %v899
        %v2500 = vcvt.s32.f32 %v900
        %v2501 = vcvt.s32.f32 %v901
        %v2502 = vcvt.s32.f32 %v902
        %v2503 = vcvt.s32.f32 %v903
        %v2504 = vcvt.s32.f32 %v904
        %v2505 = vcvt.s32.f32 %v905
        %v2506 = vcvt.s32.f32 %v906
        %v2507 = vcvt.s32.f32 %v907
        %v2508 = vcvt.s32.f32 %v908
        %v2509 = vcvt.s32.f32 %v909
        %v2510 = vcvt.s32.f32 %v910
        %v2511 = vcvt.s32.f32 %v911
        %v2512 = vcvt.s32.f32 %v912
        %v2513 = vcvt.s32.f32 %v913
        %v2514 = vcvt.s32.f32 %v914
        %v2515 = vcvt.s32.f32 %v915
        %v2516 = vcvt.s32.f32 %v916
        %v2517 = vcvt.s32.f32 %v917
        %v2518 = vcvt.s32.f32 %v918
        %v2519 = vcvt.s32.f32 %v919
        %v2520 = vcvt.s32.f32 %v920
        %v2521 = vcvt.s32.f32 %v921
        %v2522 = vcvt.s32.f32 %v922
        %v2523 = vcvt.s32.f32 %v923
        %v2524 = vcvt.s32.f32 %v924
        %v2525 = vcvt.s32.f32 %v925
        %v2526 = vcvt.s32.f32 %v926
        %v2527 = vcvt.s32.f32 %v927
        %v2528 = vcvt.s32.f32 %v928
        %v2529 = vcvt.s32.f32 %v929
        %v2530 = vcvt.s32.f32 %v930
        %v2531 = vcvt.s32.f32 %v931
        %v2532 = vcvt.s32.f32 %v932
        %v2533 = vcvt.s32.f32 %v933
        %v2534 = vcvt.s32.f32 %v934
        %v2535 = vcvt.s32.f32 %v935
        %v2536 = vcvt.s32.f32 %v936
        %v2537 = vcvt.s32.f32 %v937
        %v2538 = vcvt.s32.f32 %v938
        %v2539 = vcvt.s32.f32 %v939
        %v2540 = vcvt.s32.f32 %v940
        %v2541 = vcvt.s32.f32 %v941
        %v2542 = vcvt.s32.f32 %v942
        %v2543 = vcvt.s32.f32 %v943
        %v2544 = vcvt.s32.f32 %v944
        %v2545 = vcvt.s32.f32 %v945
        %v2546 = vcvt.s32.f32 %v946
        %v2547 = vcvt.s32.f32 %v947
        %v2548 = vcvt.s32.f32 %v948
        %v2549 = vcvt.s32.f32 %v949
        %v2550 = vcvt.s32.f32 %v950
        %v2551 = vcvt.s32.f32 %v951
        %v2552 = vcvt.s32.f32 %v952
        %v2553 = vcvt.s32.f32 %v953
        %v2554 = vcvt.s32.f32 %v954
        %v2555 = vcvt.s32.f32 %v955
        %v2556 = vcvt.s32.f32 %v956
        %v2557 = vcvt.s32.f32 %v957
        %v2558 = vcvt.s32.f32 %v958
        %v2559 = vcvt.s32.f32 %v959
        %v2560 = vcvt.s32.f32 %v960
        %v2561 = vcvt.s32.f32 %v961
        %v2562 = vcvt.s32.f32 %v962
        %v2563 = vcvt.s32.f32 %v963
        %v2564 = vcvt.s32.f32 %v964
        %v2565 = vcvt.s32.f32 %v965
        %v2566 = vcvt.s32.f32 %v966
        %v2567 = vcvt.s32.f32 %v967
        %v2568 = vcvt.s32.f32 %v968
        %v2569 = vcvt.s32.f32 %v969
        %v2570 = vcvt.s32.f32 %v970
        %v2571 = vcvt.s32.f32 %v971
        %v2572 = vcvt.s32.f32 %v972
        %v2573 = vcvt.s32.f32 %v973
        %v2574 = vcvt.s32.f32 %v974
        %v2575 = vcvt.s32.f32 %v975
        %v2576 = vcvt.s32.f32 %v976
        %v2577 = vcvt.s32.f32 %v977
        %v2578 = vcvt.s32.f32 %v978
        %v2579 = vcvt.s32.f32 %v979
        %v2580 = vcvt.s32.f32 %v980
        %v2581 = vcvt.s32.f32 %v981
        %v2582 = vcvt.s32.f32 %v982
        %v2583 = vcvt.s32.f32 %v983
        %v2584 = vcvt.s32.f32 %v984
        %v2585 = vcvt.s32.f32 %v985
        %v2586 = vcvt.s32.f32 %v986
        %v2587 = vcvt.s32.f32 %v987
        %v2588 = vcvt.s32.f32 %v988
        %v2589 = vcvt.s32.f32 %v989
        %v2590 = vcvt.s32.f32 %v990
        %v2591 = vcvt.s32.f32 %v991
        %v2592 = vcvt.s32.f32 %v992
        %v2593 = vcvt.s32.f32 %v993
        %v2594 = vcvt.s32.f32 %v994
        %v2595 = vcvt.s32.f32 %v995
        %v2596 = vcvt.s32.f32 %v996
        %v2597 = vcvt.s32.f32 %v997
        %v2598 = vcvt.s32.f32 %v998
        %v2599 = vcvt.s32.f32 %v999
        %v2600 = vcvt.s32.f32 %v1000
        %v2601 = vcvt.s32.f32 %v1001
        %v2602 = vcvt.s32.f32 %v1002
        %v2603 = vcvt.s32.f32 %v1003
        %v2604 = vcvt.s32.f32 %v1004
        %v2605 = vcvt.s32.f32 %v1005
        %v2606 = vcvt.s32.f32 %v1006
        %v2607 = vcvt.s32.f32 %v1007
        %v2608 = vcvt.s32.f32 %v1008
        %v2609 = vcvt.s32.f32 %v1009
        %v2610 = vcvt.s32.f32 %v1010
        %v2611 = vcvt.s32.f32 %v1011
        %v2612 = vcvt.s32.f32 %v1012
        %v2613 = vcvt.s32.f32 %v1013
        %v2614 = vcvt.s32.f32 %v1014
        %v2615 = vcvt.s32.f32 %v1015
        %v2616 = vcvt.s32.f32 %v1016
        %v2617 = vcvt.s32.f32 %v1017
        %v2618 = vcvt.s32.f32 %v1018
        %v2619 = vcvt.s32.f32 %v1019
        %v2620 = vcvt.s32.f32 %v1020
        %v2621 = vcvt.s32.f32 %v1021
        %v2622 = vcvt.s32.f32 %v1022
        %v2623 = vcvt.s32.f32 %v1023
        %v2624 = vcvt.s32.f32 %v1024
        %v2625 = vcvt.s32.f32 %v1025
        %v2626 = vcvt.s32.f32 %v1026
        %v2627 = vcvt.s32.f32 %v1027
        %v2628 = vcvt.s32.f32 %v1028
        %v2629 = vcvt.s32.f32 %v1029
        %v2630 = vcvt.s32.f32 %v1030
        %v2631 = vcvt.s32.f32 %v1031
        %v2632 = vcvt.s32.f32 %v1032
        %v2633 = vcvt.s32.f32 %v1033
        %v2634 = vcvt.s32.f32 %v1034
        %v2635 = vcvt.s32.f32 %v1035
        %v2636 = vcvt.s32.f32 %v1036
        %v2637 = vcvt.s32.f32 %v1037
        %v2638 = vcvt.s32.f32 %v1038
        %v2639 = vcvt.s32.f32 %v1039
        %v2640 = vcvt.s32.f32 %v1040
        %v2641 = vcvt.s32.f32 %v1041
        %v2642 = vcvt.s32.f32 %v1042
        %v2643 = vcvt.s32.f32 %v1043
        %v2644 = vcvt.s32.f32 %v1044
        %v2645 = vcvt.s32.f32 %v1045
        %v2646 = vcvt.s32.f32 %v1046
        %v2647 = vcvt.s32.f32 %v1047
        %v2648 = vcvt.s32.f32 %v1048
        %v2649 = vcvt.s32.f32 %v1049
        %v2650 = vcvt.s32.f32 %v1050
        %v2651 = vcvt.s32.f32 %v1051
        %v2652 = vcvt.s32.f32 %v1052
        %v2653 = vcvt.s32.f32 %v1053
        %v2654 = vcvt.s32.f32 %v1054
        %v2655 = vcvt.s32.f32 %v1055
        %v2656 = vcvt.s32.f32 %v1056
        %v2657 = vcvt.s32.f32 %v1057
        %v2658 = vcvt.s32.f32 %v1058
        %v2659 = vcvt.s32.f32 %v1059
        %v2660 = vcvt.s32.f32 %v1060
        %v2661 = vcvt.s32.f32 %v1061
        %v2662 = vcvt.s32.f32 %v1062
        %v2663 = vcvt.s32.f32 %v1063
        %v2664 = vcvt.s32.f32 %v1064
        %v2665 = vcvt.s32.f32 %v1065
        %v2666 = vcvt.s32.f32 %v1066
        %v2667 = vcvt.s32.f32 %v1067
        %v2668 = vcvt.s32.f32 %v1068
        %v2669 = vcvt.s32.f32 %v1069
        %v2670 = vcvt.s32.f32 %v1070
        %v2671 = vcvt.s32.f32 %v1071
        %v2672 = vcvt.s32.f32 %v1072
        %v2673 = vcvt.s32.f32 %v1073
        %v2674 = vcvt.s32.f32 %v1074
        %v2675 = vcvt.s32.f32 %v1075
        %v2676 = vcvt.s32.f32 %v1076
        %v2677 = vcvt.s32.f32 %v1077
        %v2678 = vcvt.s32.f32 %v1078
        %v2679 = vcvt.s32.f32 %v1079
        %v2680 = vcvt.s32.f32 %v1080
        %v2681 = vcvt.s32.f32 %v1081
        %v2682 = vcvt.s32.f32 %v1082
        %v2683 = vcvt.s32.f32 %v1083
        %v2684 = vcvt.s32.f32 %v1084
        %v2685 = vcvt.s32.f32 %v1085
        %v2686 = vcvt.s32.f32 %v1086
        %v2687 = vcvt.s32.f32 %v1087
        %v2688 = vcvt.s32.f32 %v1088
        %v2689 = vcvt.s32.f32 %v1089
        %v2690 = vcvt.s32.f32 %v1090
        %v2691 = vcvt.s32.f32 %v1091
        %v2692 = vcvt.s32.f32 %v1092
        %v2693 = vcvt.s32.f32 %v1093
        %v2694 = vcvt.s32.f32 %v1094
        %v2695 = vcvt.s32.f32 %v1095
        %v2696 = vcvt.s32.f32 %v1096
        %v2697 = vcvt.s32.f32 %v1097
        %v2698 = vcvt.s32.f32 %v1098
        %v2699 = vcvt.s32.f32 %v1099
        %v2700 = vcvt.s32.f32 %v1100
        %v2701 = vcvt.s32.f32 %v1101
        %v2702 = vcvt.s32.f32 %v1102
        %v2703 = vcvt.s32.f32 %v1103
        %v2704 = vcvt.s32.f32 %v1104
        %v2705 = vcvt.s32.f32 %v1105
        %v2706 = vcvt.s32.f32 %v1106
        %v2707 = vcvt.s32.f32 %v1107
        %v2708 = vcvt.s32.f32 %v1108
        %v2709 = vcvt.s32.f32 %v1109
        %v2710 = vcvt.s32.f32 %v1110
        %v2711 = vcvt.s32.f32 %v1111
        %v2712 = vcvt.s32.f32 %v1112
        %v2713 = vcvt.s32.f32 %v1113
        %v2714 = vcvt.s32.f32 %v1114
        %v2715 = vcvt.s32.f32 %v1115
        %v2716 = vcvt.s32.f32 %v1116
        %v2717 = vcvt.s32.f32 %v1117
        %v2718 = vcvt.s32.f32 %v1118
        %v2719 = vcvt.s32.f32 %v1119
        %v2720 = vcvt.s32.f32 %v1120
        %v2721 = vcvt.s32.f32 %v1121
        %v2722 = vcvt.s32.f32 %v1122
        %v2723 = vcvt.s32.f32 %v1123
        %v2724 = vcvt.s32.f32 %v1124
        %v2725 = vcvt.s32.f32 %v1125
        %v2726 = vcvt.s32.f32 %v1126
        %v2727 = vcvt.s32.f32 %v1127
        %v2728 = vcvt.s32.f32 %v1128
        %v2729 = vcvt.s32.f32 %v1129
        %v2730 = vcvt.s32.f32 %v1130
        %v2731 = vcvt.s32.f32 %v1131
        %v2732 = vcvt.s32.f32 %v1132
        %v2733 = vcvt.s32.f32 %v1133
        %v2734 = vcvt.s32.f32 %v1134
        %v2735 = vcvt.s32.f32 %v1135
        %v2736 = vcvt.s32.f32 %v1136
        %v2737 = vcvt.s32.f32 %v1137
        %v2738 = vcvt.s32.f32 %v1138
        %v2739 = vcvt.s32.f32 %v1139
        %v2740 = vcvt.s32.f32 %v1140
        %v2741 = vcvt.s32.f32 %v1141
        %v2742 = vcvt.s32.f32 %v1142
        %v2743 = vcvt.s32.f32 %v1143
        %v2744 = vcvt.s32.f32 %v1144
        %v2745 = vcvt.s32.f32 %v1145
        %v2746 = vcvt.s32.f32 %v1146
        %v2747 = vcvt.s32.f32 %v1147
        %v2748 = vcvt.s32.f32 %v1148
        %v2749 = vcvt.s32.f32 %v1149
        %v2750 = vcvt.s32.f32 %v1150
        %v2751 = vcvt.s32.f32 %v1151
        %v2752 = vcvt.s32.f32 %v1152
        %v2753 = vcvt.s32.f32 %v1153
        %v2754 = vcvt.s32.f32 %v1154
        %v2755 = vcvt.s32.f32 %v1155
        %v2756 = vcvt.s32.f32 %v1156
        %v2757 = vcvt.s32.f32 %v1157
        %v2758 = vcvt.s32.f32 %v1158
        %v2759 = vcvt.s32.f32 %v1159
        %v2760 = vcvt.s32.f32 %v1160
        %v2761 = vcvt.s32.f32 %v1161
        %v2762 = vcvt.s32.f32 %v1162
        %v2763 = vcvt.s32.f32 %v1163
        %v2764 = vcvt.s32.f32 %v1164
        %v2765 = vcvt.s32.f32 %v1165
        %v2766 = vcvt.s32.f32 %v1166
        %v2767 = vcvt.s32.f32 %v1167
        %v2768 = vcvt.s32.f32 %v1168
        %v2769 = vcvt.s32.f32 %v1169
        %v2770 = vcvt.s32.f32 %v1170
        %v2771 = vcvt.s32.f32 %v1171
        %v2772 = vcvt.s32.f32 %v1172
        %v2773 = vcvt.s32.f32 %v1173
        %v2774 = vcvt.s32.f32 %v1174
        %v2775 = vcvt.s32.f32 %v1175
        %v2776 = vcvt.s32.f32 %v1176
        %v2777 = vcvt.s32.f32 %v1177
        %v2778 = vcvt.s32.f32 %v1178
        %v2779 = vcvt.s32.f32 %v1179
        %v2780 = vcvt.s32.f32 %v1180
        %v2781 = vcvt.s32.f32 %v1181
        %v2782 = vcvt.s32.f32 %v1182
        %v2783 = vcvt.s32.f32 %v1183
        %v2784 = vcvt.s32.f32 %v1184
        %v2785 = vcvt.s32.f32 %v1185
        %v2786 = vcvt.s32.f32 %v1186
        %v2787 = vcvt.s32.f32 %v1187
        %v2788 = vcvt.s32.f32 %v1188
        %v2789 = vcvt.s32.f32 %v1189
        %v2790 = vcvt.s32.f32 %v1190
        %v2791 = vcvt.s32.f32 %v1191
        %v2792 = vcvt.s32.f32 %v1192
        %v2793 = vcvt.s32.f32 %v1193
        %v2794 = vcvt.s32.f32 %v1194
        %v2795 = vcvt.s32.f32 %v1195
        %v2796 = vcvt.s32.f32 %v1196
        %v2797 = vcvt.s32.f32 %v1197
        %v2798 = vcvt.s32.f32 %v1198
        %v2799 = vcvt.s32.f32 %v1199
        %v2800 = vcvt.s32.f32 %v1200
        %v2801 = vcvt.s32.f32 %v1201
        %v2802 = vcvt.s32.f32 %v1202
        %v2803 = vcvt.s32.f32 %v1203
        %v2804 = vcvt.s32.f32 %v1204
        %v2805 = vcvt.s32.f32 %v1205
        %v2806 = vcvt.s32.f32 %v1206
        %v2807 = vcvt.s32.f32 %v1207
        %v2808 = vcvt.s32.f32 %v1208
        %v2809 = vcvt.s32.f32 %v1209
        %v2810 = vcvt.s32.f32 %v1210
        %v2811 = vcvt.s32.f32 %v1211
        %v2812 = vcvt.s32.f32 %v1212
        %v2813 = vcvt.s32.f32 %v1213
        %v2814 = vcvt.s32.f32 %v1214
        %v2815 = vcvt.s32.f32 %v1215
        %v2816 = vcvt.s32.f32 %v1216
        %v2817 = vcvt.s32.f32 %v1217
        %v2818 = vcvt.s32.f32 %v1218
        %v2819 = vcvt.s32.f32 %v1219
        %v2820 = vcvt.s32.f32 %v1220
        %v2821 = vcvt.s32.f32 %v1221
        %v2822 = vcvt.s32.f32 %v1222
        %v2823 = vcvt.s32.f32 %v1223
        %v2824 = vcvt.s32.f32 %v1224
        %v2825 = vcvt.s32.f32 %v1225
        %v2826 = vcvt.s32.f32 %v1226
        %v2827 = vcvt.s32.f32 %v1227
        %v2828 = vcvt.s32.f32 %v1228
        %v2829 = vcvt.s32.f32 %v1229
        %v2830 = vcvt.s32.f32 %v1230
        %v2831 = vcvt.s32.f32 %v1231
        %v2832 = vcvt.s32.f32 %v1232
        %v2833 = vcvt.s32.f32 %v1233
        %v2834 = vcvt.s32.f32 %v1234
        %v2835 = vcvt.s32.f32 %v1235
        %v2836 = vcvt.s32.f32 %v1236
        %v2837 = vcvt.s32.f32 %v1237
        %v2838 = vcvt.s32.f32 %v1238
        %v2839 = vcvt.s32.f32 %v1239
        %v2840 = vcvt.s32.f32 %v1240
        %v2841 = vcvt.s32.f32 %v1241
        %v2842 = vcvt.s32.f32 %v1242
        %v2843 = vcvt.s32.f32 %v1243
        %v2844 = vcvt.s32.f32 %v1244
        %v2845 = vcvt.s32.f32 %v1245
        %v2846 = vcvt.s32.f32 %v1246
        %v2847 = vcvt.s32.f32 %v1247
        %v2848 = vcvt.s32.f32 %v1248
        %v2849 = vcvt.s32.f32 %v1249
        %v2850 = vcvt.s32.f32 %v1250
        %v2851 = vcvt.s32.f32 %v1251
        %v2852 = vcvt.s32.f32 %v1252
        %v2853 = vcvt.s32.f32 %v1253
        %v2854 = vcvt.s32.f32 %v1254
        %v2855 = vcvt.s32.f32 %v1255
        %v2856 = vcvt.s32.f32 %v1256
        %v2857 = vcvt.s32.f32 %v1257
        %v2858 = vcvt.s32.f32 %v1258
        %v2859 = vcvt.s32.f32 %v1259
        %v2860 = vcvt.s32.f32 %v1260
        %v2861 = vcvt.s32.f32 %v1261
        %v2862 = vcvt.s32.f32 %v1262
        %v2863 = vcvt.s32.f32 %v1263
        %v2864 = vcvt.s32.f32 %v1264
        %v2865 = vcvt.s32.f32 %v1265
        %v2866 = vcvt.s32.f32 %v1266
        %v2867 = vcvt.s32.f32 %v1267
        %v2868 = vcvt.s32.f32 %v1268
        %v2869 = vcvt.s32.f32 %v1269
        %v2870 = vcvt.s32.f32 %v1270
        %v2871 = vcvt.s32.f32 %v1271
        %v2872 = vcvt.s32.f32 %v1272
        %v2873 = vcvt.s32.f32 %v1273
        %v2874 = vcvt.s32.f32 %v1274
        %v2875 = vcvt.s32.f32 %v1275
        %v2876 = vcvt.s32.f32 %v1276
        %v2877 = vcvt.s32.f32 %v1277
        %v2878 = vcvt.s32.f32 %v1278
        %v2879 = vcvt.s32.f32 %v1279
        %v2880 = vcvt.s32.f32 %v1280
        %v2881 = vcvt.s32.f32 %v1281
        %v2882 = vcvt.s32.f32 %v1282
        %v2883 = vcvt.s32.f32 %v1283
        %v2884 = vcvt.s32.f32 %v1284
        %v2885 = vcvt.s32.f32 %v1285
        %v2886 = vcvt.s32.f32 %v1286
        %v2887 = vcvt.s32.f32 %v1287
        %v2888 = vcvt.s32.f32 %v1288
        %v2889 = vcvt.s32.f32 %v1289
        %v2890 = vcvt.s32.f32 %v1290
        %v2891 = vcvt.s32.f32 %v1291
        %v2892 = vcvt.s32.f32 %v1292
        %v2893 = vcvt.s32.f32 %v1293
        %v2894 = vcvt.s32.f32 %v1294
        %v2895 = vcvt.s32.f32 %v1295
        %v2896 = vcvt.s32.f32 %v1296
        %v2897 = vcvt.s32.f32 %v1297
        %v2898 = vcvt.s32.f32 %v1298
        %v2899 = vcvt.s32.f32 %v1299
        %v2900 = vcvt.s32.f32 %v1300
        %v2901 = vcvt.s32.f32 %v1301
        %v2902 = vcvt.s32.f32 %v1302
        %v2903 = vcvt.s32.f32 %v1303
        %v2904 = vcvt.s32.f32 %v1304
        %v2905 = vcvt.s32.f32 %v1305
        %v2906 = vcvt.s32.f32 %v1306
        %v2907 = vcvt.s32.f32 %v1307
        %v2908 = vcvt.s32.f32 %v1308
        %v2909 = vcvt.s32.f32 %v1309
        %v2910 = vcvt.s32.f32 %v1310
        %v2911 = vcvt.s32.f32 %v1311
        %v2912 = vcvt.s32.f32 %v1312
        %v2913 = vcvt.s32.f32 %v1313
        %v2914 = vcvt.s32.f32 %v1314
        %v2915 = vcvt.s32.f32 %v1315
        %v2916 = vcvt.s32.f32 %v1316
        %v2917 = vcvt.s32.f32 %v1317
        %v2918 = vcvt.s32.f32 %v1318
        %v2919 = vcvt.s32.f32 %v1319
        %v2920 = vcvt.s32.f32 %v1320
        %v2921 = vcvt.s32.f32 %v1321
        %v2922 = vcvt.s32.f32 %v1322
        %v2923 = vcvt.s32.f32 %v1323
        %v2924 = vcvt.s32.f32 %v1324
        %v2925 = vcvt.s32.f32 %v1325
        %v2926 = vcvt.s32.f32 %v1326
        %v2927 = vcvt.s32.f32 %v1327
        %v2928 = vcvt.s32.f32 %v1328
        %v2929 = vcvt.s32.f32 %v1329
        %v2930 = vcvt.s32.f32 %v1330
        %v2931 = vcvt.s32.f32 %v1331
        %v2932 = vcvt.s32.f32 %v1332
        %v2933 = vcvt.s32.f32 %v1333
        %v2934 = vcvt.s32.f32 %v1334
        %v2935 = vcvt.s32.f32 %v1335
        %v2936 = vcvt.s32.f32 %v1336
        %v2937 = vcvt.s32.f32 %v1337
        %v2938 = vcvt.s32.f32 %v1338
        %v2939 = vcvt.s32.f32 %v1339
        %v2940 = vcvt.s32.f32 %v1340
        %v2941 = vcvt.s32.f32 %v1341
        %v2942 = vcvt.s32.f32 %v1342
        %v2943 = vcvt.s32.f32 %v1343
        %v2944 = vcvt.s32.f32 %v1344
        %v2945 = vcvt.s32.f32 %v1345
        %v2946 = vcvt.s32.f32 %v1346
        %v2947 = vcvt.s32.f32 %v1347
        %v2948 = vcvt.s32.f32 %v1348
        %v2949 = vcvt.s32.f32 %v1349
        %v2950 = vcvt.s32.f32 %v1350
        %v2951 = vcvt.s32.f32 %v1351
        %v2952 = vcvt.s32.f32 %v1352
        %v2953 = vcvt.s32.f32 %v1353
        %v2954 = vcvt.s32.f32 %v1354
        %v2955 = vcvt.s32.f32 %v1355
        %v2956 = vcvt.s32.f32 %v1356
        %v2957 = vcvt.s32.f32 %v1357
        %v2958 = vcvt.s32.f32 %v1358
        %v2959 = vcvt.s32.f32 %v1359
        %v2960 = vcvt.s32.f32 %v1360
        %v2961 = vcvt.s32.f32 %v1361
        %v2962 = vcvt.s32.f32 %v1362
        %v2963 = vcvt.s32.f32 %v1363
        %v2964 = vcvt.s32.f32 %v1364
        %v2965 = vcvt.s32.f32 %v1365
        %v2966 = vcvt.s32.f32 %v1366
        %v2967 = vcvt.s32.f32 %v1367
        %v2968 = vcvt.s32.f32 %v1368
        %v2969 = vcvt.s32.f32 %v1369
        %v2970 = vcvt.s32.f32 %v1370
        %v2971 = vcvt.s32.f32 %v1371
        %v2972 = vcvt.s32.f32 %v1372
        %v2973 = vcvt.s32.f32 %v1373
        %v2974 = vcvt.s32.f32 %v1374
        %v2975 = vcvt.s32.f32 %v1375
        %v2976 = vcvt.s32.f32 %v1376
        %v2977 = vcvt.s32.f32 %v1377
        %v2978 = vcvt.s32.f32 %v1378
        %v2979 = vcvt.s32.f32 %v1379
        %v2980 = vcvt.s32.f32 %v1380
        %v2981 = vcvt.s32.f32 %v1381
        %v2982 = vcvt.s32.f32 %v1382
        %v2983 = vcvt.s32.f32 %v1383
        %v2984 = vcvt.s32.f32 %v1384
        %v2985 = vcvt.s32.f32 %v1385
        %v2986 = vcvt.s32.f32 %v1386
        %v2987 = vcvt.s32.f32 %v1387
        %v2988 = vcvt.s32.f32 %v1388
        %v2989 = vcvt.s32.f32 %v1389
        %v2990 = vcvt.s32.f32 %v1390
        %v2991 = vcvt.s32.f32 %v1391
        %v2992 = vcvt.s32.f32 %v1392
        %v2993 = vcvt.s32.f32 %v1393
        %v2994 = vcvt.s32.f32 %v1394
        %v2995 = vcvt.s32.f32 %v1395
        %v2996 = vcvt.s32.f32 %v1396
        %v2997 = vcvt.s32.f32 %v1397
        %v2998 = vcvt.s32.f32 %v1398
        %v2999 = vcvt.s32.f32 %v1399
        %v3000 = vcvt.s32.f32 %v1400
        %v3001 = vcvt.s32.f32 %v1401
        %v3002 = vcvt.s32.f32 %v1402
        %v3003 = vcvt.s32.f32 %v1403
        %v3004 = vcvt.s32.f32 %v1404
        %v3005 = vcvt.s32.f32 %v1405
        %v3006 = vcvt.s32.f32 %v1406
        %v3007 = vcvt.s32.f32 %v1407
        %v3008 = vcvt.s32.f32 %v1408
        %v3009 = vcvt.s32.f32 %v1409
        %v3010 = vcvt.s32.f32 %v1410
        %v3011 = vcvt.s32.f32 %v1411
        %v3012 = vcvt.s32.f32 %v1412
        %v3013 = vcvt.s32.f32 %v1413
        %v3014 = vcvt.s32.f32 %v1414
        %v3015 = vcvt.s32.f32 %v1415
        %v3016 = vcvt.s32.f32 %v1416
        %v3017 = vcvt.s32.f32 %v1417
        %v3018 = vcvt.s32.f32 %v1418
        %v3019 = vcvt.s32.f32 %v1419
        %v3020 = vcvt.s32.f32 %v1420
        %v3021 = vcvt.s32.f32 %v1421
        %v3022 = vcvt.s32.f32 %v1422
        %v3023 = vcvt.s32.f32 %v1423
        %v3024 = vcvt.s32.f32 %v1424
        %v3025 = vcvt.s32.f32 %v1425
        %v3026 = vcvt.s32.f32 %v1426
        %v3027 = vcvt.s32.f32 %v1427
        %v3028 = vcvt.s32.f32 %v1428
        %v3029 = vcvt.s32.f32 %v1429
        %v3030 = vcvt.s32.f32 %v1430
        %v3031 = vcvt.s32.f32 %v1431
        %v3032 = vcvt.s32.f32 %v1432
        %v3033 = vcvt.s32.f32 %v1433
        %v3034 = vcvt.s32.f32 %v1434
        %v3035 = vcvt.s32.f32 %v1435
        %v3036 = vcvt.s32.f32 %v1436
        %v3037 = vcvt.s32.f32 %v1437
        %v3038 = vcvt.s32.f32 %v1438
        %v3039 = vcvt.s32.f32 %v1439
        %v3040 = vcvt.s32.f32 %v1440
        %v3041 = vcvt.s32.f32 %v1441
        %v3042 = vcvt.s32.f32 %v1442
        %v3043 = vcvt.s32.f32 %v1443
        %v3044 = vcvt.s32.f32 %v1444
        %v3045 = vcvt.s32.f32 %v1445
        %v3046 = vcvt.s32.f32 %v1446
        %v3047 = vcvt.s32.f32 %v1447
        %v3048 = vcvt.s32.f32 %v1448
        %v3049 = vcvt.s32.f32 %v1449
        %v3050 = vcvt.s32.f32 %v1450
        %v3051 = vcvt.s32.f32 %v1451
        %v3052 = vcvt.s32.f32 %v1452
        %v3053 = vcvt.s32.f32 %v1453
        %v3054 = vcvt.s32.f32 %v1454
        %v3055 = vcvt.s32.f32 %v1455
        %v3056 = vcvt.s32.f32 %v1456
        %v3057 = vcvt.s32.f32 %v1457
        %v3058 = vcvt.s32.f32 %v1458
        %v3059 = vcvt.s32.f32 %v1459
        %v3060 = vcvt.s32.f32 %v1460
        %v3061 = vcvt.s32.f32 %v1461
        %v3062 = vcvt.s32.f32 %v1462
        %v3063 = vcvt.s32.f32 %v1463
        %v3064 = vcvt.s32.f32 %v1464
        %v3065 = vcvt.s32.f32 %v1465
        %v3066 = vcvt.s32.f32 %v1466
        %v3067 = vcvt.s32.f32 %v1467
        %v3068 = vcvt.s32.f32 %v1468
        %v3069 = vcvt.s32.f32 %v1469
        %v3070 = vcvt.s32.f32 %v1470
        %v3071 = vcvt.s32.f32 %v1471
        %v3072 = vcvt.s32.f32 %v1472
        %v3073 = vcvt.s32.f32 %v1473
        %v3074 = vcvt.s32.f32 %v1474
        %v3075 = vcvt.s32.f32 %v1475
        %v3076 = vcvt.s32.f32 %v1476
        %v3077 = vcvt.s32.f32 %v1477
        %v3078 = vcvt.s32.f32 %v1478
        %v3079 = vcvt.s32.f32 %v1479
        %v3080 = vcvt.s32.f32 %v1480
        %v3081 = vcvt.s32.f32 %v1481
        %v3082 = vcvt.s32.f32 %v1482
        %v3083 = vcvt.s32.f32 %v1483
        %v3084 = vcvt.s32.f32 %v1484
        %v3085 = vcvt.s32.f32 %v1485
        %v3086 = vcvt.s32.f32 %v1486
        %v3087 = vcvt.s32.f32 %v1487
        %v3088 = vcvt.s32.f32 %v1488
        %v3089 = vcvt.s32.f32 %v1489
        %v3090 = vcvt.s32.f32 %v1490
        %v3091 = vcvt.s32.f32 %v1491
        %v3092 = vcvt.s32.f32 %v1492
        %v3093 = vcvt.s32.f32 %v1493
        %v3094 = vcvt.s32.f32 %v1494
        %v3095 = vcvt.s32.f32 %v1495
        %v3096 = vcvt.s32.f32 %v1496
        %v3097 = vcvt.s32.f32 %v1497
        %v3098 = vcvt.s32.f32 %v1498
        %v3099 = vcvt.s32.f32 %v1499
        %v3100 = vcvt.s32.f32 %v1500
        %v3101 = vcvt.s32.f32 %v1501
        %v3102 = vcvt.s32.f32 %v1502
        %v3103 = vcvt.s32.f32 %v1503
        %v3104 = vcvt.s32.f32 %v1504
        %v3105 = vcvt.s32.f32 %v1505
        %v3106 = vcvt.s32.f32 %v1506
        %v3107 = vcvt.s32.f32 %v1507
        %v3108 = vcvt.s32.f32 %v1508
        %v3109 = vcvt.s32.f32 %v1509
        %v3110 = vcvt.s32.f32 %v1510
        %v3111 = vcvt.s32.f32 %v1511
        %v3112 = vcvt.s32.f32 %v1512
        %v3113 = vcvt.s32.f32 %v1513
        %v3114 = vcvt.s32.f32 %v1514
        %v3115 = vcvt.s32.f32 %v1515
        %v3116 = vcvt.s32.f32 %v1516
        %v3117 = vcvt.s32.f32 %v1517
        %v3118 = vcvt.s32.f32 %v1518
        %v3119 = vcvt.s32.f32 %v1519
        %v3120 = vcvt.s32.f32 %v1520
        %v3121 = vcvt.s32.f32 %v1521
        %v3122 = vcvt.s32.f32 %v1522
        %v3123 = vcvt.s32.f32 %v1523
        %v3124 = vcvt.s32.f32 %v1524
        %v3125 = vcvt.s32.f32 %v1525
        %v3126 = vcvt.s32.f32 %v1526
        %v3127 = vcvt.s32.f32 %v1527
        %v3128 = vcvt.s32.f32 %v1528
        %v3129 = vcvt.s32.f32 %v1529
        %v3130 = vcvt.s32.f32 %v1530
        %v3131 = vcvt.s32.f32 %v1531
        %v3132 = vcvt.s32.f32 %v1532
        %v3133 = vcvt.s32.f32 %v1533
        %v3134 = vcvt.s32.f32 %v1534
        %v3135 = vcvt.s32.f32 %v1535
        %v3136 = vcvt.s32.f32 %v1536
        %v3137 = vcvt.s32.f32 %v1537
        %v3138 = vcvt.s32.f32 %v1538
        %v3139 = vcvt.s32.f32 %v1539
        %v3140 = vcvt.s32.f32 %v1540
        %v3141 = vcvt.s32.f32 %v1541
        %v3142 = vcvt.s32.f32 %v1542
        %v3143 = vcvt.s32.f32 %v1543
        %v3144 = vcvt.s32.f32 %v1544
        %v3145 = vcvt.s32.f32 %v1545
        %v3146 = vcvt.s32.f32 %v1546
        %v3147 = vcvt.s32.f32 %v1547
        %v3148 = vcvt.s32.f32 %v1548
        %v3149 = vcvt.s32.f32 %v1549
        %v3150 = vcvt.s32.f32 %v1550
        %v3151 = vcvt.s32.f32 %v1551
        %v3152 = vcvt.s32.f32 %v1552
        %v3153 = vcvt.s32.f32 %v1553
        %v3154 = vcvt.s32.f32 %v1554
        %v3155 = vcvt.s32.f32 %v1555
        %v3156 = vcvt.s32.f32 %v1556
        %v3157 = vcvt.s32.f32 %v1557
        %v3158 = vcvt.s32.f32 %v1558
        %v3159 = vcvt.s32.f32 %v1559
        %v3160 = vcvt.s32.f32 %v1560
        %v3161 = vcvt.s32.f32 %v1561
        %v3162 = vcvt.s32.f32 %v1562
        %v3163 = vcvt.s32.f32 %v1563
        %v3164 = vcvt.s32.f32 %v1564
        %v3165 = vcvt.s32.f32 %v1565
        %v3166 = vcvt.s32.f32 %v1566
        %v3167 = vcvt.s32.f32 %v1567
        %v3168 = vcvt.s32.f32 %v1568
        %v3169 = vcvt.s32.f32 %v1569
        %v3170 = vcvt.s32.f32 %v1570
        %v3171 = vcvt.s32.f32 %v1571
        %v3172 = vcvt.s32.f32 %v1572
        %v3173 = vcvt.s32.f32 %v1573
        %v3174 = vcvt.s32.f32 %v1574
        %v3175 = vcvt.s32.f32 %v1575
        %v3176 = vcvt.s32.f32 %v1576
        %v3177 = vcvt.s32.f32 %v1577
        %v3178 = vcvt.s32.f32 %v1578
        %v3179 = vcvt.s32.f32 %v1579
        %v3180 = vcvt.s32.f32 %v1580
        %v3181 = vcvt.s32.f32 %v1581
        %v3182 = vcvt.s32.f32 %v1582
        %v3183 = vcvt.s32.f32 %v1583
        %v3184 = vcvt.s32.f32 %v1584
        %v3185 = vcvt.s32.f32 %v1585
        %v3186 = vcvt.s32.f32 %v1586
        %v3187 = vcvt.s32.f32 %v1587
        %v3188 = vcvt.s32.f32 %v1588
        %v3189 = vcvt.s32.f32 %v1589
        %v3190 = vcvt.s32.f32 %v1590
        %v3191 = vcvt.s32.f32 %v1591
        %v3192 = vcvt.s32.f32 %v1592
        %v3193 = vcvt.s32.f32 %v1593
        %v3194 = vcvt.s32.f32 %v1594
        %v3195 = vcvt.s32.f32 %v1595
        %v3196 = vcvt.s32.f32 %v1596
        %v3197 = vcvt.s32.f32 %v1597
        %v3198 = vcvt.s32.f32 %v1598
        %v3199 = vcvt.s32.f32 %v1599
        %v3200 = vcvt.s32.f32 %v1600
        %v3201 = vcvt.s32.f32 %v1601
        %v3202 = vcvt.s32.f32 %v1602
        %v3203 = vcvt.s32.f32 %v1603
        %v3204 = vcvt.s32.f32 %v1604
        %v3205 = vcvt.s32.f32 %v1605
        %v3206 = vcvt.s32.f32 %v1606
        %v3207 = vcvt.s32.f32 %v1607
        %v3208 = vcvt.s32.f32 %v1608
        %v3209 = vcvt.s32.f32 %v1609
        %v3210 = vcvt.s32.f32 %v1610
        %v3211 = vcvt.s32.f32 %v1611
        %v3212 = vcvt.s32.f32 %v1612
        %v3213 = vcvt.s32.f32 %v1613
        %v3214 = vcvt.s32.f32 %v1614
        %v3215 = vcvt.s32.f32 %v1615
        %v3216 = vcvt.s32.f32 %v1616
        %v3217 = vcvt.s32.f32 %v1617
        %v3218 = vcvt.s32.f32 %v1618
        %v3219 = vcvt.s32.f32 %v1619
        %v3220 = vcvt.s32.f32 %v1620
        %v3221 = vcvt.s32.f32 %v1621
        %v3222 = vcvt.s32.f32 %v1622
        %v3223 = vcvt.s32.f32 %v1623
        %v3224 = vcvt.s32.f32 %v1624
        %v3225 = vcvt.s32.f32 %v1625
        %v3226 = vcvt.s32.f32 %v1626
        %v3227 = vcvt.s32.f32 %v1627
        %v3228 = vcvt.s32.f32 %v1628
        %v3229 = vcvt.s32.f32 %v1629
        %v3230 = vcvt.s32.f32 %v1630
        %v3231 = vcvt.s32.f32 %v1631
        %v3232 = vcvt.s32.f32 %v1632
        %v3233 = vcvt.s32.f32 %v1633
        %v3234 = vcvt.s32.f32 %v1634
        %v3235 = vcvt.s32.f32 %v1635
        %v3236 = vcvt.s32.f32 %v1636
        %v3237 = vcvt.s32.f32 %v1637
        %v3238 = vcvt.s32.f32 %v1638
        %v3239 = vcvt.s32.f32 %v1639
        %v3240 = vcvt.s32.f32 %v1640
        %v3241 = vcvt.s32.f32 %v1641
        %v3242 = vcvt.s32.f32 %v1642
        %v3243 = vcvt.s32.f32 %v1643
        %v3244 = vcvt.s32.f32 %v1644
        %v3245 = vcvt.s32.f32 %v1645
        %v3246 = vcvt.s32.f32 %v1646
        %v3247 = vcvt.s32.f32 %v1647
        %v3248 = vcvt.s32.f32 %v1648
        %v3249 = vcvt.s32.f32 %v1649
        %v3250 = vcvt.s32.f32 %v1650
        %v3251 = vcvt.s32.f32 %v1651
        %v3252 = vcvt.s32.f32 %v1652
        %v3253 = vcvt.s32.f32 %v1653
        %v3254 = vcvt.s32.f32 %v1654
        %v3255 = vcvt.s32.f32 %v1655
        %v3256 = vcvt.s32.f32 %v1656
        %v3257 = vcvt.s32.f32 %v1657
        %v3258 = vcvt.s32.f32 %v1658
        %v3259 = vcvt.s32.f32 %v1659
        %v3260 = vcvt.s32.f32 %v1660
        %v3261 = vcvt.s32.f32 %v1661
        %v3262 = vcvt.s32.f32 %v1662
        %v3263 = vcvt.s32.f32 %v1663
        %v3264 = vcvt.s32.f32 %v1664
        %v3265 = vcvt.s32.f32 %v1665
        %v3266 = vcvt.s32.f32 %v1666
        %v3267 = vcvt.s32.f32 %v1667
        %v3268 = vcvt.s32.f32 %v1668
        %v3269 = vcvt.s32.f32 %v1669
        %v3270 = vcvt.s32.f32 %v1670
        %v3271 = vcvt.s32.f32 %v1671
        %v3272 = vcvt.s32.f32 %v1672
        %v3273 = vcvt.s32.f32 %v1673
        %v3274 = vcvt.s32.f32 %v1674
        %v3275 = vcvt.s32.f32 %v1675
        %v3276 = vcvt.s32.f32 %v1676
        %v3277 = vcvt.s32.f32 %v1677
        %v3278 = vcvt.s32.f32 %v1678
        %v3279 = vcvt.s32.f32 %v1679
        %v3280 = vcvt.s32.f32 %v1680
        %v3281 = vcvt.s32.f32 %v1681
        %v3282 = vcvt.s32.f32 %v1682
        %v3283 = vcvt.s32.f32 %v1683
        %v3284 = vcvt.s32.f32 %v1684
        %v3285 = vcvt.s32.f32 %v1685
        %v3286 = vcvt.s32.f32 %v1686
        %v3287 = vcvt.s32.f32 %v1687
        %v3288 = vcvt.s32.f32 %v1688
        %v3289 = vcvt.s32.f32 %v1689
        %v3290 = vcvt.s32.f32 %v1690
        %v3291 = vcvt.s32.f32 %v1691
        %v3292 = vcvt.s32.f32 %v1692
        %v3293 = vcvt.s32.f32 %v1693
        %v3294 = vcvt.s32.f32 %v1694
        %v3295 = vcvt.s32.f32 %v1695
        %v3296 = vcvt.s32.f32 %v1696
        %v3297 = vcvt.s32.f32 %v1697
        %v3298 = vcvt.s32.f32 %v1698
        %v3299 = vcvt.s32.f32 %v1699
        %v3300 = vcvt.s32.f32 %v1700
        %v3301 = vcvt.s32.f32 %v1701
        %v3302 = vcvt.s32.f32 %v1702
        %v3303 = vcvt.s32.f32 %v1703
        %v3304 = vcvt.s32.f32 %v1704
        %v3305 = vcvt.s32.f32 %v1705
        %v3306 = vcvt.s32.f32 %v1706
        %v3307 = vcvt.s32.f32 %v1707
        %v3308 = vcvt.s32.f32 %v1708
        %v3309 = vcvt.s32.f32 %v1709
        %v3310 = vcvt.s32.f32 %v1710
        %v3311 = vcvt.s32.f32 %v1711
        %v3312 = vcvt.s32.f32 %v1712
        %v3313 = vcvt.s32.f32 %v1713
        %v3314 = vcvt.s32.f32 %v1714
        %v3315 = vcvt.s32.f32 %v1715
        %v3316 = vcvt.s32.f32 %v1716
        %v3317 = vcvt.s32.f32 %v1717
        %v3318 = vcvt.s32.f32 %v1718
        %v3319 = vcvt.s32.f32 %v1719
        %v3320 = vcvt.s32.f32 %v1720
        %v3321 = vcvt.s32.f32 %v1721
        %v3322 = vcvt.s32.f32 %v1722
        %v3323 = vcvt.s32.f32 %v1723
        %v3324 = vcvt.s32.f32 %v1724
        %v3325 = vcvt.s32.f32 %v1725
        %v3326 = vcvt.s32.f32 %v1726
        %v3327 = vcvt.s32.f32 %v1727
        %v3328 = vcvt.s32.f32 %v1728
        %v3329 = vcvt.s32.f32 %v1729
        %v3330 = vcvt.s32.f32 %v1730
        %v3331 = vcvt.s32.f32 %v1731
        %v3332 = vcvt.s32.f32 %v1732
        %v3333 = vcvt.s32.f32 %v1733
        %v3334 = vcvt.s32.f32 %v1734
        %v3335 = vcvt.s32.f32 %v1735
        %v3336 = vcvt.s32.f32 %v1736
        %v3337 = vcvt.s32.f32 %v1737
        %v3338 = vcvt.s32.f32 %v1738
        %v3339 = vcvt.s32.f32 %v1739
        %v3340 = vcvt.s32.f32 %v1740
        %v3341 = vcvt.s32.f32 %v1741
        %v3342 = vcvt.s32.f32 %v1742
        %v3343 = vcvt.s32.f32 %v1743
        %v3344 = vcvt.s32.f32 %v1744
        %v3345 = vcvt.s32.f32 %v1745
        %v3346 = vcvt.s32.f32 %v1746
        %v3347 = vcvt.s32.f32 %v1747
        %v3348 = vcvt.s32.f32 %v1748
        %v3349 = vcvt.s32.f32 %v1749
        %v3350 = vcvt.s32.f32 %v1750
        %v3351 = vcvt.s32.f32 %v1751
        %v3352 = vcvt.s32.f32 %v1752
        %v3353 = vcvt.s32.f32 %v1753
        %v3354 = vcvt.s32.f32 %v1754
        %v3355 = vcvt.s32.f32 %v1755
        %v3356 = vcvt.s32.f32 %v1756
        %v3357 = vcvt.s32.f32 %v1757
        %v3358 = vcvt.s32.f32 %v1758
        %v3359 = vcvt.s32.f32 %v1759
        %v3360 = vcvt.s32.f32 %v1760
        %v3361 = vcvt.s32.f32 %v1761
        %v3362 = vcvt.s32.f32 %v1762
        %v3363 = vcvt.s32.f32 %v1763
        %v3364 = vcvt.s32.f32 %v1764
        %v3365 = vcvt.s32.f32 %v1765
        %v3366 = vcvt.s32.f32 %v1766
        %v3367 = vcvt.s32.f32 %v1767
        %v3368 = vcvt.s32.f32 %v1768
        %v3369 = vcvt.s32.f32 %v1769
        %v3370 = vcvt.s32.f32 %v1770
        %v3371 = vcvt.s32.f32 %v1771
        %v3372 = vcvt.s32.f32 %v1772
        %v3373 = vcvt.s32.f32 %v1773
        %v3374 = vcvt.s32.f32 %v1774
        %v3375 = vcvt.s32.f32 %v1775
        %v3376 = vcvt.s32.f32 %v1776
        %v3377 = vcvt.s32.f32 %v1777
        %v3378 = vcvt.s32.f32 %v1778
        %v3379 = vcvt.s32.f32 %v1779
        %v3380 = vcvt.s32.f32 %v1780
        %v3381 = vcvt.s32.f32 %v1781
        %v3382 = vcvt.s32.f32 %v1782
        %v3383 = vcvt.s32.f32 %v1783
        %v3384 = vcvt.s32.f32 %v1784
        %v3385 = vcvt.s32.f32 %v1785
        %v3386 = vcvt.s32.f32 %v1786
        %v3387 = vcvt.s32.f32 %v1787
        %v3388 = vcvt.s32.f32 %v1788
        %v3389 = vcvt.s32.f32 %v1789
        %v3390 = vcvt.s32.f32 %v1790
        %v3391 = vcvt.s32.f32 %v1791
        %v3392 = vcvt.s32.f32 %v1792
        %v3393 = vcvt.s32.f32 %v1793
        %v3394 = vcvt.s32.f32 %v1794
        %v3395 = vcvt.s32.f32 %v1795
        %v3396 = vcvt.s32.f32 %v1796
        %v3397 = vcvt.s32.f32 %v1797
        %v3398 = vcvt.s32.f32 %v1798
        %v3399 = vcvt.s32.f32 %v1799
        %v3400 = vcvt.s32.f32 %v1800
        %v3401 = vcvt.s32.f32 %v1801
        %v3402 = vcvt.s32.f32 %v1802
        %v3403 = vcvt.s32.f32 %v1803
        %v3404 = vcvt.s32.f32 %v1804
        %v3405 = vcvt.s32.f32 %v1805
        %v3406 = vcvt.s32.f32 %v1806
        %v3407 = vcvt.s32.f32 %v1807
        %v3408 = vcvt.s32.f32 %v1808
        %v3409 = vcvt.s32.f32 %v1809
        %v3410 = vcvt.s32.f32 %v1810
        %v3411 = vcvt.s32.f32 %v1811
        %v3412 = vcvt.s32.f32 %v1812
        %v3413 = vcvt.s32.f32 %v1813
        %v3414 = vcvt.s32.f32 %v1814
        %v3415 = vcvt.s32.f32 %v1815
        %v3416 = vcvt.s32.f32 %v1816
        %v3417 = vcvt.s32.f32 %v1817
        %v3418 = vcvt.s32.f32 %v1818
        %v3419 = vcvt.s32.f32 %v1819
        %v3420 = vcvt.s32.f32 %v1820
        %v3421 = vcvt.s32.f32 %v1821
        %v3422 = vcvt.s32.f32 %v1822
        %v3423 = vcvt.s32.f32 %v1823
        %v3424 = vcvt.s32.f32 %v1824
        %v3425 = vcvt.s32.f32 %v1825
        %v3426 = vcvt.s32.f32 %v1826
        %v3427 = vcvt.s32.f32 %v1827
        %v3428 = vcvt.s32.f32 %v1828
        %v3429 = vcvt.s32.f32 %v1829
        %v3430 = vcvt.s32.f32 %v1830
        %v3431 = vcvt.s32.f32 %v1831
        %v3432 = vcvt.s32.f32 %v1832
        %v3433 = vcvt.s32.f32 %v1833
        %v3434 = vcvt.s32.f32 %v1834
        %v3435 = vcvt.s32.f32 %v1835
        %v3436 = vcvt.s32.f32 %v1836
        %v3437 = vcvt.s32.f32 %v1837
        %v3438 = vcvt.s32.f32 %v1838
        %v3439 = vcvt.s32.f32 %v1839
        %v3440 = vcvt.s32.f32 %v1840
        %v3441 = vcvt.s32.f32 %v1841
        %v3442 = vcvt.s32.f32 %v1842
        %v3443 = vcvt.s32.f32 %v1843
        %v3444 = vcvt.s32.f32 %v1844
        %v3445 = vcvt.s32.f32 %v1845
        %v3446 = vcvt.s32.f32 %v1846
        %v3447 = vcvt.s32.f32 %v1847
        %v3448 = vcvt.s32.f32 %v1848
        %v3449 = vcvt.s32.f32 %v1849
        %v3450 = vcvt.s32.f32 %v1850
        %v3451 = vcvt.s32.f32 %v1851
        %v3452 = vcvt.s32.f32 %v1852
        %v3453 = vcvt.s32.f32 %v1853
        %v3454 = vcvt.s32.f32 %v1854
        %v3455 = vcvt.s32.f32 %v1855
        %v3456 = vcvt.s32.f32 %v1856
        %v3457 = vcvt.s32.f32 %v1857
        %v3458 = vcvt.s32.f32 %v1858
        %v3459 = vcvt.s32.f32 %v1859
        %v3460 = vcvt.s32.f32 %v1860
        %v3461 = vcvt.s32.f32 %v1861
        %v3462 = vcvt.s32.f32 %v1862
        %v3463 = vcvt.s32.f32 %v1863
        %v3464 = vcvt.s32.f32 %v1864
        %v3465 = vcvt.s32.f32 %v1865
        %v3466 = vcvt.s32.f32 %v1866
        %v3467 = vcvt.s32.f32 %v1867
        %v3468 = vcvt.s32.f32 %v1868
        %v3469 = vcvt.s32.f32 %v1869
        %v3470 = vcvt.s32.f32 %v1870
        %v3471 = vcvt.s32.f32 %v1871
        %v3472 = vcvt.s32.f32 %v1872
        %v3473 = vcvt.s32.f32 %v1873
        %v3474 = vcvt.s32.f32 %v1874
        %v3475 = vcvt.s32.f32 %v1875
        %v3476 = vcvt.s32.f32 %v1876
        %v3477 = vcvt.s32.f32 %v1877
        %v3478 = vcvt.s32.f32 %v1878
        %v3479 = vcvt.s32.f32 %v1879
        %v3480 = vcvt.s32.f32 %v1880
        %v3481 = vcvt.s32.f32 %v1881
        %v3482 = vcvt.s32.f32 %v1882
        %v3483 = vcvt.s32.f32 %v1883
        %v3484 = vcvt.s32.f32 %v1884
        %v3485 = vcvt.s32.f32 %v1885
        %v3486 = vcvt.s32.f32 %v1886
        %v3487 = vcvt.s32.f32 %v1887
        %v3488 = vcvt.s32.f32 %v1888
        %v3489 = vcvt.s32.f32 %v1889
        %v3490 = vcvt.s32.f32 %v1890
        %v3491 = vcvt.s32.f32 %v1891
        %v3492 = vcvt.s32.f32 %v1892
        %v3493 = vcvt.s32.f32 %v1893
        %v3494 = vcvt.s32.f32 %v1894
        %v3495 = vcvt.s32.f32 %v1895
        %v3496 = vcvt.s32.f32 %v1896
        %v3497 = vcvt.s32.f32 %v1897
        %v3498 = vcvt.s32.f32 %v1898
        %v3499 = vcvt.s32.f32 %v1899
        %v3500 = vcvt.s32.f32 %v1900
        %v3501 = vcvt.s32.f32 %v1901
        %v3502 = vcvt.s32.f32 %v1902
        %v3503 = vcvt.s32.f32 %v1903
        %v3504 = vcvt.s32.f32 %v1904
        %v3505 = vcvt.s32.f32 %v1905
        %v3506 = vcvt.s32.f32 %v1906
        %v3507 = vcvt.s32.f32 %v1907
        %v3508 = vcvt.s32.f32 %v1908
        %v3509 = vcvt.s32.f32 %v1909
        %v3510 = vcvt.s32.f32 %v1910
        %v3511 = vcvt.s32.f32 %v1911
        %v3512 = vcvt.s32.f32 %v1912
        %v3513 = vcvt.s32.f32 %v1913
        %v3514 = vcvt.s32.f32 %v1914
        %v3515 = vcvt.s32.f32 %v1915
        %v3516 = vcvt.s32.f32 %v1916
        %v3517 = vcvt.s32.f32 %v1917
        %v3518 = vcvt.s32.f32 %v1918
        %v3519 = vcvt.s32.f32 %v1919
        %v3520 = vcvt.s32.f32 %v1920
        %v3521 = vcvt.s32.f32 %v1921
        %v3522 = vcvt.s32.f32 %v1922
        %v3523 = vcvt.s32.f32 %v1923
        %v3524 = vcvt.s32.f32 %v1924
        %v3525 = vcvt.s32.f32 %v1925
        %v3526 = vcvt.s32.f32 %v1926
        %v3527 = vcvt.s32.f32 %v1927
        %v3528 = vcvt.s32.f32 %v1928
        %v3529 = vcvt.s32.f32 %v1929
        %v3530 = vcvt.s32.f32 %v1930
        %v3531 = vcvt.s32.f32 %v1931
        %v3532 = vcvt.s32.f32 %v1932
        %v3533 = vcvt.s32.f32 %v1933
        %v3534 = vcvt.s32.f32 %v1934
        %v3535 = vcvt.s32.f32 %v1935
        %v3536 = vcvt.s32.f32 %v1936
        %v3537 = vcvt.s32.f32 %v1937
        %v3538 = vcvt.s32.f32 %v1938
        %v3539 = vcvt.s32.f32 %v1939
        %v3540 = vcvt.s32.f32 %v1940
        %v3541 = vcvt.s32.f32 %v1941
        %v3542 = vcvt.s32.f32 %v1942
        %v3543 = vcvt.s32.f32 %v1943
        %v3544 = vcvt.s32.f32 %v1944
        %v3545 = vcvt.s32.f32 %v1945
        %v3546 = vcvt.s32.f32 %v1946
        %v3547 = vcvt.s32.f32 %v1947
        %v3548 = vcvt.s32.f32 %v1948
        %v3549 = vcvt.s32.f32 %v1949
        %v3550 = vcvt.s32.f32 %v1950
        %v3551 = vcvt.s32.f32 %v1951
        %v3552 = vcvt.s32.f32 %v1952
        %v3553 = vcvt.s32.f32 %v1953
        %v3554 = vcvt.s32.f32 %v1954
        %v3555 = vcvt.s32.f32 %v1955
        %v3556 = vcvt.s32.f32 %v1956
        %v3557 = vcvt.s32.f32 %v1957
        %v3558 = vcvt.s32.f32 %v1958
        %v3559 = vcvt.s32.f32 %v1959
        %v3560 = vcvt.s32.f32 %v1960
        %v3561 = vcvt.s32.f32 %v1961
        %v3562 = vcvt.s32.f32 %v1962
        %v3563 = vcvt.s32.f32 %v1963
        %v3564 = vcvt.s32.f32 %v1964
        %v3565 = vcvt.s32.f32 %v1965
        %v3566 = vcvt.s32.f32 %v1966
        %v3567 = vcvt.s32.f32 %v1967
        %v3568 = vcvt.s32.f32 %v1968
        %v3569 = vcvt.s32.f32 %v1969
        %v3570 = vcvt.s32.f32 %v1970
        %v3571 = vcvt.s32.f32 %v1971
        %v3572 = vcvt.s32.f32 %v1972
        %v3573 = vcvt.s32.f32 %v1973
        %v3574 = vcvt.s32.f32 %v1974
        %v3575 = vcvt.s32.f32 %v1975
        %v3576 = vcvt.s32.f32 %v1976
        %v3577 = vcvt.s32.f32 %v1977
        %v3578 = vcvt.s32.f32 %v1978
        %v3579 = vcvt.s32.f32 %v1979
        %v3580 = vcvt.s32.f32 %v1980
        %v3581 = vcvt.s32.f32 %v1981
        %v3582 = vcvt.s32.f32 %v1982
        %v3583 = vcvt.s32.f32 %v1983
        %v3584 = vcvt.s32.f32 %v1984
        %v3585 = vcvt.s32.f32 %v1985
        %v3586 = vcvt.s32.f32 %v1986
        %v3587 = vcvt.s32.f32 %v1987
        %v3588 = vcvt.s32.f32 %v1988
        %v3589 = vcvt.s32.f32 %v1989
        %v3590 = vcvt.s32.f32 %v1990
        %v3591 = vcvt.s32.f32 %v1991
        %v3592 = vcvt.s32.f32 %v1992
        %v3593 = vcvt.s32.f32 %v1993
        %v3594 = vcvt.s32.f32 %v1994
        %v3595 = vcvt.s32.f32 %v1995
        %v3596 = vcvt.s32.f32 %v1996
        %v3597 = vcvt.s32.f32 %v1997
        %v3598 = vcvt.s32.f32 %v1998
        %v3599 = vcvt.s32.f32 %v1999
        %v3600 = vcvt.s32.f32 %v2000
        %v3601 = vcvt.s32.f32 %v2001
        %v3602 = vcvt.s32.f32 %v2002
        %v3603 = vcvt.s32.f32 %v2003
        %v3604 = vcvt.s32.f32 %v2004
        %v3605 = vcvt.s32.f32 %v2005
        %v3606 = vcvt.s32.f32 %v2006
        %v3607 = vcvt.s32.f32 %v2007
        %v3608 = vcvt.s32.f32 %v2008
        %v3609 = vcvt.s32.f32 %v2009
        %v3610 = vcvt.s32.f32 %v2010
        %v3611 = vcvt.s32.f32 %v2011
        %v3612 = vcvt.s32.f32 %v2012
        %v3613 = vcvt.s32.f32 %v2013
        %v3614 = vcvt.s32.f32 %v2014
        %v3615 = vcvt.s32.f32 %v2015
        %v3616 = vcvt.s32.f32 %v2016
        %v3617 = vcvt.s32.f32 %v2017
        %v3618 = vcvt.s32.f32 %v2018
        %v3619 = vcvt.s32.f32 %v2019
        %v3620 = vcvt.s32.f32 %v2020
        %v3621 = vcvt.s32.f32 %v2021
        %v3622 = vcvt.s32.f32 %v2022
        %v3623 = vcvt.s32.f32 %v2023
        %v3624 = vcvt.s32.f32 %v2024
        %v3625 = vcvt.s32.f32 %v2025
        %v3626 = vcvt.s32.f32 %v2026
        %v3627 = vcvt.s32.f32 %v2027
        %v3628 = vcvt.s32.f32 %v2028
        %v3629 = vcvt.s32.f32 %v2029
        %v3630 = vcvt.s32.f32 %v2030
        %v3631 = vcvt.s32.f32 %v2031
        %v3632 = vcvt.s32.f32 %v2032
        %v3633 = vcvt.s32.f32 %v2033
        %v3634 = vcvt.s32.f32 %v2034
        %v3635 = vcvt.s32.f32 %v2035
        %v3636 = vcvt.s32.f32 %v2036
        %v3637 = vcvt.s32.f32 %v2037
        %v3638 = vcvt.s32.f32 %v2038
        %v3639 = vcvt.s32.f32 %v2039
        %v3640 = vcvt.s32.f32 %v2040
        %v3641 = vcvt.s32.f32 %v2041
        %v3642 = vcvt.s32.f32 %v2042
        %v3643 = vcvt.s32.f32 %v2043
        %v3644 = vcvt.s32.f32 %v2044
        %v3645 = vcvt.s32.f32 %v2045
        %v3646 = vcvt.s32.f32 %v2046
        %v3647 = vcvt.s32.f32 %v2047
        %v3648 = vcvt.s32.f32 %v2048
        %v3649 = vcvt.s32.f32 %v2049
        %v3650 = vcvt.s32.f32 %v2050
        %v3651 = vcvt.s32.f32 %v2051
        %v3652 = vcvt.s32.f32 %v2052
        %v3653 = vcvt.s32.f32 %v2053
        %v3654 = vcvt.s32.f32 %v2054
        %v3655 = vcvt.s32.f32 %v2055
        %v3656 = vcvt.s32.f32 %v2056
        %v3657 = vcvt.s32.f32 %v2057
        %v3658 = vcvt.s32.f32 %v2058
        %v3659 = vcvt.s32.f32 %v2059
        %v3660 = vcvt.s32.f32 %v2060
        %v3661 = vcvt.s32.f32 %v2061
        %v3662 = vcvt.s32.f32 %v2062
        %v3663 = vcvt.s32.f32 %v2063
        %v3664 = vcvt.s32.f32 %v2064
        %v3665 = vcvt.s32.f32 %v2065
        %v3666 = vcvt.s32.f32 %v2066
        %v3667 = vcvt.s32.f32 %v2067
        %v3668 = vcvt.s32.f32 %v2068
        %v3669 = vcvt.s32.f32 %v2069
        %v3670 = vcvt.s32.f32 %v2070
        %v3671 = vcvt.s32.f32 %v2071
        %v3672 = vcvt.s32.f32 %v2072
        %v3673 = vcvt.s32.f32 %v2073
        %v3674 = vcvt.s32.f32 %v2074
        %v3675 = vcvt.s32.f32 %v2075
        %v3676 = vcvt.s32.f32 %v2076
        %v3677 = vcvt.s32.f32 %v2077
        %v3678 = vcvt.s32.f32 %v2078
        %v3679 = vcvt.s32.f32 %v2079
        %v3680 = vcvt.s32.f32 %v2080
        %v3681 = vcvt.s32.f32 %v2081
        %v3682 = vcvt.s32.f32 %v2082
        %v3683 = vcvt.s32.f32 %v2083
        %v3684 = vcvt.s32.f32 %v2084
        %v3685 = vcvt.s32.f32 %v2085
        %v3686 = vcvt.s32.f32 %v2086
        %v3687 = vcvt.s32.f32 %v2087
        %v3688 = vcvt.s32.f32 %v2088
        %v3689 = vcvt.s32.f32 %v2089
        %v3690 = vcvt.s32.f32 %v2090
        %v3691 = vcvt.s32.f32 %v2091
        %v3692 = vcvt.s32.f32 %v2092
        %v3693 = vcvt.s32.f32 %v2093
        %v3694 = vcvt.s32.f32 %v2094
        %v3695 = vcvt.s32.f32 %v2095
        %v3696 = vcvt.s32.f32 %v2096
        %v3697 = vcvt.s32.f32 %v2097
        %v3698 = vcvt.s32.f32 %v2098
        %v3699 = vcvt.s32.f32 %v2099
        %v3700 = vcvt.s32.f32 %v2100
        %v3701 = vcvt.s32.f32 %v2101
        %v3702 = vcvt.s32.f32 %v2102
        %v3703 = vcvt.s32.f32 %v2103
        %v3704 = vcvt.s32.f32 %v2104
        %v3705 = vcvt.s32.f32 %v2105
        %v3706 = vcvt.s32.f32 %v2106
        %v3707 = vcvt.s32.f32 %v2107
        %v3708 = vcvt.s32.f32 %v2108
        %v3709 = vcvt.s32.f32 %v2109
        %v3710 = vcvt.s32.f32 %v2110
        %v3711 = vcvt.s32.f32 %v2111
        %v3712 = vcvt.s32.f32 %v2112
        %v3713 = vcvt.s32.f32 %v2113
        %v3714 = vcvt.s32.f32 %v2114
        %v3715 = vcvt.s32.f32 %v2115
        %v3716 = vcvt.s32.f32 %v2116
        %v3717 = vcvt.s32.f32 %v2117
        %v3718 = vcvt.s32.f32 %v2118
        %v3719 = vcvt.s32.f32 %v2119
        %v3720 = vcvt.s32.f32 %v2120
        %v3721 = vcvt.s32.f32 %v2121
        %v3722 = vcvt.s32.f32 %v2122
        %v3723 = vcvt.s32.f32 %v2123
        %v3724 = vcvt.s32.f32 %v2124
        %v3725 = vcvt.s32.f32 %v2125
        %v3726 = vcvt.s32.f32 %v2126
        %v3727 = vcvt.s32.f32 %v2127
        %v3728 = vcvt.s32.f32 %v2128
        %v3729 = vcvt.s32.f32 %v2129
        %v3730 = vcvt.s32.f32 %v2130
        %v3731 = vcvt.s32.f32 %v2131
        %v3732 = vcvt.s32.f32 %v2132
        %v3733 = vcvt.s32.f32 %v2133
        %v3734 = vcvt.s32.f32 %v2134
        %v3735 = vcvt.s32.f32 %v2135
        %v3736 = vcvt.s32.f32 %v2136
        %v3737 = vcvt.s32.f32 %v2137
        %v3738 = vcvt.s32.f32 %v2138
        %v3739 = vcvt.s32.f32 %v2139
        %v3740 = vcvt.s32.f32 %v2140
        %v3741 = vcvt.s32.f32 %v2141
        %v3742 = vcvt.s32.f32 %v2142
        %v3743 = vcvt.s32.f32 %v2143
        %v3744 = vcvt.s32.f32 %v2144
        %v3745 = vcvt.s32.f32 %v2145
        %v3746 = vcvt.s32.f32 %v2146
        %v3747 = vcvt.s32.f32 %v2147
        %v3748 = vcvt.s32.f32 %v2148
        %v3749 = vcvt.s32.f32 %v2149
        %v3750 = vcvt.s32.f32 %v2150
        %v3751 = vcvt.s32.f32 %v2151
        %v3752 = vcvt.s32.f32 %v2152
        %v3753 = vcvt.s32.f32 %v2153
        %v3754 = vcvt.s32.f32 %v2154
        %v3755 = vcvt.s32.f32 %v2155
        %v3756 = vcvt.s32.f32 %v2156
        %v3757 = vcvt.s32.f32 %v2157
        %v3758 = vcvt.s32.f32 %v2158
        %v3759 = vcvt.s32.f32 %v2159
        %v3760 = vcvt.s32.f32 %v2160
        %v3761 = vcvt.s32.f32 %v2161
        %v3762 = vcvt.s32.f32 %v2162
        %v3763 = vcvt.s32.f32 %v2163
        %v3764 = vcvt.s32.f32 %v2164
        %v3765 = vcvt.s32.f32 %v2165
        %v3766 = vcvt.s32.f32 %v2166
        %v3767 = vcvt.s32.f32 %v2167
        %v3768 = vcvt.s32.f32 %v2168
        %v3769 = vcvt.s32.f32 %v2169
        %v3770 = vcvt.s32.f32 %v2170
        %v3771 = vcvt.s32.f32 %v2171
        %v3772 = vcvt.s32.f32 %v2172
        %v3773 = vcvt.s32.f32 %v2173
        %v3774 = vcvt.s32.f32 %v2174
        %v3775 = vcvt.s32.f32 %v2175
        %v3776 = vcvt.s32.f32 %v2176
        %v3777 = vcvt.s32.f32 %v2177
        %v3778 = vcvt.s32.f32 %v2178
        %v3779 = vcvt.s32.f32 %v2179
        %v3780 = vcvt.s32.f32 %v2180
        %v3781 = vcvt.s32.f32 %v2181
        %v3782 = vcvt.s32.f32 %v2182
        %v3783 = vcvt.s32.f32 %v2183
        %v3784 = vcvt.s32.f32 %v2184
        %v3785 = vcvt.s32.f32 %v2185
        %v3786 = vcvt.s32.f32 %v2186
        %v3787 = vcvt.s32.f32 %v2187
        %v3788 = vcvt.s32.f32 %v2188
        %v3789 = vcvt.s32.f32 %v2189
        %v3790 = vcvt.s32.f32 %v2190
        %v3791 = vcvt.s32.f32 %v2191
        %v3792 = vcvt.s32.f32 %v2192
        %v3793 = vcvt.s32.f32 %v2193
        %v3794 = vcvt.s32.f32 %v2194
        %v3795 = vcvt.s32.f32 %v2195
        %v3796 = vcvt.s32.f32 %v2196
        %v3797 = vcvt.s32.f32 %v2197
        %v3798 = vcvt.s32.f32 %v2198
        %v3799 = vcvt.s32.f32 %v2199
        %v3800 = vcvt.s32.f32 %v2200
        %v3801 = vcvt.s32.f32 %v2201
        %v3802 = vcvt.s32.f32 %v2202
        %v3803 = vcvt.s32.f32 %v2203
        %v3804 = vcvt.s32.f32 %v2204
        %v3805 = vcvt.s32.f32 %v2205
        %v3806 = vcvt.s32.f32 %v2206
        %v3807 = vcvt.s32.f32 %v2207
        %v3808 = vcvt.s32.f32 %v2208
        %v3809 = vcvt.s32.f32 %v2209
        %v3810 = vcvt.s32.f32 %v2210
        %v3811 = vcvt.s32.f32 %v2211
        %v3812 = vcvt.s32.f32 %v2212
        %v3813 = vcvt.s32.f32 %v2213
        %v3814 = vcvt.s32.f32 %v2214
        %v3815 = vcvt.s32.f32 %v2215
        %v3816 = vcvt.s32.f32 %v2216
        %v3817 = vcvt.s32.f32 %v2217
        %v3818 = vcvt.s32.f32 %v2218
        %v3819 = vcvt.s32.f32 %v2219
        %v3820 = vcvt.s32.f32 %v2220
        %v3821 = vcvt.s32.f32 %v2221
        %v3822 = vcvt.s32.f32 %v2222
        %v3823 = vcvt.s32.f32 %v2223
        %v3824 = vcvt.s32.f32 %v2224
        %v3825 = vcvt.s32.f32 %v2225
        %v3826 = vcvt.s32.f32 %v2226
        %v3827 = vcvt.s32.f32 %v2227
        %v3828 = vcvt.s32.f32 %v2228
        %v3829 = vcvt.s32.f32 %v2229
        %v3830 = vcvt.s32.f32 %v2230
        %v3831 = vcvt.s32.f32 %v2231
        %v3832 = vcvt.s32.f32 %v2232
        %v3833 = vcvt.s32.f32 %v2233
        %v3834 = vcvt.s32.f32 %v2234
        %v3835 = vcvt.s32.f32 %v2235
        %v3836 = vcvt.s32.f32 %v2236
        %v3837 = vcvt.s32.f32 %v2237
        %v3838 = vcvt.s32.f32 %v2238
        %v3839 = vcvt.s32.f32 %v2239
        %v3840 = vcvt.s32.f32 %v2240
        %v3841 = vcvt.s32.f32 %v2241
        %v3842 = vcvt.s32.f32 %v2242
        %v3843 = vcvt.s32.f32 %v2243
        %v3844 = vcvt.s32.f32 %v2244
        %v3845 = vcvt.s32.f32 %v2245
        %v3846 = vcvt.s32.f32 %v2246
        %v3847 = vcvt.s32.f32 %v2247
        %v3848 = vcvt.s32.f32 %v2248
        %v3849 = vcvt.s32.f32 %v2249
        %v3850 = vcvt.s32.f32 %v2250
        %v3851 = vcvt.s32.f32 %v2251
        %v3852 = vcvt.s32.f32 %v2252
        %v3853 = vcvt.s32.f32 %v2253
        %v3854 = vcvt.s32.f32 %v2254
        %v3855 = vcvt.s32.f32 %v2255
        %v3856 = vcvt.s32.f32 %v2256
        %v3857 = vcvt.s32.f32 %v2257
        %v3858 = vcvt.s32.f32 %v2258
        %v3859 = vcvt.s32.f32 %v2259
        %v3860 = vcvt.s32.f32 %v2260
        %v3861 = vcvt.s32.f32 %v2261
        %v3862 = vcvt.s32.f32 %v2262
        %v3863 = vcvt.s32.f32 %v2263
        %v3864 = vcvt.s32.f32 %v2264
        %v3865 = vcvt.s32.f32 %v2265
        %v3866 = vcvt.s32.f32 %v2266
        %v3867 = vcvt.s32.f32 %v2267
        %v3868 = vcvt.s32.f32 %v2268
        %v3869 = vcvt.s32.f32 %v2269
        %v3870 = vcvt.s32.f32 %v2270
        %v3871 = vcvt.s32.f32 %v2271
        %v3872 = vcvt.s32.f32 %v2272
        %v3873 = vcvt.s32.f32 %v2273
        %v3874 = vcvt.s32.f32 %v2274
        %v3875 = vcvt.s32.f32 %v2275
        %v3876 = vcvt.s32.f32 %v2276
        %v3877 = vcvt.s32.f32 %v2277
        %v3878 = vcvt.s32.f32 %v2278
        %v3879 = vcvt.s32.f32 %v2279
        %v3880 = vcvt.s32.f32 %v2280
        %v3881 = vcvt.s32.f32 %v2281
        %v3882 = vcvt.s32.f32 %v2282
        %v3883 = vcvt.s32.f32 %v2283
        %v3884 = vcvt.s32.f32 %v2284
        %v3885 = vcvt.s32.f32 %v2285
        %v3886 = vcvt.s32.f32 %v2286
        %v3887 = vcvt.s32.f32 %v2287
        %v3888 = vcvt.s32.f32 %v2288
        %v3889 = vcvt.s32.f32 %v2289
        %v3890 = vcvt.s32.f32 %v2290
        %v3891 = vcvt.s32.f32 %v2291
        %v3892 = vcvt.s32.f32 %v2292
        %v3893 = vcvt.s32.f32 %v2293
        %v3894 = vcvt.s32.f32 %v2294
        %v3895 = vcvt.s32.f32 %v2295
        %v3896 = vcvt.s32.f32 %v2296
        %v3897 = vcvt.s32.f32 %v2297
        %v3898 = vcvt.s32.f32 %v2298
        %v3899 = vcvt.s32.f32 %v2299
        %v3900 = vcvt.s32.f32 %v2300
        %v3901 = vcvt.s32.f32 %v2301
        %v3902 = vcvt.s32.f32 %v2302
        %v3903 = vcvt.s32.f32 %v2303
        %v3904 = vcvt.s32.f32 %v2304
        %v3905 = vcvt.s32.f32 %v2305
        %v3906 = vcvt.s32.f32 %v2306
        %v3907 = vcvt.s32.f32 %v2307
        %v3908 = vcvt.s32.f32 %v2308
        %v3909 = vcvt.s32.f32 %v2309
        %v3910 = vcvt.s32.f32 %v2310
        %v3911 = vcvt.s32.f32 %v2311
        %v3912 = vcvt.s32.f32 %v2312
        %v3913 = vcvt.s32.f32 %v2313
        %v3914 = vcvt.s32.f32 %v2314
        %v3915 = vcvt.s32.f32 %v2315
        %v3916 = vcvt.s32.f32 %v2316
        %v3917 = vcvt.s32.f32 %v2317
        %v3918 = vcvt.s32.f32 %v2318
        %v3919 = vcvt.s32.f32 %v2319
        %v3920 = vcvt.s32.f32 %v2320
        %v3921 = vcvt.s32.f32 %v2321
        %v3922 = vcvt.s32.f32 %v2322
        %v3923 = vcvt.s32.f32 %v2323
        %v3924 = vcvt.s32.f32 %v2324
        %v3925 = vcvt.s32.f32 %v2325
        %v3926 = vcvt.s32.f32 %v2326
        %v3927 = vcvt.s32.f32 %v2327
        %v3928 = vcvt.s32.f32 %v2328
        %v3929 = vcvt.s32.f32 %v2329
        %v3930 = vcvt.s32.f32 %v2330
        %v3931 = vcvt.s32.f32 %v2331
        %v3932 = vcvt.s32.f32 %v2332
        %v3933 = vcvt.s32.f32 %v2333
        %v3934 = vcvt.s32.f32 %v2334
        %v3935 = vcvt.s32.f32 %v2335
        %v3936 = vcvt.s32.f32 %v2336
        %v3937 = vcvt.s32.f32 %v2337
        %v3938 = vcvt.s32.f32 %v2338
        %v3939 = vcvt.s32.f32 %v2339
        %v3940 = vcvt.s32.f32 %v2340
        %v3941 = vcvt.s32.f32 %v2341
        %v3942 = vcvt.s32.f32 %v2342
        %v3943 = vcvt.s32.f32 %v2343
        %v3944 = vcvt.s32.f32 %v2344
        %v3945 = vcvt.s32.f32 %v2345
        %v3946 = vcvt.s32.f32 %v2346
        %v3947 = vcvt.s32.f32 %v2347
        %v3948 = vcvt.s32.f32 %v2348
        %v3949 = vcvt.s32.f32 %v2349
        %v3950 = vcvt.s32.f32 %v2350
        %v3951 = vcvt.s32.f32 %v2351
        %v3952 = vcvt.s32.f32 %v2352
        %v3953 = vcvt.s32.f32 %v2353
        %v3954 = vcvt.s32.f32 %v2354
        %v3955 = vcvt.s32.f32 %v2355
        %v3956 = vcvt.s32.f32 %v2356
        %v3957 = vcvt.s32.f32 %v2357
        %v3958 = vcvt.s32.f32 %v2358
        %v3959 = vcvt.s32.f32 %v2359
        %v3960 = vcvt.s32.f32 %v2360
        %v3961 = vcvt.s32.f32 %v2361
        %v3962 = vcvt.s32.f32 %v2362
        %v3963 = vcvt.s32.f32 %v2363
        %v3964 = vcvt.s32.f32 %v2364
        %v3965 = vcvt.s32.f32 %v2365
        %v3966 = vcvt.s32.f32 %v2366
        %v3967 = vcvt.s32.f32 %v2367
        %v3968 = vcvt.s32.f32 %v2368
        %v3969 = vcvt.s32.f32 %v2369
        %v3970 = vcvt.s32.f32 %v2370
        %v3971 = vcvt.s32.f32 %v2371
        %v3972 = vcvt.s32.f32 %v2372
        %v3973 = vcvt.s32.f32 %v2373
        %v3974 = vcvt.s32.f32 %v2374
        %v3975 = vcvt.s32.f32 %v2375
        %v3976 = vcvt.s32.f32 %v2376
        %v3977 = vcvt.s32.f32 %v2377
        %v3978 = vcvt.s32.f32 %v2378
        %v3979 = vcvt.s32.f32 %v2379
        %v3980 = vcvt.s32.f32 %v2380
        %v3981 = vcvt.s32.f32 %v2381
        %v3982 = vcvt.s32.f32 %v2382
        %v3983 = vcvt.s32.f32 %v2383
        %v3984 = vcvt.s32.f32 %v2384
        %v3985 = vcvt.s32.f32 %v2385
        %v3986 = vcvt.s32.f32 %v2386
        %v3987 = vcvt.s32.f32 %v2387
        %v3988 = vcvt.s32.f32 %v2388
        %v3989 = vpack.c.bf16 %v2399, %v2389
        %v3990 = vpack.c.bf16 %v2400, %v2390
        %v3991 = vpack.c.bf16 %v2401, %v2391
        %v3992 = vpack.c.bf16 %v2402, %v2392
        %v3993 = vpack.c.bf16 %v2403, %v2393
        %v3994 = vpack.c.bf16 %v2404, %v2394
        %v3995 = vpack.c.bf16 %v2405, %v2395
        %v3996 = vpack.c.bf16 %v2406, %v2396
        %v3997 = vpack.c.bf16 %v2407, %v2397
        %v3998 = vpack.c.bf16 %v2408, %v2398
        %v3999 = vpack.c.bf16 %v2419, %v2409
        %v4000 = vpack.c.bf16 %v2420, %v2410
        %v4001 = vpack.c.bf16 %v2421, %v2411
        %v4002 = vpack.c.bf16 %v2422, %v2412
        %v4003 = vpack.c.bf16 %v2423, %v2413
        %v4004 = vpack.c.bf16 %v2424, %v2414
        %v4005 = vpack.c.bf16 %v2425, %v2415
        %v4006 = vpack.c.bf16 %v2426, %v2416
        %v4007 = vpack.c.bf16 %v2427, %v2417
        %v4008 = vpack.c.bf16 %v2428, %v2418
        %v4009 = vpack.c.bf16 %v2439, %v2429
        %v4010 = vpack.c.bf16 %v2440, %v2430
        %v4011 = vpack.c.bf16 %v2441, %v2431
        %v4012 = vpack.c.bf16 %v2442, %v2432
        %v4013 = vpack.c.bf16 %v2443, %v2433
        %v4014 = vpack.c.bf16 %v2444, %v2434
        %v4015 = vpack.c.bf16 %v2445, %v2435
        %v4016 = vpack.c.bf16 %v2446, %v2436
        %v4017 = vpack.c.bf16 %v2447, %v2437
        %v4018 = vpack.c.bf16 %v2448, %v2438
        %v4019 = vpack.c.bf16 %v2459, %v2449
        %v4020 = vpack.c.bf16 %v2460, %v2450
        %v4021 = vpack.c.bf16 %v2461, %v2451
        %v4022 = vpack.c.bf16 %v2462, %v2452
        %v4023 = vpack.c.bf16 %v2463, %v2453
        %v4024 = vpack.c.bf16 %v2464, %v2454
        %v4025 = vpack.c.bf16 %v2465, %v2455
        %v4026 = vpack.c.bf16 %v2466, %v2456
        %v4027 = vpack.c.bf16 %v2467, %v2457
        %v4028 = vpack.c.bf16 %v2468, %v2458
        %v4029 = vpack.c.bf16 %v2479, %v2469
        %v4030 = vpack.c.bf16 %v2480, %v2470
        %v4031 = vpack.c.bf16 %v2481, %v2471
        %v4032 = vpack.c.bf16 %v2482, %v2472
        %v4033 = vpack.c.bf16 %v2483, %v2473
        %v4034 = vpack.c.bf16 %v2484, %v2474
        %v4035 = vpack.c.bf16 %v2485, %v2475
        %v4036 = vpack.c.bf16 %v2486, %v2476
        %v4037 = vpack.c.bf16 %v2487, %v2477
        %v4038 = vpack.c.bf16 %v2488, %v2478
        %v4039 = vpack.c.bf16 %v2499, %v2489
        %v4040 = vpack.c.bf16 %v2500, %v2490
        %v4041 = vpack.c.bf16 %v2501, %v2491
        %v4042 = vpack.c.bf16 %v2502, %v2492
        %v4043 = vpack.c.bf16 %v2503, %v2493
        %v4044 = vpack.c.bf16 %v2504, %v2494
        %v4045 = vpack.c.bf16 %v2505, %v2495
        %v4046 = vpack.c.bf16 %v2506, %v2496
        %v4047 = vpack.c.bf16 %v2507, %v2497
        %v4048 = vpack.c.bf16 %v2508, %v2498
        %v4049 = vpack.c.bf16 %v2519, %v2509
        %v4050 = vpack.c.bf16 %v2520, %v2510
        %v4051 = vpack.c.bf16 %v2521, %v2511
        %v4052 = vpack.c.bf16 %v2522, %v2512
        %v4053 = vpack.c.bf16 %v2523, %v2513
        %v4054 = vpack.c.bf16 %v2524, %v2514
        %v4055 = vpack.c.bf16 %v2525, %v2515
        %v4056 = vpack.c.bf16 %v2526, %v2516
        %v4057 = vpack.c.bf16 %v2527, %v2517
        %v4058 = vpack.c.bf16 %v2528, %v2518
        %v4059 = vpack.c.bf16 %v2539, %v2529
        %v4060 = vpack.c.bf16 %v2540, %v2530
        %v4061 = vpack.c.bf16 %v2541, %v2531
        %v4062 = vpack.c.bf16 %v2542, %v2532
        %v4063 = vpack.c.bf16 %v2543, %v2533
        %v4064 = vpack.c.bf16 %v2544, %v2534
        %v4065 = vpack.c.bf16 %v2545, %v2535
        %v4066 = vpack.c.bf16 %v2546, %v2536
        %v4067 = vpack.c.bf16 %v2547, %v2537
        %v4068 = vpack.c.bf16 %v2548, %v2538
        %v4069 = vpack.c.bf16 %v2559, %v2549
        %v4070 = vpack.c.bf16 %v2560, %v2550
        %v4071 = vpack.c.bf16 %v2561, %v2551
        %v4072 = vpack.c.bf16 %v2562, %v2552
        %v4073 = vpack.c.bf16 %v2563, %v2553
        %v4074 = vpack.c.bf16 %v2564, %v2554
        %v4075 = vpack.c.bf16 %v2565, %v2555
        %v4076 = vpack.c.bf16 %v2566, %v2556
        %v4077 = vpack.c.bf16 %v2567, %v2557
        %v4078 = vpack.c.bf16 %v2568, %v2558
        %v4079 = vpack.c.bf16 %v2579, %v2569
        %v4080 = vpack.c.bf16 %v2580, %v2570
        %v4081 = vpack.c.bf16 %v2581, %v2571
        %v4082 = vpack.c.bf16 %v2582, %v2572
        %v4083 = vpack.c.bf16 %v2583, %v2573
        %v4084 = vpack.c.bf16 %v2584, %v2574
        %v4085 = vpack.c.bf16 %v2585, %v2575
        %v4086 = vpack.c.bf16 %v2586, %v2576
        %v4087 = vpack.c.bf16 %v2587, %v2577
        %v4088 = vpack.c.bf16 %v2588, %v2578
        %v4089 = vpack.c.bf16 %v2599, %v2589
        %v4090 = vpack.c.bf16 %v2600, %v2590
        %v4091 = vpack.c.bf16 %v2601, %v2591
        %v4092 = vpack.c.bf16 %v2602, %v2592
        %v4093 = vpack.c.bf16 %v2603, %v2593
        %v4094 = vpack.c.bf16 %v2604, %v2594
        %v4095 = vpack.c.bf16 %v2605, %v2595
        %v4096 = vpack.c.bf16 %v2606, %v2596
        %v4097 = vpack.c.bf16 %v2607, %v2597
        %v4098 = vpack.c.bf16 %v2608, %v2598
        %v4099 = vpack.c.bf16 %v2619, %v2609
        %v4100 = vpack.c.bf16 %v2620, %v2610
        %v4101 = vpack.c.bf16 %v2621, %v2611
        %v4102 = vpack.c.bf16 %v2622, %v2612
        %v4103 = vpack.c.bf16 %v2623, %v2613
        %v4104 = vpack.c.bf16 %v2624, %v2614
        %v4105 = vpack.c.bf16 %v2625, %v2615
        %v4106 = vpack.c.bf16 %v2626, %v2616
        %v4107 = vpack.c.bf16 %v2627, %v2617
        %v4108 = vpack.c.bf16 %v2628, %v2618
        %v4109 = vpack.c.bf16 %v2639, %v2629
        %v4110 = vpack.c.bf16 %v2640, %v2630
        %v4111 = vpack.c.bf16 %v2641, %v2631
        %v4112 = vpack.c.bf16 %v2642, %v2632
        %v4113 = vpack.c.bf16 %v2643, %v2633
        %v4114 = vpack.c.bf16 %v2644, %v2634
        %v4115 = vpack.c.bf16 %v2645, %v2635
        %v4116 = vpack.c.bf16 %v2646, %v2636
        %v4117 = vpack.c.bf16 %v2647, %v2637
        %v4118 = vpack.c.bf16 %v2648, %v2638
        %v4119 = vpack.c.bf16 %v2659, %v2649
        %v4120 = vpack.c.bf16 %v2660, %v2650
        %v4121 = vpack.c.bf16 %v2661, %v2651
        %v4122 = vpack.c.bf16 %v2662, %v2652
        %v4123 = vpack.c.bf16 %v2663, %v2653
        %v4124 = vpack.c.bf16 %v2664, %v2654
        %v4125 = vpack.c.bf16 %v2665, %v2655
        %v4126 = vpack.c.bf16 %v2666, %v2656
        %v4127 = vpack.c.bf16 %v2667, %v2657
        %v4128 = vpack.c.bf16 %v2668, %v2658
        %v4129 = vpack.c.bf16 %v2679, %v2669
        %v4130 = vpack.c.bf16 %v2680, %v2670
        %v4131 = vpack.c.bf16 %v2681, %v2671
        %v4132 = vpack.c.bf16 %v2682, %v2672
        %v4133 = vpack.c.bf16 %v2683, %v2673
        %v4134 = vpack.c.bf16 %v2684, %v2674
        %v4135 = vpack.c.bf16 %v2685, %v2675
        %v4136 = vpack.c.bf16 %v2686, %v2676
        %v4137 = vpack.c.bf16 %v2687, %v2677
        %v4138 = vpack.c.bf16 %v2688, %v2678
        %v4139 = vpack.c.bf16 %v2699, %v2689
        %v4140 = vpack.c.bf16 %v2700, %v2690
        %v4141 = vpack.c.bf16 %v2701, %v2691
        %v4142 = vpack.c.bf16 %v2702, %v2692
        %v4143 = vpack.c.bf16 %v2703, %v2693
        %v4144 = vpack.c.bf16 %v2704, %v2694
        %v4145 = vpack.c.bf16 %v2705, %v2695
        %v4146 = vpack.c.bf16 %v2706, %v2696
        %v4147 = vpack.c.bf16 %v2707, %v2697
        %v4148 = vpack.c.bf16 %v2708, %v2698
        %v4149 = vpack.c.bf16 %v2719, %v2709
        %v4150 = vpack.c.bf16 %v2720, %v2710
        %v4151 = vpack.c.bf16 %v2721, %v2711
        %v4152 = vpack.c.bf16 %v2722, %v2712
        %v4153 = vpack.c.bf16 %v2723, %v2713
        %v4154 = vpack.c.bf16 %v2724, %v2714
        %v4155 = vpack.c.bf16 %v2725, %v2715
        %v4156 = vpack.c.bf16 %v2726, %v2716
        %v4157 = vpack.c.bf16 %v2727, %v2717
        %v4158 = vpack.c.bf16 %v2728, %v2718
        %v4159 = vpack.c.bf16 %v2739, %v2729
        %v4160 = vpack.c.bf16 %v2740, %v2730
        %v4161 = vpack.c.bf16 %v2741, %v2731
        %v4162 = vpack.c.bf16 %v2742, %v2732
        %v4163 = vpack.c.bf16 %v2743, %v2733
        %v4164 = vpack.c.bf16 %v2744, %v2734
        %v4165 = vpack.c.bf16 %v2745, %v2735
        %v4166 = vpack.c.bf16 %v2746, %v2736
        %v4167 = vpack.c.bf16 %v2747, %v2737
        %v4168 = vpack.c.bf16 %v2748, %v2738
        %v4169 = vpack.c.bf16 %v2759, %v2749
        %v4170 = vpack.c.bf16 %v2760, %v2750
        %v4171 = vpack.c.bf16 %v2761, %v2751
        %v4172 = vpack.c.bf16 %v2762, %v2752
        %v4173 = vpack.c.bf16 %v2763, %v2753
        %v4174 = vpack.c.bf16 %v2764, %v2754
        %v4175 = vpack.c.bf16 %v2765, %v2755
        %v4176 = vpack.c.bf16 %v2766, %v2756
        %v4177 = vpack.c.bf16 %v2767, %v2757
        %v4178 = vpack.c.bf16 %v2768, %v2758
        %v4179 = vpack.c.bf16 %v2779, %v2769
        %v4180 = vpack.c.bf16 %v2780, %v2770
        %v4181 = vpack.c.bf16 %v2781, %v2771
        %v4182 = vpack.c.bf16 %v2782, %v2772
        %v4183 = vpack.c.bf16 %v2783, %v2773
        %v4184 = vpack.c.bf16 %v2784, %v2774
        %v4185 = vpack.c.bf16 %v2785, %v2775
        %v4186 = vpack.c.bf16 %v2786, %v2776
        %v4187 = vpack.c.bf16 %v2787, %v2777
        %v4188 = vpack.c.bf16 %v2788, %v2778
        %v4189 = vpack.c.bf16 %v2799, %v2789
        %v4190 = vpack.c.bf16 %v2800, %v2790
        %v4191 = vpack.c.bf16 %v2801, %v2791
        %v4192 = vpack.c.bf16 %v2802, %v2792
        %v4193 = vpack.c.bf16 %v2803, %v2793
        %v4194 = vpack.c.bf16 %v2804, %v2794
        %v4195 = vpack.c.bf16 %v2805, %v2795
        %v4196 = vpack.c.bf16 %v2806, %v2796
        %v4197 = vpack.c.bf16 %v2807, %v2797
        %v4198 = vpack.c.bf16 %v2808, %v2798
        %v4199 = vpack.c.bf16 %v2819, %v2809
        %v4200 = vpack.c.bf16 %v2820, %v2810
        %v4201 = vpack.c.bf16 %v2821, %v2811
        %v4202 = vpack.c.bf16 %v2822, %v2812
        %v4203 = vpack.c.bf16 %v2823, %v2813
        %v4204 = vpack.c.bf16 %v2824, %v2814
        %v4205 = vpack.c.bf16 %v2825, %v2815
        %v4206 = vpack.c.bf16 %v2826, %v2816
        %v4207 = vpack.c.bf16 %v2827, %v2817
        %v4208 = vpack.c.bf16 %v2828, %v2818
        %v4209 = vpack.c.bf16 %v2839, %v2829
        %v4210 = vpack.c.bf16 %v2840, %v2830
        %v4211 = vpack.c.bf16 %v2841, %v2831
        %v4212 = vpack.c.bf16 %v2842, %v2832
        %v4213 = vpack.c.bf16 %v2843, %v2833
        %v4214 = vpack.c.bf16 %v2844, %v2834
        %v4215 = vpack.c.bf16 %v2845, %v2835
        %v4216 = vpack.c.bf16 %v2846, %v2836
        %v4217 = vpack.c.bf16 %v2847, %v2837
        %v4218 = vpack.c.bf16 %v2848, %v2838
        %v4219 = vpack.c.bf16 %v2859, %v2849
        %v4220 = vpack.c.bf16 %v2860, %v2850
        %v4221 = vpack.c.bf16 %v2861, %v2851
        %v4222 = vpack.c.bf16 %v2862, %v2852
        %v4223 = vpack.c.bf16 %v2863, %v2853
        %v4224 = vpack.c.bf16 %v2864, %v2854
        %v4225 = vpack.c.bf16 %v2865, %v2855
        %v4226 = vpack.c.bf16 %v2866, %v2856
        %v4227 = vpack.c.bf16 %v2867, %v2857
        %v4228 = vpack.c.bf16 %v2868, %v2858
        %v4229 = vpack.c.bf16 %v2879, %v2869
        %v4230 = vpack.c.bf16 %v2880, %v2870
        %v4231 = vpack.c.bf16 %v2881, %v2871
        %v4232 = vpack.c.bf16 %v2882, %v2872
        %v4233 = vpack.c.bf16 %v2883, %v2873
        %v4234 = vpack.c.bf16 %v2884, %v2874
        %v4235 = vpack.c.bf16 %v2885, %v2875
        %v4236 = vpack.c.bf16 %v2886, %v2876
        %v4237 = vpack.c.bf16 %v2887, %v2877
        %v4238 = vpack.c.bf16 %v2888, %v2878
        %v4239 = vpack.c.bf16 %v2899, %v2889
        %v4240 = vpack.c.bf16 %v2900, %v2890
        %v4241 = vpack.c.bf16 %v2901, %v2891
        %v4242 = vpack.c.bf16 %v2902, %v2892
        %v4243 = vpack.c.bf16 %v2903, %v2893
        %v4244 = vpack.c.bf16 %v2904, %v2894
        %v4245 = vpack.c.bf16 %v2905, %v2895
        %v4246 = vpack.c.bf16 %v2906, %v2896
        %v4247 = vpack.c.bf16 %v2907, %v2897
        %v4248 = vpack.c.bf16 %v2908, %v2898
        %v4249 = vpack.c.bf16 %v2919, %v2909
        %v4250 = vpack.c.bf16 %v2920, %v2910
        %v4251 = vpack.c.bf16 %v2921, %v2911
        %v4252 = vpack.c.bf16 %v2922, %v2912
        %v4253 = vpack.c.bf16 %v2923, %v2913
        %v4254 = vpack.c.bf16 %v2924, %v2914
        %v4255 = vpack.c.bf16 %v2925, %v2915
        %v4256 = vpack.c.bf16 %v2926, %v2916
        %v4257 = vpack.c.bf16 %v2927, %v2917
        %v4258 = vpack.c.bf16 %v2928, %v2918
        %v4259 = vpack.c.bf16 %v2939, %v2929
        %v4260 = vpack.c.bf16 %v2940, %v2930
        %v4261 = vpack.c.bf16 %v2941, %v2931
        %v4262 = vpack.c.bf16 %v2942, %v2932
        %v4263 = vpack.c.bf16 %v2943, %v2933
        %v4264 = vpack.c.bf16 %v2944, %v2934
        %v4265 = vpack.c.bf16 %v2945, %v2935
        %v4266 = vpack.c.bf16 %v2946, %v2936
        %v4267 = vpack.c.bf16 %v2947, %v2937
        %v4268 = vpack.c.bf16 %v2948, %v2938
        %v4269 = vpack.c.bf16 %v2959, %v2949
        %v4270 = vpack.c.bf16 %v2960, %v2950
        %v4271 = vpack.c.bf16 %v2961, %v2951
        %v4272 = vpack.c.bf16 %v2962, %v2952
        %v4273 = vpack.c.bf16 %v2963, %v2953
        %v4274 = vpack.c.bf16 %v2964, %v2954
        %v4275 = vpack.c.bf16 %v2965, %v2955
        %v4276 = vpack.c.bf16 %v2966, %v2956
        %v4277 = vpack.c.bf16 %v2967, %v2957
        %v4278 = vpack.c.bf16 %v2968, %v2958
        %v4279 = vpack.c.bf16 %v2979, %v2969
        %v4280 = vpack.c.bf16 %v2980, %v2970
        %v4281 = vpack.c.bf16 %v2981, %v2971
        %v4282 = vpack.c.bf16 %v2982, %v2972
        %v4283 = vpack.c.bf16 %v2983, %v2973
        %v4284 = vpack.c.bf16 %v2984, %v2974
        %v4285 = vpack.c.bf16 %v2985, %v2975
        %v4286 = vpack.c.bf16 %v2986, %v2976
        %v4287 = vpack.c.bf16 %v2987, %v2977
        %v4288 = vpack.c.bf16 %v2988, %v2978
        %v4289 = vpack.c.bf16 %v2999, %v2989
        %v4290 = vpack.c.bf16 %v3000, %v2990
        %v4291 = vpack.c.bf16 %v3001, %v2991
        %v4292 = vpack.c.bf16 %v3002, %v2992
        %v4293 = vpack.c.bf16 %v3003, %v2993
        %v4294 = vpack.c.bf16 %v3004, %v2994
        %v4295 = vpack.c.bf16 %v3005, %v2995
        %v4296 = vpack.c.bf16 %v3006, %v2996
        %v4297 = vpack.c.bf16 %v3007, %v2997
        %v4298 = vpack.c.bf16 %v3008, %v2998
        %v4299 = vpack.c.bf16 %v3019, %v3009
        %v4300 = vpack.c.bf16 %v3020, %v3010
        %v4301 = vpack.c.bf16 %v3021, %v3011
        %v4302 = vpack.c.bf16 %v3022, %v3012
        %v4303 = vpack.c.bf16 %v3023, %v3013
        %v4304 = vpack.c.bf16 %v3024, %v3014
        %v4305 = vpack.c.bf16 %v3025, %v3015
        %v4306 = vpack.c.bf16 %v3026, %v3016
        %v4307 = vpack.c.bf16 %v3027, %v3017
        %v4308 = vpack.c.bf16 %v3028, %v3018
        %v4309 = vpack.c.bf16 %v3039, %v3029
        %v4310 = vpack.c.bf16 %v3040, %v3030
        %v4311 = vpack.c.bf16 %v3041, %v3031
        %v4312 = vpack.c.bf16 %v3042, %v3032
        %v4313 = vpack.c.bf16 %v3043, %v3033
        %v4314 = vpack.c.bf16 %v3044, %v3034
        %v4315 = vpack.c.bf16 %v3045, %v3035
        %v4316 = vpack.c.bf16 %v3046, %v3036
        %v4317 = vpack.c.bf16 %v3047, %v3037
        %v4318 = vpack.c.bf16 %v3048, %v3038
        %v4319 = vpack.c.bf16 %v3059, %v3049
        %v4320 = vpack.c.bf16 %v3060, %v3050
        %v4321 = vpack.c.bf16 %v3061, %v3051
        %v4322 = vpack.c.bf16 %v3062, %v3052
        %v4323 = vpack.c.bf16 %v3063, %v3053
        %v4324 = vpack.c.bf16 %v3064, %v3054
        %v4325 = vpack.c.bf16 %v3065, %v3055
        %v4326 = vpack.c.bf16 %v3066, %v3056
        %v4327 = vpack.c.bf16 %v3067, %v3057
        %v4328 = vpack.c.bf16 %v3068, %v3058
        %v4329 = vpack.c.bf16 %v3079, %v3069
        %v4330 = vpack.c.bf16 %v3080, %v3070
        %v4331 = vpack.c.bf16 %v3081, %v3071
        %v4332 = vpack.c.bf16 %v3082, %v3072
        %v4333 = vpack.c.bf16 %v3083, %v3073
        %v4334 = vpack.c.bf16 %v3084, %v3074
        %v4335 = vpack.c.bf16 %v3085, %v3075
        %v4336 = vpack.c.bf16 %v3086, %v3076
        %v4337 = vpack.c.bf16 %v3087, %v3077
        %v4338 = vpack.c.bf16 %v3088, %v3078
        %v4339 = vpack.c.bf16 %v3099, %v3089
        %v4340 = vpack.c.bf16 %v3100, %v3090
        %v4341 = vpack.c.bf16 %v3101, %v3091
        %v4342 = vpack.c.bf16 %v3102, %v3092
        %v4343 = vpack.c.bf16 %v3103, %v3093
        %v4344 = vpack.c.bf16 %v3104, %v3094
        %v4345 = vpack.c.bf16 %v3105, %v3095
        %v4346 = vpack.c.bf16 %v3106, %v3096
        %v4347 = vpack.c.bf16 %v3107, %v3097
        %v4348 = vpack.c.bf16 %v3108, %v3098
        %v4349 = vpack.c.bf16 %v3119, %v3109
        %v4350 = vpack.c.bf16 %v3120, %v3110
        %v4351 = vpack.c.bf16 %v3121, %v3111
        %v4352 = vpack.c.bf16 %v3122, %v3112
        %v4353 = vpack.c.bf16 %v3123, %v3113
        %v4354 = vpack.c.bf16 %v3124, %v3114
        %v4355 = vpack.c.bf16 %v3125, %v3115
        %v4356 = vpack.c.bf16 %v3126, %v3116
        %v4357 = vpack.c.bf16 %v3127, %v3117
        %v4358 = vpack.c.bf16 %v3128, %v3118
        %v4359 = vpack.c.bf16 %v3139, %v3129
        %v4360 = vpack.c.bf16 %v3140, %v3130
        %v4361 = vpack.c.bf16 %v3141, %v3131
        %v4362 = vpack.c.bf16 %v3142, %v3132
        %v4363 = vpack.c.bf16 %v3143, %v3133
        %v4364 = vpack.c.bf16 %v3144, %v3134
        %v4365 = vpack.c.bf16 %v3145, %v3135
        %v4366 = vpack.c.bf16 %v3146, %v3136
        %v4367 = vpack.c.bf16 %v3147, %v3137
        %v4368 = vpack.c.bf16 %v3148, %v3138
        %v4369 = vpack.c.bf16 %v3159, %v3149
        %v4370 = vpack.c.bf16 %v3160, %v3150
        %v4371 = vpack.c.bf16 %v3161, %v3151
        %v4372 = vpack.c.bf16 %v3162, %v3152
        %v4373 = vpack.c.bf16 %v3163, %v3153
        %v4374 = vpack.c.bf16 %v3164, %v3154
        %v4375 = vpack.c.bf16 %v3165, %v3155
        %v4376 = vpack.c.bf16 %v3166, %v3156
        %v4377 = vpack.c.bf16 %v3167, %v3157
        %v4378 = vpack.c.bf16 %v3168, %v3158
        %v4379 = vpack.c.bf16 %v3179, %v3169
        %v4380 = vpack.c.bf16 %v3180, %v3170
        %v4381 = vpack.c.bf16 %v3181, %v3171
        %v4382 = vpack.c.bf16 %v3182, %v3172
        %v4383 = vpack.c.bf16 %v3183, %v3173
        %v4384 = vpack.c.bf16 %v3184, %v3174
        %v4385 = vpack.c.bf16 %v3185, %v3175
        %v4386 = vpack.c.bf16 %v3186, %v3176
        %v4387 = vpack.c.bf16 %v3187, %v3177
        %v4388 = vpack.c.bf16 %v3188, %v3178
        %v4389 = vpack.c.bf16 %v3199, %v3189
        %v4390 = vpack.c.bf16 %v3200, %v3190
        %v4391 = vpack.c.bf16 %v3201, %v3191
        %v4392 = vpack.c.bf16 %v3202, %v3192
        %v4393 = vpack.c.bf16 %v3203, %v3193
        %v4394 = vpack.c.bf16 %v3204, %v3194
        %v4395 = vpack.c.bf16 %v3205, %v3195
        %v4396 = vpack.c.bf16 %v3206, %v3196
        %v4397 = vpack.c.bf16 %v3207, %v3197
        %v4398 = vpack.c.bf16 %v3208, %v3198
        %v4399 = vpack.c.bf16 %v3219, %v3209
        %v4400 = vpack.c.bf16 %v3220, %v3210
        %v4401 = vpack.c.bf16 %v3221, %v3211
        %v4402 = vpack.c.bf16 %v3222, %v3212
        %v4403 = vpack.c.bf16 %v3223, %v3213
        %v4404 = vpack.c.bf16 %v3224, %v3214
        %v4405 = vpack.c.bf16 %v3225, %v3215
        %v4406 = vpack.c.bf16 %v3226, %v3216
        %v4407 = vpack.c.bf16 %v3227, %v3217
        %v4408 = vpack.c.bf16 %v3228, %v3218
        %v4409 = vpack.c.bf16 %v3239, %v3229
        %v4410 = vpack.c.bf16 %v3240, %v3230
        %v4411 = vpack.c.bf16 %v3241, %v3231
        %v4412 = vpack.c.bf16 %v3242, %v3232
        %v4413 = vpack.c.bf16 %v3243, %v3233
        %v4414 = vpack.c.bf16 %v3244, %v3234
        %v4415 = vpack.c.bf16 %v3245, %v3235
        %v4416 = vpack.c.bf16 %v3246, %v3236
        %v4417 = vpack.c.bf16 %v3247, %v3237
        %v4418 = vpack.c.bf16 %v3248, %v3238
        %v4419 = vpack.c.bf16 %v3259, %v3249
        %v4420 = vpack.c.bf16 %v3260, %v3250
        %v4421 = vpack.c.bf16 %v3261, %v3251
        %v4422 = vpack.c.bf16 %v3262, %v3252
        %v4423 = vpack.c.bf16 %v3263, %v3253
        %v4424 = vpack.c.bf16 %v3264, %v3254
        %v4425 = vpack.c.bf16 %v3265, %v3255
        %v4426 = vpack.c.bf16 %v3266, %v3256
        %v4427 = vpack.c.bf16 %v3267, %v3257
        %v4428 = vpack.c.bf16 %v3268, %v3258
        %v4429 = vpack.c.bf16 %v3279, %v3269
        %v4430 = vpack.c.bf16 %v3280, %v3270
        %v4431 = vpack.c.bf16 %v3281, %v3271
        %v4432 = vpack.c.bf16 %v3282, %v3272
        %v4433 = vpack.c.bf16 %v3283, %v3273
        %v4434 = vpack.c.bf16 %v3284, %v3274
        %v4435 = vpack.c.bf16 %v3285, %v3275
        %v4436 = vpack.c.bf16 %v3286, %v3276
        %v4437 = vpack.c.bf16 %v3287, %v3277
        %v4438 = vpack.c.bf16 %v3288, %v3278
        %v4439 = vpack.c.bf16 %v3299, %v3289
        %v4440 = vpack.c.bf16 %v3300, %v3290
        %v4441 = vpack.c.bf16 %v3301, %v3291
        %v4442 = vpack.c.bf16 %v3302, %v3292
        %v4443 = vpack.c.bf16 %v3303, %v3293
        %v4444 = vpack.c.bf16 %v3304, %v3294
        %v4445 = vpack.c.bf16 %v3305, %v3295
        %v4446 = vpack.c.bf16 %v3306, %v3296
        %v4447 = vpack.c.bf16 %v3307, %v3297
        %v4448 = vpack.c.bf16 %v3308, %v3298
        %v4449 = vpack.c.bf16 %v3319, %v3309
        %v4450 = vpack.c.bf16 %v3320, %v3310
        %v4451 = vpack.c.bf16 %v3321, %v3311
        %v4452 = vpack.c.bf16 %v3322, %v3312
        %v4453 = vpack.c.bf16 %v3323, %v3313
        %v4454 = vpack.c.bf16 %v3324, %v3314
        %v4455 = vpack.c.bf16 %v3325, %v3315
        %v4456 = vpack.c.bf16 %v3326, %v3316
        %v4457 = vpack.c.bf16 %v3327, %v3317
        %v4458 = vpack.c.bf16 %v3328, %v3318
        %v4459 = vpack.c.bf16 %v3339, %v3329
        %v4460 = vpack.c.bf16 %v3340, %v3330
        %v4461 = vpack.c.bf16 %v3341, %v3331
        %v4462 = vpack.c.bf16 %v3342, %v3332
        %v4463 = vpack.c.bf16 %v3343, %v3333
        %v4464 = vpack.c.bf16 %v3344, %v3334
        %v4465 = vpack.c.bf16 %v3345, %v3335
        %v4466 = vpack.c.bf16 %v3346, %v3336
        %v4467 = vpack.c.bf16 %v3347, %v3337
        %v4468 = vpack.c.bf16 %v3348, %v3338
        %v4469 = vpack.c.bf16 %v3359, %v3349
        %v4470 = vpack.c.bf16 %v3360, %v3350
        %v4471 = vpack.c.bf16 %v3361, %v3351
        %v4472 = vpack.c.bf16 %v3362, %v3352
        %v4473 = vpack.c.bf16 %v3363, %v3353
        %v4474 = vpack.c.bf16 %v3364, %v3354
        %v4475 = vpack.c.bf16 %v3365, %v3355
        %v4476 = vpack.c.bf16 %v3366, %v3356
        %v4477 = vpack.c.bf16 %v3367, %v3357
        %v4478 = vpack.c.bf16 %v3368, %v3358
        %v4479 = vpack.c.bf16 %v3379, %v3369
        %v4480 = vpack.c.bf16 %v3380, %v3370
        %v4481 = vpack.c.bf16 %v3381, %v3371
        %v4482 = vpack.c.bf16 %v3382, %v3372
        %v4483 = vpack.c.bf16 %v3383, %v3373
        %v4484 = vpack.c.bf16 %v3384, %v3374
        %v4485 = vpack.c.bf16 %v3385, %v3375
        %v4486 = vpack.c.bf16 %v3386, %v3376
        %v4487 = vpack.c.bf16 %v3387, %v3377
        %v4488 = vpack.c.bf16 %v3388, %v3378
        %v4489 = vpack.c.bf16 %v3399, %v3389
        %v4490 = vpack.c.bf16 %v3400, %v3390
        %v4491 = vpack.c.bf16 %v3401, %v3391
        %v4492 = vpack.c.bf16 %v3402, %v3392
        %v4493 = vpack.c.bf16 %v3403, %v3393
        %v4494 = vpack.c.bf16 %v3404, %v3394
        %v4495 = vpack.c.bf16 %v3405, %v3395
        %v4496 = vpack.c.bf16 %v3406, %v3396
        %v4497 = vpack.c.bf16 %v3407, %v3397
        %v4498 = vpack.c.bf16 %v3408, %v3398
        %v4499 = vpack.c.bf16 %v3419, %v3409
        %v4500 = vpack.c.bf16 %v3420, %v3410
        %v4501 = vpack.c.bf16 %v3421, %v3411
        %v4502 = vpack.c.bf16 %v3422, %v3412
        %v4503 = vpack.c.bf16 %v3423, %v3413
        %v4504 = vpack.c.bf16 %v3424, %v3414
        %v4505 = vpack.c.bf16 %v3425, %v3415
        %v4506 = vpack.c.bf16 %v3426, %v3416
        %v4507 = vpack.c.bf16 %v3427, %v3417
        %v4508 = vpack.c.bf16 %v3428, %v3418
        %v4509 = vpack.c.bf16 %v3439, %v3429
        %v4510 = vpack.c.bf16 %v3440, %v3430
        %v4511 = vpack.c.bf16 %v3441, %v3431
        %v4512 = vpack.c.bf16 %v3442, %v3432
        %v4513 = vpack.c.bf16 %v3443, %v3433
        %v4514 = vpack.c.bf16 %v3444, %v3434
        %v4515 = vpack.c.bf16 %v3445, %v3435
        %v4516 = vpack.c.bf16 %v3446, %v3436
        %v4517 = vpack.c.bf16 %v3447, %v3437
        %v4518 = vpack.c.bf16 %v3448, %v3438
        %v4519 = vpack.c.bf16 %v3459, %v3449
        %v4520 = vpack.c.bf16 %v3460, %v3450
        %v4521 = vpack.c.bf16 %v3461, %v3451
        %v4522 = vpack.c.bf16 %v3462, %v3452
        %v4523 = vpack.c.bf16 %v3463, %v3453
        %v4524 = vpack.c.bf16 %v3464, %v3454
        %v4525 = vpack.c.bf16 %v3465, %v3455
        %v4526 = vpack.c.bf16 %v3466, %v3456
        %v4527 = vpack.c.bf16 %v3467, %v3457
        %v4528 = vpack.c.bf16 %v3468, %v3458
        %v4529 = vpack.c.bf16 %v3479, %v3469
        %v4530 = vpack.c.bf16 %v3480, %v3470
        %v4531 = vpack.c.bf16 %v3481, %v3471
        %v4532 = vpack.c.bf16 %v3482, %v3472
        %v4533 = vpack.c.bf16 %v3483, %v3473
        %v4534 = vpack.c.bf16 %v3484, %v3474
        %v4535 = vpack.c.bf16 %v3485, %v3475
        %v4536 = vpack.c.bf16 %v3486, %v3476
        %v4537 = vpack.c.bf16 %v3487, %v3477
        %v4538 = vpack.c.bf16 %v3488, %v3478
        %v4539 = vpack.c.bf16 %v3499, %v3489
        %v4540 = vpack.c.bf16 %v3500, %v3490
        %v4541 = vpack.c.bf16 %v3501, %v3491
        %v4542 = vpack.c.bf16 %v3502, %v3492
        %v4543 = vpack.c.bf16 %v3503, %v3493
        %v4544 = vpack.c.bf16 %v3504, %v3494
        %v4545 = vpack.c.bf16 %v3505, %v3495
        %v4546 = vpack.c.bf16 %v3506, %v3496
        %v4547 = vpack.c.bf16 %v3507, %v3497
        %v4548 = vpack.c.bf16 %v3508, %v3498
        %v4549 = vpack.c.bf16 %v3519, %v3509
        %v4550 = vpack.c.bf16 %v3520, %v3510
        %v4551 = vpack.c.bf16 %v3521, %v3511
        %v4552 = vpack.c.bf16 %v3522, %v3512
        %v4553 = vpack.c.bf16 %v3523, %v3513
        %v4554 = vpack.c.bf16 %v3524, %v3514
        %v4555 = vpack.c.bf16 %v3525, %v3515
        %v4556 = vpack.c.bf16 %v3526, %v3516
        %v4557 = vpack.c.bf16 %v3527, %v3517
        %v4558 = vpack.c.bf16 %v3528, %v3518
        %v4559 = vpack.c.bf16 %v3539, %v3529
        %v4560 = vpack.c.bf16 %v3540, %v3530
        %v4561 = vpack.c.bf16 %v3541, %v3531
        %v4562 = vpack.c.bf16 %v3542, %v3532
        %v4563 = vpack.c.bf16 %v3543, %v3533
        %v4564 = vpack.c.bf16 %v3544, %v3534
        %v4565 = vpack.c.bf16 %v3545, %v3535
        %v4566 = vpack.c.bf16 %v3546, %v3536
        %v4567 = vpack.c.bf16 %v3547, %v3537
        %v4568 = vpack.c.bf16 %v3548, %v3538
        %v4569 = vpack.c.bf16 %v3559, %v3549
        %v4570 = vpack.c.bf16 %v3560, %v3550
        %v4571 = vpack.c.bf16 %v3561, %v3551
        %v4572 = vpack.c.bf16 %v3562, %v3552
        %v4573 = vpack.c.bf16 %v3563, %v3553
        %v4574 = vpack.c.bf16 %v3564, %v3554
        %v4575 = vpack.c.bf16 %v3565, %v3555
        %v4576 = vpack.c.bf16 %v3566, %v3556
        %v4577 = vpack.c.bf16 %v3567, %v3557
        %v4578 = vpack.c.bf16 %v3568, %v3558
        %v4579 = vpack.c.bf16 %v3579, %v3569
        %v4580 = vpack.c.bf16 %v3580, %v3570
        %v4581 = vpack.c.bf16 %v3581, %v3571
        %v4582 = vpack.c.bf16 %v3582, %v3572
        %v4583 = vpack.c.bf16 %v3583, %v3573
        %v4584 = vpack.c.bf16 %v3584, %v3574
        %v4585 = vpack.c.bf16 %v3585, %v3575
        %v4586 = vpack.c.bf16 %v3586, %v3576
        %v4587 = vpack.c.bf16 %v3587, %v3577
        %v4588 = vpack.c.bf16 %v3588, %v3578
        %v4589 = vpack.c.bf16 %v3599, %v3589
        %v4590 = vpack.c.bf16 %v3600, %v3590
        %v4591 = vpack.c.bf16 %v3601, %v3591
        %v4592 = vpack.c.bf16 %v3602, %v3592
        %v4593 = vpack.c.bf16 %v3603, %v3593
        %v4594 = vpack.c.bf16 %v3604, %v3594
        %v4595 = vpack.c.bf16 %v3605, %v3595
        %v4596 = vpack.c.bf16 %v3606, %v3596
        %v4597 = vpack.c.bf16 %v3607, %v3597
        %v4598 = vpack.c.bf16 %v3608, %v3598
        %v4599 = vpack.c.bf16 %v3619, %v3609
        %v4600 = vpack.c.bf16 %v3620, %v3610
        %v4601 = vpack.c.bf16 %v3621, %v3611
        %v4602 = vpack.c.bf16 %v3622, %v3612
        %v4603 = vpack.c.bf16 %v3623, %v3613
        %v4604 = vpack.c.bf16 %v3624, %v3614
        %v4605 = vpack.c.bf16 %v3625, %v3615
        %v4606 = vpack.c.bf16 %v3626, %v3616
        %v4607 = vpack.c.bf16 %v3627, %v3617
        %v4608 = vpack.c.bf16 %v3628, %v3618
        %v4609 = vpack.c.bf16 %v3639, %v3629
        %v4610 = vpack.c.bf16 %v3640, %v3630
        %v4611 = vpack.c.bf16 %v3641, %v3631
        %v4612 = vpack.c.bf16 %v3642, %v3632
        %v4613 = vpack.c.bf16 %v3643, %v3633
        %v4614 = vpack.c.bf16 %v3644, %v3634
        %v4615 = vpack.c.bf16 %v3645, %v3635
        %v4616 = vpack.c.bf16 %v3646, %v3636
        %v4617 = vpack.c.bf16 %v3647, %v3637
        %v4618 = vpack.c.bf16 %v3648, %v3638
        %v4619 = vpack.c.bf16 %v3659, %v3649
        %v4620 = vpack.c.bf16 %v3660, %v3650
        %v4621 = vpack.c.bf16 %v3661, %v3651
        %v4622 = vpack.c.bf16 %v3662, %v3652
        %v4623 = vpack.c.bf16 %v3663, %v3653
        %v4624 = vpack.c.bf16 %v3664, %v3654
        %v4625 = vpack.c.bf16 %v3665, %v3655
        %v4626 = vpack.c.bf16 %v3666, %v3656
        %v4627 = vpack.c.bf16 %v3667, %v3657
        %v4628 = vpack.c.bf16 %v3668, %v3658
        %v4629 = vpack.c.bf16 %v3679, %v3669
        %v4630 = vpack.c.bf16 %v3680, %v3670
        %v4631 = vpack.c.bf16 %v3681, %v3671
        %v4632 = vpack.c.bf16 %v3682, %v3672
        %v4633 = vpack.c.bf16 %v3683, %v3673
        %v4634 = vpack.c.bf16 %v3684, %v3674
        %v4635 = vpack.c.bf16 %v3685, %v3675
        %v4636 = vpack.c.bf16 %v3686, %v3676
        %v4637 = vpack.c.bf16 %v3687, %v3677
        %v4638 = vpack.c.bf16 %v3688, %v3678
        %v4639 = vpack.c.bf16 %v3699, %v3689
        %v4640 = vpack.c.bf16 %v3700, %v3690
        %v4641 = vpack.c.bf16 %v3701, %v3691
        %v4642 = vpack.c.bf16 %v3702, %v3692
        %v4643 = vpack.c.bf16 %v3703, %v3693
        %v4644 = vpack.c.bf16 %v3704, %v3694
        %v4645 = vpack.c.bf16 %v3705, %v3695
        %v4646 = vpack.c.bf16 %v3706, %v3696
        %v4647 = vpack.c.bf16 %v3707, %v3697
        %v4648 = vpack.c.bf16 %v3708, %v3698
        %v4649 = vpack.c.bf16 %v3719, %v3709
        %v4650 = vpack.c.bf16 %v3720, %v3710
        %v4651 = vpack.c.bf16 %v3721, %v3711
        %v4652 = vpack.c.bf16 %v3722, %v3712
        %v4653 = vpack.c.bf16 %v3723, %v3713
        %v4654 = vpack.c.bf16 %v3724, %v3714
        %v4655 = vpack.c.bf16 %v3725, %v3715
        %v4656 = vpack.c.bf16 %v3726, %v3716
        %v4657 = vpack.c.bf16 %v3727, %v3717
        %v4658 = vpack.c.bf16 %v3728, %v3718
        %v4659 = vpack.c.bf16 %v3739, %v3729
        %v4660 = vpack.c.bf16 %v3740, %v3730
        %v4661 = vpack.c.bf16 %v3741, %v3731
        %v4662 = vpack.c.bf16 %v3742, %v3732
        %v4663 = vpack.c.bf16 %v3743, %v3733
        %v4664 = vpack.c.bf16 %v3744, %v3734
        %v4665 = vpack.c.bf16 %v3745, %v3735
        %v4666 = vpack.c.bf16 %v3746, %v3736
        %v4667 = vpack.c.bf16 %v3747, %v3737
        %v4668 = vpack.c.bf16 %v3748, %v3738
        %v4669 = vpack.c.bf16 %v3759, %v3749
        %v4670 = vpack.c.bf16 %v3760, %v3750
        %v4671 = vpack.c.bf16 %v3761, %v3751
        %v4672 = vpack.c.bf16 %v3762, %v3752
        %v4673 = vpack.c.bf16 %v3763, %v3753
        %v4674 = vpack.c.bf16 %v3764, %v3754
        %v4675 = vpack.c.bf16 %v3765, %v3755
        %v4676 = vpack.c.bf16 %v3766, %v3756
        %v4677 = vpack.c.bf16 %v3767, %v3757
        %v4678 = vpack.c.bf16 %v3768, %v3758
        %v4679 = vpack.c.bf16 %v3779, %v3769
        %v4680 = vpack.c.bf16 %v3780, %v3770
        %v4681 = vpack.c.bf16 %v3781, %v3771
        %v4682 = vpack.c.bf16 %v3782, %v3772
        %v4683 = vpack.c.bf16 %v3783, %v3773
        %v4684 = vpack.c.bf16 %v3784, %v3774
        %v4685 = vpack.c.bf16 %v3785, %v3775
        %v4686 = vpack.c.bf16 %v3786, %v3776
        %v4687 = vpack.c.bf16 %v3787, %v3777
        %v4688 = vpack.c.bf16 %v3788, %v3778
        %v4689 = vpack.c.bf16 %v3799, %v3789
        %v4690 = vpack.c.bf16 %v3800, %v3790
        %v4691 = vpack.c.bf16 %v3801, %v3791
        %v4692 = vpack.c.bf16 %v3802, %v3792
        %v4693 = vpack.c.bf16 %v3803, %v3793
        %v4694 = vpack.c.bf16 %v3804, %v3794
        %v4695 = vpack.c.bf16 %v3805, %v3795
        %v4696 = vpack.c.bf16 %v3806, %v3796
        %v4697 = vpack.c.bf16 %v3807, %v3797
        %v4698 = vpack.c.bf16 %v3808, %v3798
        %v4699 = vpack.c.bf16 %v3819, %v3809
        %v4700 = vpack.c.bf16 %v3820, %v3810
        %v4701 = vpack.c.bf16 %v3821, %v3811
        %v4702 = vpack.c.bf16 %v3822, %v3812
        %v4703 = vpack.c.bf16 %v3823, %v3813
        %v4704 = vpack.c.bf16 %v3824, %v3814
        %v4705 = vpack.c.bf16 %v3825, %v3815
        %v4706 = vpack.c.bf16 %v3826, %v3816
        %v4707 = vpack.c.bf16 %v3827, %v3817
        %v4708 = vpack.c.bf16 %v3828, %v3818
        %v4709 = vpack.c.bf16 %v3839, %v3829
        %v4710 = vpack.c.bf16 %v3840, %v3830
        %v4711 = vpack.c.bf16 %v3841, %v3831
        %v4712 = vpack.c.bf16 %v3842, %v3832
        %v4713 = vpack.c.bf16 %v3843, %v3833
        %v4714 = vpack.c.bf16 %v3844, %v3834
        %v4715 = vpack.c.bf16 %v3845, %v3835
        %v4716 = vpack.c.bf16 %v3846, %v3836
        %v4717 = vpack.c.bf16 %v3847, %v3837
        %v4718 = vpack.c.bf16 %v3848, %v3838
        %v4719 = vpack.c.bf16 %v3859, %v3849
        %v4720 = vpack.c.bf16 %v3860, %v3850
        %v4721 = vpack.c.bf16 %v3861, %v3851
        %v4722 = vpack.c.bf16 %v3862, %v3852
        %v4723 = vpack.c.bf16 %v3863, %v3853
        %v4724 = vpack.c.bf16 %v3864, %v3854
        %v4725 = vpack.c.bf16 %v3865, %v3855
        %v4726 = vpack.c.bf16 %v3866, %v3856
        %v4727 = vpack.c.bf16 %v3867, %v3857
        %v4728 = vpack.c.bf16 %v3868, %v3858
        %v4729 = vpack.c.bf16 %v3879, %v3869
        %v4730 = vpack.c.bf16 %v3880, %v3870
        %v4731 = vpack.c.bf16 %v3881, %v3871
        %v4732 = vpack.c.bf16 %v3882, %v3872
        %v4733 = vpack.c.bf16 %v3883, %v3873
        %v4734 = vpack.c.bf16 %v3884, %v3874
        %v4735 = vpack.c.bf16 %v3885, %v3875
        %v4736 = vpack.c.bf16 %v3886, %v3876
        %v4737 = vpack.c.bf16 %v3887, %v3877
        %v4738 = vpack.c.bf16 %v3888, %v3878
        %v4739 = vpack.c.bf16 %v3899, %v3889
        %v4740 = vpack.c.bf16 %v3900, %v3890
        %v4741 = vpack.c.bf16 %v3901, %v3891
        %v4742 = vpack.c.bf16 %v3902, %v3892
        %v4743 = vpack.c.bf16 %v3903, %v3893
        %v4744 = vpack.c.bf16 %v3904, %v3894
        %v4745 = vpack.c.bf16 %v3905, %v3895
        %v4746 = vpack.c.bf16 %v3906, %v3896
        %v4747 = vpack.c.bf16 %v3907, %v3897
        %v4748 = vpack.c.bf16 %v3908, %v3898
        %v4749 = vpack.c.bf16 %v3919, %v3909
        %v4750 = vpack.c.bf16 %v3920, %v3910
        %v4751 = vpack.c.bf16 %v3921, %v3911
        %v4752 = vpack.c.bf16 %v3922, %v3912
        %v4753 = vpack.c.bf16 %v3923, %v3913
        %v4754 = vpack.c.bf16 %v3924, %v3914
        %v4755 = vpack.c.bf16 %v3925, %v3915
        %v4756 = vpack.c.bf16 %v3926, %v3916
        %v4757 = vpack.c.bf16 %v3927, %v3917
        %v4758 = vpack.c.bf16 %v3928, %v3918
        %v4759 = vpack.c.bf16 %v3939, %v3929
        %v4760 = vpack.c.bf16 %v3940, %v3930
        %v4761 = vpack.c.bf16 %v3941, %v3931
        %v4762 = vpack.c.bf16 %v3942, %v3932
        %v4763 = vpack.c.bf16 %v3943, %v3933
        %v4764 = vpack.c.bf16 %v3944, %v3934
        %v4765 = vpack.c.bf16 %v3945, %v3935
        %v4766 = vpack.c.bf16 %v3946, %v3936
        %v4767 = vpack.c.bf16 %v3947, %v3937
        %v4768 = vpack.c.bf16 %v3948, %v3938
        %v4769 = vpack.c.bf16 %v3959, %v3949
        %v4770 = vpack.c.bf16 %v3960, %v3950
        %v4771 = vpack.c.bf16 %v3961, %v3951
        %v4772 = vpack.c.bf16 %v3962, %v3952
        %v4773 = vpack.c.bf16 %v3963, %v3953
        %v4774 = vpack.c.bf16 %v3964, %v3954
        %v4775 = vpack.c.bf16 %v3965, %v3955
        %v4776 = vpack.c.bf16 %v3966, %v3956
        %v4777 = vpack.c.bf16 %v3967, %v3957
        %v4778 = vpack.c.bf16 %v3968, %v3958
        %v4779 = vpack.c.bf16 %v3979, %v3969
        %v4780 = vpack.c.bf16 %v3980, %v3970
        %v4781 = vpack.c.bf16 %v3981, %v3971
        %v4782 = vpack.c.bf16 %v3982, %v3972
        %v4783 = vpack.c.bf16 %v3983, %v3973
        %v4784 = vpack.c.bf16 %v3984, %v3974
        %v4785 = vpack.c.bf16 %v3985, %v3975
        %v4786 = vpack.c.bf16 %v3986, %v3976
        %v4787 = vpack.c.bf16 %v3987, %v3977
        %v4788 = vpack.c.bf16 %v3988, %v3978
        %4789 = vmatpush.bf16.msra.mxu0 %v4059
        %4790 = vmatpush.bf16.msra.mxu0 %v4049
        %4791 = vmatpush.bf16.msra.mxu0 %v4039
        %4792 = vmatpush.bf16.msra.mxu0 %v4029
        %4793 = vmatpush.bf16.msra.mxu0 %v4019
        %4794 = vmatpush.bf16.msra.mxu0 %v4009
        %4795 = vmatpush.bf16.msra.mxu0 %v3999
        %4796 = vmatpush.bf16.msra.mxu0 %v3989
        %4797 = vmatmul.bf16.gmra.mxu0 %v379
        %v4798 = vpop.f32.mrf.mxu0
        %v4799 = vadd.f32 0.0, %v4798
        %v4800 = vpop.f32.mrf.mxu0
        %4801 = vdwg.mxu0
        %4802 = vmatpush.bf16.msra.mxu0 %v4139
        %4803 = vmatpush.bf16.msra.mxu0 %v4129
        %4804 = vmatpush.bf16.msra.mxu0 %v4119
        %4805 = vmatpush.bf16.msra.mxu0 %v4109
        %4806 = vmatpush.bf16.msra.mxu0 %v4099
        %4807 = vmatpush.bf16.msra.mxu0 %v4089
        %4808 = vmatpush.bf16.msra.mxu0 %v4079
        %4809 = vmatpush.bf16.msra.mxu0 %v4069
        %4810 = vmatmul.bf16.gmra.mxu0 %v380
        %v4811 = vpop.f32.mrf.mxu0
        %v4812 = vadd.f32 %v4799, %v4811
        %v4813 = vpop.f32.mrf.mxu0
        %4814 = vdwg.mxu0
        %4815 = vmatpush.bf16.msra.mxu0 %v4219
        %4816 = vmatpush.bf16.msra.mxu0 %v4209
        %4817 = vmatpush.bf16.msra.mxu0 %v4199
        %4818 = vmatpush.bf16.msra.mxu0 %v4189
        %4819 = vmatpush.bf16.msra.mxu0 %v4179
        %4820 = vmatpush.bf16.msra.mxu0 %v4169
        %4821 = vmatpush.bf16.msra.mxu0 %v4159
        %4822 = vmatpush.bf16.msra.mxu0 %v4149
        %4823 = vmatmul.bf16.gmra.mxu0 %v381
        %v4824 = vpop.f32.mrf.mxu0
        %v4825 = vadd.f32 %v4812, %v4824
        %v4826 = vpop.f32.mrf.mxu0
        %4827 = vdwg.mxu0
        %4828 = vmatpush.bf16.msra.mxu0 %v4299
        %4829 = vmatpush.bf16.msra.mxu0 %v4289
        %4830 = vmatpush.bf16.msra.mxu0 %v4279
        %4831 = vmatpush.bf16.msra.mxu0 %v4269
        %4832 = vmatpush.bf16.msra.mxu0 %v4259
        %4833 = vmatpush.bf16.msra.mxu0 %v4249
        %4834 = vmatpush.bf16.msra.mxu0 %v4239
        %4835 = vmatpush.bf16.msra.mxu0 %v4229
        %4836 = vmatmul.bf16.gmra.mxu0 %v382
        %v4837 = vpop.f32.mrf.mxu0
        %v4838 = vadd.f32 %v4825, %v4837
        %v4839 = vpop.f32.mrf.mxu0
        %4840 = vdwg.mxu0
        %4841 = vmatpush.bf16.msra.mxu0 %v4379
        %4842 = vmatpush.bf16.msra.mxu0 %v4369
        %4843 = vmatpush.bf16.msra.mxu0 %v4359
        %4844 = vmatpush.bf16.msra.mxu0 %v4349
        %4845 = vmatpush.bf16.msra.mxu0 %v4339
        %4846 = vmatpush.bf16.msra.mxu0 %v4329
        %4847 = vmatpush.bf16.msra.mxu0 %v4319
        %4848 = vmatpush.bf16.msra.mxu0 %v4309
        %4849 = vmatmul.bf16.gmra.mxu0 %v383
        %v4850 = vpop.f32.mrf.mxu0
        %v4851 = vadd.f32 %v4838, %v4850
        %v4852 = vpop.f32.mrf.mxu0
        %4853 = vdwg.mxu0
        %4854 = vmatpush.bf16.msra.mxu0 %v4459
        %4855 = vmatpush.bf16.msra.mxu0 %v4449
        %4856 = vmatpush.bf16.msra.mxu0 %v4439
        %4857 = vmatpush.bf16.msra.mxu0 %v4429
        %4858 = vmatpush.bf16.msra.mxu0 %v4419
        %4859 = vmatpush.bf16.msra.mxu0 %v4409
        %4860 = vmatpush.bf16.msra.mxu0 %v4399
        %4861 = vmatpush.bf16.msra.mxu0 %v4389
        %4862 = vmatmul.bf16.gmra.mxu0 %v384
        %v4863 = vpop.f32.mrf.mxu0
        %v4864 = vadd.f32 %v4851, %v4863
        %v4865 = vpop.f32.mrf.mxu0
        %4866 = vdwg.mxu0
        %4867 = vmatpush.bf16.msra.mxu0 %v4539
        %4868 = vmatpush.bf16.msra.mxu0 %v4529
        %4869 = vmatpush.bf16.msra.mxu0 %v4519
        %4870 = vmatpush.bf16.msra.mxu0 %v4509
        %4871 = vmatpush.bf16.msra.mxu0 %v4499
        %4872 = vmatpush.bf16.msra.mxu0 %v4489
        %4873 = vmatpush.bf16.msra.mxu0 %v4479
        %4874 = vmatpush.bf16.msra.mxu0 %v4469
        %4875 = vmatmul.bf16.gmra.mxu0 %v385
        %v4876 = vpop.f32.mrf.mxu0
        %v4877 = vadd.f32 %v4864, %v4876
        %v4878 = vpop.f32.mrf.mxu0
        %4879 = vdwg.mxu0
        %4880 = vmatpush.bf16.msra.mxu0 %v4619
        %4881 = vmatpush.bf16.msra.mxu0 %v4609
        %4882 = vmatpush.bf16.msra.mxu0 %v4599
        %4883 = vmatpush.bf16.msra.mxu0 %v4589
        %4884 = vmatpush.bf16.msra.mxu0 %v4579
        %4885 = vmatpush.bf16.msra.mxu0 %v4569
        %4886 = vmatpush.bf16.msra.mxu0 %v4559
        %4887 = vmatpush.bf16.msra.mxu0 %v4549
        %4888 = vmatmul.bf16.gmra.mxu0 %v386
        %v4889 = vpop.f32.mrf.mxu0
        %v4890 = vadd.f32 %v4877, %v4889
        %v4891 = vpop.f32.mrf.mxu0
        %4892 = vdwg.mxu0
        %4893 = vmatpush.bf16.msra.mxu0 %v4699
        %4894 = vmatpush.bf16.msra.mxu0 %v4689
        %4895 = vmatpush.bf16.msra.mxu0 %v4679
        %4896 = vmatpush.bf16.msra.mxu0 %v4669
        %4897 = vmatpush.bf16.msra.mxu0 %v4659
        %4898 = vmatpush.bf16.msra.mxu0 %v4649
        %4899 = vmatpush.bf16.msra.mxu0 %v4639
        %4900 = vmatpush.bf16.msra.mxu0 %v4629
        %4901 = vmatmul.bf16.gmra.mxu0 %v387
        %v4902 = vpop.f32.mrf.mxu0
        %v4903 = vadd.f32 %v4890, %v4902
        %v4904 = vpop.f32.mrf.mxu0
        %4905 = vdwg.mxu0
        %4906 = vmatpush.bf16.msra.mxu0 %v4779
        %4907 = vmatpush.bf16.msra.mxu0 %v4769
        %4908 = vmatpush.bf16.msra.mxu0 %v4759
        %4909 = vmatpush.bf16.msra.mxu0 %v4749
        %4910 = vmatpush.bf16.msra.mxu0 %v4739
        %4911 = vmatpush.bf16.msra.mxu0 %v4729
        %4912 = vmatpush.bf16.msra.mxu0 %v4719
        %4913 = vmatpush.bf16.msra.mxu0 %v4709
        %4914 = vmatmul.bf16.gmra.mxu0 %v388
        %v4915 = vpop.f32.mrf.mxu0
        %v4916 = vadd.f32 %v4903, %v4915
        %v4917 = vpop.f32.mrf.mxu0
        %4918 = vdwg.mxu0
        %4919 = vmatpush.bf16.msra.mxu0 %v4060
        %4920 = vmatpush.bf16.msra.mxu0 %v4050
        %4921 = vmatpush.bf16.msra.mxu0 %v4040
        %4922 = vmatpush.bf16.msra.mxu0 %v4030
        %4923 = vmatpush.bf16.msra.mxu0 %v4020
        %4924 = vmatpush.bf16.msra.mxu0 %v4010
        %4925 = vmatpush.bf16.msra.mxu0 %v4000
        %4926 = vmatpush.bf16.msra.mxu0 %v3990
        %4927 = vmatmul.bf16.gmra.mxu0 %v379
        %v4928 = vpop.f32.mrf.mxu0
        %v4929 = vadd.f32 0.0, %v4928
        %v4930 = vpop.f32.mrf.mxu0
        %4931 = vdwg.mxu0
        %4932 = vmatpush.bf16.msra.mxu0 %v4140
        %4933 = vmatpush.bf16.msra.mxu0 %v4130
        %4934 = vmatpush.bf16.msra.mxu0 %v4120
        %4935 = vmatpush.bf16.msra.mxu0 %v4110
        %4936 = vmatpush.bf16.msra.mxu0 %v4100
        %4937 = vmatpush.bf16.msra.mxu0 %v4090
        %4938 = vmatpush.bf16.msra.mxu0 %v4080
        %4939 = vmatpush.bf16.msra.mxu0 %v4070
        %4940 = vmatmul.bf16.gmra.mxu0 %v380
        %v4941 = vpop.f32.mrf.mxu0
        %v4942 = vadd.f32 %v4929, %v4941
        %v4943 = vpop.f32.mrf.mxu0
        %4944 = vdwg.mxu0
        %4945 = vmatpush.bf16.msra.mxu0 %v4220
        %4946 = vmatpush.bf16.msra.mxu0 %v4210
        %4947 = vmatpush.bf16.msra.mxu0 %v4200
        %4948 = vmatpush.bf16.msra.mxu0 %v4190
        %4949 = vmatpush.bf16.msra.mxu0 %v4180
        %4950 = vmatpush.bf16.msra.mxu0 %v4170
        %4951 = vmatpush.bf16.msra.mxu0 %v4160
        %4952 = vmatpush.bf16.msra.mxu0 %v4150
        %4953 = vmatmul.bf16.gmra.mxu0 %v381
        %v4954 = vpop.f32.mrf.mxu0
        %v4955 = vadd.f32 %v4942, %v4954
        %v4956 = vpop.f32.mrf.mxu0
        %4957 = vdwg.mxu0
        %4958 = vmatpush.bf16.msra.mxu0 %v4300
        %4959 = vmatpush.bf16.msra.mxu0 %v4290
        %4960 = vmatpush.bf16.msra.mxu0 %v4280
        %4961 = vmatpush.bf16.msra.mxu0 %v4270
        %4962 = vmatpush.bf16.msra.mxu0 %v4260
        %4963 = vmatpush.bf16.msra.mxu0 %v4250
        %4964 = vmatpush.bf16.msra.mxu0 %v4240
        %4965 = vmatpush.bf16.msra.mxu0 %v4230
        %4966 = vmatmul.bf16.gmra.mxu0 %v382
        %v4967 = vpop.f32.mrf.mxu0
        %v4968 = vadd.f32 %v4955, %v4967
        %v4969 = vpop.f32.mrf.mxu0
        %4970 = vdwg.mxu0
        %4971 = vmatpush.bf16.msra.mxu0 %v4380
        %4972 = vmatpush.bf16.msra.mxu0 %v4370
        %4973 = vmatpush.bf16.msra.mxu0 %v4360
        %4974 = vmatpush.bf16.msra.mxu0 %v4350
        %4975 = vmatpush.bf16.msra.mxu0 %v4340
        %4976 = vmatpush.bf16.msra.mxu0 %v4330
        %4977 = vmatpush.bf16.msra.mxu0 %v4320
        %4978 = vmatpush.bf16.msra.mxu0 %v4310
        %4979 = vmatmul.bf16.gmra.mxu0 %v383
        %v4980 = vpop.f32.mrf.mxu0
        %v4981 = vadd.f32 %v4968, %v4980
        %v4982 = vpop.f32.mrf.mxu0
        %4983 = vdwg.mxu0
        %4984 = vmatpush.bf16.msra.mxu0 %v4460
        %4985 = vmatpush.bf16.msra.mxu0 %v4450
        %4986 = vmatpush.bf16.msra.mxu0 %v4440
        %4987 = vmatpush.bf16.msra.mxu0 %v4430
        %4988 = vmatpush.bf16.msra.mxu0 %v4420
        %4989 = vmatpush.bf16.msra.mxu0 %v4410
        %4990 = vmatpush.bf16.msra.mxu0 %v4400
        %4991 = vmatpush.bf16.msra.mxu0 %v4390
        %4992 = vmatmul.bf16.gmra.mxu0 %v384
        %v4993 = vpop.f32.mrf.mxu0
        %v4994 = vadd.f32 %v4981, %v4993
        %v4995 = vpop.f32.mrf.mxu0
        %4996 = vdwg.mxu0
        %4997 = vmatpush.bf16.msra.mxu0 %v4540
        %4998 = vmatpush.bf16.msra.mxu0 %v4530
        %4999 = vmatpush.bf16.msra.mxu0 %v4520
        %5000 = vmatpush.bf16.msra.mxu0 %v4510
        %5001 = vmatpush.bf16.msra.mxu0 %v4500
        %5002 = vmatpush.bf16.msra.mxu0 %v4490
        %5003 = vmatpush.bf16.msra.mxu0 %v4480
        %5004 = vmatpush.bf16.msra.mxu0 %v4470
        %5005 = vmatmul.bf16.gmra.mxu0 %v385
        %v5006 = vpop.f32.mrf.mxu0
        %v5007 = vadd.f32 %v4994, %v5006
        %v5008 = vpop.f32.mrf.mxu0
        %5009 = vdwg.mxu0
        %5010 = vmatpush.bf16.msra.mxu0 %v4620
        %5011 = vmatpush.bf16.msra.mxu0 %v4610
        %5012 = vmatpush.bf16.msra.mxu0 %v4600
        %5013 = vmatpush.bf16.msra.mxu0 %v4590
        %5014 = vmatpush.bf16.msra.mxu0 %v4580
        %5015 = vmatpush.bf16.msra.mxu0 %v4570
        %5016 = vmatpush.bf16.msra.mxu0 %v4560
        %5017 = vmatpush.bf16.msra.mxu0 %v4550
        %5018 = vmatmul.bf16.gmra.mxu0 %v386
        %v5019 = vpop.f32.mrf.mxu0
        %v5020 = vadd.f32 %v5007, %v5019
        %v5021 = vpop.f32.mrf.mxu0
        %5022 = vdwg.mxu0
        %5023 = vmatpush.bf16.msra.mxu0 %v4700
        %5024 = vmatpush.bf16.msra.mxu0 %v4690
        %5025 = vmatpush.bf16.msra.mxu0 %v4680
        %5026 = vmatpush.bf16.msra.mxu0 %v4670
        %5027 = vmatpush.bf16.msra.mxu0 %v4660
        %5028 = vmatpush.bf16.msra.mxu0 %v4650
        %5029 = vmatpush.bf16.msra.mxu0 %v4640
        %5030 = vmatpush.bf16.msra.mxu0 %v4630
        %5031 = vmatmul.bf16.gmra.mxu0 %v387
        %v5032 = vpop.f32.mrf.mxu0
        %v5033 = vadd.f32 %v5020, %v5032
        %v5034 = vpop.f32.mrf.mxu0
        %5035 = vdwg.mxu0
        %5036 = vmatpush.bf16.msra.mxu0 %v4780
        %5037 = vmatpush.bf16.msra.mxu0 %v4770
        %5038 = vmatpush.bf16.msra.mxu0 %v4760
        %5039 = vmatpush.bf16.msra.mxu0 %v4750
        %5040 = vmatpush.bf16.msra.mxu0 %v4740
        %5041 = vmatpush.bf16.msra.mxu0 %v4730
        %5042 = vmatpush.bf16.msra.mxu0 %v4720
        %5043 = vmatpush.bf16.msra.mxu0 %v4710
        %5044 = vmatmul.bf16.gmra.mxu0 %v388
        %v5045 = vpop.f32.mrf.mxu0
        %v5046 = vadd.f32 %v5033, %v5045
        %v5047 = vpop.f32.mrf.mxu0
        %5048 = vdwg.mxu0
        %5049 = vmatpush.bf16.msra.mxu0 %v4061
        %5050 = vmatpush.bf16.msra.mxu0 %v4051
        %5051 = vmatpush.bf16.msra.mxu0 %v4041
        %5052 = vmatpush.bf16.msra.mxu0 %v4031
        %5053 = vmatpush.bf16.msra.mxu0 %v4021
        %5054 = vmatpush.bf16.msra.mxu0 %v4011
        %5055 = vmatpush.bf16.msra.mxu0 %v4001
        %5056 = vmatpush.bf16.msra.mxu0 %v3991
        %5057 = vmatmul.bf16.gmra.mxu0 %v379
        %v5058 = vpop.f32.mrf.mxu0
        %v5059 = vadd.f32 0.0, %v5058
        %v5060 = vpop.f32.mrf.mxu0
        %5061 = vdwg.mxu0
        %5062 = vmatpush.bf16.msra.mxu0 %v4141
        %5063 = vmatpush.bf16.msra.mxu0 %v4131
        %5064 = vmatpush.bf16.msra.mxu0 %v4121
        %5065 = vmatpush.bf16.msra.mxu0 %v4111
        %5066 = vmatpush.bf16.msra.mxu0 %v4101
        %5067 = vmatpush.bf16.msra.mxu0 %v4091
        %5068 = vmatpush.bf16.msra.mxu0 %v4081
        %5069 = vmatpush.bf16.msra.mxu0 %v4071
        %5070 = vmatmul.bf16.gmra.mxu0 %v380
        %v5071 = vpop.f32.mrf.mxu0
        %v5072 = vadd.f32 %v5059, %v5071
        %v5073 = vpop.f32.mrf.mxu0
        %5074 = vdwg.mxu0
        %5075 = vmatpush.bf16.msra.mxu0 %v4221
        %5076 = vmatpush.bf16.msra.mxu0 %v4211
        %5077 = vmatpush.bf16.msra.mxu0 %v4201
        %5078 = vmatpush.bf16.msra.mxu0 %v4191
        %5079 = vmatpush.bf16.msra.mxu0 %v4181
        %5080 = vmatpush.bf16.msra.mxu0 %v4171
        %5081 = vmatpush.bf16.msra.mxu0 %v4161
        %5082 = vmatpush.bf16.msra.mxu0 %v4151
        %5083 = vmatmul.bf16.gmra.mxu0 %v381
        %v5084 = vpop.f32.mrf.mxu0
        %v5085 = vadd.f32 %v5072, %v5084
        %v5086 = vpop.f32.mrf.mxu0
        %5087 = vdwg.mxu0
        %5088 = vmatpush.bf16.msra.mxu0 %v4301
        %5089 = vmatpush.bf16.msra.mxu0 %v4291
        %5090 = vmatpush.bf16.msra.mxu0 %v4281
        %5091 = vmatpush.bf16.msra.mxu0 %v4271
        %5092 = vmatpush.bf16.msra.mxu0 %v4261
        %5093 = vmatpush.bf16.msra.mxu0 %v4251
        %5094 = vmatpush.bf16.msra.mxu0 %v4241
        %5095 = vmatpush.bf16.msra.mxu0 %v4231
        %5096 = vmatmul.bf16.gmra.mxu0 %v382
        %v5097 = vpop.f32.mrf.mxu0
        %v5098 = vadd.f32 %v5085, %v5097
        %v5099 = vpop.f32.mrf.mxu0
        %5100 = vdwg.mxu0
        %5101 = vmatpush.bf16.msra.mxu0 %v4381
        %5102 = vmatpush.bf16.msra.mxu0 %v4371
        %5103 = vmatpush.bf16.msra.mxu0 %v4361
        %5104 = vmatpush.bf16.msra.mxu0 %v4351
        %5105 = vmatpush.bf16.msra.mxu0 %v4341
        %5106 = vmatpush.bf16.msra.mxu0 %v4331
        %5107 = vmatpush.bf16.msra.mxu0 %v4321
        %5108 = vmatpush.bf16.msra.mxu0 %v4311
        %5109 = vmatmul.bf16.gmra.mxu0 %v383
        %v5110 = vpop.f32.mrf.mxu0
        %v5111 = vadd.f32 %v5098, %v5110
        %v5112 = vpop.f32.mrf.mxu0
        %5113 = vdwg.mxu0
        %5114 = vmatpush.bf16.msra.mxu0 %v4461
        %5115 = vmatpush.bf16.msra.mxu0 %v4451
        %5116 = vmatpush.bf16.msra.mxu0 %v4441
        %5117 = vmatpush.bf16.msra.mxu0 %v4431
        %5118 = vmatpush.bf16.msra.mxu0 %v4421
        %5119 = vmatpush.bf16.msra.mxu0 %v4411
        %5120 = vmatpush.bf16.msra.mxu0 %v4401
        %5121 = vmatpush.bf16.msra.mxu0 %v4391
        %5122 = vmatmul.bf16.gmra.mxu0 %v384
        %v5123 = vpop.f32.mrf.mxu0
        %v5124 = vadd.f32 %v5111, %v5123
        %v5125 = vpop.f32.mrf.mxu0
        %5126 = vdwg.mxu0
        %5127 = vmatpush.bf16.msra.mxu0 %v4541
        %5128 = vmatpush.bf16.msra.mxu0 %v4531
        %5129 = vmatpush.bf16.msra.mxu0 %v4521
        %5130 = vmatpush.bf16.msra.mxu0 %v4511
        %5131 = vmatpush.bf16.msra.mxu0 %v4501
        %5132 = vmatpush.bf16.msra.mxu0 %v4491
        %5133 = vmatpush.bf16.msra.mxu0 %v4481
        %5134 = vmatpush.bf16.msra.mxu0 %v4471
        %5135 = vmatmul.bf16.gmra.mxu0 %v385
        %v5136 = vpop.f32.mrf.mxu0
        %v5137 = vadd.f32 %v5124, %v5136
        %v5138 = vpop.f32.mrf.mxu0
        %5139 = vdwg.mxu0
        %5140 = vmatpush.bf16.msra.mxu0 %v4621
        %5141 = vmatpush.bf16.msra.mxu0 %v4611
        %5142 = vmatpush.bf16.msra.mxu0 %v4601
        %5143 = vmatpush.bf16.msra.mxu0 %v4591
        %5144 = vmatpush.bf16.msra.mxu0 %v4581
        %5145 = vmatpush.bf16.msra.mxu0 %v4571
        %5146 = vmatpush.bf16.msra.mxu0 %v4561
        %5147 = vmatpush.bf16.msra.mxu0 %v4551
        %5148 = vmatmul.bf16.gmra.mxu0 %v386
        %v5149 = vpop.f32.mrf.mxu0
        %v5150 = vadd.f32 %v5137, %v5149
        %v5151 = vpop.f32.mrf.mxu0
        %5152 = vdwg.mxu0
        %5153 = vmatpush.bf16.msra.mxu0 %v4701
        %5154 = vmatpush.bf16.msra.mxu0 %v4691
        %5155 = vmatpush.bf16.msra.mxu0 %v4681
        %5156 = vmatpush.bf16.msra.mxu0 %v4671
        %5157 = vmatpush.bf16.msra.mxu0 %v4661
        %5158 = vmatpush.bf16.msra.mxu0 %v4651
        %5159 = vmatpush.bf16.msra.mxu0 %v4641
        %5160 = vmatpush.bf16.msra.mxu0 %v4631
        %5161 = vmatmul.bf16.gmra.mxu0 %v387
        %v5162 = vpop.f32.mrf.mxu0
        %v5163 = vadd.f32 %v5150, %v5162
        %v5164 = vpop.f32.mrf.mxu0
        %5165 = vdwg.mxu0
        %5166 = vmatpush.bf16.msra.mxu0 %v4781
        %5167 = vmatpush.bf16.msra.mxu0 %v4771
        %5168 = vmatpush.bf16.msra.mxu0 %v4761
        %5169 = vmatpush.bf16.msra.mxu0 %v4751
        %5170 = vmatpush.bf16.msra.mxu0 %v4741
        %5171 = vmatpush.bf16.msra.mxu0 %v4731
        %5172 = vmatpush.bf16.msra.mxu0 %v4721
        %5173 = vmatpush.bf16.msra.mxu0 %v4711
        %5174 = vmatmul.bf16.gmra.mxu0 %v388
        %v5175 = vpop.f32.mrf.mxu0
        %v5176 = vadd.f32 %v5163, %v5175
        %v5177 = vpop.f32.mrf.mxu0
        %5178 = vdwg.mxu0
        %5179 = vmatpush.bf16.msra.mxu0 %v4062
        %5180 = vmatpush.bf16.msra.mxu0 %v4052
        %5181 = vmatpush.bf16.msra.mxu0 %v4042
        %5182 = vmatpush.bf16.msra.mxu0 %v4032
        %5183 = vmatpush.bf16.msra.mxu0 %v4022
        %5184 = vmatpush.bf16.msra.mxu0 %v4012
        %5185 = vmatpush.bf16.msra.mxu0 %v4002
        %5186 = vmatpush.bf16.msra.mxu0 %v3992
        %5187 = vmatmul.bf16.gmra.mxu0 %v379
        %v5188 = vpop.f32.mrf.mxu0
        %v5189 = vadd.f32 0.0, %v5188
        %v5190 = vpop.f32.mrf.mxu0
        %5191 = vdwg.mxu0
        %5192 = vmatpush.bf16.msra.mxu0 %v4142
        %5193 = vmatpush.bf16.msra.mxu0 %v4132
        %5194 = vmatpush.bf16.msra.mxu0 %v4122
        %5195 = vmatpush.bf16.msra.mxu0 %v4112
        %5196 = vmatpush.bf16.msra.mxu0 %v4102
        %5197 = vmatpush.bf16.msra.mxu0 %v4092
        %5198 = vmatpush.bf16.msra.mxu0 %v4082
        %5199 = vmatpush.bf16.msra.mxu0 %v4072
        %5200 = vmatmul.bf16.gmra.mxu0 %v380
        %v5201 = vpop.f32.mrf.mxu0
        %v5202 = vadd.f32 %v5189, %v5201
        %v5203 = vpop.f32.mrf.mxu0
        %5204 = vdwg.mxu0
        %5205 = vmatpush.bf16.msra.mxu0 %v4222
        %5206 = vmatpush.bf16.msra.mxu0 %v4212
        %5207 = vmatpush.bf16.msra.mxu0 %v4202
        %5208 = vmatpush.bf16.msra.mxu0 %v4192
        %5209 = vmatpush.bf16.msra.mxu0 %v4182
        %5210 = vmatpush.bf16.msra.mxu0 %v4172
        %5211 = vmatpush.bf16.msra.mxu0 %v4162
        %5212 = vmatpush.bf16.msra.mxu0 %v4152
        %5213 = vmatmul.bf16.gmra.mxu0 %v381
        %v5214 = vpop.f32.mrf.mxu0
        %v5215 = vadd.f32 %v5202, %v5214
        %v5216 = vpop.f32.mrf.mxu0
        %5217 = vdwg.mxu0
        %5218 = vmatpush.bf16.msra.mxu0 %v4302
        %5219 = vmatpush.bf16.msra.mxu0 %v4292
        %5220 = vmatpush.bf16.msra.mxu0 %v4282
        %5221 = vmatpush.bf16.msra.mxu0 %v4272
        %5222 = vmatpush.bf16.msra.mxu0 %v4262
        %5223 = vmatpush.bf16.msra.mxu0 %v4252
        %5224 = vmatpush.bf16.msra.mxu0 %v4242
        %5225 = vmatpush.bf16.msra.mxu0 %v4232
        %5226 = vmatmul.bf16.gmra.mxu0 %v382
        %v5227 = vpop.f32.mrf.mxu0
        %v5228 = vadd.f32 %v5215, %v5227
        %v5229 = vpop.f32.mrf.mxu0
        %5230 = vdwg.mxu0
        %5231 = vmatpush.bf16.msra.mxu0 %v4382
        %5232 = vmatpush.bf16.msra.mxu0 %v4372
        %5233 = vmatpush.bf16.msra.mxu0 %v4362
        %5234 = vmatpush.bf16.msra.mxu0 %v4352
        %5235 = vmatpush.bf16.msra.mxu0 %v4342
        %5236 = vmatpush.bf16.msra.mxu0 %v4332
        %5237 = vmatpush.bf16.msra.mxu0 %v4322
        %5238 = vmatpush.bf16.msra.mxu0 %v4312
        %5239 = vmatmul.bf16.gmra.mxu0 %v383
        %v5240 = vpop.f32.mrf.mxu0
        %v5241 = vadd.f32 %v5228, %v5240
        %v5242 = vpop.f32.mrf.mxu0
        %5243 = vdwg.mxu0
        %5244 = vmatpush.bf16.msra.mxu0 %v4462
        %5245 = vmatpush.bf16.msra.mxu0 %v4452
        %5246 = vmatpush.bf16.msra.mxu0 %v4442
        %5247 = vmatpush.bf16.msra.mxu0 %v4432
        %5248 = vmatpush.bf16.msra.mxu0 %v4422
        %5249 = vmatpush.bf16.msra.mxu0 %v4412
        %5250 = vmatpush.bf16.msra.mxu0 %v4402
        %5251 = vmatpush.bf16.msra.mxu0 %v4392
        %5252 = vmatmul.bf16.gmra.mxu0 %v384
        %v5253 = vpop.f32.mrf.mxu0
        %v5254 = vadd.f32 %v5241, %v5253
        %v5255 = vpop.f32.mrf.mxu0
        %5256 = vdwg.mxu0
        %5257 = vmatpush.bf16.msra.mxu0 %v4542
        %5258 = vmatpush.bf16.msra.mxu0 %v4532
        %5259 = vmatpush.bf16.msra.mxu0 %v4522
        %5260 = vmatpush.bf16.msra.mxu0 %v4512
        %5261 = vmatpush.bf16.msra.mxu0 %v4502
        %5262 = vmatpush.bf16.msra.mxu0 %v4492
        %5263 = vmatpush.bf16.msra.mxu0 %v4482
        %5264 = vmatpush.bf16.msra.mxu0 %v4472
        %5265 = vmatmul.bf16.gmra.mxu0 %v385
        %v5266 = vpop.f32.mrf.mxu0
        %v5267 = vadd.f32 %v5254, %v5266
        %v5268 = vpop.f32.mrf.mxu0
        %5269 = vdwg.mxu0
        %5270 = vmatpush.bf16.msra.mxu0 %v4622
        %5271 = vmatpush.bf16.msra.mxu0 %v4612
        %5272 = vmatpush.bf16.msra.mxu0 %v4602
        %5273 = vmatpush.bf16.msra.mxu0 %v4592
        %5274 = vmatpush.bf16.msra.mxu0 %v4582
        %5275 = vmatpush.bf16.msra.mxu0 %v4572
        %5276 = vmatpush.bf16.msra.mxu0 %v4562
        %5277 = vmatpush.bf16.msra.mxu0 %v4552
        %5278 = vmatmul.bf16.gmra.mxu0 %v386
        %v5279 = vpop.f32.mrf.mxu0
        %v5280 = vadd.f32 %v5267, %v5279
        %v5281 = vpop.f32.mrf.mxu0
        %5282 = vdwg.mxu0
        %5283 = vmatpush.bf16.msra.mxu0 %v4702
        %5284 = vmatpush.bf16.msra.mxu0 %v4692
        %5285 = vmatpush.bf16.msra.mxu0 %v4682
        %5286 = vmatpush.bf16.msra.mxu0 %v4672
        %5287 = vmatpush.bf16.msra.mxu0 %v4662
        %5288 = vmatpush.bf16.msra.mxu0 %v4652
        %5289 = vmatpush.bf16.msra.mxu0 %v4642
        %5290 = vmatpush.bf16.msra.mxu0 %v4632
        %5291 = vmatmul.bf16.gmra.mxu0 %v387
        %v5292 = vpop.f32.mrf.mxu0
        %v5293 = vadd.f32 %v5280, %v5292
        %v5294 = vpop.f32.mrf.mxu0
        %5295 = vdwg.mxu0
        %5296 = vmatpush.bf16.msra.mxu0 %v4782
        %5297 = vmatpush.bf16.msra.mxu0 %v4772
        %5298 = vmatpush.bf16.msra.mxu0 %v4762
        %5299 = vmatpush.bf16.msra.mxu0 %v4752
        %5300 = vmatpush.bf16.msra.mxu0 %v4742
        %5301 = vmatpush.bf16.msra.mxu0 %v4732
        %5302 = vmatpush.bf16.msra.mxu0 %v4722
        %5303 = vmatpush.bf16.msra.mxu0 %v4712
        %5304 = vmatmul.bf16.gmra.mxu0 %v388
        %v5305 = vpop.f32.mrf.mxu0
        %v5306 = vadd.f32 %v5293, %v5305
        %v5307 = vpop.f32.mrf.mxu0
        %5308 = vdwg.mxu0
        %5309 = vmatpush.bf16.msra.mxu0 %v4063
        %5310 = vmatpush.bf16.msra.mxu0 %v4053
        %5311 = vmatpush.bf16.msra.mxu0 %v4043
        %5312 = vmatpush.bf16.msra.mxu0 %v4033
        %5313 = vmatpush.bf16.msra.mxu0 %v4023
        %5314 = vmatpush.bf16.msra.mxu0 %v4013
        %5315 = vmatpush.bf16.msra.mxu0 %v4003
        %5316 = vmatpush.bf16.msra.mxu0 %v3993
        %5317 = vmatmul.bf16.gmra.mxu0 %v379
        %v5318 = vpop.f32.mrf.mxu0
        %v5319 = vadd.f32 0.0, %v5318
        %v5320 = vpop.f32.mrf.mxu0
        %5321 = vdwg.mxu0
        %5322 = vmatpush.bf16.msra.mxu0 %v4143
        %5323 = vmatpush.bf16.msra.mxu0 %v4133
        %5324 = vmatpush.bf16.msra.mxu0 %v4123
        %5325 = vmatpush.bf16.msra.mxu0 %v4113
        %5326 = vmatpush.bf16.msra.mxu0 %v4103
        %5327 = vmatpush.bf16.msra.mxu0 %v4093
        %5328 = vmatpush.bf16.msra.mxu0 %v4083
        %5329 = vmatpush.bf16.msra.mxu0 %v4073
        %5330 = vmatmul.bf16.gmra.mxu0 %v380
        %v5331 = vpop.f32.mrf.mxu0
        %v5332 = vadd.f32 %v5319, %v5331
        %v5333 = vpop.f32.mrf.mxu0
        %5334 = vdwg.mxu0
        %5335 = vmatpush.bf16.msra.mxu0 %v4223
        %5336 = vmatpush.bf16.msra.mxu0 %v4213
        %5337 = vmatpush.bf16.msra.mxu0 %v4203
        %5338 = vmatpush.bf16.msra.mxu0 %v4193
        %5339 = vmatpush.bf16.msra.mxu0 %v4183
        %5340 = vmatpush.bf16.msra.mxu0 %v4173
        %5341 = vmatpush.bf16.msra.mxu0 %v4163
        %5342 = vmatpush.bf16.msra.mxu0 %v4153
        %5343 = vmatmul.bf16.gmra.mxu0 %v381
        %v5344 = vpop.f32.mrf.mxu0
        %v5345 = vadd.f32 %v5332, %v5344
        %v5346 = vpop.f32.mrf.mxu0
        %5347 = vdwg.mxu0
        %5348 = vmatpush.bf16.msra.mxu0 %v4303
        %5349 = vmatpush.bf16.msra.mxu0 %v4293
        %5350 = vmatpush.bf16.msra.mxu0 %v4283
        %5351 = vmatpush.bf16.msra.mxu0 %v4273
        %5352 = vmatpush.bf16.msra.mxu0 %v4263
        %5353 = vmatpush.bf16.msra.mxu0 %v4253
        %5354 = vmatpush.bf16.msra.mxu0 %v4243
        %5355 = vmatpush.bf16.msra.mxu0 %v4233
        %5356 = vmatmul.bf16.gmra.mxu0 %v382
        %v5357 = vpop.f32.mrf.mxu0
        %v5358 = vadd.f32 %v5345, %v5357
        %v5359 = vpop.f32.mrf.mxu0
        %5360 = vdwg.mxu0
        %5361 = vmatpush.bf16.msra.mxu0 %v4383
        %5362 = vmatpush.bf16.msra.mxu0 %v4373
        %5363 = vmatpush.bf16.msra.mxu0 %v4363
        %5364 = vmatpush.bf16.msra.mxu0 %v4353
        %5365 = vmatpush.bf16.msra.mxu0 %v4343
        %5366 = vmatpush.bf16.msra.mxu0 %v4333
        %5367 = vmatpush.bf16.msra.mxu0 %v4323
        %5368 = vmatpush.bf16.msra.mxu0 %v4313
        %5369 = vmatmul.bf16.gmra.mxu0 %v383
        %v5370 = vpop.f32.mrf.mxu0
        %v5371 = vadd.f32 %v5358, %v5370
        %v5372 = vpop.f32.mrf.mxu0
        %5373 = vdwg.mxu0
        %5374 = vmatpush.bf16.msra.mxu0 %v4463
        %5375 = vmatpush.bf16.msra.mxu0 %v4453
        %5376 = vmatpush.bf16.msra.mxu0 %v4443
        %5377 = vmatpush.bf16.msra.mxu0 %v4433
        %5378 = vmatpush.bf16.msra.mxu0 %v4423
        %5379 = vmatpush.bf16.msra.mxu0 %v4413
        %5380 = vmatpush.bf16.msra.mxu0 %v4403
        %5381 = vmatpush.bf16.msra.mxu0 %v4393
        %5382 = vmatmul.bf16.gmra.mxu0 %v384
        %v5383 = vpop.f32.mrf.mxu0
        %v5384 = vadd.f32 %v5371, %v5383
        %v5385 = vpop.f32.mrf.mxu0
        %5386 = vdwg.mxu0
        %5387 = vmatpush.bf16.msra.mxu0 %v4543
        %5388 = vmatpush.bf16.msra.mxu0 %v4533
        %5389 = vmatpush.bf16.msra.mxu0 %v4523
        %5390 = vmatpush.bf16.msra.mxu0 %v4513
        %5391 = vmatpush.bf16.msra.mxu0 %v4503
        %5392 = vmatpush.bf16.msra.mxu0 %v4493
        %5393 = vmatpush.bf16.msra.mxu0 %v4483
        %5394 = vmatpush.bf16.msra.mxu0 %v4473
        %5395 = vmatmul.bf16.gmra.mxu0 %v385
        %v5396 = vpop.f32.mrf.mxu0
        %v5397 = vadd.f32 %v5384, %v5396
        %v5398 = vpop.f32.mrf.mxu0
        %5399 = vdwg.mxu0
        %5400 = vmatpush.bf16.msra.mxu0 %v4623
        %5401 = vmatpush.bf16.msra.mxu0 %v4613
        %5402 = vmatpush.bf16.msra.mxu0 %v4603
        %5403 = vmatpush.bf16.msra.mxu0 %v4593
        %5404 = vmatpush.bf16.msra.mxu0 %v4583
        %5405 = vmatpush.bf16.msra.mxu0 %v4573
        %5406 = vmatpush.bf16.msra.mxu0 %v4563
        %5407 = vmatpush.bf16.msra.mxu0 %v4553
        %5408 = vmatmul.bf16.gmra.mxu0 %v386
        %v5409 = vpop.f32.mrf.mxu0
        %v5410 = vadd.f32 %v5397, %v5409
        %v5411 = vpop.f32.mrf.mxu0
        %5412 = vdwg.mxu0
        %5413 = vmatpush.bf16.msra.mxu0 %v4703
        %5414 = vmatpush.bf16.msra.mxu0 %v4693
        %5415 = vmatpush.bf16.msra.mxu0 %v4683
        %5416 = vmatpush.bf16.msra.mxu0 %v4673
        %5417 = vmatpush.bf16.msra.mxu0 %v4663
        %5418 = vmatpush.bf16.msra.mxu0 %v4653
        %5419 = vmatpush.bf16.msra.mxu0 %v4643
        %5420 = vmatpush.bf16.msra.mxu0 %v4633
        %5421 = vmatmul.bf16.gmra.mxu0 %v387
        %v5422 = vpop.f32.mrf.mxu0
        %v5423 = vadd.f32 %v5410, %v5422
        %v5424 = vpop.f32.mrf.mxu0
        %5425 = vdwg.mxu0
        %5426 = vmatpush.bf16.msra.mxu0 %v4783
        %5427 = vmatpush.bf16.msra.mxu0 %v4773
        %5428 = vmatpush.bf16.msra.mxu0 %v4763
        %5429 = vmatpush.bf16.msra.mxu0 %v4753
        %5430 = vmatpush.bf16.msra.mxu0 %v4743
        %5431 = vmatpush.bf16.msra.mxu0 %v4733
        %5432 = vmatpush.bf16.msra.mxu0 %v4723
        %5433 = vmatpush.bf16.msra.mxu0 %v4713
        %5434 = vmatmul.bf16.gmra.mxu0 %v388
        %v5435 = vpop.f32.mrf.mxu0
        %v5436 = vadd.f32 %v5423, %v5435
        %v5437 = vpop.f32.mrf.mxu0
        %5438 = vdwg.mxu0
        %5439 = vmatpush.bf16.msra.mxu0 %v4064
        %5440 = vmatpush.bf16.msra.mxu0 %v4054
        %5441 = vmatpush.bf16.msra.mxu0 %v4044
        %5442 = vmatpush.bf16.msra.mxu0 %v4034
        %5443 = vmatpush.bf16.msra.mxu0 %v4024
        %5444 = vmatpush.bf16.msra.mxu0 %v4014
        %5445 = vmatpush.bf16.msra.mxu0 %v4004
        %5446 = vmatpush.bf16.msra.mxu0 %v3994
        %5447 = vmatmul.bf16.gmra.mxu0 %v379
        %v5448 = vpop.f32.mrf.mxu0
        %v5449 = vadd.f32 0.0, %v5448
        %v5450 = vpop.f32.mrf.mxu0
        %5451 = vdwg.mxu0
        %5452 = vmatpush.bf16.msra.mxu0 %v4144
        %5453 = vmatpush.bf16.msra.mxu0 %v4134
        %5454 = vmatpush.bf16.msra.mxu0 %v4124
        %5455 = vmatpush.bf16.msra.mxu0 %v4114
        %5456 = vmatpush.bf16.msra.mxu0 %v4104
        %5457 = vmatpush.bf16.msra.mxu0 %v4094
        %5458 = vmatpush.bf16.msra.mxu0 %v4084
        %5459 = vmatpush.bf16.msra.mxu0 %v4074
        %5460 = vmatmul.bf16.gmra.mxu0 %v380
        %v5461 = vpop.f32.mrf.mxu0
        %v5462 = vadd.f32 %v5449, %v5461
        %v5463 = vpop.f32.mrf.mxu0
        %5464 = vdwg.mxu0
        %5465 = vmatpush.bf16.msra.mxu0 %v4224
        %5466 = vmatpush.bf16.msra.mxu0 %v4214
        %5467 = vmatpush.bf16.msra.mxu0 %v4204
        %5468 = vmatpush.bf16.msra.mxu0 %v4194
        %5469 = vmatpush.bf16.msra.mxu0 %v4184
        %5470 = vmatpush.bf16.msra.mxu0 %v4174
        %5471 = vmatpush.bf16.msra.mxu0 %v4164
        %5472 = vmatpush.bf16.msra.mxu0 %v4154
        %5473 = vmatmul.bf16.gmra.mxu0 %v381
        %v5474 = vpop.f32.mrf.mxu0
        %v5475 = vadd.f32 %v5462, %v5474
        %v5476 = vpop.f32.mrf.mxu0
        %5477 = vdwg.mxu0
        %5478 = vmatpush.bf16.msra.mxu0 %v4304
        %5479 = vmatpush.bf16.msra.mxu0 %v4294
        %5480 = vmatpush.bf16.msra.mxu0 %v4284
        %5481 = vmatpush.bf16.msra.mxu0 %v4274
        %5482 = vmatpush.bf16.msra.mxu0 %v4264
        %5483 = vmatpush.bf16.msra.mxu0 %v4254
        %5484 = vmatpush.bf16.msra.mxu0 %v4244
        %5485 = vmatpush.bf16.msra.mxu0 %v4234
        %5486 = vmatmul.bf16.gmra.mxu0 %v382
        %v5487 = vpop.f32.mrf.mxu0
        %v5488 = vadd.f32 %v5475, %v5487
        %v5489 = vpop.f32.mrf.mxu0
        %5490 = vdwg.mxu0
        %5491 = vmatpush.bf16.msra.mxu0 %v4384
        %5492 = vmatpush.bf16.msra.mxu0 %v4374
        %5493 = vmatpush.bf16.msra.mxu0 %v4364
        %5494 = vmatpush.bf16.msra.mxu0 %v4354
        %5495 = vmatpush.bf16.msra.mxu0 %v4344
        %5496 = vmatpush.bf16.msra.mxu0 %v4334
        %5497 = vmatpush.bf16.msra.mxu0 %v4324
        %5498 = vmatpush.bf16.msra.mxu0 %v4314
        %5499 = vmatmul.bf16.gmra.mxu0 %v383
        %v5500 = vpop.f32.mrf.mxu0
        %v5501 = vadd.f32 %v5488, %v5500
        %v5502 = vpop.f32.mrf.mxu0
        %5503 = vdwg.mxu0
        %5504 = vmatpush.bf16.msra.mxu0 %v4464
        %5505 = vmatpush.bf16.msra.mxu0 %v4454
        %5506 = vmatpush.bf16.msra.mxu0 %v4444
        %5507 = vmatpush.bf16.msra.mxu0 %v4434
        %5508 = vmatpush.bf16.msra.mxu0 %v4424
        %5509 = vmatpush.bf16.msra.mxu0 %v4414
        %5510 = vmatpush.bf16.msra.mxu0 %v4404
        %5511 = vmatpush.bf16.msra.mxu0 %v4394
        %5512 = vmatmul.bf16.gmra.mxu0 %v384
        %v5513 = vpop.f32.mrf.mxu0
        %v5514 = vadd.f32 %v5501, %v5513
        %v5515 = vpop.f32.mrf.mxu0
        %5516 = vdwg.mxu0
        %5517 = vmatpush.bf16.msra.mxu0 %v4544
        %5518 = vmatpush.bf16.msra.mxu0 %v4534
        %5519 = vmatpush.bf16.msra.mxu0 %v4524
        %5520 = vmatpush.bf16.msra.mxu0 %v4514
        %5521 = vmatpush.bf16.msra.mxu0 %v4504
        %5522 = vmatpush.bf16.msra.mxu0 %v4494
        %5523 = vmatpush.bf16.msra.mxu0 %v4484
        %5524 = vmatpush.bf16.msra.mxu0 %v4474
        %5525 = vmatmul.bf16.gmra.mxu0 %v385
        %v5526 = vpop.f32.mrf.mxu0
        %v5527 = vadd.f32 %v5514, %v5526
        %v5528 = vpop.f32.mrf.mxu0
        %5529 = vdwg.mxu0
        %5530 = vmatpush.bf16.msra.mxu0 %v4624
        %5531 = vmatpush.bf16.msra.mxu0 %v4614
        %5532 = vmatpush.bf16.msra.mxu0 %v4604
        %5533 = vmatpush.bf16.msra.mxu0 %v4594
        %5534 = vmatpush.bf16.msra.mxu0 %v4584
        %5535 = vmatpush.bf16.msra.mxu0 %v4574
        %5536 = vmatpush.bf16.msra.mxu0 %v4564
        %5537 = vmatpush.bf16.msra.mxu0 %v4554
        %5538 = vmatmul.bf16.gmra.mxu0 %v386
        %v5539 = vpop.f32.mrf.mxu0
        %v5540 = vadd.f32 %v5527, %v5539
        %v5541 = vpop.f32.mrf.mxu0
        %5542 = vdwg.mxu0
        %5543 = vmatpush.bf16.msra.mxu0 %v4704
        %5544 = vmatpush.bf16.msra.mxu0 %v4694
        %5545 = vmatpush.bf16.msra.mxu0 %v4684
        %5546 = vmatpush.bf16.msra.mxu0 %v4674
        %5547 = vmatpush.bf16.msra.mxu0 %v4664
        %5548 = vmatpush.bf16.msra.mxu0 %v4654
        %5549 = vmatpush.bf16.msra.mxu0 %v4644
        %5550 = vmatpush.bf16.msra.mxu0 %v4634
        %5551 = vmatmul.bf16.gmra.mxu0 %v387
        %v5552 = vpop.f32.mrf.mxu0
        %v5553 = vadd.f32 %v5540, %v5552
        %v5554 = vpop.f32.mrf.mxu0
        %5555 = vdwg.mxu0
        %5556 = vmatpush.bf16.msra.mxu0 %v4784
        %5557 = vmatpush.bf16.msra.mxu0 %v4774
        %5558 = vmatpush.bf16.msra.mxu0 %v4764
        %5559 = vmatpush.bf16.msra.mxu0 %v4754
        %5560 = vmatpush.bf16.msra.mxu0 %v4744
        %5561 = vmatpush.bf16.msra.mxu0 %v4734
        %5562 = vmatpush.bf16.msra.mxu0 %v4724
        %5563 = vmatpush.bf16.msra.mxu0 %v4714
        %5564 = vmatmul.bf16.gmra.mxu0 %v388
        %v5565 = vpop.f32.mrf.mxu0
        %v5566 = vadd.f32 %v5553, %v5565
        %v5567 = vpop.f32.mrf.mxu0
        %5568 = vdwg.mxu0
        %5569 = vmatpush.bf16.msra.mxu0 %v4065
        %5570 = vmatpush.bf16.msra.mxu0 %v4055
        %5571 = vmatpush.bf16.msra.mxu0 %v4045
        %5572 = vmatpush.bf16.msra.mxu0 %v4035
        %5573 = vmatpush.bf16.msra.mxu0 %v4025
        %5574 = vmatpush.bf16.msra.mxu0 %v4015
        %5575 = vmatpush.bf16.msra.mxu0 %v4005
        %5576 = vmatpush.bf16.msra.mxu0 %v3995
        %5577 = vmatmul.bf16.gmra.mxu0 %v379
        %v5578 = vpop.f32.mrf.mxu0
        %v5579 = vadd.f32 0.0, %v5578
        %v5580 = vpop.f32.mrf.mxu0
        %5581 = vdwg.mxu0
        %5582 = vmatpush.bf16.msra.mxu0 %v4145
        %5583 = vmatpush.bf16.msra.mxu0 %v4135
        %5584 = vmatpush.bf16.msra.mxu0 %v4125
        %5585 = vmatpush.bf16.msra.mxu0 %v4115
        %5586 = vmatpush.bf16.msra.mxu0 %v4105
        %5587 = vmatpush.bf16.msra.mxu0 %v4095
        %5588 = vmatpush.bf16.msra.mxu0 %v4085
        %5589 = vmatpush.bf16.msra.mxu0 %v4075
        %5590 = vmatmul.bf16.gmra.mxu0 %v380
        %v5591 = vpop.f32.mrf.mxu0
        %v5592 = vadd.f32 %v5579, %v5591
        %v5593 = vpop.f32.mrf.mxu0
        %5594 = vdwg.mxu0
        %5595 = vmatpush.bf16.msra.mxu0 %v4225
        %5596 = vmatpush.bf16.msra.mxu0 %v4215
        %5597 = vmatpush.bf16.msra.mxu0 %v4205
        %5598 = vmatpush.bf16.msra.mxu0 %v4195
        %5599 = vmatpush.bf16.msra.mxu0 %v4185
        %5600 = vmatpush.bf16.msra.mxu0 %v4175
        %5601 = vmatpush.bf16.msra.mxu0 %v4165
        %5602 = vmatpush.bf16.msra.mxu0 %v4155
        %5603 = vmatmul.bf16.gmra.mxu0 %v381
        %v5604 = vpop.f32.mrf.mxu0
        %v5605 = vadd.f32 %v5592, %v5604
        %v5606 = vpop.f32.mrf.mxu0
        %5607 = vdwg.mxu0
        %5608 = vmatpush.bf16.msra.mxu0 %v4305
        %5609 = vmatpush.bf16.msra.mxu0 %v4295
        %5610 = vmatpush.bf16.msra.mxu0 %v4285
        %5611 = vmatpush.bf16.msra.mxu0 %v4275
        %5612 = vmatpush.bf16.msra.mxu0 %v4265
        %5613 = vmatpush.bf16.msra.mxu0 %v4255
        %5614 = vmatpush.bf16.msra.mxu0 %v4245
        %5615 = vmatpush.bf16.msra.mxu0 %v4235
        %5616 = vmatmul.bf16.gmra.mxu0 %v382
        %v5617 = vpop.f32.mrf.mxu0
        %v5618 = vadd.f32 %v5605, %v5617
        %v5619 = vpop.f32.mrf.mxu0
        %5620 = vdwg.mxu0
        %5621 = vmatpush.bf16.msra.mxu0 %v4385
        %5622 = vmatpush.bf16.msra.mxu0 %v4375
        %5623 = vmatpush.bf16.msra.mxu0 %v4365
        %5624 = vmatpush.bf16.msra.mxu0 %v4355
        %5625 = vmatpush.bf16.msra.mxu0 %v4345
        %5626 = vmatpush.bf16.msra.mxu0 %v4335
        %5627 = vmatpush.bf16.msra.mxu0 %v4325
        %5628 = vmatpush.bf16.msra.mxu0 %v4315
        %5629 = vmatmul.bf16.gmra.mxu0 %v383
        %v5630 = vpop.f32.mrf.mxu0
        %v5631 = vadd.f32 %v5618, %v5630
        %v5632 = vpop.f32.mrf.mxu0
        %5633 = vdwg.mxu0
        %5634 = vmatpush.bf16.msra.mxu0 %v4465
        %5635 = vmatpush.bf16.msra.mxu0 %v4455
        %5636 = vmatpush.bf16.msra.mxu0 %v4445
        %5637 = vmatpush.bf16.msra.mxu0 %v4435
        %5638 = vmatpush.bf16.msra.mxu0 %v4425
        %5639 = vmatpush.bf16.msra.mxu0 %v4415
        %5640 = vmatpush.bf16.msra.mxu0 %v4405
        %5641 = vmatpush.bf16.msra.mxu0 %v4395
        %5642 = vmatmul.bf16.gmra.mxu0 %v384
        %v5643 = vpop.f32.mrf.mxu0
        %v5644 = vadd.f32 %v5631, %v5643
        %v5645 = vpop.f32.mrf.mxu0
        %5646 = vdwg.mxu0
        %5647 = vmatpush.bf16.msra.mxu0 %v4545
        %5648 = vmatpush.bf16.msra.mxu0 %v4535
        %5649 = vmatpush.bf16.msra.mxu0 %v4525
        %5650 = vmatpush.bf16.msra.mxu0 %v4515
        %5651 = vmatpush.bf16.msra.mxu0 %v4505
        %5652 = vmatpush.bf16.msra.mxu0 %v4495
        %5653 = vmatpush.bf16.msra.mxu0 %v4485
        %5654 = vmatpush.bf16.msra.mxu0 %v4475
        %5655 = vmatmul.bf16.gmra.mxu0 %v385
        %v5656 = vpop.f32.mrf.mxu0
        %v5657 = vadd.f32 %v5644, %v5656
        %v5658 = vpop.f32.mrf.mxu0
        %5659 = vdwg.mxu0
        %5660 = vmatpush.bf16.msra.mxu0 %v4625
        %5661 = vmatpush.bf16.msra.mxu0 %v4615
        %5662 = vmatpush.bf16.msra.mxu0 %v4605
        %5663 = vmatpush.bf16.msra.mxu0 %v4595
        %5664 = vmatpush.bf16.msra.mxu0 %v4585
        %5665 = vmatpush.bf16.msra.mxu0 %v4575
        %5666 = vmatpush.bf16.msra.mxu0 %v4565
        %5667 = vmatpush.bf16.msra.mxu0 %v4555
        %5668 = vmatmul.bf16.gmra.mxu0 %v386
        %v5669 = vpop.f32.mrf.mxu0
        %v5670 = vadd.f32 %v5657, %v5669
        %v5671 = vpop.f32.mrf.mxu0
        %5672 = vdwg.mxu0
        %5673 = vmatpush.bf16.msra.mxu0 %v4705
        %5674 = vmatpush.bf16.msra.mxu0 %v4695
        %5675 = vmatpush.bf16.msra.mxu0 %v4685
        %5676 = vmatpush.bf16.msra.mxu0 %v4675
        %5677 = vmatpush.bf16.msra.mxu0 %v4665
        %5678 = vmatpush.bf16.msra.mxu0 %v4655
        %5679 = vmatpush.bf16.msra.mxu0 %v4645
        %5680 = vmatpush.bf16.msra.mxu0 %v4635
        %5681 = vmatmul.bf16.gmra.mxu0 %v387
        %v5682 = vpop.f32.mrf.mxu0
        %v5683 = vadd.f32 %v5670, %v5682
        %v5684 = vpop.f32.mrf.mxu0
        %5685 = vdwg.mxu0
        %5686 = vmatpush.bf16.msra.mxu0 %v4785
        %5687 = vmatpush.bf16.msra.mxu0 %v4775
        %5688 = vmatpush.bf16.msra.mxu0 %v4765
        %5689 = vmatpush.bf16.msra.mxu0 %v4755
        %5690 = vmatpush.bf16.msra.mxu0 %v4745
        %5691 = vmatpush.bf16.msra.mxu0 %v4735
        %5692 = vmatpush.bf16.msra.mxu0 %v4725
        %5693 = vmatpush.bf16.msra.mxu0 %v4715
        %5694 = vmatmul.bf16.gmra.mxu0 %v388
        %v5695 = vpop.f32.mrf.mxu0
        %v5696 = vadd.f32 %v5683, %v5695
        %v5697 = vpop.f32.mrf.mxu0
        %5698 = vdwg.mxu0
        %5699 = vmatpush.bf16.msra.mxu0 %v4066
        %5700 = vmatpush.bf16.msra.mxu0 %v4056
        %5701 = vmatpush.bf16.msra.mxu0 %v4046
        %5702 = vmatpush.bf16.msra.mxu0 %v4036
        %5703 = vmatpush.bf16.msra.mxu0 %v4026
        %5704 = vmatpush.bf16.msra.mxu0 %v4016
        %5705 = vmatpush.bf16.msra.mxu0 %v4006
        %5706 = vmatpush.bf16.msra.mxu0 %v3996
        %5707 = vmatmul.bf16.gmra.mxu0 %v379
        %v5708 = vpop.f32.mrf.mxu0
        %v5709 = vadd.f32 0.0, %v5708
        %v5710 = vpop.f32.mrf.mxu0
        %5711 = vdwg.mxu0
        %5712 = vmatpush.bf16.msra.mxu0 %v4146
        %5713 = vmatpush.bf16.msra.mxu0 %v4136
        %5714 = vmatpush.bf16.msra.mxu0 %v4126
        %5715 = vmatpush.bf16.msra.mxu0 %v4116
        %5716 = vmatpush.bf16.msra.mxu0 %v4106
        %5717 = vmatpush.bf16.msra.mxu0 %v4096
        %5718 = vmatpush.bf16.msra.mxu0 %v4086
        %5719 = vmatpush.bf16.msra.mxu0 %v4076
        %5720 = vmatmul.bf16.gmra.mxu0 %v380
        %v5721 = vpop.f32.mrf.mxu0
        %v5722 = vadd.f32 %v5709, %v5721
        %v5723 = vpop.f32.mrf.mxu0
        %5724 = vdwg.mxu0
        %5725 = vmatpush.bf16.msra.mxu0 %v4226
        %5726 = vmatpush.bf16.msra.mxu0 %v4216
        %5727 = vmatpush.bf16.msra.mxu0 %v4206
        %5728 = vmatpush.bf16.msra.mxu0 %v4196
        %5729 = vmatpush.bf16.msra.mxu0 %v4186
        %5730 = vmatpush.bf16.msra.mxu0 %v4176
        %5731 = vmatpush.bf16.msra.mxu0 %v4166
        %5732 = vmatpush.bf16.msra.mxu0 %v4156
        %5733 = vmatmul.bf16.gmra.mxu0 %v381
        %v5734 = vpop.f32.mrf.mxu0
        %v5735 = vadd.f32 %v5722, %v5734
        %v5736 = vpop.f32.mrf.mxu0
        %5737 = vdwg.mxu0
        %5738 = vmatpush.bf16.msra.mxu0 %v4306
        %5739 = vmatpush.bf16.msra.mxu0 %v4296
        %5740 = vmatpush.bf16.msra.mxu0 %v4286
        %5741 = vmatpush.bf16.msra.mxu0 %v4276
        %5742 = vmatpush.bf16.msra.mxu0 %v4266
        %5743 = vmatpush.bf16.msra.mxu0 %v4256
        %5744 = vmatpush.bf16.msra.mxu0 %v4246
        %5745 = vmatpush.bf16.msra.mxu0 %v4236
        %5746 = vmatmul.bf16.gmra.mxu0 %v382
        %v5747 = vpop.f32.mrf.mxu0
        %v5748 = vadd.f32 %v5735, %v5747
        %v5749 = vpop.f32.mrf.mxu0
        %5750 = vdwg.mxu0
        %5751 = vmatpush.bf16.msra.mxu0 %v4386
        %5752 = vmatpush.bf16.msra.mxu0 %v4376
        %5753 = vmatpush.bf16.msra.mxu0 %v4366
        %5754 = vmatpush.bf16.msra.mxu0 %v4356
        %5755 = vmatpush.bf16.msra.mxu0 %v4346
        %5756 = vmatpush.bf16.msra.mxu0 %v4336
        %5757 = vmatpush.bf16.msra.mxu0 %v4326
        %5758 = vmatpush.bf16.msra.mxu0 %v4316
        %5759 = vmatmul.bf16.gmra.mxu0 %v383
        %v5760 = vpop.f32.mrf.mxu0
        %v5761 = vadd.f32 %v5748, %v5760
        %v5762 = vpop.f32.mrf.mxu0
        %5763 = vdwg.mxu0
        %5764 = vmatpush.bf16.msra.mxu0 %v4466
        %5765 = vmatpush.bf16.msra.mxu0 %v4456
        %5766 = vmatpush.bf16.msra.mxu0 %v4446
        %5767 = vmatpush.bf16.msra.mxu0 %v4436
        %5768 = vmatpush.bf16.msra.mxu0 %v4426
        %5769 = vmatpush.bf16.msra.mxu0 %v4416
        %5770 = vmatpush.bf16.msra.mxu0 %v4406
        %5771 = vmatpush.bf16.msra.mxu0 %v4396
        %5772 = vmatmul.bf16.gmra.mxu0 %v384
        %v5773 = vpop.f32.mrf.mxu0
        %v5774 = vadd.f32 %v5761, %v5773
        %v5775 = vpop.f32.mrf.mxu0
        %5776 = vdwg.mxu0
        %5777 = vmatpush.bf16.msra.mxu0 %v4546
        %5778 = vmatpush.bf16.msra.mxu0 %v4536
        %5779 = vmatpush.bf16.msra.mxu0 %v4526
        %5780 = vmatpush.bf16.msra.mxu0 %v4516
        %5781 = vmatpush.bf16.msra.mxu0 %v4506
        %5782 = vmatpush.bf16.msra.mxu0 %v4496
        %5783 = vmatpush.bf16.msra.mxu0 %v4486
        %5784 = vmatpush.bf16.msra.mxu0 %v4476
        %5785 = vmatmul.bf16.gmra.mxu0 %v385
        %v5786 = vpop.f32.mrf.mxu0
        %v5787 = vadd.f32 %v5774, %v5786
        %v5788 = vpop.f32.mrf.mxu0
        %5789 = vdwg.mxu0
        %5790 = vmatpush.bf16.msra.mxu0 %v4626
        %5791 = vmatpush.bf16.msra.mxu0 %v4616
        %5792 = vmatpush.bf16.msra.mxu0 %v4606
        %5793 = vmatpush.bf16.msra.mxu0 %v4596
        %5794 = vmatpush.bf16.msra.mxu0 %v4586
        %5795 = vmatpush.bf16.msra.mxu0 %v4576
        %5796 = vmatpush.bf16.msra.mxu0 %v4566
        %5797 = vmatpush.bf16.msra.mxu0 %v4556
        %5798 = vmatmul.bf16.gmra.mxu0 %v386
        %v5799 = vpop.f32.mrf.mxu0
        %v5800 = vadd.f32 %v5787, %v5799
        %v5801 = vpop.f32.mrf.mxu0
        %5802 = vdwg.mxu0
        %5803 = vmatpush.bf16.msra.mxu0 %v4706
        %5804 = vmatpush.bf16.msra.mxu0 %v4696
        %5805 = vmatpush.bf16.msra.mxu0 %v4686
        %5806 = vmatpush.bf16.msra.mxu0 %v4676
        %5807 = vmatpush.bf16.msra.mxu0 %v4666
        %5808 = vmatpush.bf16.msra.mxu0 %v4656
        %5809 = vmatpush.bf16.msra.mxu0 %v4646
        %5810 = vmatpush.bf16.msra.mxu0 %v4636
        %5811 = vmatmul.bf16.gmra.mxu0 %v387
        %v5812 = vpop.f32.mrf.mxu0
        %v5813 = vadd.f32 %v5800, %v5812
        %v5814 = vpop.f32.mrf.mxu0
        %5815 = vdwg.mxu0
        %5816 = vmatpush.bf16.msra.mxu0 %v4786
        %5817 = vmatpush.bf16.msra.mxu0 %v4776
        %5818 = vmatpush.bf16.msra.mxu0 %v4766
        %5819 = vmatpush.bf16.msra.mxu0 %v4756
        %5820 = vmatpush.bf16.msra.mxu0 %v4746
        %5821 = vmatpush.bf16.msra.mxu0 %v4736
        %5822 = vmatpush.bf16.msra.mxu0 %v4726
        %5823 = vmatpush.bf16.msra.mxu0 %v4716
        %5824 = vmatmul.bf16.gmra.mxu0 %v388
        %v5825 = vpop.f32.mrf.mxu0
        %v5826 = vadd.f32 %v5813, %v5825
        %v5827 = vpop.f32.mrf.mxu0
        %5828 = vdwg.mxu0
        %5829 = vmatpush.bf16.msra.mxu0 %v4067
        %5830 = vmatpush.bf16.msra.mxu0 %v4057
        %5831 = vmatpush.bf16.msra.mxu0 %v4047
        %5832 = vmatpush.bf16.msra.mxu0 %v4037
        %5833 = vmatpush.bf16.msra.mxu0 %v4027
        %5834 = vmatpush.bf16.msra.mxu0 %v4017
        %5835 = vmatpush.bf16.msra.mxu0 %v4007
        %5836 = vmatpush.bf16.msra.mxu0 %v3997
        %5837 = vmatmul.bf16.gmra.mxu0 %v379
        %v5838 = vpop.f32.mrf.mxu0
        %v5839 = vadd.f32 0.0, %v5838
        %v5840 = vpop.f32.mrf.mxu0
        %5841 = vdwg.mxu0
        %5842 = vmatpush.bf16.msra.mxu0 %v4147
        %5843 = vmatpush.bf16.msra.mxu0 %v4137
        %5844 = vmatpush.bf16.msra.mxu0 %v4127
        %5845 = vmatpush.bf16.msra.mxu0 %v4117
        %5846 = vmatpush.bf16.msra.mxu0 %v4107
        %5847 = vmatpush.bf16.msra.mxu0 %v4097
        %5848 = vmatpush.bf16.msra.mxu0 %v4087
        %5849 = vmatpush.bf16.msra.mxu0 %v4077
        %5850 = vmatmul.bf16.gmra.mxu0 %v380
        %v5851 = vpop.f32.mrf.mxu0
        %v5852 = vadd.f32 %v5839, %v5851
        %v5853 = vpop.f32.mrf.mxu0
        %5854 = vdwg.mxu0
        %5855 = vmatpush.bf16.msra.mxu0 %v4227
        %5856 = vmatpush.bf16.msra.mxu0 %v4217
        %5857 = vmatpush.bf16.msra.mxu0 %v4207
        %5858 = vmatpush.bf16.msra.mxu0 %v4197
        %5859 = vmatpush.bf16.msra.mxu0 %v4187
        %5860 = vmatpush.bf16.msra.mxu0 %v4177
        %5861 = vmatpush.bf16.msra.mxu0 %v4167
        %5862 = vmatpush.bf16.msra.mxu0 %v4157
        %5863 = vmatmul.bf16.gmra.mxu0 %v381
        %v5864 = vpop.f32.mrf.mxu0
        %v5865 = vadd.f32 %v5852, %v5864
        %v5866 = vpop.f32.mrf.mxu0
        %5867 = vdwg.mxu0
        %5868 = vmatpush.bf16.msra.mxu0 %v4307
        %5869 = vmatpush.bf16.msra.mxu0 %v4297
        %5870 = vmatpush.bf16.msra.mxu0 %v4287
        %5871 = vmatpush.bf16.msra.mxu0 %v4277
        %5872 = vmatpush.bf16.msra.mxu0 %v4267
        %5873 = vmatpush.bf16.msra.mxu0 %v4257
        %5874 = vmatpush.bf16.msra.mxu0 %v4247
        %5875 = vmatpush.bf16.msra.mxu0 %v4237
        %5876 = vmatmul.bf16.gmra.mxu0 %v382
        %v5877 = vpop.f32.mrf.mxu0
        %v5878 = vadd.f32 %v5865, %v5877
        %v5879 = vpop.f32.mrf.mxu0
        %5880 = vdwg.mxu0
        %5881 = vmatpush.bf16.msra.mxu0 %v4387
        %5882 = vmatpush.bf16.msra.mxu0 %v4377
        %5883 = vmatpush.bf16.msra.mxu0 %v4367
        %5884 = vmatpush.bf16.msra.mxu0 %v4357
        %5885 = vmatpush.bf16.msra.mxu0 %v4347
        %5886 = vmatpush.bf16.msra.mxu0 %v4337
        %5887 = vmatpush.bf16.msra.mxu0 %v4327
        %5888 = vmatpush.bf16.msra.mxu0 %v4317
        %5889 = vmatmul.bf16.gmra.mxu0 %v383
        %v5890 = vpop.f32.mrf.mxu0
        %v5891 = vadd.f32 %v5878, %v5890
        %v5892 = vpop.f32.mrf.mxu0
        %5893 = vdwg.mxu0
        %5894 = vmatpush.bf16.msra.mxu0 %v4467
        %5895 = vmatpush.bf16.msra.mxu0 %v4457
        %5896 = vmatpush.bf16.msra.mxu0 %v4447
        %5897 = vmatpush.bf16.msra.mxu0 %v4437
        %5898 = vmatpush.bf16.msra.mxu0 %v4427
        %5899 = vmatpush.bf16.msra.mxu0 %v4417
        %5900 = vmatpush.bf16.msra.mxu0 %v4407
        %5901 = vmatpush.bf16.msra.mxu0 %v4397
        %5902 = vmatmul.bf16.gmra.mxu0 %v384
        %v5903 = vpop.f32.mrf.mxu0
        %v5904 = vadd.f32 %v5891, %v5903
        %v5905 = vpop.f32.mrf.mxu0
        %5906 = vdwg.mxu0
        %5907 = vmatpush.bf16.msra.mxu0 %v4547
        %5908 = vmatpush.bf16.msra.mxu0 %v4537
        %5909 = vmatpush.bf16.msra.mxu0 %v4527
        %5910 = vmatpush.bf16.msra.mxu0 %v4517
        %5911 = vmatpush.bf16.msra.mxu0 %v4507
        %5912 = vmatpush.bf16.msra.mxu0 %v4497
        %5913 = vmatpush.bf16.msra.mxu0 %v4487
        %5914 = vmatpush.bf16.msra.mxu0 %v4477
        %5915 = vmatmul.bf16.gmra.mxu0 %v385
        %v5916 = vpop.f32.mrf.mxu0
        %v5917 = vadd.f32 %v5904, %v5916
        %v5918 = vpop.f32.mrf.mxu0
        %5919 = vdwg.mxu0
        %5920 = vmatpush.bf16.msra.mxu0 %v4627
        %5921 = vmatpush.bf16.msra.mxu0 %v4617
        %5922 = vmatpush.bf16.msra.mxu0 %v4607
        %5923 = vmatpush.bf16.msra.mxu0 %v4597
        %5924 = vmatpush.bf16.msra.mxu0 %v4587
        %5925 = vmatpush.bf16.msra.mxu0 %v4577
        %5926 = vmatpush.bf16.msra.mxu0 %v4567
        %5927 = vmatpush.bf16.msra.mxu0 %v4557
        %5928 = vmatmul.bf16.gmra.mxu0 %v386
        %v5929 = vpop.f32.mrf.mxu0
        %v5930 = vadd.f32 %v5917, %v5929
        %v5931 = vpop.f32.mrf.mxu0
        %5932 = vdwg.mxu0
        %5933 = vmatpush.bf16.msra.mxu0 %v4707
        %5934 = vmatpush.bf16.msra.mxu0 %v4697
        %5935 = vmatpush.bf16.msra.mxu0 %v4687
        %5936 = vmatpush.bf16.msra.mxu0 %v4677
        %5937 = vmatpush.bf16.msra.mxu0 %v4667
        %5938 = vmatpush.bf16.msra.mxu0 %v4657
        %5939 = vmatpush.bf16.msra.mxu0 %v4647
        %5940 = vmatpush.bf16.msra.mxu0 %v4637
        %5941 = vmatmul.bf16.gmra.mxu0 %v387
        %v5942 = vpop.f32.mrf.mxu0
        %v5943 = vadd.f32 %v5930, %v5942
        %v5944 = vpop.f32.mrf.mxu0
        %5945 = vdwg.mxu0
        %5946 = vmatpush.bf16.msra.mxu0 %v4787
        %5947 = vmatpush.bf16.msra.mxu0 %v4777
        %5948 = vmatpush.bf16.msra.mxu0 %v4767
        %5949 = vmatpush.bf16.msra.mxu0 %v4757
        %5950 = vmatpush.bf16.msra.mxu0 %v4747
        %5951 = vmatpush.bf16.msra.mxu0 %v4737
        %5952 = vmatpush.bf16.msra.mxu0 %v4727
        %5953 = vmatpush.bf16.msra.mxu0 %v4717
        %5954 = vmatmul.bf16.gmra.mxu0 %v388
        %v5955 = vpop.f32.mrf.mxu0
        %v5956 = vadd.f32 %v5943, %v5955
        %v5957 = vpop.f32.mrf.mxu0
        %5958 = vdwg.mxu0
        %5959 = vmatpush.bf16.msra.mxu0 %v4068
        %5960 = vmatpush.bf16.msra.mxu0 %v4058
        %5961 = vmatpush.bf16.msra.mxu0 %v4048
        %5962 = vmatpush.bf16.msra.mxu0 %v4038
        %5963 = vmatpush.bf16.msra.mxu0 %v4028
        %5964 = vmatpush.bf16.msra.mxu0 %v4018
        %5965 = vmatpush.bf16.msra.mxu0 %v4008
        %5966 = vmatpush.bf16.msra.mxu0 %v3998
        %5967 = vmatmul.bf16.gmra.mxu0 %v379
        %v5968 = vpop.f32.mrf.mxu0
        %v5969 = vadd.f32 0.0, %v5968
        %v5970 = vpop.f32.mrf.mxu0
        %5971 = vdwg.mxu0
        %5972 = vmatpush.bf16.msra.mxu0 %v4148
        %5973 = vmatpush.bf16.msra.mxu0 %v4138
        %5974 = vmatpush.bf16.msra.mxu0 %v4128
        %5975 = vmatpush.bf16.msra.mxu0 %v4118
        %5976 = vmatpush.bf16.msra.mxu0 %v4108
        %5977 = vmatpush.bf16.msra.mxu0 %v4098
        %5978 = vmatpush.bf16.msra.mxu0 %v4088
        %5979 = vmatpush.bf16.msra.mxu0 %v4078
        %5980 = vmatmul.bf16.gmra.mxu0 %v380
        %v5981 = vpop.f32.mrf.mxu0
        %v5982 = vadd.f32 %v5969, %v5981
        %v5983 = vpop.f32.mrf.mxu0
        %5984 = vdwg.mxu0
        %5985 = vmatpush.bf16.msra.mxu0 %v4228
        %5986 = vmatpush.bf16.msra.mxu0 %v4218
        %5987 = vmatpush.bf16.msra.mxu0 %v4208
        %5988 = vmatpush.bf16.msra.mxu0 %v4198
        %5989 = vmatpush.bf16.msra.mxu0 %v4188
        %5990 = vmatpush.bf16.msra.mxu0 %v4178
        %5991 = vmatpush.bf16.msra.mxu0 %v4168
        %5992 = vmatpush.bf16.msra.mxu0 %v4158
        %5993 = vmatmul.bf16.gmra.mxu0 %v381
        %v5994 = vpop.f32.mrf.mxu0
        %v5995 = vadd.f32 %v5982, %v5994
        %v5996 = vpop.f32.mrf.mxu0
        %5997 = vdwg.mxu0
        %5998 = vmatpush.bf16.msra.mxu0 %v4308
        %5999 = vmatpush.bf16.msra.mxu0 %v4298
        %6000 = vmatpush.bf16.msra.mxu0 %v4288
        %6001 = vmatpush.bf16.msra.mxu0 %v4278
        %6002 = vmatpush.bf16.msra.mxu0 %v4268
        %6003 = vmatpush.bf16.msra.mxu0 %v4258
        %6004 = vmatpush.bf16.msra.mxu0 %v4248
        %6005 = vmatpush.bf16.msra.mxu0 %v4238
        %6006 = vmatmul.bf16.gmra.mxu0 %v382
        %v6007 = vpop.f32.mrf.mxu0
        %v6008 = vadd.f32 %v5995, %v6007
        %v6009 = vpop.f32.mrf.mxu0
        %6010 = vdwg.mxu0
        %6011 = vmatpush.bf16.msra.mxu0 %v4388
        %6012 = vmatpush.bf16.msra.mxu0 %v4378
        %6013 = vmatpush.bf16.msra.mxu0 %v4368
        %6014 = vmatpush.bf16.msra.mxu0 %v4358
        %6015 = vmatpush.bf16.msra.mxu0 %v4348
        %6016 = vmatpush.bf16.msra.mxu0 %v4338
        %6017 = vmatpush.bf16.msra.mxu0 %v4328
        %6018 = vmatpush.bf16.msra.mxu0 %v4318
        %6019 = vmatmul.bf16.gmra.mxu0 %v383
        %v6020 = vpop.f32.mrf.mxu0
        %v6021 = vadd.f32 %v6008, %v6020
        %v6022 = vpop.f32.mrf.mxu0
        %6023 = vdwg.mxu0
        %6024 = vmatpush.bf16.msra.mxu0 %v4468
        %6025 = vmatpush.bf16.msra.mxu0 %v4458
        %6026 = vmatpush.bf16.msra.mxu0 %v4448
        %6027 = vmatpush.bf16.msra.mxu0 %v4438
        %6028 = vmatpush.bf16.msra.mxu0 %v4428
        %6029 = vmatpush.bf16.msra.mxu0 %v4418
        %6030 = vmatpush.bf16.msra.mxu0 %v4408
        %6031 = vmatpush.bf16.msra.mxu0 %v4398
        %6032 = vmatmul.bf16.gmra.mxu0 %v384
        %v6033 = vpop.f32.mrf.mxu0
        %v6034 = vadd.f32 %v6021, %v6033
        %v6035 = vpop.f32.mrf.mxu0
        %6036 = vdwg.mxu0
        %6037 = vmatpush.bf16.msra.mxu0 %v4548
        %6038 = vmatpush.bf16.msra.mxu0 %v4538
        %6039 = vmatpush.bf16.msra.mxu0 %v4528
        %6040 = vmatpush.bf16.msra.mxu0 %v4518
        %6041 = vmatpush.bf16.msra.mxu0 %v4508
        %6042 = vmatpush.bf16.msra.mxu0 %v4498
        %6043 = vmatpush.bf16.msra.mxu0 %v4488
        %6044 = vmatpush.bf16.msra.mxu0 %v4478
        %6045 = vmatmul.bf16.gmra.mxu0 %v385
        %v6046 = vpop.f32.mrf.mxu0
        %v6047 = vadd.f32 %v6034, %v6046
        %v6048 = vpop.f32.mrf.mxu0
        %6049 = vdwg.mxu0
        %6050 = vmatpush.bf16.msra.mxu0 %v4628
        %6051 = vmatpush.bf16.msra.mxu0 %v4618
        %6052 = vmatpush.bf16.msra.mxu0 %v4608
        %6053 = vmatpush.bf16.msra.mxu0 %v4598
        %6054 = vmatpush.bf16.msra.mxu0 %v4588
        %6055 = vmatpush.bf16.msra.mxu0 %v4578
        %6056 = vmatpush.bf16.msra.mxu0 %v4568
        %6057 = vmatpush.bf16.msra.mxu0 %v4558
        %6058 = vmatmul.bf16.gmra.mxu0 %v386
        %v6059 = vpop.f32.mrf.mxu0
        %v6060 = vadd.f32 %v6047, %v6059
        %v6061 = vpop.f32.mrf.mxu0
        %6062 = vdwg.mxu0
        %6063 = vmatpush.bf16.msra.mxu0 %v4708
        %6064 = vmatpush.bf16.msra.mxu0 %v4698
        %6065 = vmatpush.bf16.msra.mxu0 %v4688
        %6066 = vmatpush.bf16.msra.mxu0 %v4678
        %6067 = vmatpush.bf16.msra.mxu0 %v4668
        %6068 = vmatpush.bf16.msra.mxu0 %v4658
        %6069 = vmatpush.bf16.msra.mxu0 %v4648
        %6070 = vmatpush.bf16.msra.mxu0 %v4638
        %6071 = vmatmul.bf16.gmra.mxu0 %v387
        %v6072 = vpop.f32.mrf.mxu0
        %v6073 = vadd.f32 %v6060, %v6072
        %v6074 = vpop.f32.mrf.mxu0
        %6075 = vdwg.mxu0
        %6076 = vmatpush.bf16.msra.mxu0 %v4788
        %6077 = vmatpush.bf16.msra.mxu0 %v4778
        %6078 = vmatpush.bf16.msra.mxu0 %v4768
        %6079 = vmatpush.bf16.msra.mxu0 %v4758
        %6080 = vmatpush.bf16.msra.mxu0 %v4748
        %6081 = vmatpush.bf16.msra.mxu0 %v4738
        %6082 = vmatpush.bf16.msra.mxu0 %v4728
        %6083 = vmatpush.bf16.msra.mxu0 %v4718
        %6084 = vmatmul.bf16.gmra.mxu0 %v388
        %v6085 = vpop.f32.mrf.mxu0
        %v6086 = vadd.f32 %v6073, %v6085
        %v6087 = vpop.f32.mrf.mxu0
        %6088 = vdwg.mxu0
        %v6089 = vadd.f32 %v359, %v4916
        %v6090 = vadd.f32 %v360, %v5046
        %v6091 = vadd.f32 %v361, %v5176
        %v6092 = vadd.f32 %v362, %v5306
        %v6093 = vadd.f32 %v363, %v5436
        %v6094 = vadd.f32 %v364, %v5566
        %v6095 = vadd.f32 %v365, %v5696
        %v6096 = vadd.f32 %v366, %v5826
        %v6097 = vadd.f32 %v367, %v5956
        %v6098 = vadd.f32 %v368, %v6086
        %6099 = vst [vmem:[#allocation2] sm:$0xff] %v6089
        %6100 = vst [vmem:[#allocation2 + $0x8] sm:$0xff] %v6090
        %6101 = vst [vmem:[#allocation2 + $0x10] sm:$0xff] %v6091
        %6102 = vst [vmem:[#allocation2 + $0x18] sm:$0xff] %v6092
        %6103 = vst [vmem:[#allocation2 + $0x20] sm:$0xff] %v6093
        %6104 = vst [vmem:[#allocation2 + $0x28] sm:$0xff] %v6094
        %6105 = vst [vmem:[#allocation2 + $0x30] sm:$0xff] %v6095
        %6106 = vst [vmem:[#allocation2 + $0x38] sm:$0xff] %v6096
        %6107 = vst [vmem:[#allocation2 + $0x40] sm:$0xff] %v6097
        %6108 = vst [vmem:[#allocation2 + $0x48] sm:$0xff] %v6098
        %p6109 = scmp.eq.s32.totalorder %s25, 1
        // Predicated region
        $region65: #{model_pvpmulti_forward.1} parent=47 // pred_check
          %p6110 = pneg %p6109
        $region66: #{model_pvpmulti_forward.1} parent=47 // pred_check_branch
          %6112 = sbr.rel (%p6110) target = $region68
        $region67: #{model_pvpmulti_forward.1} parent=47 // pred_region
          %v6113 = vld [vmem:[#allocation8] sm:$0x77]
          %v6114 = vld [vmem:[#allocation8 + $0x8] sm:$0x77]
          %v6115 = vld [vmem:[#allocation8 + $0x10] sm:$0x77]
          %v6116 = vld [vmem:[#allocation8 + $0x18] sm:$0x77]
          %v6117 = vld [vmem:[#allocation8 + $0x20] sm:$0x77]
          %v6118 = vld [vmem:[#allocation8 + $0x28] sm:$0x77]
          %v6119 = vld [vmem:[#allocation8 + $0x30] sm:$0x7]
          %v6120 = vld [vmem:[#allocation8 + $0x34] sm:$0x7]
          %v6121 = vld [vmem:[#allocation8 + $0x38] sm:$0x7]
          %v6122 = vld [vmem:[#allocation8 + $0x3e] sm:$0x1]
          %v6123 = vld [vmem:[#allocation2] sm:$0xff]
          %v6124 = vld [vmem:[#allocation2 + $0x8] sm:$0xff]
          %v6125 = vld [vmem:[#allocation2 + $0x10] sm:$0xff]
          %v6126 = vld [vmem:[#allocation2 + $0x18] sm:$0xff]
          %v6127 = vld [vmem:[#allocation2 + $0x20] sm:$0xff]
          %v6128 = vld [vmem:[#allocation2 + $0x28] sm:$0xff]
          %v6129 = vld [vmem:[#allocation2 + $0x30] sm:$0xff]
          %v6130 = vld [vmem:[#allocation2 + $0x38] sm:$0xff]
          %v6131 = vld [vmem:[#allocation2 + $0x40] sm:$0xff]
          %v6132 = vld [vmem:[#allocation2 + $0x48] sm:$0xff]
          %v6133 = vrot.slane %v6123, 4
          %v6134 = vadd.f32 %v6123, %v6133
          %v6135 = vrot.slane %v6134, 2
          %v6136 = vadd.f32 %v6134, %v6135
          %v6137 = vrot.slane %v6136, 1
          %v6138 = vadd.f32 %v6136, %v6137
          %v6139 = vrot.slane %v6124, 4
          %v6140 = vadd.f32 %v6124, %v6139
          %v6141 = vrot.slane %v6140, 2
          %v6142 = vadd.f32 %v6140, %v6141
          %v6143 = vrot.slane %v6142, 1
          %v6144 = vadd.f32 %v6142, %v6143
          %v6145 = vrot.slane %v6125, 4
          %v6146 = vadd.f32 %v6125, %v6145
          %v6147 = vrot.slane %v6146, 2
          %v6148 = vadd.f32 %v6146, %v6147
          %v6149 = vrot.slane %v6148, 1
          %v6150 = vadd.f32 %v6148, %v6149
          %v6151 = vrot.slane %v6126, 4
          %v6152 = vadd.f32 %v6126, %v6151
          %v6153 = vrot.slane %v6152, 2
          %v6154 = vadd.f32 %v6152, %v6153
          %v6155 = vrot.slane %v6154, 1
          %v6156 = vadd.f32 %v6154, %v6155
          %v6157 = vrot.slane %v6127, 4
          %v6158 = vadd.f32 %v6127, %v6157
          %v6159 = vrot.slane %v6158, 2
          %v6160 = vadd.f32 %v6158, %v6159
          %v6161 = vrot.slane %v6160, 1
          %v6162 = vadd.f32 %v6160, %v6161
          %v6163 = vrot.slane %v6128, 4
          %v6164 = vadd.f32 %v6128, %v6163
          %v6165 = vrot.slane %v6164, 2
          %v6166 = vadd.f32 %v6164, %v6165
          %v6167 = vrot.slane %v6166, 1
          %v6168 = vadd.f32 %v6166, %v6167
          %v6169 = vrot.slane %v6129, 4
          %v6170 = vadd.f32 %v6129, %v6169
          %v6171 = vrot.slane %v6170, 2
          %v6172 = vadd.f32 %v6170, %v6171
          %v6173 = vrot.slane %v6172, 1
          %v6174 = vadd.f32 %v6172, %v6173
          %v6175 = vrot.slane %v6130, 4
          %v6176 = vadd.f32 %v6130, %v6175
          %v6177 = vrot.slane %v6176, 2
          %v6178 = vadd.f32 %v6176, %v6177
          %v6179 = vrot.slane %v6178, 1
          %v6180 = vadd.f32 %v6178, %v6179
          %v6181 = vrot.slane %v6131, 4
          %v6182 = vadd.f32 %v6131, %v6181
          %v6183 = vrot.slane %v6182, 2
          %v6184 = vadd.f32 %v6182, %v6183
          %v6185 = vrot.slane %v6184, 1
          %v6186 = vadd.f32 %v6184, %v6185
          %v6187 = vrot.slane %v6132, 4
          %v6188 = vadd.f32 %v6132, %v6187
          %v6189 = vrot.slane %v6188, 2
          %v6190 = vadd.f32 %v6188, %v6189
          %v6191 = vrot.slane %v6190, 1
          %v6192 = vadd.f32 %v6190, %v6191
          %v6193 = vrcp.pop 8.0
          %v6194 = vmul.f32 8.0, %v6193
          %v6195 = vsub.f32 1.0, %v6194
          %v6196 = vmul.f32 %v6193, %v6195
          %v6197 = vadd.f32 %v6193, %v6196
          %vm6198 = vweird.f32 %v6193
          %v6199 = vsel %vm6198, %v6193, %v6197
          %v6200 = vmul.f32 %v6138, %v6199
          %v6201 = vmul.f32 %v6144, %v6199
          %v6202 = vmul.f32 %v6150, %v6199
          %v6203 = vmul.f32 %v6156, %v6199
          %v6204 = vmul.f32 %v6162, %v6199
          %v6205 = vmul.f32 %v6168, %v6199
          %v6206 = vmul.f32 %v6174, %v6199
          %v6207 = vmul.f32 %v6180, %v6199
          %v6208 = vmul.f32 %v6186, %v6199
          %v6209 = vmul.f32 %v6192, %v6199
          %v6210 = vsub.f32 %v6123, %v6200
          %v6211 = vsub.f32 %v6124, %v6201
          %v6212 = vsub.f32 %v6125, %v6202
          %v6213 = vsub.f32 %v6126, %v6203
          %v6214 = vsub.f32 %v6127, %v6204
          %v6215 = vsub.f32 %v6128, %v6205
          %v6216 = vsub.f32 %v6129, %v6206
          %v6217 = vsub.f32 %v6130, %v6207
          %v6218 = vsub.f32 %v6131, %v6208
          %v6219 = vsub.f32 %v6132, %v6209
          %v6220 = vmul.f32 %v6210, %v6210
          %v6221 = vmul.f32 %v6211, %v6211
          %v6222 = vmul.f32 %v6212, %v6212
          %v6223 = vmul.f32 %v6213, %v6213
          %v6224 = vmul.f32 %v6214, %v6214
          %v6225 = vmul.f32 %v6215, %v6215
          %v6226 = vmul.f32 %v6216, %v6216
          %v6227 = vmul.f32 %v6217, %v6217
          %v6228 = vmul.f32 %v6218, %v6218
          %v6229 = vmul.f32 %v6219, %v6219
          %v6230 = vrot.slane %v6220, 4
          %v6231 = vadd.f32 %v6220, %v6230
          %v6232 = vrot.slane %v6231, 2
          %v6233 = vadd.f32 %v6231, %v6232
          %v6234 = vrot.slane %v6233, 1
          %v6235 = vadd.f32 %v6233, %v6234
          %v6236 = vrot.slane %v6221, 4
          %v6237 = vadd.f32 %v6221, %v6236
          %v6238 = vrot.slane %v6237, 2
          %v6239 = vadd.f32 %v6237, %v6238
          %v6240 = vrot.slane %v6239, 1
          %v6241 = vadd.f32 %v6239, %v6240
          %v6242 = vrot.slane %v6222, 4
          %v6243 = vadd.f32 %v6222, %v6242
          %v6244 = vrot.slane %v6243, 2
          %v6245 = vadd.f32 %v6243, %v6244
          %v6246 = vrot.slane %v6245, 1
          %v6247 = vadd.f32 %v6245, %v6246
          %v6248 = vrot.slane %v6223, 4
          %v6249 = vadd.f32 %v6223, %v6248
          %v6250 = vrot.slane %v6249, 2
          %v6251 = vadd.f32 %v6249, %v6250
          %v6252 = vrot.slane %v6251, 1
          %v6253 = vadd.f32 %v6251, %v6252
          %v6254 = vrot.slane %v6224, 4
          %v6255 = vadd.f32 %v6224, %v6254
          %v6256 = vrot.slane %v6255, 2
          %v6257 = vadd.f32 %v6255, %v6256
          %v6258 = vrot.slane %v6257, 1
          %v6259 = vadd.f32 %v6257, %v6258
          %v6260 = vrot.slane %v6225, 4
          %v6261 = vadd.f32 %v6225, %v6260
          %v6262 = vrot.slane %v6261, 2
          %v6263 = vadd.f32 %v6261, %v6262
          %v6264 = vrot.slane %v6263, 1
          %v6265 = vadd.f32 %v6263, %v6264
          %v6266 = vrot.slane %v6226, 4
          %v6267 = vadd.f32 %v6226, %v6266
          %v6268 = vrot.slane %v6267, 2
          %v6269 = vadd.f32 %v6267, %v6268
          %v6270 = vrot.slane %v6269, 1
          %v6271 = vadd.f32 %v6269, %v6270
          %v6272 = vrot.slane %v6227, 4
          %v6273 = vadd.f32 %v6227, %v6272
          %v6274 = vrot.slane %v6273, 2
          %v6275 = vadd.f32 %v6273, %v6274
          %v6276 = vrot.slane %v6275, 1
          %v6277 = vadd.f32 %v6275, %v6276
          %v6278 = vrot.slane %v6228, 4
          %v6279 = vadd.f32 %v6228, %v6278
          %v6280 = vrot.slane %v6279, 2
          %v6281 = vadd.f32 %v6279, %v6280
          %v6282 = vrot.slane %v6281, 1
          %v6283 = vadd.f32 %v6281, %v6282
          %v6284 = vrot.slane %v6229, 4
          %v6285 = vadd.f32 %v6229, %v6284
          %v6286 = vrot.slane %v6285, 2
          %v6287 = vadd.f32 %v6285, %v6286
          %v6288 = vrot.slane %v6287, 1
          %v6289 = vadd.f32 %v6287, %v6288
          %v6290 = vmul.f32 %v6235, %v6199
          %v6291 = vmul.f32 %v6241, %v6199
          %v6292 = vmul.f32 %v6247, %v6199
          %v6293 = vmul.f32 %v6253, %v6199
          %v6294 = vmul.f32 %v6259, %v6199
          %v6295 = vmul.f32 %v6265, %v6199
          %v6296 = vmul.f32 %v6271, %v6199
          %v6297 = vmul.f32 %v6277, %v6199
          %v6298 = vmul.f32 %v6283, %v6199
          %v6299 = vmul.f32 %v6289, %v6199
          %v6300 = vadd.f32 %v6290, 1e-05
          %v6301 = vadd.f32 %v6291, 1e-05
          %v6302 = vadd.f32 %v6292, 1e-05
          %v6303 = vadd.f32 %v6293, 1e-05
          %v6304 = vadd.f32 %v6294, 1e-05
          %v6305 = vadd.f32 %v6295, 1e-05
          %v6306 = vadd.f32 %v6296, 1e-05
          %v6307 = vadd.f32 %v6297, 1e-05
          %v6308 = vadd.f32 %v6298, 1e-05
          %v6309 = vadd.f32 %v6299, 1e-05
          %v6310 = vrsqrt.pop %v6300
          %v6311 = vmul.f32 %v6310, %v6300
          %v6312 = vmul.f32 %v6311, %v6310
          %v6313 = vmul.f32 0.5, %v6312
          %v6314 = vsub.f32 1.5, %v6313
          %v6315 = vmul.f32 %v6310, %v6314
          %vm6316 = vweird.f32 %v6300
          %vm6317 = vweird.f32 %v6310
          %vm6318 = vmor %vm6316, %vm6317
          %v6319 = vsel %vm6318, %v6310, %v6315
          %v6320 = vrsqrt.pop %v6301
          %v6321 = vmul.f32 %v6320, %v6301
          %v6322 = vmul.f32 %v6321, %v6320
          %v6323 = vmul.f32 0.5, %v6322
          %v6324 = vsub.f32 1.5, %v6323
          %v6325 = vmul.f32 %v6320, %v6324
          %vm6326 = vweird.f32 %v6301
          %vm6327 = vweird.f32 %v6320
          %vm6328 = vmor %vm6326, %vm6327
          %v6329 = vsel %vm6328, %v6320, %v6325
          %v6330 = vrsqrt.pop %v6302
          %v6331 = vmul.f32 %v6330, %v6302
          %v6332 = vmul.f32 %v6331, %v6330
          %v6333 = vmul.f32 0.5, %v6332
          %v6334 = vsub.f32 1.5, %v6333
          %v6335 = vmul.f32 %v6330, %v6334
          %vm6336 = vweird.f32 %v6302
          %vm6337 = vweird.f32 %v6330
          %vm6338 = vmor %vm6336, %vm6337
          %v6339 = vsel %vm6338, %v6330, %v6335
          %v6340 = vrsqrt.pop %v6303
          %v6341 = vmul.f32 %v6340, %v6303
          %v6342 = vmul.f32 %v6341, %v6340
          %v6343 = vmul.f32 0.5, %v6342
          %v6344 = vsub.f32 1.5, %v6343
          %v6345 = vmul.f32 %v6340, %v6344
          %vm6346 = vweird.f32 %v6303
          %vm6347 = vweird.f32 %v6340
          %vm6348 = vmor %vm6346, %vm6347
          %v6349 = vsel %vm6348, %v6340, %v6345
          %v6350 = vrsqrt.pop %v6304
          %v6351 = vmul.f32 %v6350, %v6304
          %v6352 = vmul.f32 %v6351, %v6350
          %v6353 = vmul.f32 0.5, %v6352
          %v6354 = vsub.f32 1.5, %v6353
          %v6355 = vmul.f32 %v6350, %v6354
          %vm6356 = vweird.f32 %v6304
          %vm6357 = vweird.f32 %v6350
          %vm6358 = vmor %vm6356, %vm6357
          %v6359 = vsel %vm6358, %v6350, %v6355
          %v6360 = vrsqrt.pop %v6305
          %v6361 = vmul.f32 %v6360, %v6305
          %v6362 = vmul.f32 %v6361, %v6360
          %v6363 = vmul.f32 0.5, %v6362
          %v6364 = vsub.f32 1.5, %v6363
          %v6365 = vmul.f32 %v6360, %v6364
          %vm6366 = vweird.f32 %v6305
          %vm6367 = vweird.f32 %v6360
          %vm6368 = vmor %vm6366, %vm6367
          %v6369 = vsel %vm6368, %v6360, %v6365
          %v6370 = vrsqrt.pop %v6306
          %v6371 = vmul.f32 %v6370, %v6306
          %v6372 = vmul.f32 %v6371, %v6370
          %v6373 = vmul.f32 0.5, %v6372
          %v6374 = vsub.f32 1.5, %v6373
          %v6375 = vmul.f32 %v6370, %v6374
          %vm6376 = vweird.f32 %v6306
          %vm6377 = vweird.f32 %v6370
          %vm6378 = vmor %vm6376, %vm6377
          %v6379 = vsel %vm6378, %v6370, %v6375
          %v6380 = vrsqrt.pop %v6307
          %v6381 = vmul.f32 %v6380, %v6307
          %v6382 = vmul.f32 %v6381, %v6380
          %v6383 = vmul.f32 0.5, %v6382
          %v6384 = vsub.f32 1.5, %v6383
          %v6385 = vmul.f32 %v6380, %v6384
          %vm6386 = vweird.f32 %v6307
          %vm6387 = vweird.f32 %v6380
          %vm6388 = vmor %vm6386, %vm6387
          %v6389 = vsel %vm6388, %v6380, %v6385
          %v6390 = vrsqrt.pop %v6308
          %v6391 = vmul.f32 %v6390, %v6308
          %v6392 = vmul.f32 %v6391, %v6390
          %v6393 = vmul.f32 0.5, %v6392
          %v6394 = vsub.f32 1.5, %v6393
          %v6395 = vmul.f32 %v6390, %v6394
          %vm6396 = vweird.f32 %v6308
          %vm6397 = vweird.f32 %v6390
          %vm6398 = vmor %vm6396, %vm6397
          %v6399 = vsel %vm6398, %v6390, %v6395
          %v6400 = vrsqrt.pop %v6309
          %v6401 = vmul.f32 %v6400, %v6309
          %v6402 = vmul.f32 %v6401, %v6400
          %v6403 = vmul.f32 0.5, %v6402
          %v6404 = vsub.f32 1.5, %v6403
          %v6405 = vmul.f32 %v6400, %v6404
          %vm6406 = vweird.f32 %v6309
          %vm6407 = vweird.f32 %v6400
          %vm6408 = vmor %vm6406, %vm6407
          %v6409 = vsel %vm6408, %v6400, %v6405
          %v6420 = vrot.slane %v6329, 4
          %v6421 = vrot.slane %v6349, 4
          %v6422 = vrot.slane %v6369, 4
          %v6423 = vrot.slane %v6389, 4
          %v6424 = vrot.slane %v6409, 4
          %vm6425 = vcmask 1043456
          %v6426 = vsel %vm6425, %v6319, %v6420
          %v6427 = vsel %vm6425, %v6339, %v6421
          %v6428 = vsel %vm6425, %v6359, %v6422
          %v6429 = vsel %vm6425, %v6379, %v6423
          %v6430 = vsel %vm6425, %v6399, %v6424
          %v6436 = vmul.f32 %v6113, %v6426
          %v6437 = vmul.f32 %v6114, %v6427
          %v6438 = vmul.f32 %v6115, %v6428
          %v6439 = vmul.f32 %v6116, %v6429
          %v6440 = vmul.f32 %v6117, %v6430
          %v6446 = vperm.slane %v6436, 0
          %v6447 = vperm.slane %v6436, 4
          %v6448 = vperm.slane %v6437, 0
          %v6449 = vperm.slane %v6437, 4
          %v6450 = vperm.slane %v6438, 0
          %v6451 = vperm.slane %v6438, 4
          %v6452 = vperm.slane %v6439, 0
          %v6453 = vperm.slane %v6439, 4
          %v6454 = vperm.slane %v6440, 0
          %v6455 = vperm.slane %v6440, 4
          %v6466 = vperm.slane %v6446, 0
          %v6467 = vperm.slane %v6447, 0
          %v6468 = vperm.slane %v6448, 0
          %v6469 = vperm.slane %v6449, 0
          %v6470 = vperm.slane %v6450, 0
          %v6471 = vperm.slane %v6451, 0
          %v6472 = vperm.slane %v6452, 0
          %v6473 = vperm.slane %v6453, 0
          %v6474 = vperm.slane %v6454, 0
          %v6475 = vperm.slane %v6455, 0
          %v6476 = vmul.f32 %v6210, %v6466
          %v6477 = vmul.f32 %v6211, %v6467
          %v6478 = vmul.f32 %v6212, %v6468
          %v6479 = vmul.f32 %v6213, %v6469
          %v6480 = vmul.f32 %v6214, %v6470
          %v6481 = vmul.f32 %v6215, %v6471
          %v6482 = vmul.f32 %v6216, %v6472
          %v6483 = vmul.f32 %v6217, %v6473
          %v6484 = vmul.f32 %v6218, %v6474
          %v6485 = vmul.f32 %v6219, %v6475
          %v6491 = vperm.slane %v6113, 1
          %v6492 = vperm.slane %v6113, 5
          %v6493 = vperm.slane %v6114, 1
          %v6494 = vperm.slane %v6114, 5
          %v6495 = vperm.slane %v6115, 1
          %v6496 = vperm.slane %v6115, 5
          %v6497 = vperm.slane %v6116, 1
          %v6498 = vperm.slane %v6116, 5
          %v6499 = vperm.slane %v6117, 1
          %v6500 = vperm.slane %v6117, 5
          %v6511 = vperm.slane %v6491, 1
          %v6512 = vperm.slane %v6492, 1
          %v6513 = vperm.slane %v6493, 1
          %v6514 = vperm.slane %v6494, 1
          %v6515 = vperm.slane %v6495, 1
          %v6516 = vperm.slane %v6496, 1
          %v6517 = vperm.slane %v6497, 1
          %v6518 = vperm.slane %v6498, 1
          %v6519 = vperm.slane %v6499, 1
          %v6520 = vperm.slane %v6500, 1
          %v6521 = vadd.f32 %v6476, %v6511
          %v6522 = vadd.f32 %v6477, %v6512
          %v6523 = vadd.f32 %v6478, %v6513
          %v6524 = vadd.f32 %v6479, %v6514
          %v6525 = vadd.f32 %v6480, %v6515
          %v6526 = vadd.f32 %v6481, %v6516
          %v6527 = vadd.f32 %v6482, %v6517
          %v6528 = vadd.f32 %v6483, %v6518
          %v6529 = vadd.f32 %v6484, %v6519
          %v6530 = vadd.f32 %v6485, %v6520
          %v6531 = vmax.f32 %v6521, 0.0
          %v6532 = vmax.f32 %v6522, 0.0
          %v6533 = vmax.f32 %v6523, 0.0
          %v6534 = vmax.f32 %v6524, 0.0
          %v6535 = vmax.f32 %v6525, 0.0
          %v6536 = vmax.f32 %v6526, 0.0
          %v6537 = vmax.f32 %v6527, 0.0
          %v6538 = vmax.f32 %v6528, 0.0
          %v6539 = vmax.f32 %v6529, 0.0
          %v6540 = vmax.f32 %v6530, 0.0
          %v6541 = vpack.c.bf16 %v6531, %v6531
          %v6542 = vpack.c.bf16 %v6532, %v6532
          %v6543 = vpack.c.bf16 %v6533, %v6533
          %v6544 = vpack.c.bf16 %v6534, %v6534
          %v6545 = vpack.c.bf16 %v6535, %v6535
          %v6546 = vpack.c.bf16 %v6536, %v6536
          %v6547 = vpack.c.bf16 %v6537, %v6537
          %v6548 = vpack.c.bf16 %v6538, %v6538
          %v6549 = vpack.c.bf16 %v6539, %v6539
          %v6550 = vpack.c.bf16 %v6540, %v6540
          %v6551 = vld [vmem:[%s2] sm:$0xff]
          %v6552 = vld [vmem:[%s2 + $0x8] sm:$0xf]
          %v6553 = vld [vmem:[%s2 + $0xc] sm:$0xff]
          %v6554 = vld [vmem:[%s2 + $0x14] sm:$0xf]
          %v6555 = vld [vmem:[%s2 + $0x18] sm:$0xff]
          %v6556 = vld [vmem:[%s2 + $0x20] sm:$0xf]
          %v6557 = vld [vmem:[%s2 + $0x24] sm:$0xff]
          %v6558 = vld [vmem:[%s2 + $0x2c] sm:$0xf]
          %v6559 = vld [vmem:[%s2 + $0x30] sm:$0xff]
          %v6560 = vld [vmem:[%s2 + $0x38] sm:$0xf]
          %v6561 = vld [vmem:[%s2 + $0x3c] sm:$0xff]
          %v6562 = vld [vmem:[%s2 + $0x44] sm:$0xf]
          %v6563 = vld [vmem:[%s2 + $0x48] sm:$0xff]
          %v6564 = vld [vmem:[%s2 + $0x50] sm:$0xf]
          %v6565 = vld [vmem:[%s2 + $0x54] sm:$0xff]
          %v6566 = vld [vmem:[%s2 + $0x5c] sm:$0xf]
          %v6567 = vld [vmem:[%s2 + $0x60] sm:$0xff]
          %v6568 = vld [vmem:[%s2 + $0x68] sm:$0xf]
          %v6569 = vld [vmem:[%s2 + $0x6c] sm:$0xff]
          %v6570 = vld [vmem:[%s2 + $0x74] sm:$0xf]
          %v6571 = vld [vmem:[%s2 + $0x78] sm:$0xff]
          %v6572 = vld [vmem:[%s2 + $0x80] sm:$0xf]
          %v6573 = vld [vmem:[%s2 + $0x84] sm:$0xff]
          %v6574 = vld [vmem:[%s2 + $0x8c] sm:$0xf]
          %v6575 = vld [vmem:[%s2 + $0x90] sm:$0xff]
          %v6576 = vld [vmem:[%s2 + $0x98] sm:$0xf]
          %v6577 = vld [vmem:[%s2 + $0x9c] sm:$0xff]
          %v6578 = vld [vmem:[%s2 + $0xa4] sm:$0xf]
          %v6579 = vld [vmem:[%s2 + $0xa8] sm:$0xff]
          %v6580 = vld [vmem:[%s2 + $0xb0] sm:$0xf]
          %v6581 = vld [vmem:[%s2 + $0xb4] sm:$0xff]
          %v6582 = vld [vmem:[%s2 + $0xbc] sm:$0xf]
          %v6583 = vld [vmem:[%s2 + $0xc0] sm:$0xff]
          %v6584 = vld [vmem:[%s2 + $0xc8] sm:$0xf]
          %v6585 = vld [vmem:[%s2 + $0xcc] sm:$0xff]
          %v6586 = vld [vmem:[%s2 + $0xd4] sm:$0xf]
          %v6587 = vld [vmem:[%s2 + $0xd8] sm:$0xff]
          %v6588 = vld [vmem:[%s2 + $0xe0] sm:$0xf]
          %v6589 = vld [vmem:[%s2 + $0xe4] sm:$0xff]
          %v6590 = vld [vmem:[%s2 + $0xec] sm:$0xf]
          %v6591 = vld [vmem:[%s2 + $0xf0] sm:$0xff]
          %v6592 = vld [vmem:[%s2 + $0xf8] sm:$0xf]
          %v6593 = vld [vmem:[%s2 + $0xfc] sm:$0xff]
          %v6594 = vld [vmem:[%s2 + $0x104] sm:$0xf]
          %v6595 = vld [vmem:[%s2 + $0x108] sm:$0xff]
          %v6596 = vld [vmem:[%s2 + $0x110] sm:$0xf]
          %v6597 = vld [vmem:[%s2 + $0x114] sm:$0xff]
          %v6598 = vld [vmem:[%s2 + $0x11c] sm:$0xf]
          %v6599 = vld [vmem:[%s2 + $0x120] sm:$0xff]
          %v6600 = vld [vmem:[%s2 + $0x128] sm:$0xf]
          %v6601 = vld [vmem:[%s2 + $0x12c] sm:$0xff]
          %v6602 = vld [vmem:[%s2 + $0x134] sm:$0xf]
          %v6603 = vld [vmem:[%s2 + $0x138] sm:$0xff]
          %v6604 = vld [vmem:[%s2 + $0x140] sm:$0xf]
          %v6605 = vld [vmem:[%s2 + $0x144] sm:$0xff]
          %v6606 = vld [vmem:[%s2 + $0x14c] sm:$0xf]
          %v6607 = vld [vmem:[%s2 + $0x150] sm:$0xff]
          %v6608 = vld [vmem:[%s2 + $0x158] sm:$0xf]
          %v6609 = vld [vmem:[%s2 + $0x15c] sm:$0xff]
          %v6610 = vld [vmem:[%s2 + $0x164] sm:$0xf]
          %v6611 = vld [vmem:[%s2 + $0x168] sm:$0xff]
          %v6612 = vld [vmem:[%s2 + $0x170] sm:$0xf]
          %v6613 = vld [vmem:[%s2 + $0x174] sm:$0xff]
          %v6614 = vld [vmem:[%s2 + $0x17c] sm:$0xf]
          %v6615 = vld [vmem:[%s2 + $0x180] sm:$0xff]
          %v6616 = vld [vmem:[%s2 + $0x188] sm:$0xf]
          %v6617 = vld [vmem:[%s2 + $0x18c] sm:$0xff]
          %v6618 = vld [vmem:[%s2 + $0x194] sm:$0xf]
          %v6619 = vld [vmem:[%s2 + $0x198] sm:$0xff]
          %v6620 = vld [vmem:[%s2 + $0x1a0] sm:$0xf]
          %v6621 = vld [vmem:[%s2 + $0x1a4] sm:$0xff]
          %v6622 = vld [vmem:[%s2 + $0x1ac] sm:$0xf]
          %v6623 = vld [vmem:[%s2 + $0x1b0] sm:$0xff]
          %v6624 = vld [vmem:[%s2 + $0x1b8] sm:$0xf]
          %v6625 = vld [vmem:[%s2 + $0x1bc] sm:$0xff]
          %v6626 = vld [vmem:[%s2 + $0x1c4] sm:$0xf]
          %v6627 = vld [vmem:[%s2 + $0x1c8] sm:$0xff]
          %v6628 = vld [vmem:[%s2 + $0x1d0] sm:$0xf]
          %v6629 = vld [vmem:[%s2 + $0x1d4] sm:$0xff]
          %v6630 = vld [vmem:[%s2 + $0x1dc] sm:$0xf]
          %v6631 = vld [vmem:[%s2 + $0x1e0] sm:$0xff]
          %v6632 = vld [vmem:[%s2 + $0x1e8] sm:$0xf]
          %v6633 = vld [vmem:[%s2 + $0x1ec] sm:$0xff]
          %v6634 = vld [vmem:[%s2 + $0x1f4] sm:$0xf]
          %v6635 = vld [vmem:[%s2 + $0x1f8] sm:$0xff]
          %v6636 = vld [vmem:[%s2 + $0x200] sm:$0xf]
          %v6637 = vld [vmem:[%s2 + $0x204] sm:$0xff]
          %v6638 = vld [vmem:[%s2 + $0x20c] sm:$0xf]
          %v6639 = vld [vmem:[%s2 + $0x210] sm:$0xff]
          %v6640 = vld [vmem:[%s2 + $0x218] sm:$0xf]
          %v6641 = vld [vmem:[%s2 + $0x21c] sm:$0xff]
          %v6642 = vld [vmem:[%s2 + $0x224] sm:$0xf]
          %v6643 = vld [vmem:[%s2 + $0x228] sm:$0xff]
          %v6644 = vld [vmem:[%s2 + $0x230] sm:$0xf]
          %v6645 = vld [vmem:[%s2 + $0x234] sm:$0xff]
          %v6646 = vld [vmem:[%s2 + $0x23c] sm:$0xf]
          %v6647 = vld [vmem:[%s2 + $0x240] sm:$0xff]
          %v6648 = vld [vmem:[%s2 + $0x248] sm:$0xf]
          %v6649 = vld [vmem:[%s2 + $0x24c] sm:$0xff]
          %v6650 = vld [vmem:[%s2 + $0x254] sm:$0xf]
          %v6651 = vld [vmem:[%s2 + $0x258] sm:$0xff]
          %v6652 = vld [vmem:[%s2 + $0x260] sm:$0xf]
          %v6653 = vld [vmem:[%s2 + $0x264] sm:$0xff]
          %v6654 = vld [vmem:[%s2 + $0x26c] sm:$0xf]
          %v6655 = vld [vmem:[%s2 + $0x270] sm:$0xff]
          %v6656 = vld [vmem:[%s2 + $0x278] sm:$0xf]
          %v6657 = vld [vmem:[%s2 + $0x27c] sm:$0xff]
          %v6658 = vld [vmem:[%s2 + $0x284] sm:$0xf]
          %v6659 = vld [vmem:[%s2 + $0x288] sm:$0xff]
          %v6660 = vld [vmem:[%s2 + $0x290] sm:$0xf]
          %v6661 = vld [vmem:[%s2 + $0x294] sm:$0xff]
          %v6662 = vld [vmem:[%s2 + $0x29c] sm:$0xf]
          %v6663 = vld [vmem:[%s2 + $0x2a0] sm:$0xff]
          %v6664 = vld [vmem:[%s2 + $0x2a8] sm:$0xf]
          %v6665 = vld [vmem:[%s2 + $0x2ac] sm:$0xff]
          %v6666 = vld [vmem:[%s2 + $0x2b4] sm:$0xf]
          %v6667 = vld [vmem:[%s2 + $0x2b8] sm:$0xff]
          %v6668 = vld [vmem:[%s2 + $0x2c0] sm:$0xf]
          %v6669 = vld [vmem:[%s2 + $0x2c4] sm:$0xff]
          %v6670 = vld [vmem:[%s2 + $0x2cc] sm:$0xf]
          %v6671 = vld [vmem:[%s2 + $0x2d0] sm:$0xff]
          %v6672 = vld [vmem:[%s2 + $0x2d8] sm:$0xf]
          %v6673 = vld [vmem:[%s2 + $0x2dc] sm:$0xff]
          %v6674 = vld [vmem:[%s2 + $0x2e4] sm:$0xf]
          %v6675 = vld [vmem:[%s2 + $0x2e8] sm:$0xff]
          %v6676 = vld [vmem:[%s2 + $0x2f0] sm:$0xf]
          %v6677 = vld [vmem:[%s2 + $0x2f4] sm:$0xff]
          %v6678 = vld [vmem:[%s2 + $0x2fc] sm:$0xf]
          %v6679 = vld [vmem:[%s2 + $0x300] sm:$0xff]
          %v6680 = vld [vmem:[%s2 + $0x308] sm:$0xf]
          %v6681 = vld [vmem:[%s2 + $0x30c] sm:$0xff]
          %v6682 = vld [vmem:[%s2 + $0x314] sm:$0xf]
          %v6683 = vld [vmem:[%s2 + $0x318] sm:$0xff]
          %v6684 = vld [vmem:[%s2 + $0x320] sm:$0xf]
          %v6685 = vld [vmem:[%s2 + $0x324] sm:$0xff]
          %v6686 = vld [vmem:[%s2 + $0x32c] sm:$0xf]
          %v6687 = vld [vmem:[%s2 + $0x330] sm:$0xff]
          %v6688 = vld [vmem:[%s2 + $0x338] sm:$0xf]
          %v6689 = vld [vmem:[%s2 + $0x33c] sm:$0xff]
          %v6690 = vld [vmem:[%s2 + $0x344] sm:$0xf]
          %v6691 = vld [vmem:[%s2 + $0x348] sm:$0xff]
          %v6692 = vld [vmem:[%s2 + $0x350] sm:$0xf]
          %v6693 = vld [vmem:[%s2 + $0x354] sm:$0xff]
          %v6694 = vld [vmem:[%s2 + $0x35c] sm:$0xf]
          %v6695 = vld [vmem:[%s2 + $0x360] sm:$0xff]
          %v6696 = vld [vmem:[%s2 + $0x368] sm:$0xf]
          %v6697 = vld [vmem:[%s2 + $0x36c] sm:$0xff]
          %v6698 = vld [vmem:[%s2 + $0x374] sm:$0xf]
          %v6699 = vld [vmem:[%s2 + $0x378] sm:$0xff]
          %v6700 = vld [vmem:[%s2 + $0x380] sm:$0xf]
          %v6701 = vld [vmem:[%s2 + $0x384] sm:$0xff]
          %v6702 = vld [vmem:[%s2 + $0x38c] sm:$0xf]
          %v6703 = vld [vmem:[%s2 + $0x390] sm:$0xff]
          %v6704 = vld [vmem:[%s2 + $0x398] sm:$0xf]
          %v6705 = vld [vmem:[%s2 + $0x39c] sm:$0xff]
          %v6706 = vld [vmem:[%s2 + $0x3a4] sm:$0xf]
          %v6707 = vld [vmem:[%s2 + $0x3a8] sm:$0xff]
          %v6708 = vld [vmem:[%s2 + $0x3b0] sm:$0xf]
          %v6709 = vld [vmem:[%s2 + $0x3b4] sm:$0xff]
          %v6710 = vld [vmem:[%s2 + $0x3bc] sm:$0xf]
          %v6711 = vld [vmem:[%s2 + $0x3c0] sm:$0xff]
          %v6712 = vld [vmem:[%s2 + $0x3c8] sm:$0xf]
          %v6713 = vld [vmem:[%s2 + $0x3cc] sm:$0xff]
          %v6714 = vld [vmem:[%s2 + $0x3d4] sm:$0xf]
          %v6715 = vld [vmem:[%s2 + $0x3d8] sm:$0xff]
          %v6716 = vld [vmem:[%s2 + $0x3e0] sm:$0xf]
          %v6717 = vld [vmem:[%s2 + $0x3e4] sm:$0xff]
          %v6718 = vld [vmem:[%s2 + $0x3ec] sm:$0xf]
          %v6719 = vld [vmem:[%s2 + $0x3f0] sm:$0xff]
          %v6720 = vld [vmem:[%s2 + $0x3f8] sm:$0xf]
          %v6721 = vld [vmem:[%s2 + $0x3fc] sm:$0xff]
          %v6722 = vld [vmem:[%s2 + $0x404] sm:$0xf]
          %v6723 = vld [vmem:[%s2 + $0x408] sm:$0xff]
          %v6724 = vld [vmem:[%s2 + $0x410] sm:$0xf]
          %v6725 = vld [vmem:[%s2 + $0x414] sm:$0xff]
          %v6726 = vld [vmem:[%s2 + $0x41c] sm:$0xf]
          %v6727 = vld [vmem:[%s2 + $0x420] sm:$0xff]
          %v6728 = vld [vmem:[%s2 + $0x428] sm:$0xf]
          %v6729 = vld [vmem:[%s2 + $0x42c] sm:$0xff]
          %v6730 = vld [vmem:[%s2 + $0x434] sm:$0xf]
          %v6731 = vld [vmem:[%s2 + $0x438] sm:$0xff]
          %v6732 = vld [vmem:[%s2 + $0x440] sm:$0xf]
          %v6733 = vld [vmem:[%s2 + $0x444] sm:$0xff]
          %v6734 = vld [vmem:[%s2 + $0x44c] sm:$0xf]
          %v6735 = vld [vmem:[%s2 + $0x450] sm:$0xff]
          %v6736 = vld [vmem:[%s2 + $0x458] sm:$0xf]
          %v6737 = vld [vmem:[%s2 + $0x45c] sm:$0xff]
          %v6738 = vld [vmem:[%s2 + $0x464] sm:$0xf]
          %v6739 = vld [vmem:[%s2 + $0x468] sm:$0xff]
          %v6740 = vld [vmem:[%s2 + $0x470] sm:$0xf]
          %v6741 = vld [vmem:[%s2 + $0x474] sm:$0xff]
          %v6742 = vld [vmem:[%s2 + $0x47c] sm:$0xf]
          %v6743 = vld [vmem:[%s2 + $0x480] sm:$0xff]
          %v6744 = vld [vmem:[%s2 + $0x488] sm:$0xf]
          %v6745 = vld [vmem:[%s2 + $0x48c] sm:$0xff]
          %v6746 = vld [vmem:[%s2 + $0x494] sm:$0xf]
          %v6747 = vld [vmem:[%s2 + $0x498] sm:$0xff]
          %v6748 = vld [vmem:[%s2 + $0x4a0] sm:$0xf]
          %v6749 = vld [vmem:[%s2 + $0x4a4] sm:$0xff]
          %v6750 = vld [vmem:[%s2 + $0x4ac] sm:$0xf]
          %v6751 = vld [vmem:[%s2 + $0x4b0] sm:$0xff]
          %v6752 = vld [vmem:[%s2 + $0x4b8] sm:$0xf]
          %v6753 = vld [vmem:[%s2 + $0x4bc] sm:$0xff]
          %v6754 = vld [vmem:[%s2 + $0x4c4] sm:$0xf]
          %v6755 = vld [vmem:[%s2 + $0x4c8] sm:$0xff]
          %v6756 = vld [vmem:[%s2 + $0x4d0] sm:$0xf]
          %v6757 = vld [vmem:[%s2 + $0x4d4] sm:$0xff]
          %v6758 = vld [vmem:[%s2 + $0x4dc] sm:$0xf]
          %v6759 = vld [vmem:[%s2 + $0x4e0] sm:$0xff]
          %v6760 = vld [vmem:[%s2 + $0x4e8] sm:$0xf]
          %v6761 = vld [vmem:[%s2 + $0x4ec] sm:$0xff]
          %v6762 = vld [vmem:[%s2 + $0x4f4] sm:$0xf]
          %v6763 = vld [vmem:[%s2 + $0x4f8] sm:$0xff]
          %v6764 = vld [vmem:[%s2 + $0x500] sm:$0xf]
          %v6765 = vld [vmem:[%s2 + $0x504] sm:$0xff]
          %v6766 = vld [vmem:[%s2 + $0x50c] sm:$0xf]
          %v6767 = vld [vmem:[%s2 + $0x510] sm:$0xff]
          %v6768 = vld [vmem:[%s2 + $0x518] sm:$0xf]
          %v6769 = vld [vmem:[%s2 + $0x51c] sm:$0xff]
          %v6770 = vld [vmem:[%s2 + $0x524] sm:$0xf]
          %v6771 = vld [vmem:[%s2 + $0x528] sm:$0xff]
          %v6772 = vld [vmem:[%s2 + $0x530] sm:$0xf]
          %v6773 = vld [vmem:[%s2 + $0x534] sm:$0xff]
          %v6774 = vld [vmem:[%s2 + $0x53c] sm:$0xf]
          %v6775 = vld [vmem:[%s2 + $0x540] sm:$0xff]
          %v6776 = vld [vmem:[%s2 + $0x548] sm:$0xf]
          %v6777 = vld [vmem:[%s2 + $0x54c] sm:$0xff]
          %v6778 = vld [vmem:[%s2 + $0x554] sm:$0xf]
          %v6779 = vld [vmem:[%s2 + $0x558] sm:$0xff]
          %v6780 = vld [vmem:[%s2 + $0x560] sm:$0xf]
          %v6781 = vld [vmem:[%s2 + $0x564] sm:$0xff]
          %v6782 = vld [vmem:[%s2 + $0x56c] sm:$0xf]
          %v6783 = vld [vmem:[%s2 + $0x570] sm:$0xff]
          %v6784 = vld [vmem:[%s2 + $0x578] sm:$0xf]
          %v6785 = vld [vmem:[%s2 + $0x57c] sm:$0xff]
          %v6786 = vld [vmem:[%s2 + $0x584] sm:$0xf]
          %v6787 = vld [vmem:[%s2 + $0x588] sm:$0xff]
          %v6788 = vld [vmem:[%s2 + $0x590] sm:$0xf]
          %v6789 = vld [vmem:[%s2 + $0x594] sm:$0xff]
          %v6790 = vld [vmem:[%s2 + $0x59c] sm:$0xf]
          %v6791 = vld [vmem:[%s2 + $0x5a0] sm:$0xff]
          %v6792 = vld [vmem:[%s2 + $0x5a8] sm:$0xf]
          %v6793 = vld [vmem:[%s2 + $0x5ac] sm:$0xff]
          %v6794 = vld [vmem:[%s2 + $0x5b4] sm:$0xf]
          %v6795 = vld [vmem:[%s2 + $0x5b8] sm:$0xff]
          %v6796 = vld [vmem:[%s2 + $0x5c0] sm:$0xf]
          %v6797 = vld [vmem:[%s2 + $0x5c4] sm:$0xff]
          %v6798 = vld [vmem:[%s2 + $0x5cc] sm:$0xf]
          %v6799 = vld [vmem:[%s2 + $0x5d0] sm:$0xff]
          %v6800 = vld [vmem:[%s2 + $0x5d8] sm:$0xf]
          %v6801 = vld [vmem:[%s2 + $0x5dc] sm:$0xff]
          %v6802 = vld [vmem:[%s2 + $0x5e4] sm:$0xf]
          %v6803 = vld [vmem:[%s2 + $0x5e8] sm:$0xff]
          %v6804 = vld [vmem:[%s2 + $0x5f0] sm:$0xf]
          %v6805 = vld [vmem:[%s2 + $0x5f4] sm:$0xff]
          %v6806 = vld [vmem:[%s2 + $0x5fc] sm:$0xf]
          %v6807 = vld [vmem:[%s2 + $0x600] sm:$0xff]
          %v6808 = vld [vmem:[%s2 + $0x608] sm:$0xf]
          %v6809 = vld [vmem:[%s2 + $0x60c] sm:$0xff]
          %v6810 = vld [vmem:[%s2 + $0x614] sm:$0xf]
          %v6811 = vld [vmem:[%s2 + $0x618] sm:$0xff]
          %v6812 = vld [vmem:[%s2 + $0x620] sm:$0xf]
          %v6813 = vld [vmem:[%s2 + $0x624] sm:$0xff]
          %v6814 = vld [vmem:[%s2 + $0x62c] sm:$0xf]
          %v6815 = vld [vmem:[%s2 + $0x630] sm:$0xff]
          %v6816 = vld [vmem:[%s2 + $0x638] sm:$0xf]
          %v6817 = vld [vmem:[%s2 + $0x63c] sm:$0xff]
          %v6818 = vld [vmem:[%s2 + $0x644] sm:$0xf]
          %v6819 = vld [vmem:[%s2 + $0x648] sm:$0xff]
          %v6820 = vld [vmem:[%s2 + $0x650] sm:$0xf]
          %v6821 = vld [vmem:[%s2 + $0x654] sm:$0xff]
          %v6822 = vld [vmem:[%s2 + $0x65c] sm:$0xf]
          %v6823 = vld [vmem:[%s2 + $0x660] sm:$0xff]
          %v6824 = vld [vmem:[%s2 + $0x668] sm:$0xf]
          %v6825 = vld [vmem:[%s2 + $0x66c] sm:$0xff]
          %v6826 = vld [vmem:[%s2 + $0x674] sm:$0xf]
          %v6827 = vld [vmem:[%s2 + $0x678] sm:$0xff]
          %v6828 = vld [vmem:[%s2 + $0x680] sm:$0xf]
          %v6829 = vld [vmem:[%s2 + $0x684] sm:$0xff]
          %v6830 = vld [vmem:[%s2 + $0x68c] sm:$0xf]
          %v6831 = vld [vmem:[%s2 + $0x690] sm:$0xff]
          %v6832 = vld [vmem:[%s2 + $0x698] sm:$0xf]
          %v6833 = vld [vmem:[%s2 + $0x69c] sm:$0xff]
          %v6834 = vld [vmem:[%s2 + $0x6a4] sm:$0xf]
          %v6835 = vld [vmem:[%s2 + $0x6a8] sm:$0xff]
          %v6836 = vld [vmem:[%s2 + $0x6b0] sm:$0xf]
          %v6837 = vld [vmem:[%s2 + $0x6b4] sm:$0xff]
          %v6838 = vld [vmem:[%s2 + $0x6bc] sm:$0xf]
          %v6839 = vld [vmem:[%s2 + $0x6c0] sm:$0xff]
          %v6840 = vld [vmem:[%s2 + $0x6c8] sm:$0xf]
          %v6841 = vld [vmem:[%s2 + $0x6cc] sm:$0xff]
          %v6842 = vld [vmem:[%s2 + $0x6d4] sm:$0xf]
          %v6843 = vld [vmem:[%s2 + $0x6d8] sm:$0xff]
          %v6844 = vld [vmem:[%s2 + $0x6e0] sm:$0xf]
          %v6845 = vld [vmem:[%s2 + $0x6e4] sm:$0xff]
          %v6846 = vld [vmem:[%s2 + $0x6ec] sm:$0xf]
          %v6847 = vld [vmem:[%s2 + $0x6f0] sm:$0xff]
          %v6848 = vld [vmem:[%s2 + $0x6f8] sm:$0xf]
          %v6849 = vld [vmem:[%s2 + $0x6fc] sm:$0xff]
          %v6850 = vld [vmem:[%s2 + $0x704] sm:$0xf]
          %v6851 = vld [vmem:[%s2 + $0x708] sm:$0xff]
          %v6852 = vld [vmem:[%s2 + $0x710] sm:$0xf]
          %v6853 = vld [vmem:[%s2 + $0x714] sm:$0xff]
          %v6854 = vld [vmem:[%s2 + $0x71c] sm:$0xf]
          %v6855 = vld [vmem:[%s2 + $0x720] sm:$0xff]
          %v6856 = vld [vmem:[%s2 + $0x728] sm:$0xf]
          %v6857 = vld [vmem:[%s2 + $0x72c] sm:$0xff]
          %v6858 = vld [vmem:[%s2 + $0x734] sm:$0xf]
          %v6859 = vld [vmem:[%s2 + $0x738] sm:$0xff]
          %v6860 = vld [vmem:[%s2 + $0x740] sm:$0xf]
          %v6861 = vld [vmem:[%s2 + $0x744] sm:$0xff]
          %v6862 = vld [vmem:[%s2 + $0x74c] sm:$0xf]
          %v6863 = vld [vmem:[%s2 + $0x750] sm:$0xff]
          %v6864 = vld [vmem:[%s2 + $0x758] sm:$0xf]
          %v6865 = vld [vmem:[%s2 + $0x75c] sm:$0xff]
          %v6866 = vld [vmem:[%s2 + $0x764] sm:$0xf]
          %v6867 = vld [vmem:[%s2 + $0x768] sm:$0xff]
          %v6868 = vld [vmem:[%s2 + $0x770] sm:$0xf]
          %v6869 = vld [vmem:[%s2 + $0x774] sm:$0xff]
          %v6870 = vld [vmem:[%s2 + $0x77c] sm:$0xf]
          %v7191 = vunpack.c.l.b16 %v6551
          %v7192 = vunpack.c.h.b16 %v6551
          %v7193 = vunpack.c.l.b16 %v6552
          %v7194 = vunpack.c.l.b16 %v6553
          %v7195 = vunpack.c.h.b16 %v6553
          %v7196 = vunpack.c.l.b16 %v6554
          %v7197 = vunpack.c.l.b16 %v6555
          %v7198 = vunpack.c.h.b16 %v6555
          %v7199 = vunpack.c.l.b16 %v6556
          %v7200 = vunpack.c.l.b16 %v6557
          %v7201 = vunpack.c.h.b16 %v6557
          %v7202 = vunpack.c.l.b16 %v6558
          %v7203 = vunpack.c.l.b16 %v6559
          %v7204 = vunpack.c.h.b16 %v6559
          %v7205 = vunpack.c.l.b16 %v6560
          %v7206 = vunpack.c.l.b16 %v6561
          %v7207 = vunpack.c.h.b16 %v6561
          %v7208 = vunpack.c.l.b16 %v6562
          %v7209 = vunpack.c.l.b16 %v6563
          %v7210 = vunpack.c.h.b16 %v6563
          %v7211 = vunpack.c.l.b16 %v6564
          %v7212 = vunpack.c.l.b16 %v6565
          %v7213 = vunpack.c.h.b16 %v6565
          %v7214 = vunpack.c.l.b16 %v6566
          %v7215 = vunpack.c.l.b16 %v6567
          %v7216 = vunpack.c.h.b16 %v6567
          %v7217 = vunpack.c.l.b16 %v6568
          %v7218 = vunpack.c.l.b16 %v6569
          %v7219 = vunpack.c.h.b16 %v6569
          %v7220 = vunpack.c.l.b16 %v6570
          %v7221 = vunpack.c.l.b16 %v6571
          %v7222 = vunpack.c.h.b16 %v6571
          %v7223 = vunpack.c.l.b16 %v6572
          %v7224 = vunpack.c.l.b16 %v6573
          %v7225 = vunpack.c.h.b16 %v6573
          %v7226 = vunpack.c.l.b16 %v6574
          %v7227 = vunpack.c.l.b16 %v6575
          %v7228 = vunpack.c.h.b16 %v6575
          %v7229 = vunpack.c.l.b16 %v6576
          %v7230 = vunpack.c.l.b16 %v6577
          %v7231 = vunpack.c.h.b16 %v6577
          %v7232 = vunpack.c.l.b16 %v6578
          %v7233 = vunpack.c.l.b16 %v6579
          %v7234 = vunpack.c.h.b16 %v6579
          %v7235 = vunpack.c.l.b16 %v6580
          %v7236 = vunpack.c.l.b16 %v6581
          %v7237 = vunpack.c.h.b16 %v6581
          %v7238 = vunpack.c.l.b16 %v6582
          %v7239 = vunpack.c.l.b16 %v6583
          %v7240 = vunpack.c.h.b16 %v6583
          %v7241 = vunpack.c.l.b16 %v6584
          %v7242 = vunpack.c.l.b16 %v6585
          %v7243 = vunpack.c.h.b16 %v6585
          %v7244 = vunpack.c.l.b16 %v6586
          %v7245 = vunpack.c.l.b16 %v6587
          %v7246 = vunpack.c.h.b16 %v6587
          %v7247 = vunpack.c.l.b16 %v6588
          %v7248 = vunpack.c.l.b16 %v6589
          %v7249 = vunpack.c.h.b16 %v6589
          %v7250 = vunpack.c.l.b16 %v6590
          %v7251 = vunpack.c.l.b16 %v6591
          %v7252 = vunpack.c.h.b16 %v6591
          %v7253 = vunpack.c.l.b16 %v6592
          %v7254 = vunpack.c.l.b16 %v6593
          %v7255 = vunpack.c.h.b16 %v6593
          %v7256 = vunpack.c.l.b16 %v6594
          %v7257 = vunpack.c.l.b16 %v6595
          %v7258 = vunpack.c.h.b16 %v6595
          %v7259 = vunpack.c.l.b16 %v6596
          %v7260 = vunpack.c.l.b16 %v6597
          %v7261 = vunpack.c.h.b16 %v6597
          %v7262 = vunpack.c.l.b16 %v6598
          %v7263 = vunpack.c.l.b16 %v6599
          %v7264 = vunpack.c.h.b16 %v6599
          %v7265 = vunpack.c.l.b16 %v6600
          %v7266 = vunpack.c.l.b16 %v6601
          %v7267 = vunpack.c.h.b16 %v6601
          %v7268 = vunpack.c.l.b16 %v6602
          %v7269 = vunpack.c.l.b16 %v6603
          %v7270 = vunpack.c.h.b16 %v6603
          %v7271 = vunpack.c.l.b16 %v6604
          %v7272 = vunpack.c.l.b16 %v6605
          %v7273 = vunpack.c.h.b16 %v6605
          %v7274 = vunpack.c.l.b16 %v6606
          %v7275 = vunpack.c.l.b16 %v6607
          %v7276 = vunpack.c.h.b16 %v6607
          %v7277 = vunpack.c.l.b16 %v6608
          %v7278 = vunpack.c.l.b16 %v6609
          %v7279 = vunpack.c.h.b16 %v6609
          %v7280 = vunpack.c.l.b16 %v6610
          %v7281 = vunpack.c.l.b16 %v6611
          %v7282 = vunpack.c.h.b16 %v6611
          %v7283 = vunpack.c.l.b16 %v6612
          %v7284 = vunpack.c.l.b16 %v6613
          %v7285 = vunpack.c.h.b16 %v6613
          %v7286 = vunpack.c.l.b16 %v6614
          %v7287 = vunpack.c.l.b16 %v6615
          %v7288 = vunpack.c.h.b16 %v6615
          %v7289 = vunpack.c.l.b16 %v6616
          %v7290 = vunpack.c.l.b16 %v6617
          %v7291 = vunpack.c.h.b16 %v6617
          %v7292 = vunpack.c.l.b16 %v6618
          %v7293 = vunpack.c.l.b16 %v6619
          %v7294 = vunpack.c.h.b16 %v6619
          %v7295 = vunpack.c.l.b16 %v6620
          %v7296 = vunpack.c.l.b16 %v6621
          %v7297 = vunpack.c.h.b16 %v6621
          %v7298 = vunpack.c.l.b16 %v6622
          %v7299 = vunpack.c.l.b16 %v6623
          %v7300 = vunpack.c.h.b16 %v6623
          %v7301 = vunpack.c.l.b16 %v6624
          %v7302 = vunpack.c.l.b16 %v6625
          %v7303 = vunpack.c.h.b16 %v6625
          %v7304 = vunpack.c.l.b16 %v6626
          %v7305 = vunpack.c.l.b16 %v6627
          %v7306 = vunpack.c.h.b16 %v6627
          %v7307 = vunpack.c.l.b16 %v6628
          %v7308 = vunpack.c.l.b16 %v6629
          %v7309 = vunpack.c.h.b16 %v6629
          %v7310 = vunpack.c.l.b16 %v6630
          %v7311 = vunpack.c.l.b16 %v6631
          %v7312 = vunpack.c.h.b16 %v6631
          %v7313 = vunpack.c.l.b16 %v6632
          %v7314 = vunpack.c.l.b16 %v6633
          %v7315 = vunpack.c.h.b16 %v6633
          %v7316 = vunpack.c.l.b16 %v6634
          %v7317 = vunpack.c.l.b16 %v6635
          %v7318 = vunpack.c.h.b16 %v6635
          %v7319 = vunpack.c.l.b16 %v6636
          %v7320 = vunpack.c.l.b16 %v6637
          %v7321 = vunpack.c.h.b16 %v6637
          %v7322 = vunpack.c.l.b16 %v6638
          %v7323 = vunpack.c.l.b16 %v6639
          %v7324 = vunpack.c.h.b16 %v6639
          %v7325 = vunpack.c.l.b16 %v6640
          %v7326 = vunpack.c.l.b16 %v6641
          %v7327 = vunpack.c.h.b16 %v6641
          %v7328 = vunpack.c.l.b16 %v6642
          %v7329 = vunpack.c.l.b16 %v6643
          %v7330 = vunpack.c.h.b16 %v6643
          %v7331 = vunpack.c.l.b16 %v6644
          %v7332 = vunpack.c.l.b16 %v6645
          %v7333 = vunpack.c.h.b16 %v6645
          %v7334 = vunpack.c.l.b16 %v6646
          %v7335 = vunpack.c.l.b16 %v6647
          %v7336 = vunpack.c.h.b16 %v6647
          %v7337 = vunpack.c.l.b16 %v6648
          %v7338 = vunpack.c.l.b16 %v6649
          %v7339 = vunpack.c.h.b16 %v6649
          %v7340 = vunpack.c.l.b16 %v6650
          %v7341 = vunpack.c.l.b16 %v6651
          %v7342 = vunpack.c.h.b16 %v6651
          %v7343 = vunpack.c.l.b16 %v6652
          %v7344 = vunpack.c.l.b16 %v6653
          %v7345 = vunpack.c.h.b16 %v6653
          %v7346 = vunpack.c.l.b16 %v6654
          %v7347 = vunpack.c.l.b16 %v6655
          %v7348 = vunpack.c.h.b16 %v6655
          %v7349 = vunpack.c.l.b16 %v6656
          %v7350 = vunpack.c.l.b16 %v6657
          %v7351 = vunpack.c.h.b16 %v6657
          %v7352 = vunpack.c.l.b16 %v6658
          %v7353 = vunpack.c.l.b16 %v6659
          %v7354 = vunpack.c.h.b16 %v6659
          %v7355 = vunpack.c.l.b16 %v6660
          %v7356 = vunpack.c.l.b16 %v6661
          %v7357 = vunpack.c.h.b16 %v6661
          %v7358 = vunpack.c.l.b16 %v6662
          %v7359 = vunpack.c.l.b16 %v6663
          %v7360 = vunpack.c.h.b16 %v6663
          %v7361 = vunpack.c.l.b16 %v6664
          %v7362 = vunpack.c.l.b16 %v6665
          %v7363 = vunpack.c.h.b16 %v6665
          %v7364 = vunpack.c.l.b16 %v6666
          %v7365 = vunpack.c.l.b16 %v6667
          %v7366 = vunpack.c.h.b16 %v6667
          %v7367 = vunpack.c.l.b16 %v6668
          %v7368 = vunpack.c.l.b16 %v6669
          %v7369 = vunpack.c.h.b16 %v6669
          %v7370 = vunpack.c.l.b16 %v6670
          %v7371 = vunpack.c.l.b16 %v6671
          %v7372 = vunpack.c.h.b16 %v6671
          %v7373 = vunpack.c.l.b16 %v6672
          %v7374 = vunpack.c.l.b16 %v6673
          %v7375 = vunpack.c.h.b16 %v6673
          %v7376 = vunpack.c.l.b16 %v6674
          %v7377 = vunpack.c.l.b16 %v6675
          %v7378 = vunpack.c.h.b16 %v6675
          %v7379 = vunpack.c.l.b16 %v6676
          %v7380 = vunpack.c.l.b16 %v6677
          %v7381 = vunpack.c.h.b16 %v6677
          %v7382 = vunpack.c.l.b16 %v6678
          %v7383 = vunpack.c.l.b16 %v6679
          %v7384 = vunpack.c.h.b16 %v6679
          %v7385 = vunpack.c.l.b16 %v6680
          %v7386 = vunpack.c.l.b16 %v6681
          %v7387 = vunpack.c.h.b16 %v6681
          %v7388 = vunpack.c.l.b16 %v6682
          %v7389 = vunpack.c.l.b16 %v6683
          %v7390 = vunpack.c.h.b16 %v6683
          %v7391 = vunpack.c.l.b16 %v6684
          %v7392 = vunpack.c.l.b16 %v6685
          %v7393 = vunpack.c.h.b16 %v6685
          %v7394 = vunpack.c.l.b16 %v6686
          %v7395 = vunpack.c.l.b16 %v6687
          %v7396 = vunpack.c.h.b16 %v6687
          %v7397 = vunpack.c.l.b16 %v6688
          %v7398 = vunpack.c.l.b16 %v6689
          %v7399 = vunpack.c.h.b16 %v6689
          %v7400 = vunpack.c.l.b16 %v6690
          %v7401 = vunpack.c.l.b16 %v6691
          %v7402 = vunpack.c.h.b16 %v6691
          %v7403 = vunpack.c.l.b16 %v6692
          %v7404 = vunpack.c.l.b16 %v6693
          %v7405 = vunpack.c.h.b16 %v6693
          %v7406 = vunpack.c.l.b16 %v6694
          %v7407 = vunpack.c.l.b16 %v6695
          %v7408 = vunpack.c.h.b16 %v6695
          %v7409 = vunpack.c.l.b16 %v6696
          %v7410 = vunpack.c.l.b16 %v6697
          %v7411 = vunpack.c.h.b16 %v6697
          %v7412 = vunpack.c.l.b16 %v6698
          %v7413 = vunpack.c.l.b16 %v6699
          %v7414 = vunpack.c.h.b16 %v6699
          %v7415 = vunpack.c.l.b16 %v6700
          %v7416 = vunpack.c.l.b16 %v6701
          %v7417 = vunpack.c.h.b16 %v6701
          %v7418 = vunpack.c.l.b16 %v6702
          %v7419 = vunpack.c.l.b16 %v6703
          %v7420 = vunpack.c.h.b16 %v6703
          %v7421 = vunpack.c.l.b16 %v6704
          %v7422 = vunpack.c.l.b16 %v6705
          %v7423 = vunpack.c.h.b16 %v6705
          %v7424 = vunpack.c.l.b16 %v6706
          %v7425 = vunpack.c.l.b16 %v6707
          %v7426 = vunpack.c.h.b16 %v6707
          %v7427 = vunpack.c.l.b16 %v6708
          %v7428 = vunpack.c.l.b16 %v6709
          %v7429 = vunpack.c.h.b16 %v6709
          %v7430 = vunpack.c.l.b16 %v6710
          %v7431 = vunpack.c.l.b16 %v6711
          %v7432 = vunpack.c.h.b16 %v6711
          %v7433 = vunpack.c.l.b16 %v6712
          %v7434 = vunpack.c.l.b16 %v6713
          %v7435 = vunpack.c.h.b16 %v6713
          %v7436 = vunpack.c.l.b16 %v6714
          %v7437 = vunpack.c.l.b16 %v6715
          %v7438 = vunpack.c.h.b16 %v6715
          %v7439 = vunpack.c.l.b16 %v6716
          %v7440 = vunpack.c.l.b16 %v6717
          %v7441 = vunpack.c.h.b16 %v6717
          %v7442 = vunpack.c.l.b16 %v6718
          %v7443 = vunpack.c.l.b16 %v6719
          %v7444 = vunpack.c.h.b16 %v6719
          %v7445 = vunpack.c.l.b16 %v6720
          %v7446 = vunpack.c.l.b16 %v6721
          %v7447 = vunpack.c.h.b16 %v6721
          %v7448 = vunpack.c.l.b16 %v6722
          %v7449 = vunpack.c.l.b16 %v6723
          %v7450 = vunpack.c.h.b16 %v6723
          %v7451 = vunpack.c.l.b16 %v6724
          %v7452 = vunpack.c.l.b16 %v6725
          %v7453 = vunpack.c.h.b16 %v6725
          %v7454 = vunpack.c.l.b16 %v6726
          %v7455 = vunpack.c.l.b16 %v6727
          %v7456 = vunpack.c.h.b16 %v6727
          %v7457 = vunpack.c.l.b16 %v6728
          %v7458 = vunpack.c.l.b16 %v6729
          %v7459 = vunpack.c.h.b16 %v6729
          %v7460 = vunpack.c.l.b16 %v6730
          %v7461 = vunpack.c.l.b16 %v6731
          %v7462 = vunpack.c.h.b16 %v6731
          %v7463 = vunpack.c.l.b16 %v6732
          %v7464 = vunpack.c.l.b16 %v6733
          %v7465 = vunpack.c.h.b16 %v6733
          %v7466 = vunpack.c.l.b16 %v6734
          %v7467 = vunpack.c.l.b16 %v6735
          %v7468 = vunpack.c.h.b16 %v6735
          %v7469 = vunpack.c.l.b16 %v6736
          %v7470 = vunpack.c.l.b16 %v6737
          %v7471 = vunpack.c.h.b16 %v6737
          %v7472 = vunpack.c.l.b16 %v6738
          %v7473 = vunpack.c.l.b16 %v6739
          %v7474 = vunpack.c.h.b16 %v6739
          %v7475 = vunpack.c.l.b16 %v6740
          %v7476 = vunpack.c.l.b16 %v6741
          %v7477 = vunpack.c.h.b16 %v6741
          %v7478 = vunpack.c.l.b16 %v6742
          %v7479 = vunpack.c.l.b16 %v6743
          %v7480 = vunpack.c.h.b16 %v6743
          %v7481 = vunpack.c.l.b16 %v6744
          %v7482 = vunpack.c.l.b16 %v6745
          %v7483 = vunpack.c.h.b16 %v6745
          %v7484 = vunpack.c.l.b16 %v6746
          %v7485 = vunpack.c.l.b16 %v6747
          %v7486 = vunpack.c.h.b16 %v6747
          %v7487 = vunpack.c.l.b16 %v6748
          %v7488 = vunpack.c.l.b16 %v6749
          %v7489 = vunpack.c.h.b16 %v6749
          %v7490 = vunpack.c.l.b16 %v6750
          %v7491 = vunpack.c.l.b16 %v6751
          %v7492 = vunpack.c.h.b16 %v6751
          %v7493 = vunpack.c.l.b16 %v6752
          %v7494 = vunpack.c.l.b16 %v6753
          %v7495 = vunpack.c.h.b16 %v6753
          %v7496 = vunpack.c.l.b16 %v6754
          %v7497 = vunpack.c.l.b16 %v6755
          %v7498 = vunpack.c.h.b16 %v6755
          %v7499 = vunpack.c.l.b16 %v6756
          %v7500 = vunpack.c.l.b16 %v6757
          %v7501 = vunpack.c.h.b16 %v6757
          %v7502 = vunpack.c.l.b16 %v6758
          %v7503 = vunpack.c.l.b16 %v6759
          %v7504 = vunpack.c.h.b16 %v6759
          %v7505 = vunpack.c.l.b16 %v6760
          %v7506 = vunpack.c.l.b16 %v6761
          %v7507 = vunpack.c.h.b16 %v6761
          %v7508 = vunpack.c.l.b16 %v6762
          %v7509 = vunpack.c.l.b16 %v6763
          %v7510 = vunpack.c.h.b16 %v6763
          %v7511 = vunpack.c.l.b16 %v6764
          %v7512 = vunpack.c.l.b16 %v6765
          %v7513 = vunpack.c.h.b16 %v6765
          %v7514 = vunpack.c.l.b16 %v6766
          %v7515 = vunpack.c.l.b16 %v6767
          %v7516 = vunpack.c.h.b16 %v6767
          %v7517 = vunpack.c.l.b16 %v6768
          %v7518 = vunpack.c.l.b16 %v6769
          %v7519 = vunpack.c.h.b16 %v6769
          %v7520 = vunpack.c.l.b16 %v6770
          %v7521 = vunpack.c.l.b16 %v6771
          %v7522 = vunpack.c.h.b16 %v6771
          %v7523 = vunpack.c.l.b16 %v6772
          %v7524 = vunpack.c.l.b16 %v6773
          %v7525 = vunpack.c.h.b16 %v6773
          %v7526 = vunpack.c.l.b16 %v6774
          %v7527 = vunpack.c.l.b16 %v6775
          %v7528 = vunpack.c.h.b16 %v6775
          %v7529 = vunpack.c.l.b16 %v6776
          %v7530 = vunpack.c.l.b16 %v6777
          %v7531 = vunpack.c.h.b16 %v6777
          %v7532 = vunpack.c.l.b16 %v6778
          %v7533 = vunpack.c.l.b16 %v6779
          %v7534 = vunpack.c.h.b16 %v6779
          %v7535 = vunpack.c.l.b16 %v6780
          %v7536 = vunpack.c.l.b16 %v6781
          %v7537 = vunpack.c.h.b16 %v6781
          %v7538 = vunpack.c.l.b16 %v6782
          %v7539 = vunpack.c.l.b16 %v6783
          %v7540 = vunpack.c.h.b16 %v6783
          %v7541 = vunpack.c.l.b16 %v6784
          %v7542 = vunpack.c.l.b16 %v6785
          %v7543 = vunpack.c.h.b16 %v6785
          %v7544 = vunpack.c.l.b16 %v6786
          %v7545 = vunpack.c.l.b16 %v6787
          %v7546 = vunpack.c.h.b16 %v6787
          %v7547 = vunpack.c.l.b16 %v6788
          %v7548 = vunpack.c.l.b16 %v6789
          %v7549 = vunpack.c.h.b16 %v6789
          %v7550 = vunpack.c.l.b16 %v6790
          %v7551 = vunpack.c.l.b16 %v6791
          %v7552 = vunpack.c.h.b16 %v6791
          %v7553 = vunpack.c.l.b16 %v6792
          %v7554 = vunpack.c.l.b16 %v6793
          %v7555 = vunpack.c.h.b16 %v6793
          %v7556 = vunpack.c.l.b16 %v6794
          %v7557 = vunpack.c.l.b16 %v6795
          %v7558 = vunpack.c.h.b16 %v6795
          %v7559 = vunpack.c.l.b16 %v6796
          %v7560 = vunpack.c.l.b16 %v6797
          %v7561 = vunpack.c.h.b16 %v6797
          %v7562 = vunpack.c.l.b16 %v6798
          %v7563 = vunpack.c.l.b16 %v6799
          %v7564 = vunpack.c.h.b16 %v6799
          %v7565 = vunpack.c.l.b16 %v6800
          %v7566 = vunpack.c.l.b16 %v6801
          %v7567 = vunpack.c.h.b16 %v6801
          %v7568 = vunpack.c.l.b16 %v6802
          %v7569 = vunpack.c.l.b16 %v6803
          %v7570 = vunpack.c.h.b16 %v6803
          %v7571 = vunpack.c.l.b16 %v6804
          %v7572 = vunpack.c.l.b16 %v6805
          %v7573 = vunpack.c.h.b16 %v6805
          %v7574 = vunpack.c.l.b16 %v6806
          %v7575 = vunpack.c.l.b16 %v6807
          %v7576 = vunpack.c.h.b16 %v6807
          %v7577 = vunpack.c.l.b16 %v6808
          %v7578 = vunpack.c.l.b16 %v6809
          %v7579 = vunpack.c.h.b16 %v6809
          %v7580 = vunpack.c.l.b16 %v6810
          %v7581 = vunpack.c.l.b16 %v6811
          %v7582 = vunpack.c.h.b16 %v6811
          %v7583 = vunpack.c.l.b16 %v6812
          %v7584 = vunpack.c.l.b16 %v6813
          %v7585 = vunpack.c.h.b16 %v6813
          %v7586 = vunpack.c.l.b16 %v6814
          %v7587 = vunpack.c.l.b16 %v6815
          %v7588 = vunpack.c.h.b16 %v6815
          %v7589 = vunpack.c.l.b16 %v6816
          %v7590 = vunpack.c.l.b16 %v6817
          %v7591 = vunpack.c.h.b16 %v6817
          %v7592 = vunpack.c.l.b16 %v6818
          %v7593 = vunpack.c.l.b16 %v6819
          %v7594 = vunpack.c.h.b16 %v6819
          %v7595 = vunpack.c.l.b16 %v6820
          %v7596 = vunpack.c.l.b16 %v6821
          %v7597 = vunpack.c.h.b16 %v6821
          %v7598 = vunpack.c.l.b16 %v6822
          %v7599 = vunpack.c.l.b16 %v6823
          %v7600 = vunpack.c.h.b16 %v6823
          %v7601 = vunpack.c.l.b16 %v6824
          %v7602 = vunpack.c.l.b16 %v6825
          %v7603 = vunpack.c.h.b16 %v6825
          %v7604 = vunpack.c.l.b16 %v6826
          %v7605 = vunpack.c.l.b16 %v6827
          %v7606 = vunpack.c.h.b16 %v6827
          %v7607 = vunpack.c.l.b16 %v6828
          %v7608 = vunpack.c.l.b16 %v6829
          %v7609 = vunpack.c.h.b16 %v6829
          %v7610 = vunpack.c.l.b16 %v6830
          %v7611 = vunpack.c.l.b16 %v6831
          %v7612 = vunpack.c.h.b16 %v6831
          %v7613 = vunpack.c.l.b16 %v6832
          %v7614 = vunpack.c.l.b16 %v6833
          %v7615 = vunpack.c.h.b16 %v6833
          %v7616 = vunpack.c.l.b16 %v6834
          %v7617 = vunpack.c.l.b16 %v6835
          %v7618 = vunpack.c.h.b16 %v6835
          %v7619 = vunpack.c.l.b16 %v6836
          %v7620 = vunpack.c.l.b16 %v6837
          %v7621 = vunpack.c.h.b16 %v6837
          %v7622 = vunpack.c.l.b16 %v6838
          %v7623 = vunpack.c.l.b16 %v6839
          %v7624 = vunpack.c.h.b16 %v6839
          %v7625 = vunpack.c.l.b16 %v6840
          %v7626 = vunpack.c.l.b16 %v6841
          %v7627 = vunpack.c.h.b16 %v6841
          %v7628 = vunpack.c.l.b16 %v6842
          %v7629 = vunpack.c.l.b16 %v6843
          %v7630 = vunpack.c.h.b16 %v6843
          %v7631 = vunpack.c.l.b16 %v6844
          %v7632 = vunpack.c.l.b16 %v6845
          %v7633 = vunpack.c.h.b16 %v6845
          %v7634 = vunpack.c.l.b16 %v6846
          %v7635 = vunpack.c.l.b16 %v6847
          %v7636 = vunpack.c.h.b16 %v6847
          %v7637 = vunpack.c.l.b16 %v6848
          %v7638 = vunpack.c.l.b16 %v6849
          %v7639 = vunpack.c.h.b16 %v6849
          %v7640 = vunpack.c.l.b16 %v6850
          %v7641 = vunpack.c.l.b16 %v6851
          %v7642 = vunpack.c.h.b16 %v6851
          %v7643 = vunpack.c.l.b16 %v6852
          %v7644 = vunpack.c.l.b16 %v6853
          %v7645 = vunpack.c.h.b16 %v6853
          %v7646 = vunpack.c.l.b16 %v6854
          %v7647 = vunpack.c.l.b16 %v6855
          %v7648 = vunpack.c.h.b16 %v6855
          %v7649 = vunpack.c.l.b16 %v6856
          %v7650 = vunpack.c.l.b16 %v6857
          %v7651 = vunpack.c.h.b16 %v6857
          %v7652 = vunpack.c.l.b16 %v6858
          %v7653 = vunpack.c.l.b16 %v6859
          %v7654 = vunpack.c.h.b16 %v6859
          %v7655 = vunpack.c.l.b16 %v6860
          %v7656 = vunpack.c.l.b16 %v6861
          %v7657 = vunpack.c.h.b16 %v6861
          %v7658 = vunpack.c.l.b16 %v6862
          %v7659 = vunpack.c.l.b16 %v6863
          %v7660 = vunpack.c.h.b16 %v6863
          %v7661 = vunpack.c.l.b16 %v6864
          %v7662 = vunpack.c.l.b16 %v6865
          %v7663 = vunpack.c.h.b16 %v6865
          %v7664 = vunpack.c.l.b16 %v6866
          %v7665 = vunpack.c.l.b16 %v6867
          %v7666 = vunpack.c.h.b16 %v6867
          %v7667 = vunpack.c.l.b16 %v6868
          %v7668 = vunpack.c.l.b16 %v6869
          %v7669 = vunpack.c.h.b16 %v6869
          %v7670 = vunpack.c.l.b16 %v6870
          %v7671 = vpack.c.b16 %v7194, %v7191
          %v7672 = vpack.c.b16 %v7195, %v7192
          %v7673 = vpack.c.b16 %v7196, %v7193
          %v7674 = vpack.c.b16 %v7200, %v7197
          %v7675 = vpack.c.b16 %v7201, %v7198
          %v7676 = vpack.c.b16 %v7202, %v7199
          %v7677 = vpack.c.b16 %v7206, %v7203
          %v7678 = vpack.c.b16 %v7207, %v7204
          %v7679 = vpack.c.b16 %v7208, %v7205
          %v7680 = vpack.c.b16 %v7212, %v7209
          %v7681 = vpack.c.b16 %v7213, %v7210
          %v7682 = vpack.c.b16 %v7214, %v7211
          %v7683 = vpack.c.b16 %v7218, %v7215
          %v7684 = vpack.c.b16 %v7219, %v7216
          %v7685 = vpack.c.b16 %v7220, %v7217
          %v7686 = vpack.c.b16 %v7224, %v7221
          %v7687 = vpack.c.b16 %v7225, %v7222
          %v7688 = vpack.c.b16 %v7226, %v7223
          %v7689 = vpack.c.b16 %v7230, %v7227
          %v7690 = vpack.c.b16 %v7231, %v7228
          %v7691 = vpack.c.b16 %v7232, %v7229
          %v7692 = vpack.c.b16 %v7236, %v7233
          %v7693 = vpack.c.b16 %v7237, %v7234
          %v7694 = vpack.c.b16 %v7238, %v7235
          %v7695 = vpack.c.b16 %v7242, %v7239
          %v7696 = vpack.c.b16 %v7243, %v7240
          %v7697 = vpack.c.b16 %v7244, %v7241
          %v7698 = vpack.c.b16 %v7248, %v7245
          %v7699 = vpack.c.b16 %v7249, %v7246
          %v7700 = vpack.c.b16 %v7250, %v7247
          %v7701 = vpack.c.b16 %v7254, %v7251
          %v7702 = vpack.c.b16 %v7255, %v7252
          %v7703 = vpack.c.b16 %v7256, %v7253
          %v7704 = vpack.c.b16 %v7260, %v7257
          %v7705 = vpack.c.b16 %v7261, %v7258
          %v7706 = vpack.c.b16 %v7262, %v7259
          %v7707 = vpack.c.b16 %v7266, %v7263
          %v7708 = vpack.c.b16 %v7267, %v7264
          %v7709 = vpack.c.b16 %v7268, %v7265
          %v7710 = vpack.c.b16 %v7272, %v7269
          %v7711 = vpack.c.b16 %v7273, %v7270
          %v7712 = vpack.c.b16 %v7274, %v7271
          %v7713 = vpack.c.b16 %v7278, %v7275
          %v7714 = vpack.c.b16 %v7279, %v7276
          %v7715 = vpack.c.b16 %v7280, %v7277
          %v7716 = vpack.c.b16 %v7284, %v7281
          %v7717 = vpack.c.b16 %v7285, %v7282
          %v7718 = vpack.c.b16 %v7286, %v7283
          %v7719 = vpack.c.b16 %v7290, %v7287
          %v7720 = vpack.c.b16 %v7291, %v7288
          %v7721 = vpack.c.b16 %v7292, %v7289
          %v7722 = vpack.c.b16 %v7296, %v7293
          %v7723 = vpack.c.b16 %v7297, %v7294
          %v7724 = vpack.c.b16 %v7298, %v7295
          %v7725 = vpack.c.b16 %v7302, %v7299
          %v7726 = vpack.c.b16 %v7303, %v7300
          %v7727 = vpack.c.b16 %v7304, %v7301
          %v7728 = vpack.c.b16 %v7308, %v7305
          %v7729 = vpack.c.b16 %v7309, %v7306
          %v7730 = vpack.c.b16 %v7310, %v7307
          %v7731 = vpack.c.b16 %v7314, %v7311
          %v7732 = vpack.c.b16 %v7315, %v7312
          %v7733 = vpack.c.b16 %v7316, %v7313
          %v7734 = vpack.c.b16 %v7320, %v7317
          %v7735 = vpack.c.b16 %v7321, %v7318
          %v7736 = vpack.c.b16 %v7322, %v7319
          %v7737 = vpack.c.b16 %v7326, %v7323
          %v7738 = vpack.c.b16 %v7327, %v7324
          %v7739 = vpack.c.b16 %v7328, %v7325
          %v7740 = vpack.c.b16 %v7332, %v7329
          %v7741 = vpack.c.b16 %v7333, %v7330
          %v7742 = vpack.c.b16 %v7334, %v7331
          %v7743 = vpack.c.b16 %v7338, %v7335
          %v7744 = vpack.c.b16 %v7339, %v7336
          %v7745 = vpack.c.b16 %v7340, %v7337
          %v7746 = vpack.c.b16 %v7344, %v7341
          %v7747 = vpack.c.b16 %v7345, %v7342
          %v7748 = vpack.c.b16 %v7346, %v7343
          %v7749 = vpack.c.b16 %v7350, %v7347
          %v7750 = vpack.c.b16 %v7351, %v7348
          %v7751 = vpack.c.b16 %v7352, %v7349
          %v7752 = vpack.c.b16 %v7356, %v7353
          %v7753 = vpack.c.b16 %v7357, %v7354
          %v7754 = vpack.c.b16 %v7358, %v7355
          %v7755 = vpack.c.b16 %v7362, %v7359
          %v7756 = vpack.c.b16 %v7363, %v7360
          %v7757 = vpack.c.b16 %v7364, %v7361
          %v7758 = vpack.c.b16 %v7368, %v7365
          %v7759 = vpack.c.b16 %v7369, %v7366
          %v7760 = vpack.c.b16 %v7370, %v7367
          %v7761 = vpack.c.b16 %v7374, %v7371
          %v7762 = vpack.c.b16 %v7375, %v7372
          %v7763 = vpack.c.b16 %v7376, %v7373
          %v7764 = vpack.c.b16 %v7380, %v7377
          %v7765 = vpack.c.b16 %v7381, %v7378
          %v7766 = vpack.c.b16 %v7382, %v7379
          %v7767 = vpack.c.b16 %v7386, %v7383
          %v7768 = vpack.c.b16 %v7387, %v7384
          %v7769 = vpack.c.b16 %v7388, %v7385
          %v7770 = vpack.c.b16 %v7392, %v7389
          %v7771 = vpack.c.b16 %v7393, %v7390
          %v7772 = vpack.c.b16 %v7394, %v7391
          %v7773 = vpack.c.b16 %v7398, %v7395
          %v7774 = vpack.c.b16 %v7399, %v7396
          %v7775 = vpack.c.b16 %v7400, %v7397
          %v7776 = vpack.c.b16 %v7404, %v7401
          %v7777 = vpack.c.b16 %v7405, %v7402
          %v7778 = vpack.c.b16 %v7406, %v7403
          %v7779 = vpack.c.b16 %v7410, %v7407
          %v7780 = vpack.c.b16 %v7411, %v7408
          %v7781 = vpack.c.b16 %v7412, %v7409
          %v7782 = vpack.c.b16 %v7416, %v7413
          %v7783 = vpack.c.b16 %v7417, %v7414
          %v7784 = vpack.c.b16 %v7418, %v7415
          %v7785 = vpack.c.b16 %v7422, %v7419
          %v7786 = vpack.c.b16 %v7423, %v7420
          %v7787 = vpack.c.b16 %v7424, %v7421
          %v7788 = vpack.c.b16 %v7428, %v7425
          %v7789 = vpack.c.b16 %v7429, %v7426
          %v7790 = vpack.c.b16 %v7430, %v7427
          %v7791 = vpack.c.b16 %v7434, %v7431
          %v7792 = vpack.c.b16 %v7435, %v7432
          %v7793 = vpack.c.b16 %v7436, %v7433
          %v7794 = vpack.c.b16 %v7440, %v7437
          %v7795 = vpack.c.b16 %v7441, %v7438
          %v7796 = vpack.c.b16 %v7442, %v7439
          %v7797 = vpack.c.b16 %v7446, %v7443
          %v7798 = vpack.c.b16 %v7447, %v7444
          %v7799 = vpack.c.b16 %v7448, %v7445
          %v7800 = vpack.c.b16 %v7452, %v7449
          %v7801 = vpack.c.b16 %v7453, %v7450
          %v7802 = vpack.c.b16 %v7454, %v7451
          %v7803 = vpack.c.b16 %v7458, %v7455
          %v7804 = vpack.c.b16 %v7459, %v7456
          %v7805 = vpack.c.b16 %v7460, %v7457
          %v7806 = vpack.c.b16 %v7464, %v7461
          %v7807 = vpack.c.b16 %v7465, %v7462
          %v7808 = vpack.c.b16 %v7466, %v7463
          %v7809 = vpack.c.b16 %v7470, %v7467
          %v7810 = vpack.c.b16 %v7471, %v7468
          %v7811 = vpack.c.b16 %v7472, %v7469
          %v7812 = vpack.c.b16 %v7476, %v7473
          %v7813 = vpack.c.b16 %v7477, %v7474
          %v7814 = vpack.c.b16 %v7478, %v7475
          %v7815 = vpack.c.b16 %v7482, %v7479
          %v7816 = vpack.c.b16 %v7483, %v7480
          %v7817 = vpack.c.b16 %v7484, %v7481
          %v7818 = vpack.c.b16 %v7488, %v7485
          %v7819 = vpack.c.b16 %v7489, %v7486
          %v7820 = vpack.c.b16 %v7490, %v7487
          %v7821 = vpack.c.b16 %v7494, %v7491
          %v7822 = vpack.c.b16 %v7495, %v7492
          %v7823 = vpack.c.b16 %v7496, %v7493
          %v7824 = vpack.c.b16 %v7500, %v7497
          %v7825 = vpack.c.b16 %v7501, %v7498
          %v7826 = vpack.c.b16 %v7502, %v7499
          %v7827 = vpack.c.b16 %v7506, %v7503
          %v7828 = vpack.c.b16 %v7507, %v7504
          %v7829 = vpack.c.b16 %v7508, %v7505
          %v7830 = vpack.c.b16 %v7512, %v7509
          %v7831 = vpack.c.b16 %v7513, %v7510
          %v7832 = vpack.c.b16 %v7514, %v7511
          %v7833 = vpack.c.b16 %v7518, %v7515
          %v7834 = vpack.c.b16 %v7519, %v7516
          %v7835 = vpack.c.b16 %v7520, %v7517
          %v7836 = vpack.c.b16 %v7524, %v7521
          %v7837 = vpack.c.b16 %v7525, %v7522
          %v7838 = vpack.c.b16 %v7526, %v7523
          %v7839 = vpack.c.b16 %v7530, %v7527
          %v7840 = vpack.c.b16 %v7531, %v7528
          %v7841 = vpack.c.b16 %v7532, %v7529
          %v7842 = vpack.c.b16 %v7536, %v7533
          %v7843 = vpack.c.b16 %v7537, %v7534
          %v7844 = vpack.c.b16 %v7538, %v7535
          %v7845 = vpack.c.b16 %v7542, %v7539
          %v7846 = vpack.c.b16 %v7543, %v7540
          %v7847 = vpack.c.b16 %v7544, %v7541
          %v7848 = vpack.c.b16 %v7548, %v7545
          %v7849 = vpack.c.b16 %v7549, %v7546
          %v7850 = vpack.c.b16 %v7550, %v7547
          %v7851 = vpack.c.b16 %v7554, %v7551
          %v7852 = vpack.c.b16 %v7555, %v7552
          %v7853 = vpack.c.b16 %v7556, %v7553
          %v7854 = vpack.c.b16 %v7560, %v7557
          %v7855 = vpack.c.b16 %v7561, %v7558
          %v7856 = vpack.c.b16 %v7562, %v7559
          %v7857 = vpack.c.b16 %v7566, %v7563
          %v7858 = vpack.c.b16 %v7567, %v7564
          %v7859 = vpack.c.b16 %v7568, %v7565
          %v7860 = vpack.c.b16 %v7572, %v7569
          %v7861 = vpack.c.b16 %v7573, %v7570
          %v7862 = vpack.c.b16 %v7574, %v7571
          %v7863 = vpack.c.b16 %v7578, %v7575
          %v7864 = vpack.c.b16 %v7579, %v7576
          %v7865 = vpack.c.b16 %v7580, %v7577
          %v7866 = vpack.c.b16 %v7584, %v7581
          %v7867 = vpack.c.b16 %v7585, %v7582
          %v7868 = vpack.c.b16 %v7586, %v7583
          %v7869 = vpack.c.b16 %v7590, %v7587
          %v7870 = vpack.c.b16 %v7591, %v7588
          %v7871 = vpack.c.b16 %v7592, %v7589
          %v7872 = vpack.c.b16 %v7596, %v7593
          %v7873 = vpack.c.b16 %v7597, %v7594
          %v7874 = vpack.c.b16 %v7598, %v7595
          %v7875 = vpack.c.b16 %v7602, %v7599
          %v7876 = vpack.c.b16 %v7603, %v7600
          %v7877 = vpack.c.b16 %v7604, %v7601
          %v7878 = vpack.c.b16 %v7608, %v7605
          %v7879 = vpack.c.b16 %v7609, %v7606
          %v7880 = vpack.c.b16 %v7610, %v7607
          %v7881 = vpack.c.b16 %v7614, %v7611
          %v7882 = vpack.c.b16 %v7615, %v7612
          %v7883 = vpack.c.b16 %v7616, %v7613
          %v7884 = vpack.c.b16 %v7620, %v7617
          %v7885 = vpack.c.b16 %v7621, %v7618
          %v7886 = vpack.c.b16 %v7622, %v7619
          %v7887 = vpack.c.b16 %v7626, %v7623
          %v7888 = vpack.c.b16 %v7627, %v7624
          %v7889 = vpack.c.b16 %v7628, %v7625
          %v7890 = vpack.c.b16 %v7632, %v7629
          %v7891 = vpack.c.b16 %v7633, %v7630
          %v7892 = vpack.c.b16 %v7634, %v7631
          %v7893 = vpack.c.b16 %v7638, %v7635
          %v7894 = vpack.c.b16 %v7639, %v7636
          %v7895 = vpack.c.b16 %v7640, %v7637
          %v7896 = vpack.c.b16 %v7644, %v7641
          %v7897 = vpack.c.b16 %v7645, %v7642
          %v7898 = vpack.c.b16 %v7646, %v7643
          %v7899 = vpack.c.b16 %v7650, %v7647
          %v7900 = vpack.c.b16 %v7651, %v7648
          %v7901 = vpack.c.b16 %v7652, %v7649
          %v7902 = vpack.c.b16 %v7656, %v7653
          %v7903 = vpack.c.b16 %v7657, %v7654
          %v7904 = vpack.c.b16 %v7658, %v7655
          %v7905 = vpack.c.b16 %v7662, %v7659
          %v7906 = vpack.c.b16 %v7663, %v7660
          %v7907 = vpack.c.b16 %v7664, %v7661
          %v7908 = vpack.c.b16 %v7668, %v7665
          %v7909 = vpack.c.b16 %v7669, %v7666
          %v7910 = vpack.c.b16 %v7670, %v7667
          %8151 = vmatpush.bf16.msra.mxu0 %v7692
          %8152 = vmatpush.bf16.msra.mxu0 %v7689
          %8153 = vmatpush.bf16.msra.mxu0 %v7686
          %8154 = vmatpush.bf16.msra.mxu0 %v7683
          %8155 = vmatpush.bf16.msra.mxu0 %v7680
          %8156 = vmatpush.bf16.msra.mxu0 %v7677
          %8157 = vmatpush.bf16.msra.mxu0 %v7674
          %8158 = vmatpush.bf16.msra.mxu0 %v7671
          %8159 = vmatmul.bf16.gmra.mxu0 %v6541
          %v8160 = vpop.f32.mrf.mxu0
          %v8161 = vadd.f32 0.0, %v8160
          %v8162 = vpop.f32.mrf.mxu0
          %8163 = vdwg.mxu0
          %8164 = vmatpush.bf16.msra.mxu0 %v7716
          %8165 = vmatpush.bf16.msra.mxu0 %v7713
          %8166 = vmatpush.bf16.msra.mxu0 %v7710
          %8167 = vmatpush.bf16.msra.mxu0 %v7707
          %8168 = vmatpush.bf16.msra.mxu0 %v7704
          %8169 = vmatpush.bf16.msra.mxu0 %v7701
          %8170 = vmatpush.bf16.msra.mxu0 %v7698
          %8171 = vmatpush.bf16.msra.mxu0 %v7695
          %8172 = vmatmul.bf16.gmra.mxu0 %v6542
          %v8173 = vpop.f32.mrf.mxu0
          %v8174 = vadd.f32 %v8161, %v8173
          %v8175 = vpop.f32.mrf.mxu0
          %8176 = vdwg.mxu0
          %8177 = vmatpush.bf16.msra.mxu0 %v7740
          %8178 = vmatpush.bf16.msra.mxu0 %v7737
          %8179 = vmatpush.bf16.msra.mxu0 %v7734
          %8180 = vmatpush.bf16.msra.mxu0 %v7731
          %8181 = vmatpush.bf16.msra.mxu0 %v7728
          %8182 = vmatpush.bf16.msra.mxu0 %v7725
          %8183 = vmatpush.bf16.msra.mxu0 %v7722
          %8184 = vmatpush.bf16.msra.mxu0 %v7719
          %8185 = vmatmul.bf16.gmra.mxu0 %v6543
          %v8186 = vpop.f32.mrf.mxu0
          %v8187 = vadd.f32 %v8174, %v8186
          %v8188 = vpop.f32.mrf.mxu0
          %8189 = vdwg.mxu0
          %8190 = vmatpush.bf16.msra.mxu0 %v7764
          %8191 = vmatpush.bf16.msra.mxu0 %v7761
          %8192 = vmatpush.bf16.msra.mxu0 %v7758
          %8193 = vmatpush.bf16.msra.mxu0 %v7755
          %8194 = vmatpush.bf16.msra.mxu0 %v7752
          %8195 = vmatpush.bf16.msra.mxu0 %v7749
          %8196 = vmatpush.bf16.msra.mxu0 %v7746
          %8197 = vmatpush.bf16.msra.mxu0 %v7743
          %8198 = vmatmul.bf16.gmra.mxu0 %v6544
          %v8199 = vpop.f32.mrf.mxu0
          %v8200 = vadd.f32 %v8187, %v8199
          %v8201 = vpop.f32.mrf.mxu0
          %8202 = vdwg.mxu0
          %8203 = vmatpush.bf16.msra.mxu0 %v7788
          %8204 = vmatpush.bf16.msra.mxu0 %v7785
          %8205 = vmatpush.bf16.msra.mxu0 %v7782
          %8206 = vmatpush.bf16.msra.mxu0 %v7779
          %8207 = vmatpush.bf16.msra.mxu0 %v7776
          %8208 = vmatpush.bf16.msra.mxu0 %v7773
          %8209 = vmatpush.bf16.msra.mxu0 %v7770
          %8210 = vmatpush.bf16.msra.mxu0 %v7767
          %8211 = vmatmul.bf16.gmra.mxu0 %v6545
          %v8212 = vpop.f32.mrf.mxu0
          %v8213 = vadd.f32 %v8200, %v8212
          %v8214 = vpop.f32.mrf.mxu0
          %8215 = vdwg.mxu0
          %8216 = vmatpush.bf16.msra.mxu0 %v7812
          %8217 = vmatpush.bf16.msra.mxu0 %v7809
          %8218 = vmatpush.bf16.msra.mxu0 %v7806
          %8219 = vmatpush.bf16.msra.mxu0 %v7803
          %8220 = vmatpush.bf16.msra.mxu0 %v7800
          %8221 = vmatpush.bf16.msra.mxu0 %v7797
          %8222 = vmatpush.bf16.msra.mxu0 %v7794
          %8223 = vmatpush.bf16.msra.mxu0 %v7791
          %8224 = vmatmul.bf16.gmra.mxu0 %v6546
          %v8225 = vpop.f32.mrf.mxu0
          %v8226 = vadd.f32 %v8213, %v8225
          %v8227 = vpop.f32.mrf.mxu0
          %8228 = vdwg.mxu0
          %8229 = vmatpush.bf16.msra.mxu0 %v7836
          %8230 = vmatpush.bf16.msra.mxu0 %v7833
          %8231 = vmatpush.bf16.msra.mxu0 %v7830
          %8232 = vmatpush.bf16.msra.mxu0 %v7827
          %8233 = vmatpush.bf16.msra.mxu0 %v7824
          %8234 = vmatpush.bf16.msra.mxu0 %v7821
          %8235 = vmatpush.bf16.msra.mxu0 %v7818
          %8236 = vmatpush.bf16.msra.mxu0 %v7815
          %8237 = vmatmul.bf16.gmra.mxu0 %v6547
          %v8238 = vpop.f32.mrf.mxu0
          %v8239 = vadd.f32 %v8226, %v8238
          %v8240 = vpop.f32.mrf.mxu0
          %8241 = vdwg.mxu0
          %8242 = vmatpush.bf16.msra.mxu0 %v7860
          %8243 = vmatpush.bf16.msra.mxu0 %v7857
          %8244 = vmatpush.bf16.msra.mxu0 %v7854
          %8245 = vmatpush.bf16.msra.mxu0 %v7851
          %8246 = vmatpush.bf16.msra.mxu0 %v7848
          %8247 = vmatpush.bf16.msra.mxu0 %v7845
          %8248 = vmatpush.bf16.msra.mxu0 %v7842
          %8249 = vmatpush.bf16.msra.mxu0 %v7839
          %8250 = vmatmul.bf16.gmra.mxu0 %v6548
          %v8251 = vpop.f32.mrf.mxu0
          %v8252 = vadd.f32 %v8239, %v8251
          %v8253 = vpop.f32.mrf.mxu0
          %8254 = vdwg.mxu0
          %8255 = vmatpush.bf16.msra.mxu0 %v7884
          %8256 = vmatpush.bf16.msra.mxu0 %v7881
          %8257 = vmatpush.bf16.msra.mxu0 %v7878
          %8258 = vmatpush.bf16.msra.mxu0 %v7875
          %8259 = vmatpush.bf16.msra.mxu0 %v7872
          %8260 = vmatpush.bf16.msra.mxu0 %v7869
          %8261 = vmatpush.bf16.msra.mxu0 %v7866
          %8262 = vmatpush.bf16.msra.mxu0 %v7863
          %8263 = vmatmul.bf16.gmra.mxu0 %v6549
          %v8264 = vpop.f32.mrf.mxu0
          %v8265 = vadd.f32 %v8252, %v8264
          %v8266 = vpop.f32.mrf.mxu0
          %8267 = vdwg.mxu0
          %8268 = vmatpush.bf16.msra.mxu0 %v7908
          %8269 = vmatpush.bf16.msra.mxu0 %v7905
          %8270 = vmatpush.bf16.msra.mxu0 %v7902
          %8271 = vmatpush.bf16.msra.mxu0 %v7899
          %8272 = vmatpush.bf16.msra.mxu0 %v7896
          %8273 = vmatpush.bf16.msra.mxu0 %v7893
          %8274 = vmatpush.bf16.msra.mxu0 %v7890
          %8275 = vmatpush.bf16.msra.mxu0 %v7887
          %8276 = vmatmul.bf16.gmra.mxu0 %v6550
          %v8277 = vpop.f32.mrf.mxu0
          %v8278 = vadd.f32 %v8265, %v8277
          %v8279 = vpop.f32.mrf.mxu0
          %8280 = vdwg.mxu0
          %8281 = vmatpush.bf16.msra.mxu0 %v7693
          %8282 = vmatpush.bf16.msra.mxu0 %v7690
          %8283 = vmatpush.bf16.msra.mxu0 %v7687
          %8284 = vmatpush.bf16.msra.mxu0 %v7684
          %8285 = vmatpush.bf16.msra.mxu0 %v7681
          %8286 = vmatpush.bf16.msra.mxu0 %v7678
          %8287 = vmatpush.bf16.msra.mxu0 %v7675
          %8288 = vmatpush.bf16.msra.mxu0 %v7672
          %8289 = vmatmul.bf16.gmra.mxu0 %v6541
          %v8290 = vpop.f32.mrf.mxu0
          %v8291 = vadd.f32 0.0, %v8290
          %v8292 = vpop.f32.mrf.mxu0
          %8293 = vdwg.mxu0
          %8294 = vmatpush.bf16.msra.mxu0 %v7717
          %8295 = vmatpush.bf16.msra.mxu0 %v7714
          %8296 = vmatpush.bf16.msra.mxu0 %v7711
          %8297 = vmatpush.bf16.msra.mxu0 %v7708
          %8298 = vmatpush.bf16.msra.mxu0 %v7705
          %8299 = vmatpush.bf16.msra.mxu0 %v7702
          %8300 = vmatpush.bf16.msra.mxu0 %v7699
          %8301 = vmatpush.bf16.msra.mxu0 %v7696
          %8302 = vmatmul.bf16.gmra.mxu0 %v6542
          %v8303 = vpop.f32.mrf.mxu0
          %v8304 = vadd.f32 %v8291, %v8303
          %v8305 = vpop.f32.mrf.mxu0
          %8306 = vdwg.mxu0
          %8307 = vmatpush.bf16.msra.mxu0 %v7741
          %8308 = vmatpush.bf16.msra.mxu0 %v7738
          %8309 = vmatpush.bf16.msra.mxu0 %v7735
          %8310 = vmatpush.bf16.msra.mxu0 %v7732
          %8311 = vmatpush.bf16.msra.mxu0 %v7729
          %8312 = vmatpush.bf16.msra.mxu0 %v7726
          %8313 = vmatpush.bf16.msra.mxu0 %v7723
          %8314 = vmatpush.bf16.msra.mxu0 %v7720
          %8315 = vmatmul.bf16.gmra.mxu0 %v6543
          %v8316 = vpop.f32.mrf.mxu0
          %v8317 = vadd.f32 %v8304, %v8316
          %v8318 = vpop.f32.mrf.mxu0
          %8319 = vdwg.mxu0
          %8320 = vmatpush.bf16.msra.mxu0 %v7765
          %8321 = vmatpush.bf16.msra.mxu0 %v7762
          %8322 = vmatpush.bf16.msra.mxu0 %v7759
          %8323 = vmatpush.bf16.msra.mxu0 %v7756
          %8324 = vmatpush.bf16.msra.mxu0 %v7753
          %8325 = vmatpush.bf16.msra.mxu0 %v7750
          %8326 = vmatpush.bf16.msra.mxu0 %v7747
          %8327 = vmatpush.bf16.msra.mxu0 %v7744
          %8328 = vmatmul.bf16.gmra.mxu0 %v6544
          %v8329 = vpop.f32.mrf.mxu0
          %v8330 = vadd.f32 %v8317, %v8329
          %v8331 = vpop.f32.mrf.mxu0
          %8332 = vdwg.mxu0
          %8333 = vmatpush.bf16.msra.mxu0 %v7789
          %8334 = vmatpush.bf16.msra.mxu0 %v7786
          %8335 = vmatpush.bf16.msra.mxu0 %v7783
          %8336 = vmatpush.bf16.msra.mxu0 %v7780
          %8337 = vmatpush.bf16.msra.mxu0 %v7777
          %8338 = vmatpush.bf16.msra.mxu0 %v7774
          %8339 = vmatpush.bf16.msra.mxu0 %v7771
          %8340 = vmatpush.bf16.msra.mxu0 %v7768
          %8341 = vmatmul.bf16.gmra.mxu0 %v6545
          %v8342 = vpop.f32.mrf.mxu0
          %v8343 = vadd.f32 %v8330, %v8342
          %v8344 = vpop.f32.mrf.mxu0
          %8345 = vdwg.mxu0
          %8346 = vmatpush.bf16.msra.mxu0 %v7813
          %8347 = vmatpush.bf16.msra.mxu0 %v7810
          %8348 = vmatpush.bf16.msra.mxu0 %v7807
          %8349 = vmatpush.bf16.msra.mxu0 %v7804
          %8350 = vmatpush.bf16.msra.mxu0 %v7801
          %8351 = vmatpush.bf16.msra.mxu0 %v7798
          %8352 = vmatpush.bf16.msra.mxu0 %v7795
          %8353 = vmatpush.bf16.msra.mxu0 %v7792
          %8354 = vmatmul.bf16.gmra.mxu0 %v6546
          %v8355 = vpop.f32.mrf.mxu0
          %v8356 = vadd.f32 %v8343, %v8355
          %v8357 = vpop.f32.mrf.mxu0
          %8358 = vdwg.mxu0
          %8359 = vmatpush.bf16.msra.mxu0 %v7837
          %8360 = vmatpush.bf16.msra.mxu0 %v7834
          %8361 = vmatpush.bf16.msra.mxu0 %v7831
          %8362 = vmatpush.bf16.msra.mxu0 %v7828
          %8363 = vmatpush.bf16.msra.mxu0 %v7825
          %8364 = vmatpush.bf16.msra.mxu0 %v7822
          %8365 = vmatpush.bf16.msra.mxu0 %v7819
          %8366 = vmatpush.bf16.msra.mxu0 %v7816
          %8367 = vmatmul.bf16.gmra.mxu0 %v6547
          %v8368 = vpop.f32.mrf.mxu0
          %v8369 = vadd.f32 %v8356, %v8368
          %v8370 = vpop.f32.mrf.mxu0
          %8371 = vdwg.mxu0
          %8372 = vmatpush.bf16.msra.mxu0 %v7861
          %8373 = vmatpush.bf16.msra.mxu0 %v7858
          %8374 = vmatpush.bf16.msra.mxu0 %v7855
          %8375 = vmatpush.bf16.msra.mxu0 %v7852
          %8376 = vmatpush.bf16.msra.mxu0 %v7849
          %8377 = vmatpush.bf16.msra.mxu0 %v7846
          %8378 = vmatpush.bf16.msra.mxu0 %v7843
          %8379 = vmatpush.bf16.msra.mxu0 %v7840
          %8380 = vmatmul.bf16.gmra.mxu0 %v6548
          %v8381 = vpop.f32.mrf.mxu0
          %v8382 = vadd.f32 %v8369, %v8381
          %v8383 = vpop.f32.mrf.mxu0
          %8384 = vdwg.mxu0
          %8385 = vmatpush.bf16.msra.mxu0 %v7885
          %8386 = vmatpush.bf16.msra.mxu0 %v7882
          %8387 = vmatpush.bf16.msra.mxu0 %v7879
          %8388 = vmatpush.bf16.msra.mxu0 %v7876
          %8389 = vmatpush.bf16.msra.mxu0 %v7873
          %8390 = vmatpush.bf16.msra.mxu0 %v7870
          %8391 = vmatpush.bf16.msra.mxu0 %v7867
          %8392 = vmatpush.bf16.msra.mxu0 %v7864
          %8393 = vmatmul.bf16.gmra.mxu0 %v6549
          %v8394 = vpop.f32.mrf.mxu0
          %v8395 = vadd.f32 %v8382, %v8394
          %v8396 = vpop.f32.mrf.mxu0
          %8397 = vdwg.mxu0
          %8398 = vmatpush.bf16.msra.mxu0 %v7909
          %8399 = vmatpush.bf16.msra.mxu0 %v7906
          %8400 = vmatpush.bf16.msra.mxu0 %v7903
          %8401 = vmatpush.bf16.msra.mxu0 %v7900
          %8402 = vmatpush.bf16.msra.mxu0 %v7897
          %8403 = vmatpush.bf16.msra.mxu0 %v7894
          %8404 = vmatpush.bf16.msra.mxu0 %v7891
          %8405 = vmatpush.bf16.msra.mxu0 %v7888
          %8406 = vmatmul.bf16.gmra.mxu0 %v6550
          %v8407 = vpop.f32.mrf.mxu0
          %v8408 = vadd.f32 %v8395, %v8407
          %v8409 = vpop.f32.mrf.mxu0
          %8410 = vdwg.mxu0
          %8411 = vmatpush.bf16.msra.mxu0 %v7694
          %8412 = vmatpush.bf16.msra.mxu0 %v7691
          %8413 = vmatpush.bf16.msra.mxu0 %v7688
          %8414 = vmatpush.bf16.msra.mxu0 %v7685
          %8415 = vmatpush.bf16.msra.mxu0 %v7682
          %8416 = vmatpush.bf16.msra.mxu0 %v7679
          %8417 = vmatpush.bf16.msra.mxu0 %v7676
          %8418 = vmatpush.bf16.msra.mxu0 %v7673
          %8419 = vmatmul.bf16.gmra.mxu0 %v6541
          %v8420 = vpop.f32.mrf.mxu0
          %v8421 = vadd.f32 0.0, %v8420
          %v8422 = vpop.f32.mrf.mxu0
          %8423 = vdwg.mxu0
          %8424 = vmatpush.bf16.msra.mxu0 %v7718
          %8425 = vmatpush.bf16.msra.mxu0 %v7715
          %8426 = vmatpush.bf16.msra.mxu0 %v7712
          %8427 = vmatpush.bf16.msra.mxu0 %v7709
          %8428 = vmatpush.bf16.msra.mxu0 %v7706
          %8429 = vmatpush.bf16.msra.mxu0 %v7703
          %8430 = vmatpush.bf16.msra.mxu0 %v7700
          %8431 = vmatpush.bf16.msra.mxu0 %v7697
          %8432 = vmatmul.bf16.gmra.mxu0 %v6542
          %v8433 = vpop.f32.mrf.mxu0
          %v8434 = vadd.f32 %v8421, %v8433
          %v8435 = vpop.f32.mrf.mxu0
          %8436 = vdwg.mxu0
          %8437 = vmatpush.bf16.msra.mxu0 %v7742
          %8438 = vmatpush.bf16.msra.mxu0 %v7739
          %8439 = vmatpush.bf16.msra.mxu0 %v7736
          %8440 = vmatpush.bf16.msra.mxu0 %v7733
          %8441 = vmatpush.bf16.msra.mxu0 %v7730
          %8442 = vmatpush.bf16.msra.mxu0 %v7727
          %8443 = vmatpush.bf16.msra.mxu0 %v7724
          %8444 = vmatpush.bf16.msra.mxu0 %v7721
          %8445 = vmatmul.bf16.gmra.mxu0 %v6543
          %v8446 = vpop.f32.mrf.mxu0
          %v8447 = vadd.f32 %v8434, %v8446
          %v8448 = vpop.f32.mrf.mxu0
          %8449 = vdwg.mxu0
          %8450 = vmatpush.bf16.msra.mxu0 %v7766
          %8451 = vmatpush.bf16.msra.mxu0 %v7763
          %8452 = vmatpush.bf16.msra.mxu0 %v7760
          %8453 = vmatpush.bf16.msra.mxu0 %v7757
          %8454 = vmatpush.bf16.msra.mxu0 %v7754
          %8455 = vmatpush.bf16.msra.mxu0 %v7751
          %8456 = vmatpush.bf16.msra.mxu0 %v7748
          %8457 = vmatpush.bf16.msra.mxu0 %v7745
          %8458 = vmatmul.bf16.gmra.mxu0 %v6544
          %v8459 = vpop.f32.mrf.mxu0
          %v8460 = vadd.f32 %v8447, %v8459
          %v8461 = vpop.f32.mrf.mxu0
          %8462 = vdwg.mxu0
          %8463 = vmatpush.bf16.msra.mxu0 %v7790
          %8464 = vmatpush.bf16.msra.mxu0 %v7787
          %8465 = vmatpush.bf16.msra.mxu0 %v7784
          %8466 = vmatpush.bf16.msra.mxu0 %v7781
          %8467 = vmatpush.bf16.msra.mxu0 %v7778
          %8468 = vmatpush.bf16.msra.mxu0 %v7775
          %8469 = vmatpush.bf16.msra.mxu0 %v7772
          %8470 = vmatpush.bf16.msra.mxu0 %v7769
          %8471 = vmatmul.bf16.gmra.mxu0 %v6545
          %v8472 = vpop.f32.mrf.mxu0
          %v8473 = vadd.f32 %v8460, %v8472
          %v8474 = vpop.f32.mrf.mxu0
          %8475 = vdwg.mxu0
          %8476 = vmatpush.bf16.msra.mxu0 %v7814
          %8477 = vmatpush.bf16.msra.mxu0 %v7811
          %8478 = vmatpush.bf16.msra.mxu0 %v7808
          %8479 = vmatpush.bf16.msra.mxu0 %v7805
          %8480 = vmatpush.bf16.msra.mxu0 %v7802
          %8481 = vmatpush.bf16.msra.mxu0 %v7799
          %8482 = vmatpush.bf16.msra.mxu0 %v7796
          %8483 = vmatpush.bf16.msra.mxu0 %v7793
          %8484 = vmatmul.bf16.gmra.mxu0 %v6546
          %v8485 = vpop.f32.mrf.mxu0
          %v8486 = vadd.f32 %v8473, %v8485
          %v8487 = vpop.f32.mrf.mxu0
          %8488 = vdwg.mxu0
          %8489 = vmatpush.bf16.msra.mxu0 %v7838
          %8490 = vmatpush.bf16.msra.mxu0 %v7835
          %8491 = vmatpush.bf16.msra.mxu0 %v7832
          %8492 = vmatpush.bf16.msra.mxu0 %v7829
          %8493 = vmatpush.bf16.msra.mxu0 %v7826
          %8494 = vmatpush.bf16.msra.mxu0 %v7823
          %8495 = vmatpush.bf16.msra.mxu0 %v7820
          %8496 = vmatpush.bf16.msra.mxu0 %v7817
          %8497 = vmatmul.bf16.gmra.mxu0 %v6547
          %v8498 = vpop.f32.mrf.mxu0
          %v8499 = vadd.f32 %v8486, %v8498
          %v8500 = vpop.f32.mrf.mxu0
          %8501 = vdwg.mxu0
          %8502 = vmatpush.bf16.msra.mxu0 %v7862
          %8503 = vmatpush.bf16.msra.mxu0 %v7859
          %8504 = vmatpush.bf16.msra.mxu0 %v7856
          %8505 = vmatpush.bf16.msra.mxu0 %v7853
          %8506 = vmatpush.bf16.msra.mxu0 %v7850
          %8507 = vmatpush.bf16.msra.mxu0 %v7847
          %8508 = vmatpush.bf16.msra.mxu0 %v7844
          %8509 = vmatpush.bf16.msra.mxu0 %v7841
          %8510 = vmatmul.bf16.gmra.mxu0 %v6548
          %v8511 = vpop.f32.mrf.mxu0
          %v8512 = vadd.f32 %v8499, %v8511
          %v8513 = vpop.f32.mrf.mxu0
          %8514 = vdwg.mxu0
          %8515 = vmatpush.bf16.msra.mxu0 %v7886
          %8516 = vmatpush.bf16.msra.mxu0 %v7883
          %8517 = vmatpush.bf16.msra.mxu0 %v7880
          %8518 = vmatpush.bf16.msra.mxu0 %v7877
          %8519 = vmatpush.bf16.msra.mxu0 %v7874
          %8520 = vmatpush.bf16.msra.mxu0 %v7871
          %8521 = vmatpush.bf16.msra.mxu0 %v7868
          %8522 = vmatpush.bf16.msra.mxu0 %v7865
          %8523 = vmatmul.bf16.gmra.mxu0 %v6549
          %v8524 = vpop.f32.mrf.mxu0
          %v8525 = vadd.f32 %v8512, %v8524
          %v8526 = vpop.f32.mrf.mxu0
          %8527 = vdwg.mxu0
          %8528 = vmatpush.bf16.msra.mxu0 %v7910
          %8529 = vmatpush.bf16.msra.mxu0 %v7907
          %8530 = vmatpush.bf16.msra.mxu0 %v7904
          %8531 = vmatpush.bf16.msra.mxu0 %v7901
          %8532 = vmatpush.bf16.msra.mxu0 %v7898
          %8533 = vmatpush.bf16.msra.mxu0 %v7895
          %8534 = vmatpush.bf16.msra.mxu0 %v7892
          %8535 = vmatpush.bf16.msra.mxu0 %v7889
          %8536 = vmatmul.bf16.gmra.mxu0 %v6550
          %v8537 = vpop.f32.mrf.mxu0
          %v8538 = vadd.f32 %v8525, %v8537
          %v8539 = vpop.f32.mrf.mxu0
          %8540 = vdwg.mxu0
          %v8541 = vrot.slane %v8278, 4
          %v8542 = vadd.f32 %v8278, %v8541
          %v8543 = vrot.slane %v8542, 2
          %v8544 = vadd.f32 %v8542, %v8543
          %v8545 = vrot.slane %v8544, 1
          %v8546 = vadd.f32 %v8544, %v8545
          %v8547 = vrot.slane %v8408, 4
          %v8548 = vadd.f32 %v8408, %v8547
          %v8549 = vrot.slane %v8548, 2
          %v8550 = vadd.f32 %v8548, %v8549
          %v8551 = vrot.slane %v8550, 1
          %v8552 = vadd.f32 %v8550, %v8551
          %vm8553 = vcmask 523264
          %v8554 = vsel %vm8553, %v8538, 0.0
          %v8555 = vrot.slane %v8554, 4
          %v8556 = vadd.f32 %v8554, %v8555
          %v8557 = vrot.slane %v8556, 2
          %v8558 = vadd.f32 %v8556, %v8557
          %v8559 = vrot.slane %v8558, 1
          %v8560 = vadd.f32 %v8558, %v8559
          %v8561 = vmul.f32 %v8546, %v6199
          %v8562 = vmul.f32 %v8552, %v6199
          %v8563 = vmul.f32 %v8560, %v6199
          %v8564 = vsub.f32 %v8278, %v8561
          %v8565 = vsub.f32 %v8408, %v8562
          %v8566 = vsub.f32 %v8538, %v8563
          %v8567 = vmul.f32 %v8564, %v8564
          %v8568 = vmul.f32 %v8565, %v8565
          %v8569 = vmul.f32 %v8566, %v8566
          %v8570 = vrot.slane %v8567, 4
          %v8571 = vadd.f32 %v8567, %v8570
          %v8572 = vrot.slane %v8571, 2
          %v8573 = vadd.f32 %v8571, %v8572
          %v8574 = vrot.slane %v8573, 1
          %v8575 = vadd.f32 %v8573, %v8574
          %v8576 = vrot.slane %v8568, 4
          %v8577 = vadd.f32 %v8568, %v8576
          %v8578 = vrot.slane %v8577, 2
          %v8579 = vadd.f32 %v8577, %v8578
          %v8580 = vrot.slane %v8579, 1
          %v8581 = vadd.f32 %v8579, %v8580
          %v8582 = vsel %vm8553, %v8569, 0.0
          %v8583 = vrot.slane %v8582, 4
          %v8584 = vadd.f32 %v8582, %v8583
          %v8585 = vrot.slane %v8584, 2
          %v8586 = vadd.f32 %v8584, %v8585
          %v8587 = vrot.slane %v8586, 1
          %v8588 = vadd.f32 %v8586, %v8587
          %v8589 = vmul.f32 %v8575, %v6199
          %v8590 = vmul.f32 %v8581, %v6199
          %v8591 = vmul.f32 %v8588, %v6199
          %v8592 = vadd.f32 %v8589, 1e-05
          %v8593 = vadd.f32 %v8590, 1e-05
          %v8594 = vadd.f32 %v8591, 1e-05
          %v8595 = vrsqrt.pop %v8592
          %v8596 = vmul.f32 %v8595, %v8592
          %v8597 = vmul.f32 %v8596, %v8595
          %v8598 = vmul.f32 0.5, %v8597
          %v8599 = vsub.f32 1.5, %v8598
          %v8600 = vmul.f32 %v8595, %v8599
          %vm8601 = vweird.f32 %v8592
          %vm8602 = vweird.f32 %v8595
          %vm8603 = vmor %vm8601, %vm8602
          %v8604 = vsel %vm8603, %v8595, %v8600
          %v8605 = vrsqrt.pop %v8593
          %v8606 = vmul.f32 %v8605, %v8593
          %v8607 = vmul.f32 %v8606, %v8605
          %v8608 = vmul.f32 0.5, %v8607
          %v8609 = vsub.f32 1.5, %v8608
          %v8610 = vmul.f32 %v8605, %v8609
          %vm8611 = vweird.f32 %v8593
          %vm8612 = vweird.f32 %v8605
          %vm8613 = vmor %vm8611, %vm8612
          %v8614 = vsel %vm8613, %v8605, %v8610
          %v8615 = vrsqrt.pop %v8594
          %v8616 = vmul.f32 %v8615, %v8594
          %v8617 = vmul.f32 %v8616, %v8615
          %v8618 = vmul.f32 0.5, %v8617
          %v8619 = vsub.f32 1.5, %v8618
          %v8620 = vmul.f32 %v8615, %v8619
          %vm8621 = vweird.f32 %v8594
          %vm8622 = vweird.f32 %v8615
          %vm8623 = vmor %vm8621, %vm8622
          %v8624 = vsel %vm8623, %v8615, %v8620
          %v8627 = vrot.slane %v8614, 4
          %v8628 = vsel %vm6425, %v8604, %v8627
          %v8630 = vmul.f32 %v6118, %v8628
          %v8631 = vmul.f32 %v6119, %v8624
          %v8634 = vperm.slane %v8630, 0
          %v8635 = vperm.slane %v8630, 4
          %v8636 = vperm.slane %v8631, 0
          %v8640 = vperm.slane %v8634, 0
          %v8641 = vperm.slane %v8635, 0
          %v8642 = vperm.slane %v8636, 0
          %v8643 = vmul.f32 %v8564, %v8640
          %v8644 = vmul.f32 %v8565, %v8641
          %v8645 = vmul.f32 %v8566, %v8642
          %v8648 = vperm.slane %v6118, 1
          %v8649 = vperm.slane %v6118, 5
          %v8650 = vperm.slane %v6119, 1
          %v8654 = vperm.slane %v8648, 1
          %v8655 = vperm.slane %v8649, 1
          %v8656 = vperm.slane %v8650, 1
          %v8657 = vadd.f32 %v8643, %v8654
          %v8658 = vadd.f32 %v8644, %v8655
          %v8659 = vadd.f32 %v8645, %v8656
          %v8660 = vmax.f32 %v8657, 0.0
          %v8661 = vmax.f32 %v8658, 0.0
          %v8662 = vmax.f32 %v8659, 0.0
          %v8663 = vpack.c.bf16 %v8660, %v8660
          %v8664 = vpack.c.bf16 %v8661, %v8661
          %v8665 = vpack.c.bf16 %v8662, %v8662
          %v8666 = vld [vmem:[%s3] sm:$0xf]
          %v8667 = vld [vmem:[%s3 + $0x4] sm:$0xf]
          %v8668 = vld [vmem:[%s3 + $0x8] sm:$0xf]
          %v8669 = vld [vmem:[%s3 + $0xc] sm:$0xf]
          %v8670 = vld [vmem:[%s3 + $0x10] sm:$0xf]
          %v8671 = vld [vmem:[%s3 + $0x14] sm:$0xf]
          %v8672 = vld [vmem:[%s3 + $0x18] sm:$0xf]
          %v8673 = vld [vmem:[%s3 + $0x1c] sm:$0xf]
          %v8674 = vld [vmem:[%s3 + $0x20] sm:$0xf]
          %v8675 = vld [vmem:[%s3 + $0x24] sm:$0xf]
          %v8676 = vld [vmem:[%s3 + $0x28] sm:$0xf]
          %v8677 = vld [vmem:[%s3 + $0x2c] sm:$0xf]
          %v8678 = vld [vmem:[%s3 + $0x30] sm:$0xf]
          %v8679 = vld [vmem:[%s3 + $0x34] sm:$0xf]
          %v8680 = vld [vmem:[%s3 + $0x38] sm:$0xf]
          %v8681 = vld [vmem:[%s3 + $0x3c] sm:$0xf]
          %v8682 = vld [vmem:[%s3 + $0x40] sm:$0xf]
          %v8683 = vld [vmem:[%s3 + $0x44] sm:$0xf]
          %v8684 = vld [vmem:[%s3 + $0x48] sm:$0xf]
          %v8685 = vld [vmem:[%s3 + $0x4c] sm:$0xf]
          %v8686 = vld [vmem:[%s3 + $0x50] sm:$0xf]
          %v8687 = vld [vmem:[%s3 + $0x54] sm:$0xf]
          %v8688 = vld [vmem:[%s3 + $0x58] sm:$0xf]
          %v8689 = vld [vmem:[%s3 + $0x5c] sm:$0xf]
          %v8690 = vld [vmem:[%s3 + $0x60] sm:$0xf]
          %v8691 = vld [vmem:[%s3 + $0x64] sm:$0xf]
          %v8692 = vld [vmem:[%s3 + $0x68] sm:$0xf]
          %v8693 = vld [vmem:[%s3 + $0x6c] sm:$0xf]
          %v8694 = vld [vmem:[%s3 + $0x70] sm:$0xf]
          %v8695 = vld [vmem:[%s3 + $0x74] sm:$0xf]
          %v8696 = vld [vmem:[%s3 + $0x78] sm:$0xf]
          %v8697 = vld [vmem:[%s3 + $0x7c] sm:$0xf]
          %v8698 = vld [vmem:[%s3 + $0x80] sm:$0xf]
          %v8699 = vld [vmem:[%s3 + $0x84] sm:$0xf]
          %v8700 = vld [vmem:[%s3 + $0x88] sm:$0xf]
          %v8701 = vld [vmem:[%s3 + $0x8c] sm:$0xf]
          %v8702 = vld [vmem:[%s3 + $0x90] sm:$0xf]
          %v8703 = vld [vmem:[%s3 + $0x94] sm:$0xf]
          %v8704 = vld [vmem:[%s3 + $0x98] sm:$0xf]
          %v8705 = vld [vmem:[%s3 + $0x9c] sm:$0xf]
          %v8746 = vunpack.c.l.b16 %v8666
          %v8747 = vunpack.c.l.b16 %v8667
          %v8748 = vunpack.c.l.b16 %v8668
          %v8749 = vunpack.c.l.b16 %v8669
          %v8750 = vunpack.c.l.b16 %v8670
          %v8751 = vunpack.c.l.b16 %v8671
          %v8752 = vunpack.c.l.b16 %v8672
          %v8753 = vunpack.c.l.b16 %v8673
          %v8754 = vunpack.c.l.b16 %v8674
          %v8755 = vunpack.c.l.b16 %v8675
          %v8756 = vunpack.c.l.b16 %v8676
          %v8757 = vunpack.c.l.b16 %v8677
          %v8758 = vunpack.c.l.b16 %v8678
          %v8759 = vunpack.c.l.b16 %v8679
          %v8760 = vunpack.c.l.b16 %v8680
          %v8761 = vunpack.c.l.b16 %v8681
          %v8762 = vunpack.c.l.b16 %v8682
          %v8763 = vunpack.c.l.b16 %v8683
          %v8764 = vunpack.c.l.b16 %v8684
          %v8765 = vunpack.c.l.b16 %v8685
          %v8766 = vunpack.c.l.b16 %v8686
          %v8767 = vunpack.c.l.b16 %v8687
          %v8768 = vunpack.c.l.b16 %v8688
          %v8769 = vunpack.c.l.b16 %v8689
          %v8770 = vunpack.c.l.b16 %v8690
          %v8771 = vunpack.c.l.b16 %v8691
          %v8772 = vunpack.c.l.b16 %v8692
          %v8773 = vunpack.c.l.b16 %v8693
          %v8774 = vunpack.c.l.b16 %v8694
          %v8775 = vunpack.c.l.b16 %v8695
          %v8776 = vunpack.c.l.b16 %v8696
          %v8777 = vunpack.c.l.b16 %v8697
          %v8778 = vunpack.c.l.b16 %v8698
          %v8779 = vunpack.c.l.b16 %v8699
          %v8780 = vunpack.c.l.b16 %v8700
          %v8781 = vunpack.c.l.b16 %v8701
          %v8782 = vunpack.c.l.b16 %v8702
          %v8783 = vunpack.c.l.b16 %v8703
          %v8784 = vunpack.c.l.b16 %v8704
          %v8785 = vunpack.c.l.b16 %v8705
          %v8786 = vpack.c.b16 %v8747, %v8746
          %v8787 = vpack.c.b16 %v8749, %v8748
          %v8788 = vpack.c.b16 %v8751, %v8750
          %v8789 = vpack.c.b16 %v8753, %v8752
          %v8790 = vpack.c.b16 %v8755, %v8754
          %v8791 = vpack.c.b16 %v8757, %v8756
          %v8792 = vpack.c.b16 %v8759, %v8758
          %v8793 = vpack.c.b16 %v8761, %v8760
          %v8794 = vpack.c.b16 %v8763, %v8762
          %v8795 = vpack.c.b16 %v8765, %v8764
          %v8796 = vpack.c.b16 %v8767, %v8766
          %v8797 = vpack.c.b16 %v8769, %v8768
          %v8798 = vpack.c.b16 %v8771, %v8770
          %v8799 = vpack.c.b16 %v8773, %v8772
          %v8800 = vpack.c.b16 %v8775, %v8774
          %v8801 = vpack.c.b16 %v8777, %v8776
          %v8802 = vpack.c.b16 %v8779, %v8778
          %v8803 = vpack.c.b16 %v8781, %v8780
          %v8804 = vpack.c.b16 %v8783, %v8782
          %v8805 = vpack.c.b16 %v8785, %v8784
          %v8827 = vsel %vm8553, %v8665, 0
          %8829 = vmatpush.bf16.msra.mxu0 %v8793
          %8830 = vmatpush.bf16.msra.mxu0 %v8792
          %8831 = vmatpush.bf16.msra.mxu0 %v8791
          %8832 = vmatpush.bf16.msra.mxu0 %v8790
          %8833 = vmatpush.bf16.msra.mxu0 %v8789
          %8834 = vmatpush.bf16.msra.mxu0 %v8788
          %8835 = vmatpush.bf16.msra.mxu0 %v8787
          %8836 = vmatpush.bf16.msra.mxu0 %v8786
          %8837 = vmatmul.bf16.gmra.mxu0 %v8663
          %v8838 = vpop.f32.mrf.mxu0
          %v8839 = vadd.f32 0.0, %v8838
          %v8840 = vpop.f32.mrf.mxu0
          %8841 = vdwg.mxu0
          %8842 = vmatpush.bf16.msra.mxu0 %v8801
          %8843 = vmatpush.bf16.msra.mxu0 %v8800
          %8844 = vmatpush.bf16.msra.mxu0 %v8799
          %8845 = vmatpush.bf16.msra.mxu0 %v8798
          %8846 = vmatpush.bf16.msra.mxu0 %v8797
          %8847 = vmatpush.bf16.msra.mxu0 %v8796
          %8848 = vmatpush.bf16.msra.mxu0 %v8795
          %8849 = vmatpush.bf16.msra.mxu0 %v8794
          %8850 = vmatmul.bf16.gmra.mxu0 %v8664
          %v8851 = vpop.f32.mrf.mxu0
          %v8852 = vadd.f32 %v8839, %v8851
          %v8853 = vpop.f32.mrf.mxu0
          %8854 = vdwg.mxu0
          %8855 = vmatpush.bf16.msra.mxu0 0
          %8856 = vmatpush.bf16.msra.mxu0 0
          %8857 = vmatpush.bf16.msra.mxu0 0
          %8858 = vmatpush.bf16.msra.mxu0 0
          %8859 = vmatpush.bf16.msra.mxu0 %v8805
          %8860 = vmatpush.bf16.msra.mxu0 %v8804
          %8861 = vmatpush.bf16.msra.mxu0 %v8803
          %8862 = vmatpush.bf16.msra.mxu0 %v8802
          %8863 = vmatmul.bf16.gmra.mxu0 %v8827
          %v8864 = vpop.f32.mrf.mxu0
          %v8865 = vadd.f32 %v8852, %v8864
          %v8866 = vpop.f32.mrf.mxu0
          %8867 = vdwg.mxu0
          %vm8868 = vcmask 654336
          %v8869 = vsel %vm8868, %v8865, 0.0
          %v8870 = vrot.slane %v8869, 4
          %v8871 = vadd.f32 %v8869, %v8870
          %v8872 = vrot.slane %v8871, 2
          %v8873 = vadd.f32 %v8871, %v8872
          %v8874 = vrot.slane %v8873, 1
          %v8875 = vadd.f32 %v8873, %v8874
          %v8876 = vmul.f32 %v8875, %v6199
          %v8877 = vsub.f32 %v8865, %v8876
          %v8878 = vmul.f32 %v8877, %v8877
          %v8879 = vsel %vm8868, %v8878, 0.0
          %v8880 = vrot.slane %v8879, 4
          %v8881 = vadd.f32 %v8879, %v8880
          %v8882 = vrot.slane %v8881, 2
          %v8883 = vadd.f32 %v8881, %v8882
          %v8884 = vrot.slane %v8883, 1
          %v8885 = vadd.f32 %v8883, %v8884
          %v8886 = vmul.f32 %v8885, %v6199
          %v8887 = vadd.f32 %v8886, 1e-05
          %v8888 = vrsqrt.pop %v8887
          %v8889 = vmul.f32 %v8888, %v8887
          %v8890 = vmul.f32 %v8889, %v8888
          %v8891 = vmul.f32 0.5, %v8890
          %v8892 = vsub.f32 1.5, %v8891
          %v8893 = vmul.f32 %v8888, %v8892
          %vm8894 = vweird.f32 %v8887
          %vm8895 = vweird.f32 %v8888
          %vm8896 = vmor %vm8894, %vm8895
          %v8897 = vsel %vm8896, %v8888, %v8893
          %v8898 = vmul.f32 %v6120, %v8897
          %v8899 = vperm.slane %v8898, 0
          %v8900 = vmul.f32 %v8877, %v8899
          %v8901 = vperm.slane %v6120, 1
          %v8902 = vadd.f32 %v8900, %v8901
          %v8903 = vmax.f32 %v8902, 0.0
          %v8904 = vpack.c.bf16 %v8903, %v8903
          %v8905 = vld [vmem:[%s4] sm:$0xf]
          %v8906 = vld [vmem:[%s4 + $0x4] sm:$0xf]
          %v8907 = vld [vmem:[%s4 + $0x8] sm:$0xf]
          %v8908 = vld [vmem:[%s4 + $0xc] sm:$0xf]
          %v8909 = vld [vmem:[%s4 + $0x10] sm:$0xf]
          %v8910 = vld [vmem:[%s4 + $0x14] sm:$0xf]
          %v8911 = vld [vmem:[%s4 + $0x18] sm:$0xf]
          %v8912 = vld [vmem:[%s4 + $0x1c] sm:$0xf]
          %v8913 = vld [vmem:[%s4 + $0x20] sm:$0xf]
          %v8914 = vld [vmem:[%s4 + $0x24] sm:$0xf]
          %v8925 = vunpack.c.l.b16 %v8905
          %v8926 = vunpack.c.l.b16 %v8906
          %v8927 = vunpack.c.l.b16 %v8907
          %v8928 = vunpack.c.l.b16 %v8908
          %v8929 = vunpack.c.l.b16 %v8909
          %v8930 = vunpack.c.l.b16 %v8910
          %v8931 = vunpack.c.l.b16 %v8911
          %v8932 = vunpack.c.l.b16 %v8912
          %v8933 = vunpack.c.l.b16 %v8913
          %v8934 = vunpack.c.l.b16 %v8914
          %v8935 = vpack.c.b16 %v8926, %v8925
          %v8936 = vpack.c.b16 %v8928, %v8927
          %v8937 = vpack.c.b16 %v8930, %v8929
          %v8938 = vpack.c.b16 %v8932, %v8931
          %v8939 = vpack.c.b16 %v8934, %v8933
          %v8946 = vsel %vm8868, %v8904, 0
          %8948 = vmatpush.bf16.msra.mxu0 0
          %8949 = vmatpush.bf16.msra.mxu0 0
          %8950 = vmatpush.bf16.msra.mxu0 0
          %8951 = vmatpush.bf16.msra.mxu0 %v8939
          %8952 = vmatpush.bf16.msra.mxu0 %v8938
          %8953 = vmatpush.bf16.msra.mxu0 %v8937
          %8954 = vmatpush.bf16.msra.mxu0 %v8936
          %8955 = vmatpush.bf16.msra.mxu0 %v8935
          %8956 = vmatmul.bf16.gmra.mxu0 %v8946
          %v8957 = vpop.f32.mrf.mxu0
          %v8958 = vadd.f32 0.0, %v8957
          %v8959 = vpop.f32.mrf.mxu0
          %8960 = vdwg.mxu0
          %vm8961 = vcmask 162816
          %v8962 = vsel %vm8961, %v8958, 0.0
          %v8963 = vrot.slane %v8962, 4
          %v8964 = vadd.f32 %v8962, %v8963
          %v8965 = vrot.slane %v8964, 2
          %v8966 = vadd.f32 %v8964, %v8965
          %v8967 = vrot.slane %v8966, 1
          %v8968 = vadd.f32 %v8966, %v8967
          %v8969 = vmul.f32 %v8968, %v6199
          %v8970 = vsub.f32 %v8958, %v8969
          %v8971 = vmul.f32 %v8970, %v8970
          %v8972 = vsel %vm8961, %v8971, 0.0
          %v8973 = vrot.slane %v8972, 4
          %v8974 = vadd.f32 %v8972, %v8973
          %v8975 = vrot.slane %v8974, 2
          %v8976 = vadd.f32 %v8974, %v8975
          %v8977 = vrot.slane %v8976, 1
          %v8978 = vadd.f32 %v8976, %v8977
          %v8979 = vmul.f32 %v8978, %v6199
          %v8980 = vadd.f32 %v8979, 1e-05
          %v8981 = vrsqrt.pop %v8980
          %v8982 = vmul.f32 %v8981, %v8980
          %v8983 = vmul.f32 %v8982, %v8981
          %v8984 = vmul.f32 0.5, %v8983
          %v8985 = vsub.f32 1.5, %v8984
          %v8986 = vmul.f32 %v8981, %v8985
          %vm8987 = vweird.f32 %v8980
          %vm8988 = vweird.f32 %v8981
          %vm8989 = vmor %vm8987, %vm8988
          %v8990 = vsel %vm8989, %v8981, %v8986
          %v8991 = vmul.f32 %v6121, %v8990
          %v8992 = vperm.slane %v8991, 0
          %v8993 = vmul.f32 %v8970, %v8992
          %v8994 = vperm.slane %v6121, 1
          %v8995 = vadd.f32 %v8993, %v8994
          %v8996 = vmax.f32 %v8995, 0.0
          %v8997 = vpack.c.bf16 %v8996, %v8996
          %v8998 = vld [vmem:[%s5] sm:$0xf]
          %v8999 = vld [vmem:[%s5 + $0x4] sm:$0xf]
          %v9000 = vld [vmem:[%s5 + $0x8] sm:$0x3]
          %v9001 = vperm.slane %v6122, 0
          %v9005 = vunpack.c.l.b16 %v8998
          %v9006 = vunpack.c.l.b16 %v8999
          %v9007 = vunpack.c.l.b16 %v9000
          %v9008 = vpack.c.b16 %v9006, %v9005
          %v9009 = vpack.c.b16 %v9007, %v9007
          %v9012 = vsel %vm8961, %v8997, 0
          %vm9014 = vcmask 1041408
          %v9016 = vsel %vm9014, %v9009, 0
          %9018 = vmatpush.bf16.msra.mxu0 0
          %9019 = vmatpush.bf16.msra.mxu0 0
          %9020 = vmatpush.bf16.msra.mxu0 0
          %9021 = vmatpush.bf16.msra.mxu0 0
          %9022 = vmatpush.bf16.msra.mxu0 0
          %9023 = vmatpush.bf16.msra.mxu0 0
          %9024 = vmatpush.bf16.msra.mxu0 %v9016
          %9025 = vmatpush.bf16.msra.mxu0 %v9008
          %9026 = vmatmul.bf16.gmra.mxu0 %v9012
          %v9027 = vpop.f32.mrf.mxu0
          %v9028 = vadd.f32 %v9001, %v9027
          %v9029 = vpop.f32.mrf.mxu0
          %9030 = vdwg.mxu0
          %vm9031 = vcmask 64512
          %9032 = vst.msk [vmem:[#allocation9] sm:$0xff] %vm9031, %v9028
        $region68: #{model_pvpmulti_forward.1} parent=47 // pred_fallthru
          _
        // Predicated region
        $region69: #{model_pvpmulti_forward.1} parent=47 // pred_check
          %p9033 = pneg %p195
        $region70: #{model_pvpmulti_forward.1} parent=47 // pred_check_branch
          %9035 = sbr.rel (%p9033) target = $region72
        $region71: #{model_pvpmulti_forward.1} parent=47 // pred_region
          %9037 = vsyncadd [#allocation5], 0
          %s9039 = sshll.u32 [#allocation9], 4
          %s9040 = int_to_ptr.vmem [resolvable:$true] %s9039
          %s9041 = sshll.u32 %s7, 4
          %s9042 = int_to_ptr.hbm [resolvable:$true] %s9041
          %9044 = dma.vmem_to_hbm [thread:$0]  %s9040, 128, %s9042, [#allocation5]
        $region72: #{model_pvpmulti_forward.1} parent=47 // pred_fallthru
          _
        // Predicated region
        $region73: #{model_pvpmulti_forward.1} parent=47 // pred_check
          %p9045 = pneg %p195
        $region74: #{model_pvpmulti_forward.1} parent=47 // pred_check_branch
          %9047 = sbr.rel (%p9045) target = $region76
        $region75: #{model_pvpmulti_forward.1} parent=47 // pred_region
          %9049 = dma.done [#allocation5], 128
        $region76: #{model_pvpmulti_forward.1} parent=47 // pred_fallthru
          _
      $region48: #{model_pvpmulti_forward.1} parent=5 // pred_fallthru
        _
      %p9050 = scmp.le.s32.totalorder 2, %s20
      // Predicated region
      $region77: #{model_pvpmulti_forward.1} parent=5 // pred_check
        %p9051 = pneg %p9050
      $region78: #{model_pvpmulti_forward.1} parent=5 // pred_check_branch
        %9053 = sbr.rel (%p9051) target = $region80
      $region79: #{model_pvpmulti_forward.1} parent=5 // pred_region
        %s9054 = ssub.s32 %s20, 2
      $region80: #{model_pvpmulti_forward.1} parent=5 // pred_fallthru
        _
    $region6: #{model_pvpmulti_forward.1} parent=1 // loop_footer
      %s24 = sadd.s32 1, %s20
    $region7: #{model_pvpmulti_forward.1} parent=1 // loop_footer_branch
      %19 = sbr.rel target = $region3
    $region8: #{model_pvpmulti_forward.1} parent=1 // loop_exit
      _
    %9055 = vsyncpa [#allocation4], 1
    %s9056 = scalar_lea.sflag [#allocation4], 1
    %9057 = vsyncpa %s9056, 1
    %9058 = vsyncpa [#allocation7], 1
    %s9059 = scalar_lea.sflag [#allocation7], 1
    %9060 = vsyncpa %s9059, 1
    %9061 = vsyncpa [#allocation5], 1
    %s9062 = scalar_lea.sflag [#allocation5], 1
    %9063 = vsyncpa %s9062, 1

</llo_original>
